<compile_context>
chip_gen: v6e
topology: v6e:2x2x1
jax: 0.10.0
libtpu: 0.0.40
codegen_flags: <defaults>
</compile_context>

<pallas_src>
import math
from functools import partial

import jax
import jax.numpy as jnp
from jax import lax
from jax.experimental import pallas as pl
from jax.experimental.pallas import tpu as pltpu

EPS = 1e-5                      # torch BatchNorm1d default eps
ACT_DTYPE = jnp.bfloat16        # HBM dtype of inter-stage activations


def _tpu_budget():
    """(vmem_limit_bytes, max_row_tile, min_grid_steps) tuned per generation."""
    try:
        cap = getattr(pltpu.get_tpu_info(), "vmem_capacity_bytes", 0)
    except Exception:
        cap = 0
    if cap >= 100 * 1024 * 1024:          # v5e / v6e: 128 MiB VMEM, single TC
        return 64 * 1024 * 1024, 2048, 2
    if cap >= 48 * 1024 * 1024:           # v7x-class: 64 MiB VMEM, 2 TCs -> keep >=4 steps
        return 40 * 1024 * 1024, 1024, 4
    return 32 * 1024 * 1024, 1024, 4      # unknown hardware: conservative defaults


_VMEM_LIMIT, _MAX_ROW_TILE, _MIN_GRID_STEPS = _tpu_budget()

_VMEM = pl.BlockSpec(memory_space=pltpu.MemorySpace.VMEM)
_CP_GRID2 = pltpu.CompilerParams(
    dimension_semantics=("parallel", "parallel"), vmem_limit_bytes=_VMEM_LIMIT)
_CP_NOGRID = pltpu.CompilerParams(vmem_limit_bytes=_VMEM_LIMIT)


def _row_tile(rep, bsz):
    """Largest multiple-of-16 divisor of `rep` (or rep itself) <= _MAX_ROW_TILE that
    still leaves >= _MIN_GRID_STEPS grid steps for megacore sharding."""
    cands = [t for t in range(16, min(rep, _MAX_ROW_TILE) + 1, 16) if rep % t == 0]
    if rep <= _MAX_ROW_TILE:
        cands.append(rep)
    if not cands:
        # TODO(synk): pad rep to a tileable size and mask pad rows out of the BN
        # statistics instead of refusing awkward (e.g. huge prime) row counts.
        raise NotImplementedError(
            f"rows-per-batch-item {rep} has no row tile <= {_MAX_ROW_TILE}")
    good = [t for t in cands if bsz * (rep // t) >= _MIN_GRID_STEPS]
    return max(good) if good else max(cands)


# ---------------------------------------------------------------------------
# Weight preprocessing (done once, outside the forward): Conv3d -> dense matrix
# ---------------------------------------------------------------------------
def _conv3d_as_matrix(w, b, spatial):
    """Lower Conv3d(k=7, stride=1, pad=3) over a fixed small spatial volume to a
    dense matrix:  out_flat = x_flat @ M + bias   (x_flat in (c,z,y,x) order,
    out_flat in (o,z,y,x) order).  Exact for any spatial size.
    # TODO(synk): for patch volumes >= 8^3 move this matrix to pl.ANY with a
    # one-time manual VMEM copy (it is double-buffered today despite a constant
    # index_map), or tile its K dimension.
    """
    o, c, k = w.shape[0], w.shape[1], w.shape[2]
    pad = k // 2
    d, h, ww = spatial
    s = d * h * ww

    def offsets(n):
        delta = jnp.arange(n)[None, :] - jnp.arange(n)[:, None] + pad   # (out, in)
        valid = (delta >= 0) & (delta < k)
        return jnp.clip(delta, 0, k - 1), valid

    dz, vz = offsets(d)
    dy, vy = offsets(h)
    dx, vx = offsets(ww)

    m = w[:, :, dz]                        # (O, C, Do, Di, 7, 7)
    m = m[:, :, :, :, dy]                  # (O, C, Do, Di, Ho, Hi, 7)
    m = m[:, :, :, :, :, :, dx]            # (O, C, Do, Di, Ho, Hi, Wo, Wi)
    mask = (vz[:, :, None, None, None, None]
            & vy[None, None, :, :, None, None]
            & vx[None, None, None, None, :, :])
    m = jnp.where(mask[None, None], m, 0.0)
    m = m.transpose(1, 3, 5, 7, 0, 2, 4, 6).reshape(c * s, o * s)   # (C*S, O*S)
    bias = jnp.repeat(b, s)[None, :]                                 # (1, O*S)
    return m, bias


# ---------------------------------------------------------------------------
# Kernel 1: all blocks' raw CBN gamma/beta + block-1 latent bias (one tiny call)
# ---------------------------------------------------------------------------
def _latents_kernel(lat_all_ref, wgb_ref, bgb_ref, lat0_ref, wlat_ref,
                    gb_ref, latb_ref, *, nblocks):
    for i in range(nblocks):
        gb_ref[i] = (jnp.dot(lat_all_ref[i], wgb_ref[i],
                             preferred_element_type=jnp.float32) + bgb_ref[i])
    latb_ref[...] = jnp.dot(lat0_ref[...], wlat_ref[...],
                            preferred_element_type=jnp.float32)


def _latents(packed, lat_all, lat0):
    nblocks = lat_all.shape[0]
    bsz = lat0.shape[0]
    fmax4 = packed["wgb_all"].shape[-1]
    two_f0 = packed["w_lat1"].shape[-1]
    return pl.pallas_call(
        partial(_latents_kernel, nblocks=nblocks),
        out_shape=(jax.ShapeDtypeStruct((nblocks, bsz, fmax4), jnp.float32),
                   jax.ShapeDtypeStruct((bsz, two_f0), jnp.float32)),
        in_specs=[_VMEM] * 5,
        out_specs=(_VMEM, _VMEM),
        compiler_params=_CP_NOGRID,
    )(lat_all, packed["wgb_all"], packed["bgb_all"], lat0, packed["w_lat1"])


# ---------------------------------------------------------------------------
# Kernel 2: PatchMapping convs + input assembly fused with block-1 stage A
#           output [h1 | res] (2F lanes, bf16) + per-tile sum/sum^2 partials
# ---------------------------------------------------------------------------
def _encode_a1_kernel(fr_ref, c_ref, p_ref, cw1_ref, cb1_ref, cw2_ref, cb2_ref,
                      wa_ref, ba_ref, latb_ref, hres_ref, stats_ref, *, fout, pad):
    four = fr_ref[0]                                    # (tile, 2*fourier)
    coords = c_ref[0]                                   # (tile, 3)
    patch = p_ref[0]                                    # (tile, Cin*S)

    h = jnp.dot(patch.astype(jnp.bfloat16), cw1_ref[...],
                preferred_element_type=jnp.float32) + cb1_ref[...]
    h = jnp.maximum(h, 0.0)
    pfeat = jnp.dot(h.astype(jnp.bfloat16), cw2_ref[...],
                    preferred_element_type=jnp.float32) + cb2_ref[...]
    pfeat = jnp.maximum(pfeat, 0.0)                     # (tile, S)

    parts = [four, coords, pfeat]
    if pad:                                             # pad K to a multiple of 128
        parts.append(jnp.zeros((four.shape[0], pad), jnp.float32))
    x0 = jnp.concatenate(parts, axis=-1)                # (tile, K)   (no latent cols)

    hres = (jnp.dot(x0.astype(jnp.bfloat16), wa_ref[...],
                    preferred_element_type=jnp.float32)
            + ba_ref[...] + latb_ref[0])                # latent folded into a bias
    hres_ref[0] = hres.astype(hres_ref.dtype)

    h1 = hres[:, :fout]
    cs = jnp.concatenate([jnp.sum(h1, axis=0, keepdims=True),
                          jnp.sum(h1 * h1, axis=0, keepdims=True)], axis=-1)
    stats_ref[0, 0] = jnp.broadcast_to(cs, (8, 2 * fout))


def _encode_a1(packed, fourier_b, coords_b, patches_b, lat_bias, tile):
    bsz, rep, fdim2 = fourier_b.shape
    t_tiles = rep // tile
    cs_in = patches_b.shape[-1]
    hs = packed["pm_w1"].shape[1]
    s_sp = packed["pm_w2"].shape[1]
    blk0 = packed["blocks"][0]
    kin, two_f = blk0["wa"].shape
    fout = two_f // 2
    pad = kin - (fdim2 + 3 + s_sp)
    assert pad >= 0, (kin, fdim2, s_sp)
    kernel = partial(_encode_a1_kernel, fout=fout, pad=pad)
    return pl.pallas_call(
        kernel,
        out_shape=(jax.ShapeDtypeStruct((bsz, rep, two_f), ACT_DTYPE),
                   jax.ShapeDtypeStruct((bsz, t_tiles, 8, two_f), jnp.float32)),
        grid=(bsz, t_tiles),
        in_specs=[
            pl.BlockSpec((1, tile, fdim2), lambda b, t: (b, t, 0)),
            pl.BlockSpec((1, tile, 3), lambda b, t: (b, t, 0)),
            pl.BlockSpec((1, tile, cs_in), lambda b, t: (b, t, 0)),
            pl.BlockSpec((cs_in, hs), lambda b, t: (0, 0)),
            pl.BlockSpec((1, hs), lambda b, t: (0, 0)),
            pl.BlockSpec((hs, s_sp), lambda b, t: (0, 0)),
            pl.BlockSpec((1, s_sp), lambda b, t: (0, 0)),
            pl.BlockSpec((kin, two_f), lambda b, t: (0, 0)),
            pl.BlockSpec((1, two_f), lambda b, t: (0, 0)),
            pl.BlockSpec((1, 1, two_f), lambda b, t: (b, 0, 0)),
        ],
        out_specs=(pl.BlockSpec((1, tile, two_f), lambda b, t: (b, t, 0)),
                   pl.BlockSpec((1, 1, 8, two_f), lambda b, t: (b, t, 0, 0))),
        compiler_params=_CP_GRID2,
    )(fourier_b, coords_b, patches_b,
      packed["pm_w1"], packed["pm_b1"], packed["pm_w2"], packed["pm_b2"],
      blk0["wa"], blk0["ba"], lat_bias)


# ---------------------------------------------------------------------------
# Kernel 3 (stage B): CBN1 (folded scale/shift) + ReLU + linear2
#                     output [h2 | res] (2F lanes, bf16) + per-tile partials of h2
# ---------------------------------------------------------------------------
def _stage_b_kernel(hres_ref, g1_ref, b1_ref, w2_ref, b2_ref,
                    out_ref, stats_ref, *, fout):
    hr = hres_ref[0].astype(jnp.float32)                # (tile, 2F)
    h1 = hr[:, :fout]
    res = hr[:, fout:]
    a1 = jnp.maximum(g1_ref[0] * h1 + b1_ref[0], 0.0)
    h2 = jnp.dot(a1.astype(jnp.bfloat16), w2_ref[...],
                 preferred_element_type=jnp.float32) + b2_ref[...]
    out_ref[0] = jnp.concatenate([h2, res], axis=-1).astype(out_ref.dtype)
    cs = jnp.concatenate([jnp.sum(h2, axis=0, keepdims=True),
                          jnp.sum(h2 * h2, axis=0, keepdims=True)], axis=-1)
    stats_ref[0, 0] = jnp.broadcast_to(cs, (8, 2 * fout))


def _stage_b(hres, g1, b1, blk, tile):
    bsz, rep, two_f = hres.shape
    fout = two_f // 2
    t_tiles = rep // tile
    kernel = partial(_stage_b_kernel, fout=fout)
    return pl.pallas_call(
        kernel,
        out_shape=(jax.ShapeDtypeStruct((bsz, rep, two_f), ACT_DTYPE),
                   jax.ShapeDtypeStruct((bsz, t_tiles, 8, two_f), jnp.float32)),
        grid=(bsz, t_tiles),
        in_specs=[
            pl.BlockSpec((1, tile, two_f), lambda b, t: (b, t, 0)),
            pl.BlockSpec((1, 1, fout), lambda b, t: (b, 0, 0)),
            pl.BlockSpec((1, 1, fout), lambda b, t: (b, 0, 0)),
            pl.BlockSpec(blk["w2"].shape, lambda b, t: (0, 0)),
            pl.BlockSpec(blk["b2"].shape, lambda b, t: (0, 0)),
        ],
        out_specs=(pl.BlockSpec((1, tile, two_f), lambda b, t: (b, t, 0)),
                   pl.BlockSpec((1, 1, 8, two_f), lambda b, t: (b, t, 0, 0))),
        compiler_params=_CP_GRID2,
    )(hres, g1, b1, blk["w2"], blk["b2"])


# ---------------------------------------------------------------------------
# Kernel 4: stage C of block i (CBN2 + residual + ReLU) FUSED with stage A of
#           block i+1 (linear1 + residual mapping) -- block-i's output never
#           round-trips through HBM on its own.
# ---------------------------------------------------------------------------
def _stage_ca_kernel(h2res_ref, g2_ref, b2e_ref, wa_ref, ba_ref,
                     out_ref, stats_ref, *, fprev, fout, identity_residual):
    hr = h2res_ref[0].astype(jnp.float32)               # (tile, 2*fprev)
    h2 = hr[:, :fprev]
    res = hr[:, fprev:]
    x = jnp.maximum(g2_ref[0] * h2 + b2e_ref[0] + res, 0.0)   # block-i output
    h = jnp.dot(x.astype(jnp.bfloat16), wa_ref[...],
                preferred_element_type=jnp.float32) + ba_ref[...]
    if identity_residual:
        h1 = h
        hres = jnp.concatenate([h, x], axis=-1)
    else:
        h1 = h[:, :fout]
        hres = h                                        # packed [w1 | rw] result
    out_ref[0] = hres.astype(out_ref.dtype)
    cs = jnp.concatenate([jnp.sum(h1, axis=0, keepdims=True),
                          jnp.sum(h1 * h1, axis=0, keepdims=True)], axis=-1)
    stats_ref[0, 0] = jnp.broadcast_to(cs, (8, 2 * fout))


def _stage_ca(h2res, g2, b2, blk_next, tile):
    bsz, rep, two_fp = h2res.shape
    fprev = two_fp // 2
    fout = blk_next["w2"].shape[0]
    identity = (blk_next["wa"].shape[1] == fout)
    two_f = 2 * fout
    t_tiles = rep // tile
    kernel = partial(_stage_ca_kernel, fprev=fprev, fout=fout,
                     identity_residual=identity)
    return pl.pallas_call(
        kernel,
        out_shape=(jax.ShapeDtypeStruct((bsz, rep, two_f), ACT_DTYPE),
                   jax.ShapeDtypeStruct((bsz, t_tiles, 8, two_f), jnp.float32)),
        grid=(bsz, t_tiles),
        in_specs=[
            pl.BlockSpec((1, tile, two_fp), lambda b, t: (b, t, 0)),
            pl.BlockSpec((1, 1, fprev), lambda b, t: (b, 0, 0)),
            pl.BlockSpec((1, 1, fprev), lambda b, t: (b, 0, 0)),
            pl.BlockSpec(blk_next["wa"].shape, lambda b, t: (0, 0)),
            pl.BlockSpec(blk_next["ba"].shape, lambda b, t: (0, 0)),
        ],
        out_specs=(pl.BlockSpec((1, tile, two_f), lambda b, t: (b, t, 0)),
                   pl.BlockSpec((1, 1, 8, two_f), lambda b, t: (b, t, 0, 0))),
        compiler_params=_CP_GRID2,
    )(h2res, g2, b2, blk_next["wa"], blk_next["ba"])


# ---------------------------------------------------------------------------
# Kernel 5: last block's stage C fused with the final Linear(bias=False)+Sigmoid
# ---------------------------------------------------------------------------
def _final_kernel(h2res_ref, g2_ref, b2e_ref, wf_ref, out_ref, *, fprev):
    hr = h2res_ref[0].astype(jnp.float32)
    h2 = hr[:, :fprev]
    res = hr[:, fprev:]
    act = jnp.maximum(g2_ref[0] * h2 + b2e_ref[0] + res, 0.0)
    # Final Linear(out=1) as VPU multiply + lane reduce, then stable sigmoid.
    z = jnp.sum(act * wf_ref[...], axis=-1, keepdims=True)
    e = jnp.exp(-jnp.abs(z))
    out_ref[0] = jnp.where(z >= 0.0, 1.0 / (1.0 + e), e / (1.0 + e))


def _final(h2res, g2, b2, final_wt, tile):
    bsz, rep, two_fp = h2res.shape
    fprev = two_fp // 2
    t_tiles = rep // tile
    kernel = partial(_final_kernel, fprev=fprev)
    return pl.pallas_call(
        kernel,
        out_shape=jax.ShapeDtypeStruct((bsz, rep, 1), jnp.float32),
        grid=(bsz, t_tiles),
        in_specs=[
            pl.BlockSpec((1, tile, two_fp), lambda b, t: (b, t, 0)),
            pl.BlockSpec((1, 1, fprev), lambda b, t: (b, 0, 0)),
            pl.BlockSpec((1, 1, fprev), lambda b, t: (b, 0, 0)),
            pl.BlockSpec((1, fprev), lambda b, t: (0, 0)),
        ],
        out_specs=pl.BlockSpec((1, tile, 1), lambda b, t: (b, t, 0)),
        compiler_params=_CP_GRID2,
    )(h2res, g2, b2, final_wt)


# ---------------------------------------------------------------------------
# Glue: fold global batch statistics into per-batch gamma/beta (tiny scalar math)
# ---------------------------------------------------------------------------
def _bn_fold(stats, gamma, beta, count):
    """y = g_eff * x + b_eff with torch training-mode BN (biased var, eps=1e-5).
    # TODO(synk): use a Welford/centered combine of the per-tile partials for very
    # large N to avoid E[x^2]-E[x]^2 cancellation."""
    fout = gamma.shape[-1]
    s = stats[:, :, 0, :]                               # (B, T, 2F) per-tile partials
    sum1 = jnp.sum(s[..., :fout])
    sum2 = jnp.sum(s[..., fout:])
    mean = sum1 / count
    var = jnp.maximum(sum2 / count - mean * mean, 0.0)
    inv = lax.rsqrt(var + EPS)
    g_eff = gamma * inv
    b_eff = beta - mean * g_eff
    return g_eff[:, None, :], b_eff[:, None, :]         # (B,1,F) each


# ---------------------------------------------------------------------------
# Full decoder forward
# ---------------------------------------------------------------------------
def residual_cbn_decoder_forward(packed, coordinates, patches, latent_vectors):
    # coordinates: (Nc, 1, 3); patches: (Nc, Cin, D, H, W); latent_vectors: (B, S, L)
    nc = coordinates.shape[0]
    bsz, s_lat, lat_dim = latent_vectors.shape
    rep = nc // bsz
    tile = _row_tile(rep, bsz)
    nblocks = len(packed["blocks"])
    f_max = packed["wgb_all"].shape[-1] // 4

    coords = coordinates[:, 0, :]                       # (Nc, 3)
    # Fourier features (tiny XLA glue on a (Nc, 32) array).
    # TODO(synk): move sin/cos into the fused encode kernel once Mosaic trig
    # lowering is guaranteed on all target generations.
    proj = (2.0 * math.pi) * (coords @ packed["bmat"])
    fourier = jnp.concatenate([jnp.cos(proj), jnp.sin(proj)], axis=-1)

    coords_b = coords.reshape(bsz, rep, 3)
    fourier_b = fourier.reshape(bsz, rep, -1)
    patches_b = patches.reshape(bsz, rep, -1)           # (B, rep, Cin*S), NCDHW flatten

    lat0 = latent_vectors[:, 0, :]                      # (B, L)
    if s_lat == 1:
        lat_all = jnp.broadcast_to(lat0[None], (nblocks, bsz, lat_dim))
    else:
        lat_all = jnp.transpose(latent_vectors[:, 1:nblocks + 1, :], (1, 0, 2))

    # One tiny kernel: all blocks' raw gamma/beta + block-1 latent bias.
    gb_all, latb = _latents(packed, lat_all, lat0)
    lat_bias = latb[:, None, :]                         # (B, 1, 2*F0)

    # PatchMapping + input assembly fused with block-1 stage A.
    hres, st_a = _encode_a1(packed, fourier_b, coords_b, patches_b, lat_bias, tile)

    out = None
    for i, blk in enumerate(packed["blocks"]):
        fout = blk["w2"].shape[0]
        count = bsz * rep * fout                        # BN over the whole (N,1,F) tensor
        gb_i = gb_all[i]                                # (B, 4*f_max)
        g1, b1 = _bn_fold(st_a, gb_i[:, 0:fout], gb_i[:, f_max:f_max + fout], count)
        h2res, st_b = _stage_b(hres, g1, b1, blk, tile)
        g2, b2 = _bn_fold(st_b, gb_i[:, 2 * f_max:2 * f_max + fout],
                          gb_i[:, 3 * f_max:3 * f_max + fout], count)
        if i == nblocks - 1:
            out = _final(h2res, g2, b2, packed["final_wt"], tile)
        else:
            hres, st_a = _stage_ca(h2res, g2, b2, packed["blocks"][i + 1], tile)

    return out.reshape(nc, 1)                           # matches torch .squeeze(dim=1)


# ---------------------------------------------------------------------------
# Parameter init (torch-like shapes) and one-time packing into kernel layout
# ---------------------------------------------------------------------------
def init_params(key, latent_features, features, patch_in_channels, fourier_dim):
    keys = iter(jax.random.split(key, 64))

    def nrm(shape, scale):
        return scale * jax.random.normal(next(keys), shape, jnp.float32)

    hidden_c = max(patch_in_channels // 2, 1)
    params = {
        "b": nrm((1, 3, fourier_dim), 4.0),
        "pm_w1": nrm((hidden_c, patch_in_channels, 7, 7, 7),
                     1.0 / math.sqrt(patch_in_channels * 343)),
        "pm_b1": nrm((hidden_c,), 0.02),
        "pm_w2": nrm((1, hidden_c, 7, 7, 7), 1.0 / math.sqrt(hidden_c * 343)),
        "pm_b2": nrm((1,), 0.02),
        "final_w": nrm((features[-1][1], 1), 0.1),
        "blocks": [],
    }
    for fin, fout in features:
        blk = {
            "w1": nrm((fin, fout), 1.0 / math.sqrt(fin)),
            "b1": nrm((1, fout), 0.02),
            "w2": nrm((fout, fout), 1.0 / math.sqrt(fout)),
            "b2": nrm((1, fout), 0.02),
            # CBN linears: torch reset would be weight=0, gamma bias=1, beta bias=0;
            # small random weights are used so the latent path is exercised.
            "gw1": nrm((latent_features, fout), 0.02),
            "gb1": jnp.ones((1, fout), jnp.float32),
            "bw1": nrm((latent_features, fout), 0.02),
            "bb1": jnp.zeros((1, fout), jnp.float32),
            "gw2": nrm((latent_features, fout), 0.02),
            "gb2": jnp.ones((1, fout), jnp.float32),
            "bw2": nrm((latent_features, fout), 0.02),
            "bb2": jnp.zeros((1, fout), jnp.float32),
            "rw": (nrm((fin, fout), 1.0 / math.sqrt(fin)) if fin != fout else None),
            "rb": (jnp.zeros((1, fout), jnp.float32) if fin != fout else None),
        }
        params["blocks"].append(blk)
    return params


def pack_params(raw, spatial):
    """One-time transform of torch-style weights into the kernel-friendly layout."""
    m1, bias1 = _conv3d_as_matrix(raw["pm_w1"], raw["pm_b1"], spatial)
    m2, bias2 = _conv3d_as_matrix(raw["pm_w2"], raw["pm_b2"], spatial)
    lat_dim = raw["blocks"][0]["gw1"].shape[0]
    fouts = [blk["w2"].shape[0] for blk in raw["blocks"]]
    f_max = max(fouts)

    packed = {
        "bmat": raw["b"][0],                            # (3, fourier)
        "pm_w1": m1.astype(jnp.bfloat16), "pm_b1": bias1,
        "pm_w2": m2.astype(jnp.bfloat16), "pm_b2": bias2,
        "final_wt": raw["final_w"].T,                   # (1, F_last), f32
        "blocks": [],
    }

    def _padf(w):
        return w if w.shape[1] == f_max else jnp.pad(w, ((0, 0), (0, f_max - w.shape[1])))

    wgb_all, bgb_all = [], []
    for i, blk in enumerate(raw["blocks"]):
        fin, fout = blk["w1"].shape
        if fin != fout:                                 # projection residual: pack [w1|rw]
            wa = jnp.concatenate([blk["w1"], blk["rw"]], axis=1)
            ba = jnp.concatenate([blk["b1"], blk["rb"]], axis=1)
        else:                                           # identity residual: w1 only
            wa, ba = blk["w1"], blk["b1"]

        if i == 0:
            # Block 1 always uses the packed [w1 | res] layout so the latent input
            # columns can be folded into a per-batch bias and dropped from x0;
            # an identity residual is packed as [w1 | I].
            if fin == fout:
                wa = jnp.concatenate([blk["w1"], jnp.eye(fin, dtype=jnp.float32)], axis=1)
                ba = jnp.concatenate([blk["b1"], jnp.zeros((1, fout), jnp.float32)], axis=1)
            kin_x = fin - lat_dim                       # non-latent input rows
            packed["w_lat1"] = wa[kin_x:]               # (L, 2F) latent rows -> bias matmul
            pad = (-kin_x) % 128                        # pad K to a multiple of 128
            if pad:
                wa = jnp.concatenate(
                    [wa[:kin_x], jnp.zeros((pad, wa.shape[1]), wa.dtype)], axis=0)
            else:
                wa = wa[:kin_x]

        wgb_all.append(jnp.concatenate(
            [_padf(blk["gw1"]), _padf(blk["bw1"]),
             _padf(blk["gw2"]), _padf(blk["bw2"])], axis=1))            # (L, 4*f_max)
        bgb_all.append(jnp.concatenate(
            [_padf(blk["gb1"]), _padf(blk["bb1"]),
             _padf(blk["gb2"]), _padf(blk["bb2"])], axis=1))            # (1, 4*f_max)

        packed["blocks"].append({
            "wa": wa.astype(jnp.bfloat16),
            "ba": ba,
            "w2": blk["w2"].astype(jnp.bfloat16),
            "b2": blk["b2"],
        })

    packed["wgb_all"] = jnp.stack(wgb_all)              # (nblocks, L, 4*f_max)
    packed["bgb_all"] = jnp.stack(bgb_all)              # (nblocks, 1, 4*f_max)
    return packed


if __name__ == "__main__":
    key = jax.random.PRNGKey(0)

    # Small shapes consistent with the module's forward.
    B, REP, L = 2, 1024, 32              # batch, coords per batch item, latent feats
    NC = B * REP                         # coordinates.shape[0]
    PATCH_C, D = 8, 4                    # large_patches=True -> 4*2=8 input channels
    FOURIER = 16                         # fourier buffer is (1, 3, 16)
    S_SP = D * D * D                     # PatchMapping output (out_channels=1) flattened
    in0 = 2 * FOURIER + 3 + S_SP + L     # 35 + 64 + 32 = 131
    features = ((in0, 64), (64, 64), (64, 64))

    k_params, k_c, k_p, k_l = jax.random.split(key, 4)
    raw_params = init_params(k_params, L, features, PATCH_C, FOURIER)
    packed_params = pack_params(raw_params, (D, D, D))

    coordinates = jax.random.uniform(k_c, (NC, 1, 3), jnp.float32, -1.0, 1.0)
    patches = jax.random.normal(k_p, (NC, PATCH_C, D, D, D), jnp.float32)
    # S = num_blocks + 1 so the per-block latent slicing branch is exercised.
    latent_vectors = jax.random.normal(k_l, (B, len(features) + 1, L), jnp.float32)

    fwd = jax.jit(residual_cbn_decoder_forward)
    out = jax.block_until_ready(fwd(packed_params, coordinates, patches, latent_vectors))

    assert out.shape == (NC, 1), out.shape
    assert bool(jnp.all(jnp.isfinite(out)))
    assert bool(jnp.all((out >= 0.0) & (out <= 1.0)))
    print("KERNEL_OK")
</pallas_src>

<mosaic_0001>
module attributes {stable_mosaic.version = 11 : i64} {
  func.func @_latents_kernel(%arg0: memref<3x2x32xf32, #tpu.memory_space<vmem>>, %arg1: memref<3x32x256xf32, #tpu.memory_space<vmem>>, %arg2: memref<3x1x256xf32, #tpu.memory_space<vmem>>, %arg3: memref<2x32xf32, #tpu.memory_space<vmem>>, %arg4: memref<32x128xf32, #tpu.memory_space<vmem>>, %arg5: memref<3x2x256xf32, #tpu.memory_space<vmem>>, %arg6: memref<2x128xf32, #tpu.memory_space<vmem>>) attributes {dimension_semantics = [], scalar_prefetch = 0 : i64, scratch_operands = 0 : i64, tpu.core_type = #tpu.core_type<tc>} {
    %c0 = arith.constant 0 : index
    %c0_0 = arith.constant 0 : index
    %c0_1 = arith.constant 0 : index
    %0 = vector.load %arg0[%c0, %c0_0, %c0_1] : memref<3x2x32xf32, #tpu.memory_space<vmem>>, vector<1x2x32xf32>
    %1 = vector.shape_cast %0 : vector<1x2x32xf32> to vector<2x32xf32>
    %c0_2 = arith.constant 0 : index
    %c0_3 = arith.constant 0 : index
    %c0_4 = arith.constant 0 : index
    %2 = vector.load %arg1[%c0_2, %c0_3, %c0_4] : memref<3x32x256xf32, #tpu.memory_space<vmem>>, vector<1x32x256xf32>
    %3 = vector.shape_cast %2 : vector<1x32x256xf32> to vector<32x256xf32>
    %cst = arith.constant dense<0.000000e+00> : vector<2x256xf32>
    %4 = tpu.matmul %1, %3, %cst {dimension_numbers = #tpu.dot_dimension_numbers<[1], [0], [0], [1], [0, 0, 1, 1], [], []>} : vector<2x32xf32>, vector<32x256xf32>, vector<2x256xf32> -> vector<2x256xf32>
    %c0_5 = arith.constant 0 : index
    %c0_6 = arith.constant 0 : index
    %c0_7 = arith.constant 0 : index
    %5 = vector.load %arg2[%c0_5, %c0_6, %c0_7] : memref<3x1x256xf32, #tpu.memory_space<vmem>>, vector<1x1x256xf32>
    %6 = vector.shape_cast %5 : vector<1x1x256xf32> to vector<1x256xf32>
    %7 = vector.broadcast %6 : vector<1x256xf32> to vector<2x256xf32>
    %8 = arith.addf %4, %7 : vector<2x256xf32>
    %c0_8 = arith.constant 0 : index
    %c0_9 = arith.constant 0 : index
    %c0_10 = arith.constant 0 : index
    %9 = vector.load %arg5[%c0_8, %c0_9, %c0_10] : memref<3x2x256xf32, #tpu.memory_space<vmem>>, vector<1x2x256xf32>
    %10 = vector.shape_cast %9 : vector<1x2x256xf32> to vector<2x256xf32>
    %11 = vector.shape_cast %8 : vector<2x256xf32> to vector<1x2x256xf32>
    tpu.vector_store %arg5[%c0_8, %c0_9, %c0_10], %11 {strides = array<i32>} : memref<3x2x256xf32, #tpu.memory_space<vmem>>, vector<1x2x256xf32>,
    %c1 = arith.constant 1 : index
    %c0_11 = arith.constant 0 : index
    %c0_12 = arith.constant 0 : index
    %12 = vector.load %arg0[%c1, %c0_11, %c0_12] : memref<3x2x32xf32, #tpu.memory_space<vmem>>, vector<1x2x32xf32>
    %13 = vector.shape_cast %12 : vector<1x2x32xf32> to vector<2x32xf32>
    %c1_13 = arith.constant 1 : index
    %c0_14 = arith.constant 0 : index
    %c0_15 = arith.constant 0 : index
    %14 = vector.load %arg1[%c1_13, %c0_14, %c0_15] : memref<3x32x256xf32, #tpu.memory_space<vmem>>, vector<1x32x256xf32>
    %15 = vector.shape_cast %14 : vector<1x32x256xf32> to vector<32x256xf32>
    %cst_16 = arith.constant dense<0.000000e+00> : vector<2x256xf32>
    %16 = tpu.matmul %13, %15, %cst_16 {dimension_numbers = #tpu.dot_dimension_numbers<[1], [0], [0], [1], [0, 0, 1, 1], [], []>} : vector<2x32xf32>, vector<32x256xf32>, vector<2x256xf32> -> vector<2x256xf32>
    %c1_17 = arith.constant 1 : index
    %c0_18 = arith.constant 0 : index
    %c0_19 = arith.constant 0 : index
    %17 = vector.load %arg2[%c1_17, %c0_18, %c0_19] : memref<3x1x256xf32, #tpu.memory_space<vmem>>, vector<1x1x256xf32>
    %18 = vector.shape_cast %17 : vector<1x1x256xf32> to vector<1x256xf32>
    %19 = vector.broadcast %18 : vector<1x256xf32> to vector<2x256xf32>
    %20 = arith.addf %16, %19 : vector<2x256xf32>
    %c1_20 = arith.constant 1 : index
    %c0_21 = arith.constant 0 : index
    %c0_22 = arith.constant 0 : index
    %21 = vector.load %arg5[%c1_20, %c0_21, %c0_22] : memref<3x2x256xf32, #tpu.memory_space<vmem>>, vector<1x2x256xf32>
    %22 = vector.shape_cast %21 : vector<1x2x256xf32> to vector<2x256xf32>
    %23 = vector.shape_cast %20 : vector<2x256xf32> to vector<1x2x256xf32>
    tpu.vector_store %arg5[%c1_20, %c0_21, %c0_22], %23 {strides = array<i32>} : memref<3x2x256xf32, #tpu.memory_space<vmem>>, vector<1x2x256xf32>,
    %c2 = arith.constant 2 : index
    %c0_23 = arith.constant 0 : index
    %c0_24 = arith.constant 0 : index
    %24 = vector.load %arg0[%c2, %c0_23, %c0_24] : memref<3x2x32xf32, #tpu.memory_space<vmem>>, vector<1x2x32xf32>
    %25 = vector.shape_cast %24 : vector<1x2x32xf32> to vector<2x32xf32>
    %c2_25 = arith.constant 2 : index
    %c0_26 = arith.constant 0 : index
    %c0_27 = arith.constant 0 : index
    %26 = vector.load %arg1[%c2_25, %c0_26, %c0_27] : memref<3x32x256xf32, #tpu.memory_space<vmem>>, vector<1x32x256xf32>
    %27 = vector.shape_cast %26 : vector<1x32x256xf32> to vector<32x256xf32>
    %cst_28 = arith.constant dense<0.000000e+00> : vector<2x256xf32>
    %28 = tpu.matmul %25, %27, %cst_28 {dimension_numbers = #tpu.dot_dimension_numbers<[1], [0], [0], [1], [0, 0, 1, 1], [], []>} : vector<2x32xf32>, vector<32x256xf32>, vector<2x256xf32> -> vector<2x256xf32>
    %c2_29 = arith.constant 2 : index
    %c0_30 = arith.constant 0 : index
    %c0_31 = arith.constant 0 : index
    %29 = vector.load %arg2[%c2_29, %c0_30, %c0_31] : memref<3x1x256xf32, #tpu.memory_space<vmem>>, vector<1x1x256xf32>
    %30 = vector.shape_cast %29 : vector<1x1x256xf32> to vector<1x256xf32>
    %31 = vector.broadcast %30 : vector<1x256xf32> to vector<2x256xf32>
    %32 = arith.addf %28, %31 : vector<2x256xf32>
    %c2_32 = arith.constant 2 : index
    %c0_33 = arith.constant 0 : index
    %c0_34 = arith.constant 0 : index
    %33 = vector.load %arg5[%c2_32, %c0_33, %c0_34] : memref<3x2x256xf32, #tpu.memory_space<vmem>>, vector<1x2x256xf32>
    %34 = vector.shape_cast %33 : vector<1x2x256xf32> to vector<2x256xf32>
    %35 = vector.shape_cast %32 : vector<2x256xf32> to vector<1x2x256xf32>
    tpu.vector_store %arg5[%c2_32, %c0_33, %c0_34], %35 {strides = array<i32>} : memref<3x2x256xf32, #tpu.memory_space<vmem>>, vector<1x2x256xf32>,
    %c0_35 = arith.constant 0 : index
    %c0_36 = arith.constant 0 : index
    %36 = vector.load %arg3[%c0_35, %c0_36] : memref<2x32xf32, #tpu.memory_space<vmem>>, vector<2x32xf32>
    %c0_37 = arith.constant 0 : index
    %c0_38 = arith.constant 0 : index
    %37 = vector.load %arg4[%c0_37, %c0_38] : memref<32x128xf32, #tpu.memory_space<vmem>>, vector<32x128xf32>
    %cst_39 = arith.constant dense<0.000000e+00> : vector<2x128xf32>
    %38 = tpu.matmul %36, %37, %cst_39 {dimension_numbers = #tpu.dot_dimension_numbers<[1], [0], [0], [1], [0, 0, 1, 1], [], []>} : vector<2x32xf32>, vector<32x128xf32>, vector<2x128xf32> -> vector<2x128xf32>
    %c0_40 = arith.constant 0 : index
    %c0_41 = arith.constant 0 : index
    %39 = vector.load %arg6[%c0_40, %c0_41] : memref<2x128xf32, #tpu.memory_space<vmem>>, vector<2x128xf32>
    tpu.vector_store %arg6[%c0_40, %c0_41], %38 {strides = array<i32>} : memref<2x128xf32, #tpu.memory_space<vmem>>, vector<2x128xf32>,
    return
  }
}

module attributes {stable_mosaic.version = 11 : i64} {
  func.func @_encode_a1_kernel(%arg0: i32, %arg1: i32, %arg2: memref<1x512x32xf32, #tpu.memory_space<vmem>>, %arg3: memref<1x512x3xf32, #tpu.memory_space<vmem>>, %arg4: memref<1x512x512xf32, #tpu.memory_space<vmem>>, %arg5: memref<512x256xbf16, #tpu.memory_space<vmem>>, %arg6: memref<1x256xf32, #tpu.memory_space<vmem>>, %arg7: memref<256x64xbf16, #tpu.memory_space<vmem>>, %arg8: memref<1x64xf32, #tpu.memory_space<vmem>>, %arg9: memref<128x128xbf16, #tpu.memory_space<vmem>>, %arg10: memref<1x128xf32, #tpu.memory_space<vmem>>, %arg11: memref<1x1x128xf32, #tpu.memory_space<vmem>>, %arg12: memref<1x512x128xbf16, #tpu.memory_space<vmem>>, %arg13: memref<1x1x8x128xf32, #tpu.memory_space<vmem>>) attributes {dimension_semantics = [#tpu.dimension_semantics<parallel>, #tpu.dimension_semantics<parallel>], iteration_bounds = array<i64: 2, 2>, scalar_prefetch = 0 : i64, scratch_operands = 0 : i64, tpu.core_type = #tpu.core_type<tc>, window_params = [{transform_indices = @transform_0, window_bounds = array<i64: 1, 512, 32>}, {transform_indices = @transform_1, window_bounds = array<i64: 1, 512, 3>}, {transform_indices = @transform_2, window_bounds = array<i64: 1, 512, 512>}, {pipeline_mode = #tpu.pipeline_mode<synchronous>, transform_indices = @transform_3, window_bounds = array<i64: 512, 256>}, {pipeline_mode = #tpu.pipeline_mode<synchronous>, transform_indices = @transform_4, window_bounds = array<i64: 1, 256>}, {pipeline_mode = #tpu.pipeline_mode<synchronous>, transform_indices = @transform_5, window_bounds = array<i64: 256, 64>}, {pipeline_mode = #tpu.pipeline_mode<synchronous>, transform_indices = @transform_6, window_bounds = array<i64: 1, 64>}, {pipeline_mode = #tpu.pipeline_mode<synchronous>, transform_indices = @transform_7, window_bounds = array<i64: 128, 128>}, {pipeline_mode = #tpu.pipeline_mode<synchronous>, transform_indices = @transform_8, window_bounds = array<i64: 1, 128>}, {transform_indices = @transform_9, window_bounds = array<i64: 1, 1, 128>}, {transform_indices = @transform_10, window_bounds = array<i64: 1, 512, 128>}, {transform_indices = @transform_11, window_bounds = array<i64: 1, 1, 8, 128>}]} {
    %c0 = arith.constant 0 : index
    %c0_0 = arith.constant 0 : index
    %c0_1 = arith.constant 0 : index
    %0 = vector.load %arg2[%c0, %c0_0, %c0_1] : memref<1x512x32xf32, #tpu.memory_space<vmem>>, vector<1x512x32xf32>
    %1 = vector.shape_cast %0 : vector<1x512x32xf32> to vector<512x32xf32>
    %c0_2 = arith.constant 0 : index
    %c0_3 = arith.constant 0 : index
    %c0_4 = arith.constant 0 : index
    %2 = vector.load %arg3[%c0_2, %c0_3, %c0_4] : memref<1x512x3xf32, #tpu.memory_space<vmem>>, vector<1x512x3xf32>
    %3 = vector.shape_cast %2 : vector<1x512x3xf32> to vector<512x3xf32>
    %c0_5 = arith.constant 0 : index
    %c0_6 = arith.constant 0 : index
    %c0_7 = arith.constant 0 : index
    %4 = vector.load %arg4[%c0_5, %c0_6, %c0_7] : memref<1x512x512xf32, #tpu.memory_space<vmem>>, vector<1x512x512xf32>
    %5 = vector.shape_cast %4 : vector<1x512x512xf32> to vector<512x512xf32>
    %6 = arith.truncf %5 : vector<512x512xf32> to vector<512x512xbf16>
    %c0_8 = arith.constant 0 : index
    %c0_9 = arith.constant 0 : index
    %7 = vector.load %arg5[%c0_8, %c0_9] : memref<512x256xbf16, #tpu.memory_space<vmem>>, vector<512x256xbf16>
    %cst = arith.constant dense<0.000000e+00> : vector<512x256xf32>
    %8 = tpu.matmul %6, %7, %cst {dimension_numbers = #tpu.dot_dimension_numbers<[1], [0], [0], [1], [0, 0, 1, 1], [], []>} : vector<512x512xbf16>, vector<512x256xbf16>, vector<512x256xf32> -> vector<512x256xf32>
    %c0_10 = arith.constant 0 : index
    %c0_11 = arith.constant 0 : index
    %9 = vector.load %arg6[%c0_10, %c0_11] : memref<1x256xf32, #tpu.memory_space<vmem>>, vector<1x256xf32>
    %10 = vector.broadcast %9 : vector<1x256xf32> to vector<512x256xf32>
    %11 = arith.addf %8, %10 : vector<512x256xf32>
    %cst_12 = arith.constant 0.000000e+00 : f32
    %12 = vector.broadcast %cst_12 : f32 to vector<512x256xf32>
    %13 = arith.maximumf %11, %12 : vector<512x256xf32>
    %14 = arith.truncf %13 : vector<512x256xf32> to vector<512x256xbf16>
    %c0_13 = arith.constant 0 : index
    %c0_14 = arith.constant 0 : index
    %15 = vector.load %arg7[%c0_13, %c0_14] : memref<256x64xbf16, #tpu.memory_space<vmem>>, vector<256x64xbf16>
    %cst_15 = arith.constant dense<0.000000e+00> : vector<512x64xf32>
    %16 = tpu.matmul %14, %15, %cst_15 {dimension_numbers = #tpu.dot_dimension_numbers<[1], [0], [0], [1], [0, 0, 1, 1], [], []>} : vector<512x256xbf16>, vector<256x64xbf16>, vector<512x64xf32> -> vector<512x64xf32>
    %c0_16 = arith.constant 0 : index
    %c0_17 = arith.constant 0 : index
    %17 = vector.load %arg8[%c0_16, %c0_17] : memref<1x64xf32, #tpu.memory_space<vmem>>, vector<1x64xf32>
    %18 = vector.broadcast %17 : vector<1x64xf32> to vector<512x64xf32>
    %19 = arith.addf %16, %18 : vector<512x64xf32>
    %cst_18 = arith.constant 0.000000e+00 : f32
    %20 = vector.broadcast %cst_18 : f32 to vector<512x64xf32>
    %21 = arith.maximumf %19, %20 : vector<512x64xf32>
    %cst_19 = arith.constant 0.000000e+00 : f32
    %22 = vector.broadcast %cst_19 : f32 to vector<512x29xf32>
    %23 = tpu.concatenate %1, %3, %21, %22 in 1 : vector<512x32xf32>, vector<512x3xf32>, vector<512x64xf32>, vector<512x29xf32> -> vector<512x128xf32>
    %24 = arith.truncf %23 : vector<512x128xf32> to vector<512x128xbf16>
    %c0_20 = arith.constant 0 : index
    %c0_21 = arith.constant 0 : index
    %25 = vector.load %arg9[%c0_20, %c0_21] : memref<128x128xbf16, #tpu.memory_space<vmem>>, vector<128x128xbf16>
    %cst_22 = arith.constant dense<0.000000e+00> : vector<512x128xf32>
    %26 = tpu.matmul %24, %25, %cst_22 {dimension_numbers = #tpu.dot_dimension_numbers<[1], [0], [0], [1], [0, 0, 1, 1], [], []>} : vector<512x128xbf16>, vector<128x128xbf16>, vector<512x128xf32> -> vector<512x128xf32>
    %c0_23 = arith.constant 0 : index
    %c0_24 = arith.constant 0 : index
    %27 = vector.load %arg10[%c0_23, %c0_24] : memref<1x128xf32, #tpu.memory_space<vmem>>, vector<1x128xf32>
    %28 = vector.broadcast %27 : vector<1x128xf32> to vector<512x128xf32>
    %29 = arith.addf %26, %28 : vector<512x128xf32>
    %c0_25 = arith.constant 0 : index
    %c0_26 = arith.constant 0 : index
    %c0_27 = arith.constant 0 : index
    %30 = vector.load %arg11[%c0_25, %c0_26, %c0_27] : memref<1x1x128xf32, #tpu.memory_space<vmem>>, vector<1x1x128xf32>
    %31 = vector.shape_cast %30 : vector<1x1x128xf32> to vector<1x128xf32>
    %32 = vector.broadcast %31 : vector<1x128xf32> to vector<512x128xf32>
    %33 = arith.addf %29, %32 : vector<512x128xf32>
    %34 = arith.truncf %33 : vector<512x128xf32> to vector<512x128xbf16>
    %c0_28 = arith.constant 0 : index
    %c0_29 = arith.constant 0 : index
    %c0_30 = arith.constant 0 : index
    %35 = vector.load %arg12[%c0_28, %c0_29, %c0_30] : memref<1x512x128xbf16, #tpu.memory_space<vmem>>, vector<1x512x128xbf16>
    %36 = vector.shape_cast %35 : vector<1x512x128xbf16> to vector<512x128xbf16>
    %37 = vector.shape_cast %34 : vector<512x128xbf16> to vector<1x512x128xbf16>
    tpu.vector_store %arg12[%c0_28, %c0_29, %c0_30], %37 {strides = array<i32>} : memref<1x512x128xbf16, #tpu.memory_space<vmem>>, vector<1x512x128xbf16>,
    %38 = vector.extract_strided_slice %33 {offsets = [0, 0], sizes = [512, 64], strides = [1, 1]} : vector<512x128xf32> to vector<512x64xf32>
    %cst_31 = arith.constant dense<0.000000e+00> : vector<64xf32>
    %39 = vector.multi_reduction <add>, %38, %cst_31 [0] : vector<512x64xf32> to vector<64xf32>
    %40 = vector.shape_cast %39 : vector<64xf32> to vector<1x64xf32>
    %41 = arith.mulf %38, %38 : vector<512x64xf32>
    %cst_32 = arith.constant dense<0.000000e+00> : vector<64xf32>
    %42 = vector.multi_reduction <add>, %41, %cst_32 [0] : vector<512x64xf32> to vector<64xf32>
    %43 = vector.shape_cast %42 : vector<64xf32> to vector<1x64xf32>
    %44 = tpu.concatenate %40, %43 in 1 : vector<1x64xf32>, vector<1x64xf32> -> vector<1x128xf32>
    %45 = vector.shape_cast %44 : vector<1x128xf32> to vector<1x128xf32>
    %46 = vector.broadcast %45 : vector<1x128xf32> to vector<8x128xf32>
    %c0_33 = arith.constant 0 : index
    %c0_34 = arith.constant 0 : index
    %c0_35 = arith.constant 0 : index
    %c0_36 = arith.constant 0 : index
    %47 = vector.load %arg13[%c0_33, %c0_34, %c0_35, %c0_36] : memref<1x1x8x128xf32, #tpu.memory_space<vmem>>, vector<1x1x8x128xf32>
    %48 = vector.shape_cast %47 : vector<1x1x8x128xf32> to vector<8x128xf32>
    %49 = vector.shape_cast %46 : vector<8x128xf32> to vector<1x1x8x128xf32>
    tpu.vector_store %arg13[%c0_33, %c0_34, %c0_35, %c0_36], %49 {strides = array<i32>} : memref<1x1x8x128xf32, #tpu.memory_space<vmem>>, vector<1x1x8x128xf32>,
    return
  }
  func.func @transform_0(%arg0: i32, %arg1: i32) -> (i32, i32, i32) {
    %c0_i32 = arith.constant 0 : i32
    %c0_i32_0 = arith.constant 0 : i32
    return %arg0, %arg1, %c0_i32 : i32, i32, i32
  }
  func.func @transform_1(%arg0: i32, %arg1: i32) -> (i32, i32, i32) {
    %c0_i32 = arith.constant 0 : i32
    %c0_i32_0 = arith.constant 0 : i32
    return %arg0, %arg1, %c0_i32 : i32, i32, i32
  }
  func.func @transform_2(%arg0: i32, %arg1: i32) -> (i32, i32, i32) {
    %c0_i32 = arith.constant 0 : i32
    %c0_i32_0 = arith.constant 0 : i32
    return %arg0, %arg1, %c0_i32 : i32, i32, i32
  }
  func.func @transform_3(%arg0: i32, %arg1: i32) -> (i32, i32) {
    %c0_i32 = arith.constant 0 : i32
    %c0_i32_0 = arith.constant 0 : i32
    %c0_i32_1 = arith.constant 0 : i32
    return %c0_i32, %c0_i32_0 : i32, i32
  }
  func.func @transform_4(%arg0: i32, %arg1: i32) -> (i32, i32) {
    %c0_i32 = arith.constant 0 : i32
    %c0_i32_0 = arith.constant 0 : i32
    %c0_i32_1 = arith.constant 0 : i32
    return %c0_i32, %c0_i32_0 : i32, i32
  }
  func.func @transform_5(%arg0: i32, %arg1: i32) -> (i32, i32) {
    %c0_i32 = arith.constant 0 : i32
    %c0_i32_0 = arith.constant 0 : i32
    %c0_i32_1 = arith.constant 0 : i32
    return %c0_i32, %c0_i32_0 : i32, i32
  }
  func.func @transform_6(%arg0: i32, %arg1: i32) -> (i32, i32) {
    %c0_i32 = arith.constant 0 : i32
    %c0_i32_0 = arith.constant 0 : i32
    %c0_i32_1 = arith.constant 0 : i32
    return %c0_i32, %c0_i32_0 : i32, i32
  }
  func.func @transform_7(%arg0: i32, %arg1: i32) -> (i32, i32) {
    %c0_i32 = arith.constant 0 : i32
    %c0_i32_0 = arith.constant 0 : i32
    %c0_i32_1 = arith.constant 0 : i32
    return %c0_i32, %c0_i32_0 : i32, i32
  }
  func.func @transform_8(%arg0: i32, %arg1: i32) -> (i32, i32) {
    %c0_i32 = arith.constant 0 : i32
    %c0_i32_0 = arith.constant 0 : i32
    %c0_i32_1 = arith.constant 0 : i32
    return %c0_i32, %c0_i32_0 : i32, i32
  }
  func.func @transform_9(%arg0: i32, %arg1: i32) -> (i32, i32, i32) {
    %c0_i32 = arith.constant 0 : i32
    %c0_i32_0 = arith.constant 0 : i32
    %c0_i32_1 = arith.constant 0 : i32
    return %arg0, %c0_i32, %c0_i32_0 : i32, i32, i32
  }
  func.func @transform_10(%arg0: i32, %arg1: i32) -> (i32, i32, i32) {
    %c0_i32 = arith.constant 0 : i32
    %c0_i32_0 = arith.constant 0 : i32
    return %arg0, %arg1, %c0_i32 : i32, i32, i32
  }
  func.func @transform_11(%arg0: i32, %arg1: i32) -> (i32, i32, i32, i32) {
    %c0_i32 = arith.constant 0 : i32
    %c0_i32_0 = arith.constant 0 : i32
    %c0_i32_1 = arith.constant 0 : i32
    return %arg0, %arg1, %c0_i32, %c0_i32_0 : i32, i32, i32, i32
  }
}

module attributes {stable_mosaic.version = 11 : i64} {
  func.func @_stage_b_kernel(%arg0: i32, %arg1: i32, %arg2: memref<1x512x128xbf16, #tpu.memory_space<vmem>>, %arg3: memref<1x1x64xf32, #tpu.memory_space<vmem>>, %arg4: memref<1x1x64xf32, #tpu.memory_space<vmem>>, %arg5: memref<64x64xbf16, #tpu.memory_space<vmem>>, %arg6: memref<1x64xf32, #tpu.memory_space<vmem>>, %arg7: memref<1x512x128xbf16, #tpu.memory_space<vmem>>, %arg8: memref<1x1x8x128xf32, #tpu.memory_space<vmem>>) attributes {dimension_semantics = [#tpu.dimension_semantics<parallel>, #tpu.dimension_semantics<parallel>], iteration_bounds = array<i64: 2, 2>, scalar_prefetch = 0 : i64, scratch_operands = 0 : i64, tpu.core_type = #tpu.core_type<tc>, window_params = [{transform_indices = @transform_0, window_bounds = array<i64: 1, 512, 128>}, {transform_indices = @transform_1, window_bounds = array<i64: 1, 1, 64>}, {transform_indices = @transform_2, window_bounds = array<i64: 1, 1, 64>}, {pipeline_mode = #tpu.pipeline_mode<synchronous>, transform_indices = @transform_3, window_bounds = array<i64: 64, 64>}, {pipeline_mode = #tpu.pipeline_mode<synchronous>, transform_indices = @transform_4, window_bounds = array<i64: 1, 64>}, {transform_indices = @transform_5, window_bounds = array<i64: 1, 512, 128>}, {transform_indices = @transform_6, window_bounds = array<i64: 1, 1, 8, 128>}]} {
    %c0 = arith.constant 0 : index
    %c0_0 = arith.constant 0 : index
    %c0_1 = arith.constant 0 : index
    %0 = vector.load %arg2[%c0, %c0_0, %c0_1] : memref<1x512x128xbf16, #tpu.memory_space<vmem>>, vector<1x512x128xbf16>
    %1 = vector.shape_cast %0 : vector<1x512x128xbf16> to vector<512x128xbf16>
    %2 = arith.extf %1 : vector<512x128xbf16> to vector<512x128xf32>
    %3 = vector.extract_strided_slice %2 {offsets = [0, 0], sizes = [512, 64], strides = [1, 1]} : vector<512x128xf32> to vector<512x64xf32>
    %4 = vector.extract_strided_slice %2 {offsets = [0, 64], sizes = [512, 64], strides = [1, 1]} : vector<512x128xf32> to vector<512x64xf32>
    %c0_2 = arith.constant 0 : index
    %c0_3 = arith.constant 0 : index
    %c0_4 = arith.constant 0 : index
    %5 = vector.load %arg3[%c0_2, %c0_3, %c0_4] : memref<1x1x64xf32, #tpu.memory_space<vmem>>, vector<1x1x64xf32>
    %6 = vector.shape_cast %5 : vector<1x1x64xf32> to vector<1x64xf32>
    %7 = vector.broadcast %6 : vector<1x64xf32> to vector<512x64xf32>
    %8 = arith.mulf %7, %3 : vector<512x64xf32>
    %c0_5 = arith.constant 0 : index
    %c0_6 = arith.constant 0 : index
    %c0_7 = arith.constant 0 : index
    %9 = vector.load %arg4[%c0_5, %c0_6, %c0_7] : memref<1x1x64xf32, #tpu.memory_space<vmem>>, vector<1x1x64xf32>
    %10 = vector.shape_cast %9 : vector<1x1x64xf32> to vector<1x64xf32>
    %11 = vector.broadcast %10 : vector<1x64xf32> to vector<512x64xf32>
    %12 = arith.addf %8, %11 : vector<512x64xf32>
    %cst = arith.constant 0.000000e+00 : f32
    %13 = vector.broadcast %cst : f32 to vector<512x64xf32>
    %14 = arith.maximumf %12, %13 : vector<512x64xf32>
    %15 = arith.truncf %14 : vector<512x64xf32> to vector<512x64xbf16>
    %c0_8 = arith.constant 0 : index
    %c0_9 = arith.constant 0 : index
    %16 = vector.load %arg5[%c0_8, %c0_9] : memref<64x64xbf16, #tpu.memory_space<vmem>>, vector<64x64xbf16>
    %cst_10 = arith.constant dense<0.000000e+00> : vector<512x64xf32>
    %17 = tpu.matmul %15, %16, %cst_10 {dimension_numbers = #tpu.dot_dimension_numbers<[1], [0], [0], [1], [0, 0, 1, 1], [], []>} : vector<512x64xbf16>, vector<64x64xbf16>, vector<512x64xf32> -> vector<512x64xf32>
    %c0_11 = arith.constant 0 : index
    %c0_12 = arith.constant 0 : index
    %18 = vector.load %arg6[%c0_11, %c0_12] : memref<1x64xf32, #tpu.memory_space<vmem>>, vector<1x64xf32>
    %19 = vector.broadcast %18 : vector<1x64xf32> to vector<512x64xf32>
    %20 = arith.addf %17, %19 : vector<512x64xf32>
    %21 = tpu.concatenate %20, %4 in 1 : vector<512x64xf32>, vector<512x64xf32> -> vector<512x128xf32>
    %22 = arith.truncf %21 : vector<512x128xf32> to vector<512x128xbf16>
    %c0_13 = arith.constant 0 : index
    %c0_14 = arith.constant 0 : index
    %c0_15 = arith.constant 0 : index
    %23 = vector.load %arg7[%c0_13, %c0_14, %c0_15] : memref<1x512x128xbf16, #tpu.memory_space<vmem>>, vector<1x512x128xbf16>
    %24 = vector.shape_cast %23 : vector<1x512x128xbf16> to vector<512x128xbf16>
    %25 = vector.shape_cast %22 : vector<512x128xbf16> to vector<1x512x128xbf16>
    tpu.vector_store %arg7[%c0_13, %c0_14, %c0_15], %25 {strides = array<i32>} : memref<1x512x128xbf16, #tpu.memory_space<vmem>>, vector<1x512x128xbf16>,
    %cst_16 = arith.constant dense<0.000000e+00> : vector<64xf32>
    %26 = vector.multi_reduction <add>, %20, %cst_16 [0] : vector<512x64xf32> to vector<64xf32>
    %27 = vector.shape_cast %26 : vector<64xf32> to vector<1x64xf32>
    %28 = arith.mulf %20, %20 : vector<512x64xf32>
    %cst_17 = arith.constant dense<0.000000e+00> : vector<64xf32>
    %29 = vector.multi_reduction <add>, %28, %cst_17 [0] : vector<512x64xf32> to vector<64xf32>
    %30 = vector.shape_cast %29 : vector<64xf32> to vector<1x64xf32>
    %31 = tpu.concatenate %27, %30 in 1 : vector<1x64xf32>, vector<1x64xf32> -> vector<1x128xf32>
    %32 = vector.shape_cast %31 : vector<1x128xf32> to vector<1x128xf32>
    %33 = vector.broadcast %32 : vector<1x128xf32> to vector<8x128xf32>
    %c0_18 = arith.constant 0 : index
    %c0_19 = arith.constant 0 : index
    %c0_20 = arith.constant 0 : index
    %c0_21 = arith.constant 0 : index
    %34 = vector.load %arg8[%c0_18, %c0_19, %c0_20, %c0_21] : memref<1x1x8x128xf32, #tpu.memory_space<vmem>>, vector<1x1x8x128xf32>
    %35 = vector.shape_cast %34 : vector<1x1x8x128xf32> to vector<8x128xf32>
    %36 = vector.shape_cast %33 : vector<8x128xf32> to vector<1x1x8x128xf32>
    tpu.vector_store %arg8[%c0_18, %c0_19, %c0_20, %c0_21], %36 {strides = array<i32>} : memref<1x1x8x128xf32, #tpu.memory_space<vmem>>, vector<1x1x8x128xf32>,
    return
  }
  func.func @transform_0(%arg0: i32, %arg1: i32) -> (i32, i32, i32) {
    %c0_i32 = arith.constant 0 : i32
    %c0_i32_0 = arith.constant 0 : i32
    return %arg0, %arg1, %c0_i32 : i32, i32, i32
  }
  func.func @transform_1(%arg0: i32, %arg1: i32) -> (i32, i32, i32) {
    %c0_i32 = arith.constant 0 : i32
    %c0_i32_0 = arith.constant 0 : i32
    %c0_i32_1 = arith.constant 0 : i32
    return %arg0, %c0_i32, %c0_i32_0 : i32, i32, i32
  }
  func.func @transform_2(%arg0: i32, %arg1: i32) -> (i32, i32, i32) {
    %c0_i32 = arith.constant 0 : i32
    %c0_i32_0 = arith.constant 0 : i32
    %c0_i32_1 = arith.constant 0 : i32
    return %arg0, %c0_i32, %c0_i32_0 : i32, i32, i32
  }
  func.func @transform_3(%arg0: i32, %arg1: i32) -> (i32, i32) {
    %c0_i32 = arith.constant 0 : i32
    %c0_i32_0 = arith.constant 0 : i32
    %c0_i32_1 = arith.constant 0 : i32
    return %c0_i32, %c0_i32_0 : i32, i32
  }
  func.func @transform_4(%arg0: i32, %arg1: i32) -> (i32, i32) {
    %c0_i32 = arith.constant 0 : i32
    %c0_i32_0 = arith.constant 0 : i32
    %c0_i32_1 = arith.constant 0 : i32
    return %c0_i32, %c0_i32_0 : i32, i32
  }
  func.func @transform_5(%arg0: i32, %arg1: i32) -> (i32, i32, i32) {
    %c0_i32 = arith.constant 0 : i32
    %c0_i32_0 = arith.constant 0 : i32
    return %arg0, %arg1, %c0_i32 : i32, i32, i32
  }
  func.func @transform_6(%arg0: i32, %arg1: i32) -> (i32, i32, i32, i32) {
    %c0_i32 = arith.constant 0 : i32
    %c0_i32_0 = arith.constant 0 : i32
    %c0_i32_1 = arith.constant 0 : i32
    return %arg0, %arg1, %c0_i32, %c0_i32_0 : i32, i32, i32, i32
  }
}

module attributes {stable_mosaic.version = 11 : i64} {
  func.func @_stage_ca_kernel(%arg0: i32, %arg1: i32, %arg2: memref<1x512x128xbf16, #tpu.memory_space<vmem>>, %arg3: memref<1x1x64xf32, #tpu.memory_space<vmem>>, %arg4: memref<1x1x64xf32, #tpu.memory_space<vmem>>, %arg5: memref<64x64xbf16, #tpu.memory_space<vmem>>, %arg6: memref<1x64xf32, #tpu.memory_space<vmem>>, %arg7: memref<1x512x128xbf16, #tpu.memory_space<vmem>>, %arg8: memref<1x1x8x128xf32, #tpu.memory_space<vmem>>) attributes {dimension_semantics = [#tpu.dimension_semantics<parallel>, #tpu.dimension_semantics<parallel>], iteration_bounds = array<i64: 2, 2>, scalar_prefetch = 0 : i64, scratch_operands = 0 : i64, tpu.core_type = #tpu.core_type<tc>, window_params = [{transform_indices = @transform_0, window_bounds = array<i64: 1, 512, 128>}, {transform_indices = @transform_1, window_bounds = array<i64: 1, 1, 64>}, {transform_indices = @transform_2, window_bounds = array<i64: 1, 1, 64>}, {pipeline_mode = #tpu.pipeline_mode<synchronous>, transform_indices = @transform_3, window_bounds = array<i64: 64, 64>}, {pipeline_mode = #tpu.pipeline_mode<synchronous>, transform_indices = @transform_4, window_bounds = array<i64: 1, 64>}, {transform_indices = @transform_5, window_bounds = array<i64: 1, 512, 128>}, {transform_indices = @transform_6, window_bounds = array<i64: 1, 1, 8, 128>}]} {
    %c0 = arith.constant 0 : index
    %c0_0 = arith.constant 0 : index
    %c0_1 = arith.constant 0 : index
    %0 = vector.load %arg2[%c0, %c0_0, %c0_1] : memref<1x512x128xbf16, #tpu.memory_space<vmem>>, vector<1x512x128xbf16>
    %1 = vector.shape_cast %0 : vector<1x512x128xbf16> to vector<512x128xbf16>
    %2 = arith.extf %1 : vector<512x128xbf16> to vector<512x128xf32>
    %3 = vector.extract_strided_slice %2 {offsets = [0, 0], sizes = [512, 64], strides = [1, 1]} : vector<512x128xf32> to vector<512x64xf32>
    %4 = vector.extract_strided_slice %2 {offsets = [0, 64], sizes = [512, 64], strides = [1, 1]} : vector<512x128xf32> to vector<512x64xf32>
    %c0_2 = arith.constant 0 : index
    %c0_3 = arith.constant 0 : index
    %c0_4 = arith.constant 0 : index
    %5 = vector.load %arg3[%c0_2, %c0_3, %c0_4] : memref<1x1x64xf32, #tpu.memory_space<vmem>>, vector<1x1x64xf32>
    %6 = vector.shape_cast %5 : vector<1x1x64xf32> to vector<1x64xf32>
    %7 = vector.broadcast %6 : vector<1x64xf32> to vector<512x64xf32>
    %8 = arith.mulf %7, %3 : vector<512x64xf32>
    %c0_5 = arith.constant 0 : index
    %c0_6 = arith.constant 0 : index
    %c0_7 = arith.constant 0 : index
    %9 = vector.load %arg4[%c0_5, %c0_6, %c0_7] : memref<1x1x64xf32, #tpu.memory_space<vmem>>, vector<1x1x64xf32>
    %10 = vector.shape_cast %9 : vector<1x1x64xf32> to vector<1x64xf32>
    %11 = vector.broadcast %10 : vector<1x64xf32> to vector<512x64xf32>
    %12 = arith.addf %8, %11 : vector<512x64xf32>
    %13 = arith.addf %12, %4 : vector<512x64xf32>
    %cst = arith.constant 0.000000e+00 : f32
    %14 = vector.broadcast %cst : f32 to vector<512x64xf32>
    %15 = arith.maximumf %13, %14 : vector<512x64xf32>
    %16 = arith.truncf %15 : vector<512x64xf32> to vector<512x64xbf16>
    %c0_8 = arith.constant 0 : index
    %c0_9 = arith.constant 0 : index
    %17 = vector.load %arg5[%c0_8, %c0_9] : memref<64x64xbf16, #tpu.memory_space<vmem>>, vector<64x64xbf16>
    %cst_10 = arith.constant dense<0.000000e+00> : vector<512x64xf32>
    %18 = tpu.matmul %16, %17, %cst_10 {dimension_numbers = #tpu.dot_dimension_numbers<[1], [0], [0], [1], [0, 0, 1, 1], [], []>} : vector<512x64xbf16>, vector<64x64xbf16>, vector<512x64xf32> -> vector<512x64xf32>
    %c0_11 = arith.constant 0 : index
    %c0_12 = arith.constant 0 : index
    %19 = vector.load %arg6[%c0_11, %c0_12] : memref<1x64xf32, #tpu.memory_space<vmem>>, vector<1x64xf32>
    %20 = vector.broadcast %19 : vector<1x64xf32> to vector<512x64xf32>
    %21 = arith.addf %18, %20 : vector<512x64xf32>
    %22 = tpu.concatenate %21, %15 in 1 : vector<512x64xf32>, vector<512x64xf32> -> vector<512x128xf32>
    %23 = arith.truncf %22 : vector<512x128xf32> to vector<512x128xbf16>
    %c0_13 = arith.constant 0 : index
    %c0_14 = arith.constant 0 : index
    %c0_15 = arith.constant 0 : index
    %24 = vector.load %arg7[%c0_13, %c0_14, %c0_15] : memref<1x512x128xbf16, #tpu.memory_space<vmem>>, vector<1x512x128xbf16>
    %25 = vector.shape_cast %24 : vector<1x512x128xbf16> to vector<512x128xbf16>
    %26 = vector.shape_cast %23 : vector<512x128xbf16> to vector<1x512x128xbf16>
    tpu.vector_store %arg7[%c0_13, %c0_14, %c0_15], %26 {strides = array<i32>} : memref<1x512x128xbf16, #tpu.memory_space<vmem>>, vector<1x512x128xbf16>,
    %cst_16 = arith.constant dense<0.000000e+00> : vector<64xf32>
    %27 = vector.multi_reduction <add>, %21, %cst_16 [0] : vector<512x64xf32> to vector<64xf32>
    %28 = vector.shape_cast %27 : vector<64xf32> to vector<1x64xf32>
    %29 = arith.mulf %21, %21 : vector<512x64xf32>
    %cst_17 = arith.constant dense<0.000000e+00> : vector<64xf32>
    %30 = vector.multi_reduction <add>, %29, %cst_17 [0] : vector<512x64xf32> to vector<64xf32>
    %31 = vector.shape_cast %30 : vector<64xf32> to vector<1x64xf32>
    %32 = tpu.concatenate %28, %31 in 1 : vector<1x64xf32>, vector<1x64xf32> -> vector<1x128xf32>
    %33 = vector.shape_cast %32 : vector<1x128xf32> to vector<1x128xf32>
    %34 = vector.broadcast %33 : vector<1x128xf32> to vector<8x128xf32>
    %c0_18 = arith.constant 0 : index
    %c0_19 = arith.constant 0 : index
    %c0_20 = arith.constant 0 : index
    %c0_21 = arith.constant 0 : index
    %35 = vector.load %arg8[%c0_18, %c0_19, %c0_20, %c0_21] : memref<1x1x8x128xf32, #tpu.memory_space<vmem>>, vector<1x1x8x128xf32>
    %36 = vector.shape_cast %35 : vector<1x1x8x128xf32> to vector<8x128xf32>
    %37 = vector.shape_cast %34 : vector<8x128xf32> to vector<1x1x8x128xf32>
    tpu.vector_store %arg8[%c0_18, %c0_19, %c0_20, %c0_21], %37 {strides = array<i32>} : memref<1x1x8x128xf32, #tpu.memory_space<vmem>>, vector<1x1x8x128xf32>,
    return
  }
  func.func @transform_0(%arg0: i32, %arg1: i32) -> (i32, i32, i32) {
    %c0_i32 = arith.constant 0 : i32
    %c0_i32_0 = arith.constant 0 : i32
    return %arg0, %arg1, %c0_i32 : i32, i32, i32
  }
  func.func @transform_1(%arg0: i32, %arg1: i32) -> (i32, i32, i32) {
    %c0_i32 = arith.constant 0 : i32
    %c0_i32_0 = arith.constant 0 : i32
    %c0_i32_1 = arith.constant 0 : i32
    return %arg0, %c0_i32, %c0_i32_0 : i32, i32, i32
  }
  func.func @transform_2(%arg0: i32, %arg1: i32) -> (i32, i32, i32) {
    %c0_i32 = arith.constant 0 : i32
    %c0_i32_0 = arith.constant 0 : i32
    %c0_i32_1 = arith.constant 0 : i32
    return %arg0, %c0_i32, %c0_i32_0 : i32, i32, i32
  }
  func.func @transform_3(%arg0: i32, %arg1: i32) -> (i32, i32) {
    %c0_i32 = arith.constant 0 : i32
    %c0_i32_0 = arith.constant 0 : i32
    %c0_i32_1 = arith.constant 0 : i32
    return %c0_i32, %c0_i32_0 : i32, i32
  }
  func.func @transform_4(%arg0: i32, %arg1: i32) -> (i32, i32) {
    %c0_i32 = arith.constant 0 : i32
    %c0_i32_0 = arith.constant 0 : i32
    %c0_i32_1 = arith.constant 0 : i32
    return %c0_i32, %c0_i32_0 : i32, i32
  }
  func.func @transform_5(%arg0: i32, %arg1: i32) -> (i32, i32, i32) {
    %c0_i32 = arith.constant 0 : i32
    %c0_i32_0 = arith.constant 0 : i32
    return %arg0, %arg1, %c0_i32 : i32, i32, i32
  }
  func.func @transform_6(%arg0: i32, %arg1: i32) -> (i32, i32, i32, i32) {
    %c0_i32 = arith.constant 0 : i32
    %c0_i32_0 = arith.constant 0 : i32
    %c0_i32_1 = arith.constant 0 : i32
    return %arg0, %arg1, %c0_i32, %c0_i32_0 : i32, i32, i32, i32
  }
}

module attributes {stable_mosaic.version = 11 : i64} {
  func.func @_final_kernel(%arg0: i32, %arg1: i32, %arg2: memref<1x512x128xbf16, #tpu.memory_space<vmem>>, %arg3: memref<1x1x64xf32, #tpu.memory_space<vmem>>, %arg4: memref<1x1x64xf32, #tpu.memory_space<vmem>>, %arg5: memref<1x64xf32, #tpu.memory_space<vmem>>, %arg6: memref<1x512x1xf32, #tpu.memory_space<vmem>>) attributes {dimension_semantics = [#tpu.dimension_semantics<parallel>, #tpu.dimension_semantics<parallel>], iteration_bounds = array<i64: 2, 2>, scalar_prefetch = 0 : i64, scratch_operands = 0 : i64, tpu.core_type = #tpu.core_type<tc>, window_params = [{transform_indices = @transform_0, window_bounds = array<i64: 1, 512, 128>}, {transform_indices = @transform_1, window_bounds = array<i64: 1, 1, 64>}, {transform_indices = @transform_2, window_bounds = array<i64: 1, 1, 64>}, {pipeline_mode = #tpu.pipeline_mode<synchronous>, transform_indices = @transform_3, window_bounds = array<i64: 1, 64>}, {transform_indices = @transform_4, window_bounds = array<i64: 1, 512, 1>}]} {
    %c0 = arith.constant 0 : index
    %c0_0 = arith.constant 0 : index
    %c0_1 = arith.constant 0 : index
    %0 = vector.load %arg2[%c0, %c0_0, %c0_1] : memref<1x512x128xbf16, #tpu.memory_space<vmem>>, vector<1x512x128xbf16>
    %1 = vector.shape_cast %0 : vector<1x512x128xbf16> to vector<512x128xbf16>
    %2 = arith.extf %1 : vector<512x128xbf16> to vector<512x128xf32>
    %3 = vector.extract_strided_slice %2 {offsets = [0, 0], sizes = [512, 64], strides = [1, 1]} : vector<512x128xf32> to vector<512x64xf32>
    %4 = vector.extract_strided_slice %2 {offsets = [0, 64], sizes = [512, 64], strides = [1, 1]} : vector<512x128xf32> to vector<512x64xf32>
    %c0_2 = arith.constant 0 : index
    %c0_3 = arith.constant 0 : index
    %c0_4 = arith.constant 0 : index
    %5 = vector.load %arg3[%c0_2, %c0_3, %c0_4] : memref<1x1x64xf32, #tpu.memory_space<vmem>>, vector<1x1x64xf32>
    %6 = vector.shape_cast %5 : vector<1x1x64xf32> to vector<1x64xf32>
    %7 = vector.broadcast %6 : vector<1x64xf32> to vector<512x64xf32>
    %8 = arith.mulf %7, %3 : vector<512x64xf32>
    %c0_5 = arith.constant 0 : index
    %c0_6 = arith.constant 0 : index
    %c0_7 = arith.constant 0 : index
    %9 = vector.load %arg4[%c0_5, %c0_6, %c0_7] : memref<1x1x64xf32, #tpu.memory_space<vmem>>, vector<1x1x64xf32>
    %10 = vector.shape_cast %9 : vector<1x1x64xf32> to vector<1x64xf32>
    %11 = vector.broadcast %10 : vector<1x64xf32> to vector<512x64xf32>
    %12 = arith.addf %8, %11 : vector<512x64xf32>
    %13 = arith.addf %12, %4 : vector<512x64xf32>
    %cst = arith.constant 0.000000e+00 : f32
    %14 = vector.broadcast %cst : f32 to vector<512x64xf32>
    %15 = arith.maximumf %13, %14 : vector<512x64xf32>
    %c0_8 = arith.constant 0 : index
    %c0_9 = arith.constant 0 : index
    %16 = vector.load %arg5[%c0_8, %c0_9] : memref<1x64xf32, #tpu.memory_space<vmem>>, vector<1x64xf32>
    %17 = vector.broadcast %16 : vector<1x64xf32> to vector<512x64xf32>
    %18 = arith.mulf %15, %17 : vector<512x64xf32>
    %cst_10 = arith.constant dense<0.000000e+00> : vector<512xf32>
    %19 = vector.multi_reduction <add>, %18, %cst_10 [1] : vector<512x64xf32> to vector<512xf32>
    %20 = vector.shape_cast %19 : vector<512xf32> to vector<512x1xf32>
    %21 = math.absf %20 : vector<512x1xf32>
    %cst_11 = arith.constant 0.000000e+00 : f32
    %22 = vector.broadcast %cst_11 : f32 to vector<512x1xf32>
    %23 = arith.subf %22, %21 : vector<512x1xf32>
    %24 = math.exp %23 : vector<512x1xf32>
    %cst_12 = arith.constant 0.000000e+00 : f32
    %25 = vector.broadcast %cst_12 : f32 to vector<512x1xf32>
    %26 = arith.cmpf oge, %20, %25 : vector<512x1xf32>
    %cst_13 = arith.constant 1.000000e+00 : f32
    %27 = vector.broadcast %cst_13 : f32 to vector<512x1xf32>
    %28 = arith.addf %27, %24 : vector<512x1xf32>
    %cst_14 = arith.constant 1.000000e+00 : f32
    %29 = vector.broadcast %cst_14 : f32 to vector<512x1xf32>
    %30 = arith.divf %29, %28 : vector<512x1xf32>
    %cst_15 = arith.constant 1.000000e+00 : f32
    %31 = vector.broadcast %cst_15 : f32 to vector<512x1xf32>
    %32 = arith.addf %31, %24 : vector<512x1xf32>
    %33 = arith.divf %24, %32 : vector<512x1xf32>
    %34 = arith.select %26, %30, %33 : vector<512x1xi1>, vector<512x1xf32>
    %c0_16 = arith.constant 0 : index
    %c0_17 = arith.constant 0 : index
    %c0_18 = arith.constant 0 : index
    %35 = vector.load %arg6[%c0_16, %c0_17, %c0_18] : memref<1x512x1xf32, #tpu.memory_space<vmem>>, vector<1x512x1xf32>
    %36 = vector.shape_cast %35 : vector<1x512x1xf32> to vector<512x1xf32>
    %37 = vector.shape_cast %34 : vector<512x1xf32> to vector<1x512x1xf32>
    tpu.vector_store %arg6[%c0_16, %c0_17, %c0_18], %37 {strides = array<i32>} : memref<1x512x1xf32, #tpu.memory_space<vmem>>, vector<1x512x1xf32>,
    return
  }
  func.func @transform_0(%arg0: i32, %arg1: i32) -> (i32, i32, i32) {
    %c0_i32 = arith.constant 0 : i32
    %c0_i32_0 = arith.constant 0 : i32
    return %arg0, %arg1, %c0_i32 : i32, i32, i32
  }
  func.func @transform_1(%arg0: i32, %arg1: i32) -> (i32, i32, i32) {
    %c0_i32 = arith.constant 0 : i32
    %c0_i32_0 = arith.constant 0 : i32
    %c0_i32_1 = arith.constant 0 : i32
    return %arg0, %c0_i32, %c0_i32_0 : i32, i32, i32
  }
  func.func @transform_2(%arg0: i32, %arg1: i32) -> (i32, i32, i32) {
    %c0_i32 = arith.constant 0 : i32
    %c0_i32_0 = arith.constant 0 : i32
    %c0_i32_1 = arith.constant 0 : i32
    return %arg0, %c0_i32, %c0_i32_0 : i32, i32, i32
  }
  func.func @transform_3(%arg0: i32, %arg1: i32) -> (i32, i32) {
    %c0_i32 = arith.constant 0 : i32
    %c0_i32_0 = arith.constant 0 : i32
    %c0_i32_1 = arith.constant 0 : i32
    return %c0_i32, %c0_i32_0 : i32, i32
  }
  func.func @transform_4(%arg0: i32, %arg1: i32) -> (i32, i32, i32) {
    %c0_i32 = arith.constant 0 : i32
    %c0_i32_0 = arith.constant 0 : i32
    return %arg0, %arg1, %c0_i32 : i32, i32, i32
  }
}

</mosaic_0001>

<llo_original>
// kernel: residual_cbn_decoder_forward.8
$region0: #{residual_cbn_decoder_forward.8}
  #allocation0 [shape = 'u32[]', space=smem, size = 0x4, offset = 0x4, fixed_abs, tag = 'smem constant byte address 0x4 - core index']
  #allocation1 [shape = 'u32[144,128]{1,0:T(1,128)}', space=vmem, size = 0x12000, scoped, tag = 'internal scratch']
  %s0 = inlined_call_operand.vmem [shape: f32[3,2,32], index: 0, kind: input, shape index: {}]
  %s1 = inlined_call_operand.hbm [shape: f32[3,32,256], index: 1, kind: input, shape index: {}]
  %s2 = inlined_call_operand.hbm [shape: f32[3,1,256], index: 2, kind: input, shape index: {}]
  %s3 = inlined_call_operand.vmem [shape: f32[2,32], index: 3, kind: input, shape index: {}]
  %s4 = inlined_call_operand.hbm [shape: f32[32,128], index: 4, kind: input, shape index: {}]
  %s5 = inlined_call_operand.vmem [shape: f32[3,2,256], index: 5, kind: output, shape index: {0}]
  %s6 = inlined_call_operand.vmem [shape: f32[2,128], index: 6, kind: output, shape index: {1}]
  %7 = xla_tuple %s5, %s6
  %s8 = sld [smem:[#allocation0]]
  $region50: #{residual_cbn_decoder_forward.8} parent=0
    _
  %s10 = ssub.s32 1, %s8
  %s11 = scalar_select 0, %s10, %s8
  $region1: #{residual_cbn_decoder_forward.8} parent=0
    #allocation2 [shape = 'u8[98304]{0}', space=vmem, size = 0x18000, scoped, tag = 'input window, operand 1, single buffered']
    #allocation3 [shape = 's32[1]{0}', space=sflag, size = 0x4, scoped, tag = 'scoped memory for residual_cbn_decoder_forward.8']
    #allocation4 [shape = 'u8[3072]{0}', space=vmem, size = 0xc00, scoped, tag = 'input window, operand 2, single buffered']
    #allocation5 [shape = 's32[1]{0}', space=sflag, size = 0x4, scoped, tag = 'scoped memory for residual_cbn_decoder_forward.8']
    #allocation6 [shape = 'u8[16384]{0}', space=vmem, size = 0x4000, scoped, tag = 'input window, operand 4, single buffered']
    %12 = vsyncpa [#allocation3], 0
    %13 = vsyncpa [#allocation5], 0
    // Predicated region
    $region2: #{residual_cbn_decoder_forward.8} parent=1 // pred_check
      _
    $region3: #{residual_cbn_decoder_forward.8} parent=1 // pred_check_branch
      %15 = sbr.rel (0) target = $region5
    $region4: #{residual_cbn_decoder_forward.8} parent=1 // pred_region
      _
    $region5: #{residual_cbn_decoder_forward.8} parent=1 // pred_fallthru
      _
    // Predicated region
    $region6: #{residual_cbn_decoder_forward.8} parent=1 // pred_check
      _
    $region7: #{residual_cbn_decoder_forward.8} parent=1 // pred_check_branch
      %17 = sbr.rel (0) target = $region9
    $region8: #{residual_cbn_decoder_forward.8} parent=1 // pred_region
      %s19 = ssub.s32 3072, 3072
      %20 = vsyncadd [#allocation3], %s19
      %s21 = sshll.u32 [#allocation2], 4
      %s22 = int_to_ptr.vmem [resolvable:$true] %s21
      %27 = dma.hbm_to_vmem [thread:$0]  %s1, 3072, %s22, [#allocation3], 256, 256, 16
    $region9: #{residual_cbn_decoder_forward.8} parent=1 // pred_fallthru
      _
    // Predicated region
    $region10: #{residual_cbn_decoder_forward.8} parent=1 // pred_check
      _
    $region11: #{residual_cbn_decoder_forward.8} parent=1 // pred_check_branch
      %29 = sbr.rel (0) target = $region13
    $region12: #{residual_cbn_decoder_forward.8} parent=1 // pred_region
      %s31 = ssub.s32 96, 96
      %32 = vsyncadd [#allocation5], %s31
      %s33 = sshll.u32 [#allocation4], 4
      %s34 = int_to_ptr.vmem [resolvable:$true] %s33
      %39 = dma.hbm_to_vmem [thread:$0]  %s2, 96, %s34, [#allocation5], 32, 32, 2
    $region13: #{residual_cbn_decoder_forward.8} parent=1 // pred_fallthru
      _
    // Predicated region
    $region14: #{residual_cbn_decoder_forward.8} parent=1 // pred_check
      _
    $region15: #{residual_cbn_decoder_forward.8} parent=1 // pred_check_branch
      %41 = sbr.rel (0) target = $region17
    $region16: #{residual_cbn_decoder_forward.8} parent=1 // pred_region
      _
    $region17: #{residual_cbn_decoder_forward.8} parent=1 // pred_fallthru
      _
    // Predicated region
    $region18: #{residual_cbn_decoder_forward.8} parent=1 // pred_check
      _
    $region19: #{residual_cbn_decoder_forward.8} parent=1 // pred_check_branch
      %43 = sbr.rel (0) target = $region21
    $region20: #{residual_cbn_decoder_forward.8} parent=1 // pred_region
      %s45 = ssub.s32 512, 512
      %46 = vsyncadd [#allocation5], %s45
      %s47 = sshll.u32 [#allocation6], 4
      %s48 = int_to_ptr.vmem [resolvable:$true] %s47
      %53 = dma.hbm_to_vmem [thread:$0]  %s4, 512, %s48, [#allocation5], 128, 128, 8
    $region21: #{residual_cbn_decoder_forward.8} parent=1 // pred_fallthru
      _
    // Predicated region
    $region22: #{residual_cbn_decoder_forward.8} parent=1 // pred_check
      _
    $region23: #{residual_cbn_decoder_forward.8} parent=1 // pred_check_branch
      %55 = sbr.rel (0) target = $region25
    $region24: #{residual_cbn_decoder_forward.8} parent=1 // pred_region
      %56 = dma.done [#allocation3], 3072
    $region25: #{residual_cbn_decoder_forward.8} parent=1 // pred_fallthru
      _
    // Predicated region
    $region26: #{residual_cbn_decoder_forward.8} parent=1 // pred_check
      _
    $region27: #{residual_cbn_decoder_forward.8} parent=1 // pred_check_branch
      %58 = sbr.rel (0) target = $region29
    $region28: #{residual_cbn_decoder_forward.8} parent=1 // pred_region
      %59 = dma.done [#allocation5], 96
    $region29: #{residual_cbn_decoder_forward.8} parent=1 // pred_fallthru
      _
    // Predicated region
    $region30: #{residual_cbn_decoder_forward.8} parent=1 // pred_check
      _
    $region31: #{residual_cbn_decoder_forward.8} parent=1 // pred_check_branch
      %61 = sbr.rel (0) target = $region33
    $region32: #{residual_cbn_decoder_forward.8} parent=1 // pred_region
      %62 = dma.done [#allocation5], 512
    $region33: #{residual_cbn_decoder_forward.8} parent=1 // pred_fallthru
      _
    %v63 = vld [vmem:[%s0] sm:$0x3]
    %v64 = vld [vmem:[#allocation2] sm:$0xff]
    %v65 = vld [vmem:[#allocation2 + $0x8] sm:$0xff]
    %v66 = vld [vmem:[#allocation2 + $0x10] sm:$0xff]
    %v67 = vld [vmem:[#allocation2 + $0x18] sm:$0xff]
    %v68 = vld [vmem:[#allocation2 + $0x20] sm:$0xff]
    %v69 = vld [vmem:[#allocation2 + $0x28] sm:$0xff]
    %v70 = vld [vmem:[#allocation2 + $0x30] sm:$0xff]
    %v71 = vld [vmem:[#allocation2 + $0x38] sm:$0xff]
    %v72 = vld [vmem:[#allocation4] sm:$0x3]
    %v74 = vlaneseq
    %v75 = vshrl.u32 %v74, 7
    %v76 = vsub.s32 0, %v75
    %v77 = vrot.slane %v72, %v76
    %v78 = vlaneseq
    %v79 = vshrl.u32 %v78, 7
    %v80 = vsub.s32 1, %v79
    %v81 = vrot.slane %v72, %v80
    %vm84 = vcmask 261120
    %v86 = vsel %vm84, %v63, 0
    %88 = vmatprep.subr.mxu0 0.0
    %89 = vmatpush1.msra.mxu0 0.0
    %90 = vmatprep.subr.mxu0 0.0
    %91 = vmatpush1.msra.mxu0 0.0
    %92 = vmatprep.subr.mxu0 0.0
    %93 = vmatpush1.msra.mxu0 0.0
    %94 = vmatprep.subr.mxu0 0.0
    %95 = vmatpush1.msra.mxu0 0.0
    %96 = vmatprep.subr.mxu0 0.0
    %97 = vmatpush1.msra.mxu0 0.0
    %98 = vmatprep.subr.mxu0 0.0
    %99 = vmatpush1.msra.mxu0 0.0
    %100 = vmatprep.subr.mxu0 0.0
    %101 = vmatpush1.msra.mxu0 0.0
    %102 = vmatprep.subr.mxu0 0.0
    %103 = vmatpush1.msra.mxu0 0.0
    %104 = vmatprep.subr.mxu0 0.0
    %105 = vmatpush1.msra.mxu0 0.0
    %106 = vmatprep.subr.mxu0 0.0
    %107 = vmatpush1.msra.mxu0 0.0
    %108 = vmatprep.subr.mxu0 0.0
    %109 = vmatpush1.msra.mxu0 0.0
    %110 = vmatprep.subr.mxu0 0.0
    %111 = vmatpush1.msra.mxu0 0.0
    %112 = vmatprep.subr.mxu0 %v71
    %113 = vmatpush1.msra.mxu0 %v70
    %114 = vmatprep.subr.mxu0 %v69
    %115 = vmatpush1.msra.mxu0 %v68
    %116 = vmatprep.subr.mxu0 %v67
    %117 = vmatpush1.msra.mxu0 %v66
    %118 = vmatprep.subr.mxu0 %v65
    %119 = vmatpush1.msra.mxu0 %v64
    %120 = vmatprep.subr.mxu0 0.0
    %121 = vmatpush2.msra.mxu0 0.0
    %122 = vmatprep.subr.mxu0 0.0
    %123 = vmatpush2.msra.mxu0 0.0
    %124 = vmatprep.subr.mxu0 0.0
    %125 = vmatpush2.msra.mxu0 0.0
    %126 = vmatprep.subr.mxu0 0.0
    %127 = vmatpush2.msra.mxu0 0.0
    %128 = vmatprep.subr.mxu0 0.0
    %129 = vmatpush2.msra.mxu0 0.0
    %130 = vmatprep.subr.mxu0 0.0
    %131 = vmatpush2.msra.mxu0 0.0
    %132 = vmatprep.subr.mxu0 0.0
    %133 = vmatpush2.msra.mxu0 0.0
    %134 = vmatprep.subr.mxu0 0.0
    %135 = vmatpush2.msra.mxu0 0.0
    %136 = vmatprep.subr.mxu0 0.0
    %137 = vmatpush2.msra.mxu0 0.0
    %138 = vmatprep.subr.mxu0 0.0
    %139 = vmatpush2.msra.mxu0 0.0
    %140 = vmatprep.subr.mxu0 0.0
    %141 = vmatpush2.msra.mxu0 0.0
    %142 = vmatprep.subr.mxu0 0.0
    %143 = vmatpush2.msra.mxu0 0.0
    %144 = vmatprep.subr.mxu0 0.0
    %145 = vmatpush2.msra.mxu0 0.0
    %146 = vmatprep.subr.mxu0 0.0
    %147 = vmatpush2.msra.mxu0 0.0
    %148 = vmatprep.subr.mxu0 0.0
    %149 = vmatpush2.msra.mxu0 0.0
    %150 = vmatprep.subr.mxu0 0.0
    %151 = vmatpush2.msra.mxu0 0.0
    %152 = vmatprep.mubr.f32.mxu0 0.0
    %153 = vmatmul.mubr.f32.gmra.mxu0 %v86
    %v154 = vpop.f32.mrf.mxu0
    %v155 = vadd.f32 %v77, %v154
    %v156 = vpop.f32.mrf.mxu0
    %v157 = vadd.f32 %v81, %v156
    %158 = vdwg.mxu0
    %v161 = vcombine.low %v155, %v157
    %v163 = vunpack.c.l.s4 1983009808
    %v164 = vunpack.c.0.s8 %v163
    %v165 = vlaneseq
    %v166 = vshrl.u32 %v165, 7
    %v167 = vsub.s32 %v164, %v166
    %v168 = vrot.slane %v161, %v167
    %170 = vst [vmem:[%s5] sm:$0xf] %v168
    %s171 = scalar_lea.vmem %s0, 2
    %v172 = vld [vmem:[%s171] sm:$0x3]
    %s173 = scalar_lea.vmem [#allocation2], 64
    %v174 = vld [vmem:[%s173] sm:$0xff]
    %v175 = vld [vmem:[%s173 + $0x8] sm:$0xff]
    %v176 = vld [vmem:[%s173 + $0x10] sm:$0xff]
    %v177 = vld [vmem:[%s173 + $0x18] sm:$0xff]
    %v178 = vld [vmem:[%s173 + $0x20] sm:$0xff]
    %v179 = vld [vmem:[%s173 + $0x28] sm:$0xff]
    %v180 = vld [vmem:[%s173 + $0x30] sm:$0xff]
    %v181 = vld [vmem:[%s173 + $0x38] sm:$0xff]
    %s182 = scalar_lea.vmem [#allocation4], 2
    %v183 = vld [vmem:[%s182] sm:$0x3]
    %v185 = vlaneseq
    %v186 = vshrl.u32 %v185, 7
    %v187 = vsub.s32 0, %v186
    %v188 = vrot.slane %v183, %v187
    %v189 = vlaneseq
    %v190 = vshrl.u32 %v189, 7
    %v191 = vsub.s32 1, %v190
    %v192 = vrot.slane %v183, %v191
    %v196 = vsel %vm84, %v172, 0
    %198 = vmatprep.subr.mxu0 0.0
    %199 = vmatpush1.msra.mxu0 0.0
    %200 = vmatprep.subr.mxu0 0.0
    %201 = vmatpush1.msra.mxu0 0.0
    %202 = vmatprep.subr.mxu0 0.0
    %203 = vmatpush1.msra.mxu0 0.0
    %204 = vmatprep.subr.mxu0 0.0
    %205 = vmatpush1.msra.mxu0 0.0
    %206 = vmatprep.subr.mxu0 0.0
    %207 = vmatpush1.msra.mxu0 0.0
    %208 = vmatprep.subr.mxu0 0.0
    %209 = vmatpush1.msra.mxu0 0.0
    %210 = vmatprep.subr.mxu0 0.0
    %211 = vmatpush1.msra.mxu0 0.0
    %212 = vmatprep.subr.mxu0 0.0
    %213 = vmatpush1.msra.mxu0 0.0
    %214 = vmatprep.subr.mxu0 0.0
    %215 = vmatpush1.msra.mxu0 0.0
    %216 = vmatprep.subr.mxu0 0.0
    %217 = vmatpush1.msra.mxu0 0.0
    %218 = vmatprep.subr.mxu0 0.0
    %219 = vmatpush1.msra.mxu0 0.0
    %220 = vmatprep.subr.mxu0 0.0
    %221 = vmatpush1.msra.mxu0 0.0
    %222 = vmatprep.subr.mxu0 %v181
    %223 = vmatpush1.msra.mxu0 %v180
    %224 = vmatprep.subr.mxu0 %v179
    %225 = vmatpush1.msra.mxu0 %v178
    %226 = vmatprep.subr.mxu0 %v177
    %227 = vmatpush1.msra.mxu0 %v176
    %228 = vmatprep.subr.mxu0 %v175
    %229 = vmatpush1.msra.mxu0 %v174
    %230 = vmatprep.subr.mxu0 0.0
    %231 = vmatpush2.msra.mxu0 0.0
    %232 = vmatprep.subr.mxu0 0.0
    %233 = vmatpush2.msra.mxu0 0.0
    %234 = vmatprep.subr.mxu0 0.0
    %235 = vmatpush2.msra.mxu0 0.0
    %236 = vmatprep.subr.mxu0 0.0
    %237 = vmatpush2.msra.mxu0 0.0
    %238 = vmatprep.subr.mxu0 0.0
    %239 = vmatpush2.msra.mxu0 0.0
    %240 = vmatprep.subr.mxu0 0.0
    %241 = vmatpush2.msra.mxu0 0.0
    %242 = vmatprep.subr.mxu0 0.0
    %243 = vmatpush2.msra.mxu0 0.0
    %244 = vmatprep.subr.mxu0 0.0
    %245 = vmatpush2.msra.mxu0 0.0
    %246 = vmatprep.subr.mxu0 0.0
    %247 = vmatpush2.msra.mxu0 0.0
    %248 = vmatprep.subr.mxu0 0.0
    %249 = vmatpush2.msra.mxu0 0.0
    %250 = vmatprep.subr.mxu0 0.0
    %251 = vmatpush2.msra.mxu0 0.0
    %252 = vmatprep.subr.mxu0 0.0
    %253 = vmatpush2.msra.mxu0 0.0
    %254 = vmatprep.subr.mxu0 0.0
    %255 = vmatpush2.msra.mxu0 0.0
    %256 = vmatprep.subr.mxu0 0.0
    %257 = vmatpush2.msra.mxu0 0.0
    %258 = vmatprep.subr.mxu0 0.0
    %259 = vmatpush2.msra.mxu0 0.0
    %260 = vmatprep.subr.mxu0 0.0
    %261 = vmatpush2.msra.mxu0 0.0
    %262 = vmatprep.mubr.f32.mxu0 0.0
    %263 = vmatmul.mubr.f32.gmra.mxu0 %v196
    %v264 = vpop.f32.mrf.mxu0
    %v265 = vadd.f32 %v188, %v264
    %v266 = vpop.f32.mrf.mxu0
    %v267 = vadd.f32 %v192, %v266
    %268 = vdwg.mxu0
    %v271 = vcombine.low %v265, %v267
    %v273 = vunpack.c.l.s4 1983009808
    %v274 = vunpack.c.0.s8 %v273
    %v275 = vlaneseq
    %v276 = vshrl.u32 %v275, 7
    %v277 = vsub.s32 %v274, %v276
    %v278 = vrot.slane %v271, %v277
    %s280 = scalar_lea.vmem %s5, 4
    %281 = vst [vmem:[%s280] sm:$0xf] %v278
    %s282 = scalar_lea.vmem %s0, 4
    %v283 = vld [vmem:[%s282] sm:$0x3]
    %s284 = scalar_lea.vmem [#allocation2], 128
    %v285 = vld [vmem:[%s284] sm:$0xff]
    %v286 = vld [vmem:[%s284 + $0x8] sm:$0xff]
    %v287 = vld [vmem:[%s284 + $0x10] sm:$0xff]
    %v288 = vld [vmem:[%s284 + $0x18] sm:$0xff]
    %v289 = vld [vmem:[%s284 + $0x20] sm:$0xff]
    %v290 = vld [vmem:[%s284 + $0x28] sm:$0xff]
    %v291 = vld [vmem:[%s284 + $0x30] sm:$0xff]
    %v292 = vld [vmem:[%s284 + $0x38] sm:$0xff]
    %s293 = scalar_lea.vmem [#allocation4], 4
    %v294 = vld [vmem:[%s293] sm:$0x3]
    %v296 = vlaneseq
    %v297 = vshrl.u32 %v296, 7
    %v298 = vsub.s32 0, %v297
    %v299 = vrot.slane %v294, %v298
    %v300 = vlaneseq
    %v301 = vshrl.u32 %v300, 7
    %v302 = vsub.s32 1, %v301
    %v303 = vrot.slane %v294, %v302
    %v307 = vsel %vm84, %v283, 0
    %309 = vmatprep.subr.mxu0 0.0
    %310 = vmatpush1.msra.mxu0 0.0
    %311 = vmatprep.subr.mxu0 0.0
    %312 = vmatpush1.msra.mxu0 0.0
    %313 = vmatprep.subr.mxu0 0.0
    %314 = vmatpush1.msra.mxu0 0.0
    %315 = vmatprep.subr.mxu0 0.0
    %316 = vmatpush1.msra.mxu0 0.0
    %317 = vmatprep.subr.mxu0 0.0
    %318 = vmatpush1.msra.mxu0 0.0
    %319 = vmatprep.subr.mxu0 0.0
    %320 = vmatpush1.msra.mxu0 0.0
    %321 = vmatprep.subr.mxu0 0.0
    %322 = vmatpush1.msra.mxu0 0.0
    %323 = vmatprep.subr.mxu0 0.0
    %324 = vmatpush1.msra.mxu0 0.0
    %325 = vmatprep.subr.mxu0 0.0
    %326 = vmatpush1.msra.mxu0 0.0
    %327 = vmatprep.subr.mxu0 0.0
    %328 = vmatpush1.msra.mxu0 0.0
    %329 = vmatprep.subr.mxu0 0.0
    %330 = vmatpush1.msra.mxu0 0.0
    %331 = vmatprep.subr.mxu0 0.0
    %332 = vmatpush1.msra.mxu0 0.0
    %333 = vmatprep.subr.mxu0 %v292
    %334 = vmatpush1.msra.mxu0 %v291
    %335 = vmatprep.subr.mxu0 %v290
    %336 = vmatpush1.msra.mxu0 %v289
    %337 = vmatprep.subr.mxu0 %v288
    %338 = vmatpush1.msra.mxu0 %v287
    %339 = vmatprep.subr.mxu0 %v286
    %340 = vmatpush1.msra.mxu0 %v285
    %341 = vmatprep.subr.mxu0 0.0
    %342 = vmatpush2.msra.mxu0 0.0
    %343 = vmatprep.subr.mxu0 0.0
    %344 = vmatpush2.msra.mxu0 0.0
    %345 = vmatprep.subr.mxu0 0.0
    %346 = vmatpush2.msra.mxu0 0.0
    %347 = vmatprep.subr.mxu0 0.0
    %348 = vmatpush2.msra.mxu0 0.0
    %349 = vmatprep.subr.mxu0 0.0
    %350 = vmatpush2.msra.mxu0 0.0
    %351 = vmatprep.subr.mxu0 0.0
    %352 = vmatpush2.msra.mxu0 0.0
    %353 = vmatprep.subr.mxu0 0.0
    %354 = vmatpush2.msra.mxu0 0.0
    %355 = vmatprep.subr.mxu0 0.0
    %356 = vmatpush2.msra.mxu0 0.0
    %357 = vmatprep.subr.mxu0 0.0
    %358 = vmatpush2.msra.mxu0 0.0
    %359 = vmatprep.subr.mxu0 0.0
    %360 = vmatpush2.msra.mxu0 0.0
    %361 = vmatprep.subr.mxu0 0.0
    %362 = vmatpush2.msra.mxu0 0.0
    %363 = vmatprep.subr.mxu0 0.0
    %364 = vmatpush2.msra.mxu0 0.0
    %365 = vmatprep.subr.mxu0 0.0
    %366 = vmatpush2.msra.mxu0 0.0
    %367 = vmatprep.subr.mxu0 0.0
    %368 = vmatpush2.msra.mxu0 0.0
    %369 = vmatprep.subr.mxu0 0.0
    %370 = vmatpush2.msra.mxu0 0.0
    %371 = vmatprep.subr.mxu0 0.0
    %372 = vmatpush2.msra.mxu0 0.0
    %373 = vmatprep.mubr.f32.mxu0 0.0
    %374 = vmatmul.mubr.f32.gmra.mxu0 %v307
    %v375 = vpop.f32.mrf.mxu0
    %v376 = vadd.f32 %v299, %v375
    %v377 = vpop.f32.mrf.mxu0
    %v378 = vadd.f32 %v303, %v377
    %379 = vdwg.mxu0
    %v382 = vcombine.low %v376, %v378
    %v384 = vunpack.c.l.s4 1983009808
    %v385 = vunpack.c.0.s8 %v384
    %v386 = vlaneseq
    %v387 = vshrl.u32 %v386, 7
    %v388 = vsub.s32 %v385, %v387
    %v389 = vrot.slane %v382, %v388
    %s391 = scalar_lea.vmem %s5, 8
    %392 = vst [vmem:[%s391] sm:$0xf] %v389
    %v393 = vld [vmem:[%s3] sm:$0x3]
    %v394 = vld [vmem:[#allocation6] sm:$0xff]
    %v395 = vld [vmem:[#allocation6 + $0x8] sm:$0xff]
    %v396 = vld [vmem:[#allocation6 + $0x10] sm:$0xff]
    %v397 = vld [vmem:[#allocation6 + $0x18] sm:$0xff]
    %v399 = vsel %vm84, %v393, 0
    %401 = vmatprep.subr.mxu0 0.0
    %402 = vmatpush1.msra.mxu0 0.0
    %403 = vmatprep.subr.mxu0 0.0
    %404 = vmatpush1.msra.mxu0 0.0
    %405 = vmatprep.subr.mxu0 0.0
    %406 = vmatpush1.msra.mxu0 0.0
    %407 = vmatprep.subr.mxu0 0.0
    %408 = vmatpush1.msra.mxu0 0.0
    %409 = vmatprep.subr.mxu0 0.0
    %410 = vmatpush1.msra.mxu0 0.0
    %411 = vmatprep.subr.mxu0 0.0
    %412 = vmatpush1.msra.mxu0 0.0
    %413 = vmatprep.subr.mxu0 0.0
    %414 = vmatpush1.msra.mxu0 0.0
    %415 = vmatprep.subr.mxu0 0.0
    %416 = vmatpush1.msra.mxu0 0.0
    %417 = vmatprep.subr.mxu0 0.0
    %418 = vmatpush1.msra.mxu0 0.0
    %419 = vmatprep.subr.mxu0 0.0
    %420 = vmatpush1.msra.mxu0 0.0
    %421 = vmatprep.subr.mxu0 0.0
    %422 = vmatpush1.msra.mxu0 0.0
    %423 = vmatprep.subr.mxu0 0.0
    %424 = vmatpush1.msra.mxu0 0.0
    %425 = vmatprep.subr.mxu0 0.0
    %426 = vmatpush1.msra.mxu0 %v397
    %427 = vmatprep.subr.mxu0 0.0
    %428 = vmatpush1.msra.mxu0 %v396
    %429 = vmatprep.subr.mxu0 0.0
    %430 = vmatpush1.msra.mxu0 %v395
    %431 = vmatprep.subr.mxu0 0.0
    %432 = vmatpush1.msra.mxu0 %v394
    %433 = vmatprep.subr.mxu0 0.0
    %434 = vmatpush2.msra.mxu0 0.0
    %435 = vmatprep.subr.mxu0 0.0
    %436 = vmatpush2.msra.mxu0 0.0
    %437 = vmatprep.subr.mxu0 0.0
    %438 = vmatpush2.msra.mxu0 0.0
    %439 = vmatprep.subr.mxu0 0.0
    %440 = vmatpush2.msra.mxu0 0.0
    %441 = vmatprep.subr.mxu0 0.0
    %442 = vmatpush2.msra.mxu0 0.0
    %443 = vmatprep.subr.mxu0 0.0
    %444 = vmatpush2.msra.mxu0 0.0
    %445 = vmatprep.subr.mxu0 0.0
    %446 = vmatpush2.msra.mxu0 0.0
    %447 = vmatprep.subr.mxu0 0.0
    %448 = vmatpush2.msra.mxu0 0.0
    %449 = vmatprep.subr.mxu0 0.0
    %450 = vmatpush2.msra.mxu0 0.0
    %451 = vmatprep.subr.mxu0 0.0
    %452 = vmatpush2.msra.mxu0 0.0
    %453 = vmatprep.subr.mxu0 0.0
    %454 = vmatpush2.msra.mxu0 0.0
    %455 = vmatprep.subr.mxu0 0.0
    %456 = vmatpush2.msra.mxu0 0.0
    %457 = vmatprep.subr.mxu0 0.0
    %458 = vmatpush2.msra.mxu0 0.0
    %459 = vmatprep.subr.mxu0 0.0
    %460 = vmatpush2.msra.mxu0 0.0
    %461 = vmatprep.subr.mxu0 0.0
    %462 = vmatpush2.msra.mxu0 0.0
    %463 = vmatprep.subr.mxu0 0.0
    %464 = vmatpush2.msra.mxu0 0.0
    %465 = vmatprep.mubr.f32.mxu0 0.0
    %466 = vmatmul.mubr.f32.gmra.mxu0 %v399
    %v467 = vpop.f32.mrf.mxu0
    %v468 = vadd.f32 0.0, %v467
    %v469 = vpop.f32.mrf.mxu0
    %470 = vdwg.mxu0
    %471 = vst [vmem:[%s6] sm:$0x3] %v468
    // Predicated region
    $region34: #{residual_cbn_decoder_forward.8} parent=1 // pred_check
      _
    $region35: #{residual_cbn_decoder_forward.8} parent=1 // pred_check_branch
      %473 = sbr.rel (0) target = $region37
    $region36: #{residual_cbn_decoder_forward.8} parent=1 // pred_region
      _
    $region37: #{residual_cbn_decoder_forward.8} parent=1 // pred_fallthru
      _
    // Predicated region
    $region38: #{residual_cbn_decoder_forward.8} parent=1 // pred_check
      _
    $region39: #{residual_cbn_decoder_forward.8} parent=1 // pred_check_branch
      %475 = sbr.rel (0) target = $region41
    $region40: #{residual_cbn_decoder_forward.8} parent=1 // pred_region
      _
    $region41: #{residual_cbn_decoder_forward.8} parent=1 // pred_fallthru
      _
    // Predicated region
    $region42: #{residual_cbn_decoder_forward.8} parent=1 // pred_check
      _
    $region43: #{residual_cbn_decoder_forward.8} parent=1 // pred_check_branch
      %477 = sbr.rel (0) target = $region45
    $region44: #{residual_cbn_decoder_forward.8} parent=1 // pred_region
      _
    $region45: #{residual_cbn_decoder_forward.8} parent=1 // pred_fallthru
      _
    // Predicated region
    $region46: #{residual_cbn_decoder_forward.8} parent=1 // pred_check
      _
    $region47: #{residual_cbn_decoder_forward.8} parent=1 // pred_check_branch
      %479 = sbr.rel (0) target = $region49
    $region48: #{residual_cbn_decoder_forward.8} parent=1 // pred_region
      _
    $region49: #{residual_cbn_decoder_forward.8} parent=1 // pred_fallthru
      _
    %480 = vsyncpa [#allocation3], 1
    %481 = vsyncpa [#allocation5], 1

// kernel: residual_cbn_decoder_forward.10
$region0: #{residual_cbn_decoder_forward.10}
  #allocation0 [shape = 'u32[]', space=smem, size = 0x4, offset = 0x4, fixed_abs, tag = 'smem constant byte address 0x4 - core index']
  #allocation1 [shape = 'u32[144,128]{1,0:T(1,128)}', space=vmem, size = 0x12000, scoped, tag = 'internal scratch']
  %s0 = inlined_call_operand.vmem [shape: bf16[2,1024,128], index: 0, kind: input, shape index: {}]
  %s1 = inlined_call_operand.vmem [shape: f32[2,1,64], index: 1, kind: input, shape index: {}]
  %s2 = inlined_call_operand.vmem [shape: f32[2,1,64], index: 2, kind: input, shape index: {}]
  %s3 = inlined_call_operand.vmem [shape: bf16[64,64], index: 3, kind: input, shape index: {}]
  %s4 = inlined_call_operand.vmem [shape: f32[1,64], index: 4, kind: input, shape index: {}]
  %s5 = inlined_call_operand.vmem [shape: bf16[2,1024,128], index: 5, kind: output, shape index: {0}]
  %s6 = inlined_call_operand.vmem [shape: f32[2,2,8,128], index: 6, kind: output, shape index: {1}]
  %7 = xla_tuple %s5, %s6
  %s8 = sld [smem:[#allocation0]]
  $region61: #{residual_cbn_decoder_forward.10} parent=0
    _
  %s10 = ssub.s32 1, %s8
  %s11 = scalar_select 0, %s10, %s8
  loop: start=0, step=1, limit=6
  $region2: #{residual_cbn_decoder_forward.10} parent=0 // loop_pre_header
    _
  $region3: #{residual_cbn_decoder_forward.10} parent=0 // loop_header
    %s13 = sphi 0, %s17
    %p14 = scmp.ge.s32.totalorder %s13, 6
    %s20 = sphi 0, %s32
    %s21 = sphi 0, %s28
    %s22 = sphi 0, %s20
    %s23 = sphi 0, %s21
    %s24 = sphi 0, %s22
    %s25 = sphi 0, %s23
    %s37 = sphi 0, %s39
    %s40 = sphi 0, %s37
    %s41 = sphi 0, %s40
    %s57 = sphi 0, %s41
    %s63 = sphi 0, %s65
    %s66 = sphi 0, %s63
    %s67 = sphi 0, %s66
    %s83 = sphi 0, %s67
    %s89 = sphi 0, %s91
    %s92 = sphi 0, %s89
    %s93 = sphi 0, %s92
    %s109 = sphi 0, %s93
    %s113 = sphi 0, %s113
    %s115 = sphi 0, %s113
    %s116 = sphi 0, %s115
    %s130 = sphi 0, %s116
    %s134 = sphi 0, %s134
    %s136 = sphi 0, %s134
    %s137 = sphi 0, %s136
    %s151 = sphi 0, %s137
    %s159 = sphi 0, %s161
    %s162 = sphi 0, %s159
    %s163 = sphi 0, %s162
    %s179 = sphi 0, %s163
    %s187 = sphi 0, %s189
    %s190 = sphi 0, %s187
    %s191 = sphi 0, %s190
    %s207 = sphi 0, %s191
  $region4: #{residual_cbn_decoder_forward.10} parent=0 // loop_header_branch
    %16 = sbr.rel (%p14) target = $region8
  $region5: #{residual_cbn_decoder_forward.10} parent=0 // loop_body
    %s18 = ssub.s32 %s13, 1
    %s19 = ssub.s32 %s13, 2
    %s26 = sadd.s32 1, %s21
    %p27 = scmp.ge.s32.totalorder %s26, 2
    %s28 = scalar_select %p27, 0, %s26
    %s29 = sadd.s32 1, %s20
    %s30 = scalar_select %p27, %s29, %s20
    %p31 = scmp.ge.s32.totalorder %s30, 2
    %s32 = scalar_select %p31, 0, %s30
    %s33 = ssub.s32 %s20, %s32
    %s34 = ssub.s32 %s21, %s28
    %s35 = sor.u32 %s33, %s34
    %p36 = scmp.eq.s32.totalorder %s35, 0
    %s38 = sadd.s32 %s37, 1
    %s39 = scalar_select %p36, %s37, %s38
    %p42 = pneg %p36
    %p43 = scmp.eq.s32.totalorder %s13, 3
    %p44 = por %p42, %p43
    %p45 = scmp.ne.s32.totalorder %s37, %s40
    %p46 = scmp.eq.s32.totalorder %s13, 0
    %p47 = por %p45, %p46
    %p48 = scmp.ne.s32.totalorder %s37, %s40
    %p49 = scmp.eq.s32.totalorder %s18, 3
    %p50 = por %p48, %p49
    %p51 = scmp.ne.s32.totalorder %s40, %s41
    %p52 = scmp.eq.s32.totalorder %s18, 0
    %p53 = por %p51, %p52
    %p54 = scmp.ne.s32.totalorder %s40, %s41
    %p55 = scmp.eq.s32.totalorder %s19, 3
    %p56 = por %p54, %p55
    %p58 = scmp.ne.s32.totalorder %s41, %s57
    %p59 = scmp.eq.s32.totalorder %s19, 0
    %p60 = por %p58, %p59
    %s61 = ssub.s32 %s20, %s32
    %p62 = scmp.eq.s32.totalorder %s61, 0
    %s64 = sadd.s32 %s63, 1
    %s65 = scalar_select %p62, %s63, %s64
    %p68 = pneg %p62
    %p69 = scmp.eq.s32.totalorder %s13, 3
    %p70 = por %p68, %p69
    %p71 = scmp.ne.s32.totalorder %s63, %s66
    %p72 = scmp.eq.s32.totalorder %s13, 0
    %p73 = por %p71, %p72
    %p74 = scmp.ne.s32.totalorder %s63, %s66
    %p75 = scmp.eq.s32.totalorder %s18, 3
    %p76 = por %p74, %p75
    %p77 = scmp.ne.s32.totalorder %s66, %s67
    %p78 = scmp.eq.s32.totalorder %s18, 0
    %p79 = por %p77, %p78
    %p80 = scmp.ne.s32.totalorder %s66, %s67
    %p81 = scmp.eq.s32.totalorder %s19, 3
    %p82 = por %p80, %p81
    %p84 = scmp.ne.s32.totalorder %s67, %s83
    %p85 = scmp.eq.s32.totalorder %s19, 0
    %p86 = por %p84, %p85
    %s87 = ssub.s32 %s20, %s32
    %p88 = scmp.eq.s32.totalorder %s87, 0
    %s90 = sadd.s32 %s89, 1
    %s91 = scalar_select %p88, %s89, %s90
    %p94 = pneg %p88
    %p95 = scmp.eq.s32.totalorder %s13, 3
    %p96 = por %p94, %p95
    %p97 = scmp.ne.s32.totalorder %s89, %s92
    %p98 = scmp.eq.s32.totalorder %s13, 0
    %p99 = por %p97, %p98
    %p100 = scmp.ne.s32.totalorder %s89, %s92
    %p101 = scmp.eq.s32.totalorder %s18, 3
    %p102 = por %p100, %p101
    %p103 = scmp.ne.s32.totalorder %s92, %s93
    %p104 = scmp.eq.s32.totalorder %s18, 0
    %p105 = por %p103, %p104
    %p106 = scmp.ne.s32.totalorder %s92, %s93
    %p107 = scmp.eq.s32.totalorder %s19, 3
    %p108 = por %p106, %p107
    %p110 = scmp.ne.s32.totalorder %s93, %s109
    %p111 = scmp.eq.s32.totalorder %s19, 0
    %p112 = por %p110, %p111
    %s114 = sadd.s32 %s113, 1
    %p117 = scmp.eq.s32.totalorder %s13, 3
    %p118 = scmp.ne.s32.totalorder %s113, %s115
    %p119 = scmp.eq.s32.totalorder %s13, 0
    %p120 = por %p118, %p119
    %p121 = scmp.ne.s32.totalorder %s113, %s115
    %p122 = scmp.eq.s32.totalorder %s18, 3
    %p123 = por %p121, %p122
    %p124 = scmp.ne.s32.totalorder %s115, %s116
    %p125 = scmp.eq.s32.totalorder %s18, 0
    %p126 = por %p124, %p125
    %p127 = scmp.ne.s32.totalorder %s115, %s116
    %p128 = scmp.eq.s32.totalorder %s19, 3
    %p129 = por %p127, %p128
    %p131 = scmp.ne.s32.totalorder %s116, %s130
    %p132 = scmp.eq.s32.totalorder %s19, 0
    %p133 = por %p131, %p132
    %s135 = sadd.s32 %s134, 1
    %p138 = scmp.eq.s32.totalorder %s13, 3
    %p139 = scmp.ne.s32.totalorder %s134, %s136
    %p140 = scmp.eq.s32.totalorder %s13, 0
    %p141 = por %p139, %p140
    %p142 = scmp.ne.s32.totalorder %s134, %s136
    %p143 = scmp.eq.s32.totalorder %s18, 3
    %p144 = por %p142, %p143
    %p145 = scmp.ne.s32.totalorder %s136, %s137
    %p146 = scmp.eq.s32.totalorder %s18, 0
    %p147 = por %p145, %p146
    %p148 = scmp.ne.s32.totalorder %s136, %s137
    %p149 = scmp.eq.s32.totalorder %s19, 3
    %p150 = por %p148, %p149
    %p152 = scmp.ne.s32.totalorder %s137, %s151
    %p153 = scmp.eq.s32.totalorder %s19, 0
    %p154 = por %p152, %p153
    %s155 = ssub.s32 %s20, %s32
    %s156 = ssub.s32 %s21, %s28
    %s157 = sor.u32 %s155, %s156
    %p158 = scmp.eq.s32.totalorder %s157, 0
    %s160 = sadd.s32 %s159, 1
    %s161 = scalar_select %p158, %s159, %s160
    %p164 = pneg %p158
    %p165 = scmp.eq.s32.totalorder %s13, 3
    %p166 = por %p164, %p165
    %p167 = scmp.ne.s32.totalorder %s159, %s162
    %p168 = scmp.eq.s32.totalorder %s13, 0
    %p169 = por %p167, %p168
    %p170 = scmp.ne.s32.totalorder %s159, %s162
    %p171 = scmp.eq.s32.totalorder %s18, 3
    %p172 = por %p170, %p171
    %p173 = scmp.ne.s32.totalorder %s162, %s163
    %p174 = scmp.eq.s32.totalorder %s18, 0
    %p175 = por %p173, %p174
    %p176 = scmp.ne.s32.totalorder %s162, %s163
    %p177 = scmp.eq.s32.totalorder %s19, 3
    %p178 = por %p176, %p177
    %p180 = scmp.ne.s32.totalorder %s163, %s179
    %p181 = scmp.eq.s32.totalorder %s19, 0
    %p182 = por %p180, %p181
    %s183 = ssub.s32 %s20, %s32
    %s184 = ssub.s32 %s21, %s28
    %s185 = sor.u32 %s183, %s184
    %p186 = scmp.eq.s32.totalorder %s185, 0
    %s188 = sadd.s32 %s187, 1
    %s189 = scalar_select %p186, %s187, %s188
    %p192 = pneg %p186
    %p193 = scmp.eq.s32.totalorder %s13, 3
    %p194 = por %p192, %p193
    %p195 = scmp.ne.s32.totalorder %s187, %s190
    %p196 = scmp.eq.s32.totalorder %s13, 0
    %p197 = por %p195, %p196
    %p198 = scmp.ne.s32.totalorder %s187, %s190
    %p199 = scmp.eq.s32.totalorder %s18, 3
    %p200 = por %p198, %p199
    %p201 = scmp.ne.s32.totalorder %s190, %s191
    %p202 = scmp.eq.s32.totalorder %s18, 0
    %p203 = por %p201, %p202
    %p204 = scmp.ne.s32.totalorder %s190, %s191
    %p205 = scmp.eq.s32.totalorder %s19, 3
    %p206 = por %p204, %p205
    %p208 = scmp.ne.s32.totalorder %s191, %s207
    %p209 = scmp.eq.s32.totalorder %s19, 0
    %p210 = por %p208, %p209
    %p211 = scmp.le.s32.totalorder 1, %s13
    %p212 = scmp.lt.s32.totalorder %s13, 5
    %p213 = pnand %p211, %p212
    %p214 = pneg %p213
    // Predicated region
    $region9: #{residual_cbn_decoder_forward.10} parent=5 // pred_check
      _
    $region10: #{residual_cbn_decoder_forward.10} parent=5 // pred_check_branch
      %216 = sbr.rel (%p213) target = $region12
    $region11: #{residual_cbn_decoder_forward.10} parent=5 // pred_region
      %s217 = ssub.s32 %s13, 1
      // Predicated region
      $region13: #{residual_cbn_decoder_forward.10} parent=11 // pred_check
        %p218 = pneg %p126
      $region14: #{residual_cbn_decoder_forward.10} parent=11 // pred_check_branch
        %220 = sbr.rel (%p218) target = $region16
      $region15: #{residual_cbn_decoder_forward.10} parent=11 // pred_region
        _
      $region16: #{residual_cbn_decoder_forward.10} parent=11 // pred_fallthru
        _
      // Predicated region
      $region17: #{residual_cbn_decoder_forward.10} parent=11 // pred_check
        %p221 = pneg %p147
      $region18: #{residual_cbn_decoder_forward.10} parent=11 // pred_check_branch
        %223 = sbr.rel (%p221) target = $region20
      $region19: #{residual_cbn_decoder_forward.10} parent=11 // pred_region
        _
      $region20: #{residual_cbn_decoder_forward.10} parent=11 // pred_fallthru
        _
    $region12: #{residual_cbn_decoder_forward.10} parent=5 // pred_fallthru
      _
    %p224 = scmp.lt.s32.totalorder %s13, 4
    // Predicated region
    $region21: #{residual_cbn_decoder_forward.10} parent=5 // pred_check
      %p225 = pneg %p224
    $region22: #{residual_cbn_decoder_forward.10} parent=5 // pred_check_branch
      %227 = sbr.rel (%p225) target = $region24
    $region23: #{residual_cbn_decoder_forward.10} parent=5 // pred_region
      // Predicated region
      $region25: #{residual_cbn_decoder_forward.10} parent=23 // pred_check
        %p228 = pneg %p47
      $region26: #{residual_cbn_decoder_forward.10} parent=23 // pred_check_branch
        %230 = sbr.rel (%p228) target = $region28
      $region27: #{residual_cbn_decoder_forward.10} parent=23 // pred_region
        %s231 = smul.u32 64, %s21
        %p232 = scmp.lt.s32.totalorder %s20, 1
        %s233 = scalar_select %p232, %s20, 1
        %p234 = scmp.lt.s32.totalorder %s231, 127
        %s235 = scalar_select %p234, %s231, 127
        %s236 = smul.addr %s233, 128
        %s237 = sadd.s32 %s235, %s236
        %s238 = smul.addr %s237, 4
        %s239 = scalar_lea.vmem %s0, %s238
        %s240 = smul.u32 64, %s21
      $region28: #{residual_cbn_decoder_forward.10} parent=23 // pred_fallthru
        _
      // Predicated region
      $region29: #{residual_cbn_decoder_forward.10} parent=23 // pred_check
        %p241 = pneg %p73
      $region30: #{residual_cbn_decoder_forward.10} parent=23 // pred_check_branch
        %243 = sbr.rel (%p241) target = $region32
      $region31: #{residual_cbn_decoder_forward.10} parent=23 // pred_region
        %p244 = scmp.lt.s32.totalorder %s20, 1
        %s245 = scalar_select %p244, %s20, 1
        %s246 = scalar_lea.vmem %s1, %s245
      $region32: #{residual_cbn_decoder_forward.10} parent=23 // pred_fallthru
        _
      // Predicated region
      $region33: #{residual_cbn_decoder_forward.10} parent=23 // pred_check
        %p247 = pneg %p99
      $region34: #{residual_cbn_decoder_forward.10} parent=23 // pred_check_branch
        %249 = sbr.rel (%p247) target = $region36
      $region35: #{residual_cbn_decoder_forward.10} parent=23 // pred_region
        %p250 = scmp.lt.s32.totalorder %s20, 1
        %s251 = scalar_select %p250, %s20, 1
        %s252 = scalar_lea.vmem %s2, %s251
      $region36: #{residual_cbn_decoder_forward.10} parent=23 // pred_fallthru
        _
    $region24: #{residual_cbn_decoder_forward.10} parent=5 // pred_fallthru
      _
    %p253 = scmp.le.s32.totalorder 1, %s13
    %p254 = scmp.lt.s32.totalorder %s13, 5
    %p255 = pnand %p253, %p254
    %p256 = pneg %p255
    // Predicated region
    $region37: #{residual_cbn_decoder_forward.10} parent=5 // pred_check
      _
    $region38: #{residual_cbn_decoder_forward.10} parent=5 // pred_check_branch
      %258 = sbr.rel (%p255) target = $region40
    $region39: #{residual_cbn_decoder_forward.10} parent=5 // pred_region
      %s259 = ssub.s32 %s13, 1
      %s260 = smul.u32 64, %s23
      %p261 = scmp.lt.s32.totalorder %s22, 1
      %s262 = scalar_select %p261, %s22, 1
      %p263 = scmp.lt.s32.totalorder %s260, 127
      %s264 = scalar_select %p263, %s260, 127
      %s265 = smul.addr %s262, 128
      %s266 = sadd.s32 %s264, %s265
      %s267 = smul.addr %s266, 4
      %s268 = scalar_lea.vmem %s0, %s267
      %p269 = pneg %p53
      %p270 = pneg %p50
      %p271 = scmp.lt.s32.totalorder %s22, 1
      %s272 = scalar_select %p271, %s22, 1
      %s273 = scalar_lea.vmem %s1, %s272
      %p274 = pneg %p79
      %p275 = pneg %p76
      %p276 = scmp.lt.s32.totalorder %s22, 1
      %s277 = scalar_select %p276, %s22, 1
      %s278 = scalar_lea.vmem %s2, %s277
      %p279 = pneg %p105
      %p280 = pneg %p102
      %p281 = pneg %p126
      %p282 = pneg %p123
      %p283 = pneg %p147
      %p284 = pneg %p144
      %p285 = pneg %p175
      %p286 = pneg %p172
      %s287 = smul.u32 64, %s23
      %p288 = scmp.lt.s32.totalorder %s22, 1
      %s289 = scalar_select %p288, %s22, 1
      %p290 = scmp.lt.s32.totalorder %s287, 127
      %s291 = scalar_select %p290, %s287, 127
      %s292 = smul.addr %s289, 128
      %s293 = sadd.s32 %s291, %s292
      %s294 = smul.addr %s293, 4
      %s295 = scalar_lea.vmem %s5, %s294
      %p296 = pneg %p203
      %p297 = pneg %p200
      %p298 = scmp.lt.s32.totalorder %s22, 1
      %s299 = scalar_select %p298, %s22, 1
      %p300 = scmp.lt.s32.totalorder %s23, 1
      %s301 = scalar_select %p300, %s23, 1
      %s302 = smul.addr %s299, 2
      %s303 = sadd.s32 %s301, %s302
      %s304 = smul.addr %s303, 8
      %s305 = scalar_lea.vmem %s6, %s304
      %s306 = smul.u32 64, %s23
      %p307 = scmp.lt.s32.totalorder %s22, 1
      %s308 = scalar_select %p307, %s22, 1
      %p309 = scmp.lt.s32.totalorder %s306, 127
      %s310 = scalar_select %p309, %s306, 127
      %s311 = smul.addr %s308, 128
      %s312 = sadd.s32 %s310, %s311
      %s313 = smul.addr %s312, 4
      %s314 = scalar_lea.vmem %s0, %s313
      %s315 = smul.u32 64, %s23
      %p316 = scmp.lt.s32.totalorder %s22, 1
      %s317 = scalar_select %p316, %s22, 1
      %s318 = scalar_lea.vmem %s1, %s317
      %p319 = scmp.lt.s32.totalorder %s22, 1
      %s320 = scalar_select %p319, %s22, 1
      %s321 = scalar_lea.vmem %s2, %s320
      %s322 = smul.u32 64, %s23
      %p323 = scmp.lt.s32.totalorder %s22, 1
      %s324 = scalar_select %p323, %s22, 1
      %p325 = scmp.lt.s32.totalorder %s322, 127
      %s326 = scalar_select %p325, %s322, 127
      %s327 = smul.addr %s324, 128
      %s328 = sadd.s32 %s326, %s327
      %s329 = smul.addr %s328, 4
      %s330 = scalar_lea.vmem %s5, %s329
      %s331 = smul.u32 64, %s23
      %p332 = scmp.lt.s32.totalorder %s22, 1
      %s333 = scalar_select %p332, %s22, 1
      %p334 = scmp.lt.s32.totalorder %s23, 1
      %s335 = scalar_select %p334, %s23, 1
      %s336 = smul.addr %s333, 2
      %s337 = sadd.s32 %s335, %s336
      %s338 = smul.addr %s337, 8
      %s339 = scalar_lea.vmem %s6, %s338
      %v341 = vld [vmem:[%s314] sm:$0xf]
      %v342 = vld [vmem:[%s314 + $0x4] sm:$0xf]
      %v343 = vld [vmem:[%s314 + $0x8] sm:$0xf]
      %v344 = vld [vmem:[%s314 + $0xc] sm:$0xf]
      %v345 = vld [vmem:[%s314 + $0x10] sm:$0xf]
      %v346 = vld [vmem:[%s314 + $0x14] sm:$0xf]
      %v347 = vld [vmem:[%s314 + $0x18] sm:$0xf]
      %v348 = vld [vmem:[%s314 + $0x1c] sm:$0xf]
      %v349 = vld [vmem:[%s314 + $0x20] sm:$0xf]
      %v350 = vld [vmem:[%s314 + $0x24] sm:$0xf]
      %v351 = vld [vmem:[%s314 + $0x28] sm:$0xf]
      %v352 = vld [vmem:[%s314 + $0x2c] sm:$0xf]
      %v353 = vld [vmem:[%s314 + $0x30] sm:$0xf]
      %v354 = vld [vmem:[%s314 + $0x34] sm:$0xf]
      %v355 = vld [vmem:[%s314 + $0x38] sm:$0xf]
      %v356 = vld [vmem:[%s314 + $0x3c] sm:$0xf]
      %v357 = vld [vmem:[%s314 + $0x40] sm:$0xf]
      %v358 = vld [vmem:[%s314 + $0x44] sm:$0xf]
      %v359 = vld [vmem:[%s314 + $0x48] sm:$0xf]
      %v360 = vld [vmem:[%s314 + $0x4c] sm:$0xf]
      %v361 = vld [vmem:[%s314 + $0x50] sm:$0xf]
      %v362 = vld [vmem:[%s314 + $0x54] sm:$0xf]
      %v363 = vld [vmem:[%s314 + $0x58] sm:$0xf]
      %v364 = vld [vmem:[%s314 + $0x5c] sm:$0xf]
      %v365 = vld [vmem:[%s314 + $0x60] sm:$0xf]
      %v366 = vld [vmem:[%s314 + $0x64] sm:$0xf]
      %v367 = vld [vmem:[%s314 + $0x68] sm:$0xf]
      %v368 = vld [vmem:[%s314 + $0x6c] sm:$0xf]
      %v369 = vld [vmem:[%s314 + $0x70] sm:$0xf]
      %v370 = vld [vmem:[%s314 + $0x74] sm:$0xf]
      %v371 = vld [vmem:[%s314 + $0x78] sm:$0xf]
      %v372 = vld [vmem:[%s314 + $0x7c] sm:$0xf]
      %v373 = vld [vmem:[%s314 + $0x80] sm:$0xf]
      %v374 = vld [vmem:[%s314 + $0x84] sm:$0xf]
      %v375 = vld [vmem:[%s314 + $0x88] sm:$0xf]
      %v376 = vld [vmem:[%s314 + $0x8c] sm:$0xf]
      %v377 = vld [vmem:[%s314 + $0x90] sm:$0xf]
      %v378 = vld [vmem:[%s314 + $0x94] sm:$0xf]
      %v379 = vld [vmem:[%s314 + $0x98] sm:$0xf]
      %v380 = vld [vmem:[%s314 + $0x9c] sm:$0xf]
      %v381 = vld [vmem:[%s314 + $0xa0] sm:$0xf]
      %v382 = vld [vmem:[%s314 + $0xa4] sm:$0xf]
      %v383 = vld [vmem:[%s314 + $0xa8] sm:$0xf]
      %v384 = vld [vmem:[%s314 + $0xac] sm:$0xf]
      %v385 = vld [vmem:[%s314 + $0xb0] sm:$0xf]
      %v386 = vld [vmem:[%s314 + $0xb4] sm:$0xf]
      %v387 = vld [vmem:[%s314 + $0xb8] sm:$0xf]
      %v388 = vld [vmem:[%s314 + $0xbc] sm:$0xf]
      %v389 = vld [vmem:[%s314 + $0xc0] sm:$0xf]
      %v390 = vld [vmem:[%s314 + $0xc4] sm:$0xf]
      %v391 = vld [vmem:[%s314 + $0xc8] sm:$0xf]
      %v392 = vld [vmem:[%s314 + $0xcc] sm:$0xf]
      %v393 = vld [vmem:[%s314 + $0xd0] sm:$0xf]
      %v394 = vld [vmem:[%s314 + $0xd4] sm:$0xf]
      %v395 = vld [vmem:[%s314 + $0xd8] sm:$0xf]
      %v396 = vld [vmem:[%s314 + $0xdc] sm:$0xf]
      %v397 = vld [vmem:[%s314 + $0xe0] sm:$0xf]
      %v398 = vld [vmem:[%s314 + $0xe4] sm:$0xf]
      %v399 = vld [vmem:[%s314 + $0xe8] sm:$0xf]
      %v400 = vld [vmem:[%s314 + $0xec] sm:$0xf]
      %v401 = vld [vmem:[%s314 + $0xf0] sm:$0xf]
      %v402 = vld [vmem:[%s314 + $0xf4] sm:$0xf]
      %v403 = vld [vmem:[%s314 + $0xf8] sm:$0xf]
      %v404 = vld [vmem:[%s314 + $0xfc] sm:$0xf]
      %v405 = vunpack.c.l.bf16 %v341
      %v406 = vunpack.c.l.bf16 %v342
      %v407 = vunpack.c.l.bf16 %v343
      %v408 = vunpack.c.l.bf16 %v344
      %v409 = vunpack.c.l.bf16 %v345
      %v410 = vunpack.c.l.bf16 %v346
      %v411 = vunpack.c.l.bf16 %v347
      %v412 = vunpack.c.l.bf16 %v348
      %v413 = vunpack.c.l.bf16 %v349
      %v414 = vunpack.c.l.bf16 %v350
      %v415 = vunpack.c.l.bf16 %v351
      %v416 = vunpack.c.l.bf16 %v352
      %v417 = vunpack.c.l.bf16 %v353
      %v418 = vunpack.c.l.bf16 %v354
      %v419 = vunpack.c.l.bf16 %v355
      %v420 = vunpack.c.l.bf16 %v356
      %v421 = vunpack.c.l.bf16 %v357
      %v422 = vunpack.c.l.bf16 %v358
      %v423 = vunpack.c.l.bf16 %v359
      %v424 = vunpack.c.l.bf16 %v360
      %v425 = vunpack.c.l.bf16 %v361
      %v426 = vunpack.c.l.bf16 %v362
      %v427 = vunpack.c.l.bf16 %v363
      %v428 = vunpack.c.l.bf16 %v364
      %v429 = vunpack.c.l.bf16 %v365
      %v430 = vunpack.c.l.bf16 %v366
      %v431 = vunpack.c.l.bf16 %v367
      %v432 = vunpack.c.l.bf16 %v368
      %v433 = vunpack.c.l.bf16 %v369
      %v434 = vunpack.c.l.bf16 %v370
      %v435 = vunpack.c.l.bf16 %v371
      %v436 = vunpack.c.l.bf16 %v372
      %v437 = vunpack.c.l.bf16 %v373
      %v438 = vunpack.c.l.bf16 %v374
      %v439 = vunpack.c.l.bf16 %v375
      %v440 = vunpack.c.l.bf16 %v376
      %v441 = vunpack.c.l.bf16 %v377
      %v442 = vunpack.c.l.bf16 %v378
      %v443 = vunpack.c.l.bf16 %v379
      %v444 = vunpack.c.l.bf16 %v380
      %v445 = vunpack.c.l.bf16 %v381
      %v446 = vunpack.c.l.bf16 %v382
      %v447 = vunpack.c.l.bf16 %v383
      %v448 = vunpack.c.l.bf16 %v384
      %v449 = vunpack.c.l.bf16 %v385
      %v450 = vunpack.c.l.bf16 %v386
      %v451 = vunpack.c.l.bf16 %v387
      %v452 = vunpack.c.l.bf16 %v388
      %v453 = vunpack.c.l.bf16 %v389
      %v454 = vunpack.c.l.bf16 %v390
      %v455 = vunpack.c.l.bf16 %v391
      %v456 = vunpack.c.l.bf16 %v392
      %v457 = vunpack.c.l.bf16 %v393
      %v458 = vunpack.c.l.bf16 %v394
      %v459 = vunpack.c.l.bf16 %v395
      %v460 = vunpack.c.l.bf16 %v396
      %v461 = vunpack.c.l.bf16 %v397
      %v462 = vunpack.c.l.bf16 %v398
      %v463 = vunpack.c.l.bf16 %v399
      %v464 = vunpack.c.l.bf16 %v400
      %v465 = vunpack.c.l.bf16 %v401
      %v466 = vunpack.c.l.bf16 %v402
      %v467 = vunpack.c.l.bf16 %v403
      %v468 = vunpack.c.l.bf16 %v404
      %v469 = vld [vmem:[%s318] sm:$0x1]
      %v471 = vlaneseq
      %v472 = vshrl.u32 %v471, 7
      %v473 = vsub.s32 0, %v472
      %v474 = vrot.slane %v469, %v473
      %v476 = vmul.f32 %v474, %v405
      %v477 = vmul.f32 %v474, %v406
      %v478 = vmul.f32 %v474, %v407
      %v479 = vmul.f32 %v474, %v408
      %v480 = vmul.f32 %v474, %v409
      %v481 = vmul.f32 %v474, %v410
      %v482 = vmul.f32 %v474, %v411
      %v483 = vmul.f32 %v474, %v412
      %v484 = vmul.f32 %v474, %v413
      %v485 = vmul.f32 %v474, %v414
      %v486 = vmul.f32 %v474, %v415
      %v487 = vmul.f32 %v474, %v416
      %v488 = vmul.f32 %v474, %v417
      %v489 = vmul.f32 %v474, %v418
      %v490 = vmul.f32 %v474, %v419
      %v491 = vmul.f32 %v474, %v420
      %v492 = vmul.f32 %v474, %v421
      %v493 = vmul.f32 %v474, %v422
      %v494 = vmul.f32 %v474, %v423
      %v495 = vmul.f32 %v474, %v424
      %v496 = vmul.f32 %v474, %v425
      %v497 = vmul.f32 %v474, %v426
      %v498 = vmul.f32 %v474, %v427
      %v499 = vmul.f32 %v474, %v428
      %v500 = vmul.f32 %v474, %v429
      %v501 = vmul.f32 %v474, %v430
      %v502 = vmul.f32 %v474, %v431
      %v503 = vmul.f32 %v474, %v432
      %v504 = vmul.f32 %v474, %v433
      %v505 = vmul.f32 %v474, %v434
      %v506 = vmul.f32 %v474, %v435
      %v507 = vmul.f32 %v474, %v436
      %v508 = vmul.f32 %v474, %v437
      %v509 = vmul.f32 %v474, %v438
      %v510 = vmul.f32 %v474, %v439
      %v511 = vmul.f32 %v474, %v440
      %v512 = vmul.f32 %v474, %v441
      %v513 = vmul.f32 %v474, %v442
      %v514 = vmul.f32 %v474, %v443
      %v515 = vmul.f32 %v474, %v444
      %v516 = vmul.f32 %v474, %v445
      %v517 = vmul.f32 %v474, %v446
      %v518 = vmul.f32 %v474, %v447
      %v519 = vmul.f32 %v474, %v448
      %v520 = vmul.f32 %v474, %v449
      %v521 = vmul.f32 %v474, %v450
      %v522 = vmul.f32 %v474, %v451
      %v523 = vmul.f32 %v474, %v452
      %v524 = vmul.f32 %v474, %v453
      %v525 = vmul.f32 %v474, %v454
      %v526 = vmul.f32 %v474, %v455
      %v527 = vmul.f32 %v474, %v456
      %v528 = vmul.f32 %v474, %v457
      %v529 = vmul.f32 %v474, %v458
      %v530 = vmul.f32 %v474, %v459
      %v531 = vmul.f32 %v474, %v460
      %v532 = vmul.f32 %v474, %v461
      %v533 = vmul.f32 %v474, %v462
      %v534 = vmul.f32 %v474, %v463
      %v535 = vmul.f32 %v474, %v464
      %v536 = vmul.f32 %v474, %v465
      %v537 = vmul.f32 %v474, %v466
      %v538 = vmul.f32 %v474, %v467
      %v539 = vmul.f32 %v474, %v468
      %v540 = vld [vmem:[%s321] sm:$0x1]
      %v542 = vlaneseq
      %v543 = vshrl.u32 %v542, 7
      %v544 = vsub.s32 0, %v543
      %v545 = vrot.slane %v540, %v544
      %v547 = vadd.f32 %v476, %v545
      %v548 = vadd.f32 %v477, %v545
      %v549 = vadd.f32 %v478, %v545
      %v550 = vadd.f32 %v479, %v545
      %v551 = vadd.f32 %v480, %v545
      %v552 = vadd.f32 %v481, %v545
      %v553 = vadd.f32 %v482, %v545
      %v554 = vadd.f32 %v483, %v545
      %v555 = vadd.f32 %v484, %v545
      %v556 = vadd.f32 %v485, %v545
      %v557 = vadd.f32 %v486, %v545
      %v558 = vadd.f32 %v487, %v545
      %v559 = vadd.f32 %v488, %v545
      %v560 = vadd.f32 %v489, %v545
      %v561 = vadd.f32 %v490, %v545
      %v562 = vadd.f32 %v491, %v545
      %v563 = vadd.f32 %v492, %v545
      %v564 = vadd.f32 %v493, %v545
      %v565 = vadd.f32 %v494, %v545
      %v566 = vadd.f32 %v495, %v545
      %v567 = vadd.f32 %v496, %v545
      %v568 = vadd.f32 %v497, %v545
      %v569 = vadd.f32 %v498, %v545
      %v570 = vadd.f32 %v499, %v545
      %v571 = vadd.f32 %v500, %v545
      %v572 = vadd.f32 %v501, %v545
      %v573 = vadd.f32 %v502, %v545
      %v574 = vadd.f32 %v503, %v545
      %v575 = vadd.f32 %v504, %v545
      %v576 = vadd.f32 %v505, %v545
      %v577 = vadd.f32 %v506, %v545
      %v578 = vadd.f32 %v507, %v545
      %v579 = vadd.f32 %v508, %v545
      %v580 = vadd.f32 %v509, %v545
      %v581 = vadd.f32 %v510, %v545
      %v582 = vadd.f32 %v511, %v545
      %v583 = vadd.f32 %v512, %v545
      %v584 = vadd.f32 %v513, %v545
      %v585 = vadd.f32 %v514, %v545
      %v586 = vadd.f32 %v515, %v545
      %v587 = vadd.f32 %v516, %v545
      %v588 = vadd.f32 %v517, %v545
      %v589 = vadd.f32 %v518, %v545
      %v590 = vadd.f32 %v519, %v545
      %v591 = vadd.f32 %v520, %v545
      %v592 = vadd.f32 %v521, %v545
      %v593 = vadd.f32 %v522, %v545
      %v594 = vadd.f32 %v523, %v545
      %v595 = vadd.f32 %v524, %v545
      %v596 = vadd.f32 %v525, %v545
      %v597 = vadd.f32 %v526, %v545
      %v598 = vadd.f32 %v527, %v545
      %v599 = vadd.f32 %v528, %v545
      %v600 = vadd.f32 %v529, %v545
      %v601 = vadd.f32 %v530, %v545
      %v602 = vadd.f32 %v531, %v545
      %v603 = vadd.f32 %v532, %v545
      %v604 = vadd.f32 %v533, %v545
      %v605 = vadd.f32 %v534, %v545
      %v606 = vadd.f32 %v535, %v545
      %v607 = vadd.f32 %v536, %v545
      %v608 = vadd.f32 %v537, %v545
      %v609 = vadd.f32 %v538, %v545
      %v610 = vadd.f32 %v539, %v545
      %v611 = vmax.f32 %v547, 0.0
      %v612 = vmax.f32 %v548, 0.0
      %v613 = vmax.f32 %v549, 0.0
      %v614 = vmax.f32 %v550, 0.0
      %v615 = vmax.f32 %v551, 0.0
      %v616 = vmax.f32 %v552, 0.0
      %v617 = vmax.f32 %v553, 0.0
      %v618 = vmax.f32 %v554, 0.0
      %v619 = vmax.f32 %v555, 0.0
      %v620 = vmax.f32 %v556, 0.0
      %v621 = vmax.f32 %v557, 0.0
      %v622 = vmax.f32 %v558, 0.0
      %v623 = vmax.f32 %v559, 0.0
      %v624 = vmax.f32 %v560, 0.0
      %v625 = vmax.f32 %v561, 0.0
      %v626 = vmax.f32 %v562, 0.0
      %v627 = vmax.f32 %v563, 0.0
      %v628 = vmax.f32 %v564, 0.0
      %v629 = vmax.f32 %v565, 0.0
      %v630 = vmax.f32 %v566, 0.0
      %v631 = vmax.f32 %v567, 0.0
      %v632 = vmax.f32 %v568, 0.0
      %v633 = vmax.f32 %v569, 0.0
      %v634 = vmax.f32 %v570, 0.0
      %v635 = vmax.f32 %v571, 0.0
      %v636 = vmax.f32 %v572, 0.0
      %v637 = vmax.f32 %v573, 0.0
      %v638 = vmax.f32 %v574, 0.0
      %v639 = vmax.f32 %v575, 0.0
      %v640 = vmax.f32 %v576, 0.0
      %v641 = vmax.f32 %v577, 0.0
      %v642 = vmax.f32 %v578, 0.0
      %v643 = vmax.f32 %v579, 0.0
      %v644 = vmax.f32 %v580, 0.0
      %v645 = vmax.f32 %v581, 0.0
      %v646 = vmax.f32 %v582, 0.0
      %v647 = vmax.f32 %v583, 0.0
      %v648 = vmax.f32 %v584, 0.0
      %v649 = vmax.f32 %v585, 0.0
      %v650 = vmax.f32 %v586, 0.0
      %v651 = vmax.f32 %v587, 0.0
      %v652 = vmax.f32 %v588, 0.0
      %v653 = vmax.f32 %v589, 0.0
      %v654 = vmax.f32 %v590, 0.0
      %v655 = vmax.f32 %v591, 0.0
      %v656 = vmax.f32 %v592, 0.0
      %v657 = vmax.f32 %v593, 0.0
      %v658 = vmax.f32 %v594, 0.0
      %v659 = vmax.f32 %v595, 0.0
      %v660 = vmax.f32 %v596, 0.0
      %v661 = vmax.f32 %v597, 0.0
      %v662 = vmax.f32 %v598, 0.0
      %v663 = vmax.f32 %v599, 0.0
      %v664 = vmax.f32 %v600, 0.0
      %v665 = vmax.f32 %v601, 0.0
      %v666 = vmax.f32 %v602, 0.0
      %v667 = vmax.f32 %v603, 0.0
      %v668 = vmax.f32 %v604, 0.0
      %v669 = vmax.f32 %v605, 0.0
      %v670 = vmax.f32 %v606, 0.0
      %v671 = vmax.f32 %v607, 0.0
      %v672 = vmax.f32 %v608, 0.0
      %v673 = vmax.f32 %v609, 0.0
      %v674 = vmax.f32 %v610, 0.0
      %v675 = vpack.c.bf16 %v612, %v611
      %v676 = vpack.c.bf16 %v614, %v613
      %v677 = vpack.c.bf16 %v616, %v615
      %v678 = vpack.c.bf16 %v618, %v617
      %v679 = vpack.c.bf16 %v620, %v619
      %v680 = vpack.c.bf16 %v622, %v621
      %v681 = vpack.c.bf16 %v624, %v623
      %v682 = vpack.c.bf16 %v626, %v625
      %v683 = vpack.c.bf16 %v628, %v627
      %v684 = vpack.c.bf16 %v630, %v629
      %v685 = vpack.c.bf16 %v632, %v631
      %v686 = vpack.c.bf16 %v634, %v633
      %v687 = vpack.c.bf16 %v636, %v635
      %v688 = vpack.c.bf16 %v638, %v637
      %v689 = vpack.c.bf16 %v640, %v639
      %v690 = vpack.c.bf16 %v642, %v641
      %v691 = vpack.c.bf16 %v644, %v643
      %v692 = vpack.c.bf16 %v646, %v645
      %v693 = vpack.c.bf16 %v648, %v647
      %v694 = vpack.c.bf16 %v650, %v649
      %v695 = vpack.c.bf16 %v652, %v651
      %v696 = vpack.c.bf16 %v654, %v653
      %v697 = vpack.c.bf16 %v656, %v655
      %v698 = vpack.c.bf16 %v658, %v657
      %v699 = vpack.c.bf16 %v660, %v659
      %v700 = vpack.c.bf16 %v662, %v661
      %v701 = vpack.c.bf16 %v664, %v663
      %v702 = vpack.c.bf16 %v666, %v665
      %v703 = vpack.c.bf16 %v668, %v667
      %v704 = vpack.c.bf16 %v670, %v669
      %v705 = vpack.c.bf16 %v672, %v671
      %v706 = vpack.c.bf16 %v674, %v673
      %v707 = vld [vmem:[%s3] sm:$0xf]
      %v708 = vld [vmem:[%s3 + $0x4] sm:$0xf]
      %v709 = vld [vmem:[%s3 + $0x8] sm:$0xf]
      %v710 = vld [vmem:[%s3 + $0xc] sm:$0xf]
      %v711 = vld [vmem:[%s3 + $0x10] sm:$0xf]
      %v712 = vld [vmem:[%s3 + $0x14] sm:$0xf]
      %v713 = vld [vmem:[%s3 + $0x18] sm:$0xf]
      %v714 = vld [vmem:[%s3 + $0x1c] sm:$0xf]
      %v715 = vld [vmem:[%s4] sm:$0x1]
      %v717 = vlaneseq
      %v718 = vshrl.u32 %v717, 7
      %v719 = vsub.s32 0, %v718
      %v720 = vrot.slane %v715, %v719
      %v730 = vunpack.c.l.b16 %v707
      %v731 = vunpack.c.l.b16 %v708
      %v732 = vunpack.c.l.b16 %v709
      %v733 = vunpack.c.l.b16 %v710
      %v734 = vunpack.c.l.b16 %v711
      %v735 = vunpack.c.l.b16 %v712
      %v736 = vunpack.c.l.b16 %v713
      %v737 = vunpack.c.l.b16 %v714
      %v738 = vpack.c.b16 %v731, %v730
      %v739 = vpack.c.b16 %v733, %v732
      %v740 = vpack.c.b16 %v735, %v734
      %v741 = vpack.c.b16 %v737, %v736
      %vm746 = vcmask 523264
      %v748 = vsel %vm746, %v675, 0
      %v751 = vsel %vm746, %v676, 0
      %v754 = vsel %vm746, %v677, 0
      %v757 = vsel %vm746, %v678, 0
      %v760 = vsel %vm746, %v679, 0
      %v763 = vsel %vm746, %v680, 0
      %v766 = vsel %vm746, %v681, 0
      %v769 = vsel %vm746, %v682, 0
      %v772 = vsel %vm746, %v683, 0
      %v775 = vsel %vm746, %v684, 0
      %v778 = vsel %vm746, %v685, 0
      %v781 = vsel %vm746, %v686, 0
      %v784 = vsel %vm746, %v687, 0
      %v787 = vsel %vm746, %v688, 0
      %v790 = vsel %vm746, %v689, 0
      %v793 = vsel %vm746, %v690, 0
      %v796 = vsel %vm746, %v691, 0
      %v799 = vsel %vm746, %v692, 0
      %v802 = vsel %vm746, %v693, 0
      %v805 = vsel %vm746, %v694, 0
      %v808 = vsel %vm746, %v695, 0
      %v811 = vsel %vm746, %v696, 0
      %v814 = vsel %vm746, %v697, 0
      %v817 = vsel %vm746, %v698, 0
      %v820 = vsel %vm746, %v699, 0
      %v823 = vsel %vm746, %v700, 0
      %v826 = vsel %vm746, %v701, 0
      %v829 = vsel %vm746, %v702, 0
      %v832 = vsel %vm746, %v703, 0
      %v835 = vsel %vm746, %v704, 0
      %v838 = vsel %vm746, %v705, 0
      %v841 = vsel %vm746, %v706, 0
      %843 = vmatprep.subr.bf16.mxu0 0
      %844 = vmatpush1.bf16.msra.mxu0 0
      %845 = vmatprep.subr.bf16.mxu0 0
      %846 = vmatpush1.bf16.msra.mxu0 0
      %847 = vmatprep.subr.bf16.mxu0 0
      %848 = vmatpush1.bf16.msra.mxu0 0
      %849 = vmatprep.subr.bf16.mxu0 0
      %850 = vmatpush1.bf16.msra.mxu0 0
      %851 = vmatprep.subr.bf16.mxu0 0
      %852 = vmatpush1.bf16.msra.mxu0 %v741
      %853 = vmatprep.subr.bf16.mxu0 0
      %854 = vmatpush1.bf16.msra.mxu0 %v740
      %855 = vmatprep.subr.bf16.mxu0 0
      %856 = vmatpush1.bf16.msra.mxu0 %v739
      %857 = vmatprep.subr.bf16.mxu0 0
      %858 = vmatpush1.bf16.msra.mxu0 %v738
      %859 = vmatprep.subr.bf16.mxu0 0
      %860 = vmatpush2.bf16.msra.mxu0 0
      %861 = vmatprep.subr.bf16.mxu0 0
      %862 = vmatpush2.bf16.msra.mxu0 0
      %863 = vmatprep.subr.bf16.mxu0 0
      %864 = vmatpush2.bf16.msra.mxu0 0
      %865 = vmatprep.subr.bf16.mxu0 0
      %866 = vmatpush2.bf16.msra.mxu0 0
      %867 = vmatprep.subr.bf16.mxu0 0
      %868 = vmatpush2.bf16.msra.mxu0 0
      %869 = vmatprep.subr.bf16.mxu0 0
      %870 = vmatpush2.bf16.msra.mxu0 0
      %871 = vmatprep.subr.bf16.mxu0 0
      %872 = vmatpush2.bf16.msra.mxu0 0
      %873 = vmatprep.subr.bf16.mxu0 0
      %874 = vmatpush2.bf16.msra.mxu0 0
      %875 = vmatprep.mubr.bf16.mxu0 0
      %876 = vmatmul.mubr.bf16.gmra.mxu0 %v748
      %v877 = vpop.f32.mrf.mxu0
      %v878 = vadd.f32 %v720, %v877
      %v879 = vpop.f32.mrf.mxu0
      %v880 = vpop.f32.mrf.mxu0
      %v881 = vadd.f32 %v720, %v880
      %v882 = vpop.f32.mrf.mxu0
      %883 = vmatprep.mubr.bf16.mxu0 0
      %884 = vmatmul.mubr.bf16.gmra.mxu0 %v751
      %v885 = vpop.f32.mrf.mxu0
      %v886 = vadd.f32 %v720, %v885
      %v887 = vpop.f32.mrf.mxu0
      %v888 = vpop.f32.mrf.mxu0
      %v889 = vadd.f32 %v720, %v888
      %v890 = vpop.f32.mrf.mxu0
      %891 = vmatprep.mubr.bf16.mxu0 0
      %892 = vmatmul.mubr.bf16.gmra.mxu0 %v754
      %v893 = vpop.f32.mrf.mxu0
      %v894 = vadd.f32 %v720, %v893
      %v895 = vpop.f32.mrf.mxu0
      %v896 = vpop.f32.mrf.mxu0
      %v897 = vadd.f32 %v720, %v896
      %v898 = vpop.f32.mrf.mxu0
      %899 = vmatprep.mubr.bf16.mxu0 0
      %900 = vmatmul.mubr.bf16.gmra.mxu0 %v757
      %v901 = vpop.f32.mrf.mxu0
      %v902 = vadd.f32 %v720, %v901
      %v903 = vpop.f32.mrf.mxu0
      %v904 = vpop.f32.mrf.mxu0
      %v905 = vadd.f32 %v720, %v904
      %v906 = vpop.f32.mrf.mxu0
      %907 = vmatprep.mubr.bf16.mxu0 0
      %908 = vmatmul.mubr.bf16.gmra.mxu0 %v760
      %v909 = vpop.f32.mrf.mxu0
      %v910 = vadd.f32 %v720, %v909
      %v911 = vpop.f32.mrf.mxu0
      %v912 = vpop.f32.mrf.mxu0
      %v913 = vadd.f32 %v720, %v912
      %v914 = vpop.f32.mrf.mxu0
      %915 = vmatprep.mubr.bf16.mxu0 0
      %916 = vmatmul.mubr.bf16.gmra.mxu0 %v763
      %v917 = vpop.f32.mrf.mxu0
      %v918 = vadd.f32 %v720, %v917
      %v919 = vpop.f32.mrf.mxu0
      %v920 = vpop.f32.mrf.mxu0
      %v921 = vadd.f32 %v720, %v920
      %v922 = vpop.f32.mrf.mxu0
      %923 = vmatprep.mubr.bf16.mxu0 0
      %924 = vmatmul.mubr.bf16.gmra.mxu0 %v766
      %v925 = vpop.f32.mrf.mxu0
      %v926 = vadd.f32 %v720, %v925
      %v927 = vpop.f32.mrf.mxu0
      %v928 = vpop.f32.mrf.mxu0
      %v929 = vadd.f32 %v720, %v928
      %v930 = vpop.f32.mrf.mxu0
      %931 = vmatprep.mubr.bf16.mxu0 0
      %932 = vmatmul.mubr.bf16.gmra.mxu0 %v769
      %v933 = vpop.f32.mrf.mxu0
      %v934 = vadd.f32 %v720, %v933
      %v935 = vpop.f32.mrf.mxu0
      %v936 = vpop.f32.mrf.mxu0
      %v937 = vadd.f32 %v720, %v936
      %v938 = vpop.f32.mrf.mxu0
      %939 = vmatprep.mubr.bf16.mxu0 0
      %940 = vmatmul.mubr.bf16.gmra.mxu0 %v772
      %v941 = vpop.f32.mrf.mxu0
      %v942 = vadd.f32 %v720, %v941
      %v943 = vpop.f32.mrf.mxu0
      %v944 = vpop.f32.mrf.mxu0
      %v945 = vadd.f32 %v720, %v944
      %v946 = vpop.f32.mrf.mxu0
      %947 = vmatprep.mubr.bf16.mxu0 0
      %948 = vmatmul.mubr.bf16.gmra.mxu0 %v775
      %v949 = vpop.f32.mrf.mxu0
      %v950 = vadd.f32 %v720, %v949
      %v951 = vpop.f32.mrf.mxu0
      %v952 = vpop.f32.mrf.mxu0
      %v953 = vadd.f32 %v720, %v952
      %v954 = vpop.f32.mrf.mxu0
      %955 = vmatprep.mubr.bf16.mxu0 0
      %956 = vmatmul.mubr.bf16.gmra.mxu0 %v778
      %v957 = vpop.f32.mrf.mxu0
      %v958 = vadd.f32 %v720, %v957
      %v959 = vpop.f32.mrf.mxu0
      %v960 = vpop.f32.mrf.mxu0
      %v961 = vadd.f32 %v720, %v960
      %v962 = vpop.f32.mrf.mxu0
      %963 = vmatprep.mubr.bf16.mxu0 0
      %964 = vmatmul.mubr.bf16.gmra.mxu0 %v781
      %v965 = vpop.f32.mrf.mxu0
      %v966 = vadd.f32 %v720, %v965
      %v967 = vpop.f32.mrf.mxu0
      %v968 = vpop.f32.mrf.mxu0
      %v969 = vadd.f32 %v720, %v968
      %v970 = vpop.f32.mrf.mxu0
      %971 = vmatprep.mubr.bf16.mxu0 0
      %972 = vmatmul.mubr.bf16.gmra.mxu0 %v784
      %v973 = vpop.f32.mrf.mxu0
      %v974 = vadd.f32 %v720, %v973
      %v975 = vpop.f32.mrf.mxu0
      %v976 = vpop.f32.mrf.mxu0
      %v977 = vadd.f32 %v720, %v976
      %v978 = vpop.f32.mrf.mxu0
      %979 = vmatprep.mubr.bf16.mxu0 0
      %980 = vmatmul.mubr.bf16.gmra.mxu0 %v787
      %v981 = vpop.f32.mrf.mxu0
      %v982 = vadd.f32 %v720, %v981
      %v983 = vpop.f32.mrf.mxu0
      %v984 = vpop.f32.mrf.mxu0
      %v985 = vadd.f32 %v720, %v984
      %v986 = vpop.f32.mrf.mxu0
      %987 = vmatprep.mubr.bf16.mxu0 0
      %988 = vmatmul.mubr.bf16.gmra.mxu0 %v790
      %v989 = vpop.f32.mrf.mxu0
      %v990 = vadd.f32 %v720, %v989
      %v991 = vpop.f32.mrf.mxu0
      %v992 = vpop.f32.mrf.mxu0
      %v993 = vadd.f32 %v720, %v992
      %v994 = vpop.f32.mrf.mxu0
      %995 = vmatprep.mubr.bf16.mxu0 0
      %996 = vmatmul.mubr.bf16.gmra.mxu0 %v793
      %v997 = vpop.f32.mrf.mxu0
      %v998 = vadd.f32 %v720, %v997
      %v999 = vpop.f32.mrf.mxu0
      %v1000 = vpop.f32.mrf.mxu0
      %v1001 = vadd.f32 %v720, %v1000
      %v1002 = vpop.f32.mrf.mxu0
      %1003 = vmatprep.mubr.bf16.mxu0 0
      %1004 = vmatmul.mubr.bf16.gmra.mxu0 %v796
      %v1005 = vpop.f32.mrf.mxu0
      %v1006 = vadd.f32 %v720, %v1005
      %v1007 = vpop.f32.mrf.mxu0
      %v1008 = vpop.f32.mrf.mxu0
      %v1009 = vadd.f32 %v720, %v1008
      %v1010 = vpop.f32.mrf.mxu0
      %1011 = vmatprep.mubr.bf16.mxu0 0
      %1012 = vmatmul.mubr.bf16.gmra.mxu0 %v799
      %v1013 = vpop.f32.mrf.mxu0
      %v1014 = vadd.f32 %v720, %v1013
      %v1015 = vpop.f32.mrf.mxu0
      %v1016 = vpop.f32.mrf.mxu0
      %v1017 = vadd.f32 %v720, %v1016
      %v1018 = vpop.f32.mrf.mxu0
      %1019 = vmatprep.mubr.bf16.mxu0 0
      %1020 = vmatmul.mubr.bf16.gmra.mxu0 %v802
      %v1021 = vpop.f32.mrf.mxu0
      %v1022 = vadd.f32 %v720, %v1021
      %v1023 = vpop.f32.mrf.mxu0
      %v1024 = vpop.f32.mrf.mxu0
      %v1025 = vadd.f32 %v720, %v1024
      %v1026 = vpop.f32.mrf.mxu0
      %1027 = vmatprep.mubr.bf16.mxu0 0
      %1028 = vmatmul.mubr.bf16.gmra.mxu0 %v805
      %v1029 = vpop.f32.mrf.mxu0
      %v1030 = vadd.f32 %v720, %v1029
      %v1031 = vpop.f32.mrf.mxu0
      %v1032 = vpop.f32.mrf.mxu0
      %v1033 = vadd.f32 %v720, %v1032
      %v1034 = vpop.f32.mrf.mxu0
      %1035 = vmatprep.mubr.bf16.mxu0 0
      %1036 = vmatmul.mubr.bf16.gmra.mxu0 %v808
      %v1037 = vpop.f32.mrf.mxu0
      %v1038 = vadd.f32 %v720, %v1037
      %v1039 = vpop.f32.mrf.mxu0
      %v1040 = vpop.f32.mrf.mxu0
      %v1041 = vadd.f32 %v720, %v1040
      %v1042 = vpop.f32.mrf.mxu0
      %1043 = vmatprep.mubr.bf16.mxu0 0
      %1044 = vmatmul.mubr.bf16.gmra.mxu0 %v811
      %v1045 = vpop.f32.mrf.mxu0
      %v1046 = vadd.f32 %v720, %v1045
      %v1047 = vpop.f32.mrf.mxu0
      %v1048 = vpop.f32.mrf.mxu0
      %v1049 = vadd.f32 %v720, %v1048
      %v1050 = vpop.f32.mrf.mxu0
      %1051 = vmatprep.mubr.bf16.mxu0 0
      %1052 = vmatmul.mubr.bf16.gmra.mxu0 %v814
      %v1053 = vpop.f32.mrf.mxu0
      %v1054 = vadd.f32 %v720, %v1053
      %v1055 = vpop.f32.mrf.mxu0
      %v1056 = vpop.f32.mrf.mxu0
      %v1057 = vadd.f32 %v720, %v1056
      %v1058 = vpop.f32.mrf.mxu0
      %1059 = vmatprep.mubr.bf16.mxu0 0
      %1060 = vmatmul.mubr.bf16.gmra.mxu0 %v817
      %v1061 = vpop.f32.mrf.mxu0
      %v1062 = vadd.f32 %v720, %v1061
      %v1063 = vpop.f32.mrf.mxu0
      %v1064 = vpop.f32.mrf.mxu0
      %v1065 = vadd.f32 %v720, %v1064
      %v1066 = vpop.f32.mrf.mxu0
      %1067 = vmatprep.mubr.bf16.mxu0 0
      %1068 = vmatmul.mubr.bf16.gmra.mxu0 %v820
      %v1069 = vpop.f32.mrf.mxu0
      %v1070 = vadd.f32 %v720, %v1069
      %v1071 = vpop.f32.mrf.mxu0
      %v1072 = vpop.f32.mrf.mxu0
      %v1073 = vadd.f32 %v720, %v1072
      %v1074 = vpop.f32.mrf.mxu0
      %1075 = vmatprep.mubr.bf16.mxu0 0
      %1076 = vmatmul.mubr.bf16.gmra.mxu0 %v823
      %v1077 = vpop.f32.mrf.mxu0
      %v1078 = vadd.f32 %v720, %v1077
      %v1079 = vpop.f32.mrf.mxu0
      %v1080 = vpop.f32.mrf.mxu0
      %v1081 = vadd.f32 %v720, %v1080
      %v1082 = vpop.f32.mrf.mxu0
      %1083 = vmatprep.mubr.bf16.mxu0 0
      %1084 = vmatmul.mubr.bf16.gmra.mxu0 %v826
      %v1085 = vpop.f32.mrf.mxu0
      %v1086 = vadd.f32 %v720, %v1085
      %v1087 = vpop.f32.mrf.mxu0
      %v1088 = vpop.f32.mrf.mxu0
      %v1089 = vadd.f32 %v720, %v1088
      %v1090 = vpop.f32.mrf.mxu0
      %1091 = vmatprep.mubr.bf16.mxu0 0
      %1092 = vmatmul.mubr.bf16.gmra.mxu0 %v829
      %v1093 = vpop.f32.mrf.mxu0
      %v1094 = vadd.f32 %v720, %v1093
      %v1095 = vpop.f32.mrf.mxu0
      %v1096 = vpop.f32.mrf.mxu0
      %v1097 = vadd.f32 %v720, %v1096
      %v1098 = vpop.f32.mrf.mxu0
      %1099 = vmatprep.mubr.bf16.mxu0 0
      %1100 = vmatmul.mubr.bf16.gmra.mxu0 %v832
      %v1101 = vpop.f32.mrf.mxu0
      %v1102 = vadd.f32 %v720, %v1101
      %v1103 = vpop.f32.mrf.mxu0
      %v1104 = vpop.f32.mrf.mxu0
      %v1105 = vadd.f32 %v720, %v1104
      %v1106 = vpop.f32.mrf.mxu0
      %1107 = vmatprep.mubr.bf16.mxu0 0
      %1108 = vmatmul.mubr.bf16.gmra.mxu0 %v835
      %v1109 = vpop.f32.mrf.mxu0
      %v1110 = vadd.f32 %v720, %v1109
      %v1111 = vpop.f32.mrf.mxu0
      %v1112 = vpop.f32.mrf.mxu0
      %v1113 = vadd.f32 %v720, %v1112
      %v1114 = vpop.f32.mrf.mxu0
      %1115 = vmatprep.mubr.bf16.mxu0 0
      %1116 = vmatmul.mubr.bf16.gmra.mxu0 %v838
      %v1117 = vpop.f32.mrf.mxu0
      %v1118 = vadd.f32 %v720, %v1117
      %v1119 = vpop.f32.mrf.mxu0
      %v1120 = vpop.f32.mrf.mxu0
      %v1121 = vadd.f32 %v720, %v1120
      %v1122 = vpop.f32.mrf.mxu0
      %1123 = vmatprep.mubr.bf16.mxu0 0
      %1124 = vmatmul.mubr.bf16.gmra.mxu0 %v841
      %v1125 = vpop.f32.mrf.mxu0
      %v1126 = vadd.f32 %v720, %v1125
      %v1127 = vpop.f32.mrf.mxu0
      %v1128 = vpop.f32.mrf.mxu0
      %v1129 = vadd.f32 %v720, %v1128
      %v1130 = vpop.f32.mrf.mxu0
      %1131 = vdwg.mxu0
      %v1132 = vsel %vm746, %v878, %v405
      %v1133 = vsel %vm746, %v881, %v406
      %v1134 = vsel %vm746, %v886, %v407
      %v1135 = vsel %vm746, %v889, %v408
      %v1136 = vsel %vm746, %v894, %v409
      %v1137 = vsel %vm746, %v897, %v410
      %v1138 = vsel %vm746, %v902, %v411
      %v1139 = vsel %vm746, %v905, %v412
      %v1140 = vsel %vm746, %v910, %v413
      %v1141 = vsel %vm746, %v913, %v414
      %v1142 = vsel %vm746, %v918, %v415
      %v1143 = vsel %vm746, %v921, %v416
      %v1144 = vsel %vm746, %v926, %v417
      %v1145 = vsel %vm746, %v929, %v418
      %v1146 = vsel %vm746, %v934, %v419
      %v1147 = vsel %vm746, %v937, %v420
      %v1148 = vsel %vm746, %v942, %v421
      %v1149 = vsel %vm746, %v945, %v422
      %v1150 = vsel %vm746, %v950, %v423
      %v1151 = vsel %vm746, %v953, %v424
      %v1152 = vsel %vm746, %v958, %v425
      %v1153 = vsel %vm746, %v961, %v426
      %v1154 = vsel %vm746, %v966, %v427
      %v1155 = vsel %vm746, %v969, %v428
      %v1156 = vsel %vm746, %v974, %v429
      %v1157 = vsel %vm746, %v977, %v430
      %v1158 = vsel %vm746, %v982, %v431
      %v1159 = vsel %vm746, %v985, %v432
      %v1160 = vsel %vm746, %v990, %v433
      %v1161 = vsel %vm746, %v993, %v434
      %v1162 = vsel %vm746, %v998, %v435
      %v1163 = vsel %vm746, %v1001, %v436
      %v1164 = vsel %vm746, %v1006, %v437
      %v1165 = vsel %vm746, %v1009, %v438
      %v1166 = vsel %vm746, %v1014, %v439
      %v1167 = vsel %vm746, %v1017, %v440
      %v1168 = vsel %vm746, %v1022, %v441
      %v1169 = vsel %vm746, %v1025, %v442
      %v1170 = vsel %vm746, %v1030, %v443
      %v1171 = vsel %vm746, %v1033, %v444
      %v1172 = vsel %vm746, %v1038, %v445
      %v1173 = vsel %vm746, %v1041, %v446
      %v1174 = vsel %vm746, %v1046, %v447
      %v1175 = vsel %vm746, %v1049, %v448
      %v1176 = vsel %vm746, %v1054, %v449
      %v1177 = vsel %vm746, %v1057, %v450
      %v1178 = vsel %vm746, %v1062, %v451
      %v1179 = vsel %vm746, %v1065, %v452
      %v1180 = vsel %vm746, %v1070, %v453
      %v1181 = vsel %vm746, %v1073, %v454
      %v1182 = vsel %vm746, %v1078, %v455
      %v1183 = vsel %vm746, %v1081, %v456
      %v1184 = vsel %vm746, %v1086, %v457
      %v1185 = vsel %vm746, %v1089, %v458
      %v1186 = vsel %vm746, %v1094, %v459
      %v1187 = vsel %vm746, %v1097, %v460
      %v1188 = vsel %vm746, %v1102, %v461
      %v1189 = vsel %vm746, %v1105, %v462
      %v1190 = vsel %vm746, %v1110, %v463
      %v1191 = vsel %vm746, %v1113, %v464
      %v1192 = vsel %vm746, %v1118, %v465
      %v1193 = vsel %vm746, %v1121, %v466
      %v1194 = vsel %vm746, %v1126, %v467
      %v1195 = vsel %vm746, %v1129, %v468
      %v1196 = vpack.c.bf16 %v1133, %v1132
      %v1197 = vpack.c.bf16 %v1135, %v1134
      %v1198 = vpack.c.bf16 %v1137, %v1136
      %v1199 = vpack.c.bf16 %v1139, %v1138
      %v1200 = vpack.c.bf16 %v1141, %v1140
      %v1201 = vpack.c.bf16 %v1143, %v1142
      %v1202 = vpack.c.bf16 %v1145, %v1144
      %v1203 = vpack.c.bf16 %v1147, %v1146
      %v1204 = vpack.c.bf16 %v1149, %v1148
      %v1205 = vpack.c.bf16 %v1151, %v1150
      %v1206 = vpack.c.bf16 %v1153, %v1152
      %v1207 = vpack.c.bf16 %v1155, %v1154
      %v1208 = vpack.c.bf16 %v1157, %v1156
      %v1209 = vpack.c.bf16 %v1159, %v1158
      %v1210 = vpack.c.bf16 %v1161, %v1160
      %v1211 = vpack.c.bf16 %v1163, %v1162
      %v1212 = vpack.c.bf16 %v1165, %v1164
      %v1213 = vpack.c.bf16 %v1167, %v1166
      %v1214 = vpack.c.bf16 %v1169, %v1168
      %v1215 = vpack.c.bf16 %v1171, %v1170
      %v1216 = vpack.c.bf16 %v1173, %v1172
      %v1217 = vpack.c.bf16 %v1175, %v1174
      %v1218 = vpack.c.bf16 %v1177, %v1176
      %v1219 = vpack.c.bf16 %v1179, %v1178
      %v1220 = vpack.c.bf16 %v1181, %v1180
      %v1221 = vpack.c.bf16 %v1183, %v1182
      %v1222 = vpack.c.bf16 %v1185, %v1184
      %v1223 = vpack.c.bf16 %v1187, %v1186
      %v1224 = vpack.c.bf16 %v1189, %v1188
      %v1225 = vpack.c.bf16 %v1191, %v1190
      %v1226 = vpack.c.bf16 %v1193, %v1192
      %v1227 = vpack.c.bf16 %v1195, %v1194
      %v1260 = vunpack.c.l.b16 %v1196
      %v1261 = vunpack.c.h.b16 %v1196
      %v1262 = vunpack.c.l.b16 %v1197
      %v1263 = vunpack.c.h.b16 %v1197
      %v1264 = vunpack.c.l.b16 %v1198
      %v1265 = vunpack.c.h.b16 %v1198
      %v1266 = vunpack.c.l.b16 %v1199
      %v1267 = vunpack.c.h.b16 %v1199
      %v1268 = vunpack.c.l.b16 %v1200
      %v1269 = vunpack.c.h.b16 %v1200
      %v1270 = vunpack.c.l.b16 %v1201
      %v1271 = vunpack.c.h.b16 %v1201
      %v1272 = vunpack.c.l.b16 %v1202
      %v1273 = vunpack.c.h.b16 %v1202
      %v1274 = vunpack.c.l.b16 %v1203
      %v1275 = vunpack.c.h.b16 %v1203
      %v1276 = vunpack.c.l.b16 %v1204
      %v1277 = vunpack.c.h.b16 %v1204
      %v1278 = vunpack.c.l.b16 %v1205
      %v1279 = vunpack.c.h.b16 %v1205
      %v1280 = vunpack.c.l.b16 %v1206
      %v1281 = vunpack.c.h.b16 %v1206
      %v1282 = vunpack.c.l.b16 %v1207
      %v1283 = vunpack.c.h.b16 %v1207
      %v1284 = vunpack.c.l.b16 %v1208
      %v1285 = vunpack.c.h.b16 %v1208
      %v1286 = vunpack.c.l.b16 %v1209
      %v1287 = vunpack.c.h.b16 %v1209
      %v1288 = vunpack.c.l.b16 %v1210
      %v1289 = vunpack.c.h.b16 %v1210
      %v1290 = vunpack.c.l.b16 %v1211
      %v1291 = vunpack.c.h.b16 %v1211
      %v1292 = vunpack.c.l.b16 %v1212
      %v1293 = vunpack.c.h.b16 %v1212
      %v1294 = vunpack.c.l.b16 %v1213
      %v1295 = vunpack.c.h.b16 %v1213
      %v1296 = vunpack.c.l.b16 %v1214
      %v1297 = vunpack.c.h.b16 %v1214
      %v1298 = vunpack.c.l.b16 %v1215
      %v1299 = vunpack.c.h.b16 %v1215
      %v1300 = vunpack.c.l.b16 %v1216
      %v1301 = vunpack.c.h.b16 %v1216
      %v1302 = vunpack.c.l.b16 %v1217
      %v1303 = vunpack.c.h.b16 %v1217
      %v1304 = vunpack.c.l.b16 %v1218
      %v1305 = vunpack.c.h.b16 %v1218
      %v1306 = vunpack.c.l.b16 %v1219
      %v1307 = vunpack.c.h.b16 %v1219
      %v1308 = vunpack.c.l.b16 %v1220
      %v1309 = vunpack.c.h.b16 %v1220
      %v1310 = vunpack.c.l.b16 %v1221
      %v1311 = vunpack.c.h.b16 %v1221
      %v1312 = vunpack.c.l.b16 %v1222
      %v1313 = vunpack.c.h.b16 %v1222
      %v1314 = vunpack.c.l.b16 %v1223
      %v1315 = vunpack.c.h.b16 %v1223
      %v1316 = vunpack.c.l.b16 %v1224
      %v1317 = vunpack.c.h.b16 %v1224
      %v1318 = vunpack.c.l.b16 %v1225
      %v1319 = vunpack.c.h.b16 %v1225
      %v1320 = vunpack.c.l.b16 %v1226
      %v1321 = vunpack.c.h.b16 %v1226
      %v1322 = vunpack.c.l.b16 %v1227
      %v1323 = vunpack.c.h.b16 %v1227
      %v1324 = vpack.c.b16 %v1260, %v1260
      %v1325 = vpack.c.b16 %v1261, %v1261
      %v1326 = vpack.c.b16 %v1262, %v1262
      %v1327 = vpack.c.b16 %v1263, %v1263
      %v1328 = vpack.c.b16 %v1264, %v1264
      %v1329 = vpack.c.b16 %v1265, %v1265
      %v1330 = vpack.c.b16 %v1266, %v1266
      %v1331 = vpack.c.b16 %v1267, %v1267
      %v1332 = vpack.c.b16 %v1268, %v1268
      %v1333 = vpack.c.b16 %v1269, %v1269
      %v1334 = vpack.c.b16 %v1270, %v1270
      %v1335 = vpack.c.b16 %v1271, %v1271
      %v1336 = vpack.c.b16 %v1272, %v1272
      %v1337 = vpack.c.b16 %v1273, %v1273
      %v1338 = vpack.c.b16 %v1274, %v1274
      %v1339 = vpack.c.b16 %v1275, %v1275
      %v1340 = vpack.c.b16 %v1276, %v1276
      %v1341 = vpack.c.b16 %v1277, %v1277
      %v1342 = vpack.c.b16 %v1278, %v1278
      %v1343 = vpack.c.b16 %v1279, %v1279
      %v1344 = vpack.c.b16 %v1280, %v1280
      %v1345 = vpack.c.b16 %v1281, %v1281
      %v1346 = vpack.c.b16 %v1282, %v1282
      %v1347 = vpack.c.b16 %v1283, %v1283
      %v1348 = vpack.c.b16 %v1284, %v1284
      %v1349 = vpack.c.b16 %v1285, %v1285
      %v1350 = vpack.c.b16 %v1286, %v1286
      %v1351 = vpack.c.b16 %v1287, %v1287
      %v1352 = vpack.c.b16 %v1288, %v1288
      %v1353 = vpack.c.b16 %v1289, %v1289
      %v1354 = vpack.c.b16 %v1290, %v1290
      %v1355 = vpack.c.b16 %v1291, %v1291
      %v1356 = vpack.c.b16 %v1292, %v1292
      %v1357 = vpack.c.b16 %v1293, %v1293
      %v1358 = vpack.c.b16 %v1294, %v1294
      %v1359 = vpack.c.b16 %v1295, %v1295
      %v1360 = vpack.c.b16 %v1296, %v1296
      %v1361 = vpack.c.b16 %v1297, %v1297
      %v1362 = vpack.c.b16 %v1298, %v1298
      %v1363 = vpack.c.b16 %v1299, %v1299
      %v1364 = vpack.c.b16 %v1300, %v1300
      %v1365 = vpack.c.b16 %v1301, %v1301
      %v1366 = vpack.c.b16 %v1302, %v1302
      %v1367 = vpack.c.b16 %v1303, %v1303
      %v1368 = vpack.c.b16 %v1304, %v1304
      %v1369 = vpack.c.b16 %v1305, %v1305
      %v1370 = vpack.c.b16 %v1306, %v1306
      %v1371 = vpack.c.b16 %v1307, %v1307
      %v1372 = vpack.c.b16 %v1308, %v1308
      %v1373 = vpack.c.b16 %v1309, %v1309
      %v1374 = vpack.c.b16 %v1310, %v1310
      %v1375 = vpack.c.b16 %v1311, %v1311
      %v1376 = vpack.c.b16 %v1312, %v1312
      %v1377 = vpack.c.b16 %v1313, %v1313
      %v1378 = vpack.c.b16 %v1314, %v1314
      %v1379 = vpack.c.b16 %v1315, %v1315
      %v1380 = vpack.c.b16 %v1316, %v1316
      %v1381 = vpack.c.b16 %v1317, %v1317
      %v1382 = vpack.c.b16 %v1318, %v1318
      %v1383 = vpack.c.b16 %v1319, %v1319
      %v1384 = vpack.c.b16 %v1320, %v1320
      %v1385 = vpack.c.b16 %v1321, %v1321
      %v1386 = vpack.c.b16 %v1322, %v1322
      %v1387 = vpack.c.b16 %v1323, %v1323
      %1452 = vst [vmem:[%s330] sm:$0xf] %v1324
      %1453 = vst [vmem:[%s330 + $0x4] sm:$0xf] %v1325
      %1454 = vst [vmem:[%s330 + $0x8] sm:$0xf] %v1326
      %1455 = vst [vmem:[%s330 + $0xc] sm:$0xf] %v1327
      %1456 = vst [vmem:[%s330 + $0x10] sm:$0xf] %v1328
      %1457 = vst [vmem:[%s330 + $0x14] sm:$0xf] %v1329
      %1458 = vst [vmem:[%s330 + $0x18] sm:$0xf] %v1330
      %1459 = vst [vmem:[%s330 + $0x1c] sm:$0xf] %v1331
      %1460 = vst [vmem:[%s330 + $0x20] sm:$0xf] %v1332
      %1461 = vst [vmem:[%s330 + $0x24] sm:$0xf] %v1333
      %1462 = vst [vmem:[%s330 + $0x28] sm:$0xf] %v1334
      %1463 = vst [vmem:[%s330 + $0x2c] sm:$0xf] %v1335
      %1464 = vst [vmem:[%s330 + $0x30] sm:$0xf] %v1336
      %1465 = vst [vmem:[%s330 + $0x34] sm:$0xf] %v1337
      %1466 = vst [vmem:[%s330 + $0x38] sm:$0xf] %v1338
      %1467 = vst [vmem:[%s330 + $0x3c] sm:$0xf] %v1339
      %1468 = vst [vmem:[%s330 + $0x40] sm:$0xf] %v1340
      %1469 = vst [vmem:[%s330 + $0x44] sm:$0xf] %v1341
      %1470 = vst [vmem:[%s330 + $0x48] sm:$0xf] %v1342
      %1471 = vst [vmem:[%s330 + $0x4c] sm:$0xf] %v1343
      %1472 = vst [vmem:[%s330 + $0x50] sm:$0xf] %v1344
      %1473 = vst [vmem:[%s330 + $0x54] sm:$0xf] %v1345
      %1474 = vst [vmem:[%s330 + $0x58] sm:$0xf] %v1346
      %1475 = vst [vmem:[%s330 + $0x5c] sm:$0xf] %v1347
      %1476 = vst [vmem:[%s330 + $0x60] sm:$0xf] %v1348
      %1477 = vst [vmem:[%s330 + $0x64] sm:$0xf] %v1349
      %1478 = vst [vmem:[%s330 + $0x68] sm:$0xf] %v1350
      %1479 = vst [vmem:[%s330 + $0x6c] sm:$0xf] %v1351
      %1480 = vst [vmem:[%s330 + $0x70] sm:$0xf] %v1352
      %1481 = vst [vmem:[%s330 + $0x74] sm:$0xf] %v1353
      %1482 = vst [vmem:[%s330 + $0x78] sm:$0xf] %v1354
      %1483 = vst [vmem:[%s330 + $0x7c] sm:$0xf] %v1355
      %1484 = vst [vmem:[%s330 + $0x80] sm:$0xf] %v1356
      %1485 = vst [vmem:[%s330 + $0x84] sm:$0xf] %v1357
      %1486 = vst [vmem:[%s330 + $0x88] sm:$0xf] %v1358
      %1487 = vst [vmem:[%s330 + $0x8c] sm:$0xf] %v1359
      %1488 = vst [vmem:[%s330 + $0x90] sm:$0xf] %v1360
      %1489 = vst [vmem:[%s330 + $0x94] sm:$0xf] %v1361
      %1490 = vst [vmem:[%s330 + $0x98] sm:$0xf] %v1362
      %1491 = vst [vmem:[%s330 + $0x9c] sm:$0xf] %v1363
      %1492 = vst [vmem:[%s330 + $0xa0] sm:$0xf] %v1364
      %1493 = vst [vmem:[%s330 + $0xa4] sm:$0xf] %v1365
      %1494 = vst [vmem:[%s330 + $0xa8] sm:$0xf] %v1366
      %1495 = vst [vmem:[%s330 + $0xac] sm:$0xf] %v1367
      %1496 = vst [vmem:[%s330 + $0xb0] sm:$0xf] %v1368
      %1497 = vst [vmem:[%s330 + $0xb4] sm:$0xf] %v1369
      %1498 = vst [vmem:[%s330 + $0xb8] sm:$0xf] %v1370
      %1499 = vst [vmem:[%s330 + $0xbc] sm:$0xf] %v1371
      %1500 = vst [vmem:[%s330 + $0xc0] sm:$0xf] %v1372
      %1501 = vst [vmem:[%s330 + $0xc4] sm:$0xf] %v1373
      %1502 = vst [vmem:[%s330 + $0xc8] sm:$0xf] %v1374
      %1503 = vst [vmem:[%s330 + $0xcc] sm:$0xf] %v1375
      %1504 = vst [vmem:[%s330 + $0xd0] sm:$0xf] %v1376
      %1505 = vst [vmem:[%s330 + $0xd4] sm:$0xf] %v1377
      %1506 = vst [vmem:[%s330 + $0xd8] sm:$0xf] %v1378
      %1507 = vst [vmem:[%s330 + $0xdc] sm:$0xf] %v1379
      %1508 = vst [vmem:[%s330 + $0xe0] sm:$0xf] %v1380
      %1509 = vst [vmem:[%s330 + $0xe4] sm:$0xf] %v1381
      %1510 = vst [vmem:[%s330 + $0xe8] sm:$0xf] %v1382
      %1511 = vst [vmem:[%s330 + $0xec] sm:$0xf] %v1383
      %1512 = vst [vmem:[%s330 + $0xf0] sm:$0xf] %v1384
      %1513 = vst [vmem:[%s330 + $0xf4] sm:$0xf] %v1385
      %1514 = vst [vmem:[%s330 + $0xf8] sm:$0xf] %v1386
      %1515 = vst [vmem:[%s330 + $0xfc] sm:$0xf] %v1387
      %v1516 = vsel %vm746, %v878, 0.0
      %v1517 = vsel %vm746, %v881, 0.0
      %v1518 = vadd.f32 %v1516, %v1517
      %v1519 = vsel %vm746, %v886, 0.0
      %v1520 = vadd.f32 %v1518, %v1519
      %v1521 = vsel %vm746, %v889, 0.0
      %v1522 = vadd.f32 %v1520, %v1521
      %v1523 = vsel %vm746, %v894, 0.0
      %v1524 = vadd.f32 %v1522, %v1523
      %v1525 = vsel %vm746, %v897, 0.0
      %v1526 = vadd.f32 %v1524, %v1525
      %v1527 = vsel %vm746, %v902, 0.0
      %v1528 = vadd.f32 %v1526, %v1527
      %v1529 = vsel %vm746, %v905, 0.0
      %v1530 = vadd.f32 %v1528, %v1529
      %v1531 = vsel %vm746, %v910, 0.0
      %v1532 = vadd.f32 %v1530, %v1531
      %v1533 = vsel %vm746, %v913, 0.0
      %v1534 = vadd.f32 %v1532, %v1533
      %v1535 = vsel %vm746, %v918, 0.0
      %v1536 = vadd.f32 %v1534, %v1535
      %v1537 = vsel %vm746, %v921, 0.0
      %v1538 = vadd.f32 %v1536, %v1537
      %v1539 = vsel %vm746, %v926, 0.0
      %v1540 = vadd.f32 %v1538, %v1539
      %v1541 = vsel %vm746, %v929, 0.0
      %v1542 = vadd.f32 %v1540, %v1541
      %v1543 = vsel %vm746, %v934, 0.0
      %v1544 = vadd.f32 %v1542, %v1543
      %v1545 = vsel %vm746, %v937, 0.0
      %v1546 = vadd.f32 %v1544, %v1545
      %v1547 = vsel %vm746, %v942, 0.0
      %v1548 = vadd.f32 %v1546, %v1547
      %v1549 = vsel %vm746, %v945, 0.0
      %v1550 = vadd.f32 %v1548, %v1549
      %v1551 = vsel %vm746, %v950, 0.0
      %v1552 = vadd.f32 %v1550, %v1551
      %v1553 = vsel %vm746, %v953, 0.0
      %v1554 = vadd.f32 %v1552, %v1553
      %v1555 = vsel %vm746, %v958, 0.0
      %v1556 = vadd.f32 %v1554, %v1555
      %v1557 = vsel %vm746, %v961, 0.0
      %v1558 = vadd.f32 %v1556, %v1557
      %v1559 = vsel %vm746, %v966, 0.0
      %v1560 = vadd.f32 %v1558, %v1559
      %v1561 = vsel %vm746, %v969, 0.0
      %v1562 = vadd.f32 %v1560, %v1561
      %v1563 = vsel %vm746, %v974, 0.0
      %v1564 = vadd.f32 %v1562, %v1563
      %v1565 = vsel %vm746, %v977, 0.0
      %v1566 = vadd.f32 %v1564, %v1565
      %v1567 = vsel %vm746, %v982, 0.0
      %v1568 = vadd.f32 %v1566, %v1567
      %v1569 = vsel %vm746, %v985, 0.0
      %v1570 = vadd.f32 %v1568, %v1569
      %v1571 = vsel %vm746, %v990, 0.0
      %v1572 = vadd.f32 %v1570, %v1571
      %v1573 = vsel %vm746, %v993, 0.0
      %v1574 = vadd.f32 %v1572, %v1573
      %v1575 = vsel %vm746, %v998, 0.0
      %v1576 = vadd.f32 %v1574, %v1575
      %v1577 = vsel %vm746, %v1001, 0.0
      %v1578 = vadd.f32 %v1576, %v1577
      %v1579 = vsel %vm746, %v1006, 0.0
      %v1580 = vadd.f32 %v1578, %v1579
      %v1581 = vsel %vm746, %v1009, 0.0
      %v1582 = vadd.f32 %v1580, %v1581
      %v1583 = vsel %vm746, %v1014, 0.0
      %v1584 = vadd.f32 %v1582, %v1583
      %v1585 = vsel %vm746, %v1017, 0.0
      %v1586 = vadd.f32 %v1584, %v1585
      %v1587 = vsel %vm746, %v1022, 0.0
      %v1588 = vadd.f32 %v1586, %v1587
      %v1589 = vsel %vm746, %v1025, 0.0
      %v1590 = vadd.f32 %v1588, %v1589
      %v1591 = vsel %vm746, %v1030, 0.0
      %v1592 = vadd.f32 %v1590, %v1591
      %v1593 = vsel %vm746, %v1033, 0.0
      %v1594 = vadd.f32 %v1592, %v1593
      %v1595 = vsel %vm746, %v1038, 0.0
      %v1596 = vadd.f32 %v1594, %v1595
      %v1597 = vsel %vm746, %v1041, 0.0
      %v1598 = vadd.f32 %v1596, %v1597
      %v1599 = vsel %vm746, %v1046, 0.0
      %v1600 = vadd.f32 %v1598, %v1599
      %v1601 = vsel %vm746, %v1049, 0.0
      %v1602 = vadd.f32 %v1600, %v1601
      %v1603 = vsel %vm746, %v1054, 0.0
      %v1604 = vadd.f32 %v1602, %v1603
      %v1605 = vsel %vm746, %v1057, 0.0
      %v1606 = vadd.f32 %v1604, %v1605
      %v1607 = vsel %vm746, %v1062, 0.0
      %v1608 = vadd.f32 %v1606, %v1607
      %v1609 = vsel %vm746, %v1065, 0.0
      %v1610 = vadd.f32 %v1608, %v1609
      %v1611 = vsel %vm746, %v1070, 0.0
      %v1612 = vadd.f32 %v1610, %v1611
      %v1613 = vsel %vm746, %v1073, 0.0
      %v1614 = vadd.f32 %v1612, %v1613
      %v1615 = vsel %vm746, %v1078, 0.0
      %v1616 = vadd.f32 %v1614, %v1615
      %v1617 = vsel %vm746, %v1081, 0.0
      %v1618 = vadd.f32 %v1616, %v1617
      %v1619 = vsel %vm746, %v1086, 0.0
      %v1620 = vadd.f32 %v1618, %v1619
      %v1621 = vsel %vm746, %v1089, 0.0
      %v1622 = vadd.f32 %v1620, %v1621
      %v1623 = vsel %vm746, %v1094, 0.0
      %v1624 = vadd.f32 %v1622, %v1623
      %v1625 = vsel %vm746, %v1097, 0.0
      %v1626 = vadd.f32 %v1624, %v1625
      %v1627 = vsel %vm746, %v1102, 0.0
      %v1628 = vadd.f32 %v1626, %v1627
      %v1629 = vsel %vm746, %v1105, 0.0
      %v1630 = vadd.f32 %v1628, %v1629
      %v1631 = vsel %vm746, %v1110, 0.0
      %v1632 = vadd.f32 %v1630, %v1631
      %v1633 = vsel %vm746, %v1113, 0.0
      %v1634 = vadd.f32 %v1632, %v1633
      %v1635 = vsel %vm746, %v1118, 0.0
      %v1636 = vadd.f32 %v1634, %v1635
      %v1637 = vsel %vm746, %v1121, 0.0
      %v1638 = vadd.f32 %v1636, %v1637
      %v1639 = vsel %vm746, %v1126, 0.0
      %v1640 = vadd.f32 %v1638, %v1639
      %v1641 = vsel %vm746, %v1129, 0.0
      %v1642 = vadd.f32 %v1640, %v1641
      %v1643 = vrot.slane %v1642, 4
      %v1644 = vadd.f32 %v1642, %v1643
      %v1645 = vrot.slane %v1644, 2
      %v1646 = vadd.f32 %v1644, %v1645
      %v1647 = vrot.slane %v1646, 1
      %v1648 = vadd.f32 %v1646, %v1647
      %v1649 = vmul.f32 %v878, %v878
      %v1650 = vmul.f32 %v881, %v881
      %v1651 = vmul.f32 %v886, %v886
      %v1652 = vmul.f32 %v889, %v889
      %v1653 = vmul.f32 %v894, %v894
      %v1654 = vmul.f32 %v897, %v897
      %v1655 = vmul.f32 %v902, %v902
      %v1656 = vmul.f32 %v905, %v905
      %v1657 = vmul.f32 %v910, %v910
      %v1658 = vmul.f32 %v913, %v913
      %v1659 = vmul.f32 %v918, %v918
      %v1660 = vmul.f32 %v921, %v921
      %v1661 = vmul.f32 %v926, %v926
      %v1662 = vmul.f32 %v929, %v929
      %v1663 = vmul.f32 %v934, %v934
      %v1664 = vmul.f32 %v937, %v937
      %v1665 = vmul.f32 %v942, %v942
      %v1666 = vmul.f32 %v945, %v945
      %v1667 = vmul.f32 %v950, %v950
      %v1668 = vmul.f32 %v953, %v953
      %v1669 = vmul.f32 %v958, %v958
      %v1670 = vmul.f32 %v961, %v961
      %v1671 = vmul.f32 %v966, %v966
      %v1672 = vmul.f32 %v969, %v969
      %v1673 = vmul.f32 %v974, %v974
      %v1674 = vmul.f32 %v977, %v977
      %v1675 = vmul.f32 %v982, %v982
      %v1676 = vmul.f32 %v985, %v985
      %v1677 = vmul.f32 %v990, %v990
      %v1678 = vmul.f32 %v993, %v993
      %v1679 = vmul.f32 %v998, %v998
      %v1680 = vmul.f32 %v1001, %v1001
      %v1681 = vmul.f32 %v1006, %v1006
      %v1682 = vmul.f32 %v1009, %v1009
      %v1683 = vmul.f32 %v1014, %v1014
      %v1684 = vmul.f32 %v1017, %v1017
      %v1685 = vmul.f32 %v1022, %v1022
      %v1686 = vmul.f32 %v1025, %v1025
      %v1687 = vmul.f32 %v1030, %v1030
      %v1688 = vmul.f32 %v1033, %v1033
      %v1689 = vmul.f32 %v1038, %v1038
      %v1690 = vmul.f32 %v1041, %v1041
      %v1691 = vmul.f32 %v1046, %v1046
      %v1692 = vmul.f32 %v1049, %v1049
      %v1693 = vmul.f32 %v1054, %v1054
      %v1694 = vmul.f32 %v1057, %v1057
      %v1695 = vmul.f32 %v1062, %v1062
      %v1696 = vmul.f32 %v1065, %v1065
      %v1697 = vmul.f32 %v1070, %v1070
      %v1698 = vmul.f32 %v1073, %v1073
      %v1699 = vmul.f32 %v1078, %v1078
      %v1700 = vmul.f32 %v1081, %v1081
      %v1701 = vmul.f32 %v1086, %v1086
      %v1702 = vmul.f32 %v1089, %v1089
      %v1703 = vmul.f32 %v1094, %v1094
      %v1704 = vmul.f32 %v1097, %v1097
      %v1705 = vmul.f32 %v1102, %v1102
      %v1706 = vmul.f32 %v1105, %v1105
      %v1707 = vmul.f32 %v1110, %v1110
      %v1708 = vmul.f32 %v1113, %v1113
      %v1709 = vmul.f32 %v1118, %v1118
      %v1710 = vmul.f32 %v1121, %v1121
      %v1711 = vmul.f32 %v1126, %v1126
      %v1712 = vmul.f32 %v1129, %v1129
      %v1713 = vsel %vm746, %v1649, 0.0
      %v1714 = vsel %vm746, %v1650, 0.0
      %v1715 = vadd.f32 %v1713, %v1714
      %v1716 = vsel %vm746, %v1651, 0.0
      %v1717 = vadd.f32 %v1715, %v1716
      %v1718 = vsel %vm746, %v1652, 0.0
      %v1719 = vadd.f32 %v1717, %v1718
      %v1720 = vsel %vm746, %v1653, 0.0
      %v1721 = vadd.f32 %v1719, %v1720
      %v1722 = vsel %vm746, %v1654, 0.0
      %v1723 = vadd.f32 %v1721, %v1722
      %v1724 = vsel %vm746, %v1655, 0.0
      %v1725 = vadd.f32 %v1723, %v1724
      %v1726 = vsel %vm746, %v1656, 0.0
      %v1727 = vadd.f32 %v1725, %v1726
      %v1728 = vsel %vm746, %v1657, 0.0
      %v1729 = vadd.f32 %v1727, %v1728
      %v1730 = vsel %vm746, %v1658, 0.0
      %v1731 = vadd.f32 %v1729, %v1730
      %v1732 = vsel %vm746, %v1659, 0.0
      %v1733 = vadd.f32 %v1731, %v1732
      %v1734 = vsel %vm746, %v1660, 0.0
      %v1735 = vadd.f32 %v1733, %v1734
      %v1736 = vsel %vm746, %v1661, 0.0
      %v1737 = vadd.f32 %v1735, %v1736
      %v1738 = vsel %vm746, %v1662, 0.0
      %v1739 = vadd.f32 %v1737, %v1738
      %v1740 = vsel %vm746, %v1663, 0.0
      %v1741 = vadd.f32 %v1739, %v1740
      %v1742 = vsel %vm746, %v1664, 0.0
      %v1743 = vadd.f32 %v1741, %v1742
      %v1744 = vsel %vm746, %v1665, 0.0
      %v1745 = vadd.f32 %v1743, %v1744
      %v1746 = vsel %vm746, %v1666, 0.0
      %v1747 = vadd.f32 %v1745, %v1746
      %v1748 = vsel %vm746, %v1667, 0.0
      %v1749 = vadd.f32 %v1747, %v1748
      %v1750 = vsel %vm746, %v1668, 0.0
      %v1751 = vadd.f32 %v1749, %v1750
      %v1752 = vsel %vm746, %v1669, 0.0
      %v1753 = vadd.f32 %v1751, %v1752
      %v1754 = vsel %vm746, %v1670, 0.0
      %v1755 = vadd.f32 %v1753, %v1754
      %v1756 = vsel %vm746, %v1671, 0.0
      %v1757 = vadd.f32 %v1755, %v1756
      %v1758 = vsel %vm746, %v1672, 0.0
      %v1759 = vadd.f32 %v1757, %v1758
      %v1760 = vsel %vm746, %v1673, 0.0
      %v1761 = vadd.f32 %v1759, %v1760
      %v1762 = vsel %vm746, %v1674, 0.0
      %v1763 = vadd.f32 %v1761, %v1762
      %v1764 = vsel %vm746, %v1675, 0.0
      %v1765 = vadd.f32 %v1763, %v1764
      %v1766 = vsel %vm746, %v1676, 0.0
      %v1767 = vadd.f32 %v1765, %v1766
      %v1768 = vsel %vm746, %v1677, 0.0
      %v1769 = vadd.f32 %v1767, %v1768
      %v1770 = vsel %vm746, %v1678, 0.0
      %v1771 = vadd.f32 %v1769, %v1770
      %v1772 = vsel %vm746, %v1679, 0.0
      %v1773 = vadd.f32 %v1771, %v1772
      %v1774 = vsel %vm746, %v1680, 0.0
      %v1775 = vadd.f32 %v1773, %v1774
      %v1776 = vsel %vm746, %v1681, 0.0
      %v1777 = vadd.f32 %v1775, %v1776
      %v1778 = vsel %vm746, %v1682, 0.0
      %v1779 = vadd.f32 %v1777, %v1778
      %v1780 = vsel %vm746, %v1683, 0.0
      %v1781 = vadd.f32 %v1779, %v1780
      %v1782 = vsel %vm746, %v1684, 0.0
      %v1783 = vadd.f32 %v1781, %v1782
      %v1784 = vsel %vm746, %v1685, 0.0
      %v1785 = vadd.f32 %v1783, %v1784
      %v1786 = vsel %vm746, %v1686, 0.0
      %v1787 = vadd.f32 %v1785, %v1786
      %v1788 = vsel %vm746, %v1687, 0.0
      %v1789 = vadd.f32 %v1787, %v1788
      %v1790 = vsel %vm746, %v1688, 0.0
      %v1791 = vadd.f32 %v1789, %v1790
      %v1792 = vsel %vm746, %v1689, 0.0
      %v1793 = vadd.f32 %v1791, %v1792
      %v1794 = vsel %vm746, %v1690, 0.0
      %v1795 = vadd.f32 %v1793, %v1794
      %v1796 = vsel %vm746, %v1691, 0.0
      %v1797 = vadd.f32 %v1795, %v1796
      %v1798 = vsel %vm746, %v1692, 0.0
      %v1799 = vadd.f32 %v1797, %v1798
      %v1800 = vsel %vm746, %v1693, 0.0
      %v1801 = vadd.f32 %v1799, %v1800
      %v1802 = vsel %vm746, %v1694, 0.0
      %v1803 = vadd.f32 %v1801, %v1802
      %v1804 = vsel %vm746, %v1695, 0.0
      %v1805 = vadd.f32 %v1803, %v1804
      %v1806 = vsel %vm746, %v1696, 0.0
      %v1807 = vadd.f32 %v1805, %v1806
      %v1808 = vsel %vm746, %v1697, 0.0
      %v1809 = vadd.f32 %v1807, %v1808
      %v1810 = vsel %vm746, %v1698, 0.0
      %v1811 = vadd.f32 %v1809, %v1810
      %v1812 = vsel %vm746, %v1699, 0.0
      %v1813 = vadd.f32 %v1811, %v1812
      %v1814 = vsel %vm746, %v1700, 0.0
      %v1815 = vadd.f32 %v1813, %v1814
      %v1816 = vsel %vm746, %v1701, 0.0
      %v1817 = vadd.f32 %v1815, %v1816
      %v1818 = vsel %vm746, %v1702, 0.0
      %v1819 = vadd.f32 %v1817, %v1818
      %v1820 = vsel %vm746, %v1703, 0.0
      %v1821 = vadd.f32 %v1819, %v1820
      %v1822 = vsel %vm746, %v1704, 0.0
      %v1823 = vadd.f32 %v1821, %v1822
      %v1824 = vsel %vm746, %v1705, 0.0
      %v1825 = vadd.f32 %v1823, %v1824
      %v1826 = vsel %vm746, %v1706, 0.0
      %v1827 = vadd.f32 %v1825, %v1826
      %v1828 = vsel %vm746, %v1707, 0.0
      %v1829 = vadd.f32 %v1827, %v1828
      %v1830 = vsel %vm746, %v1708, 0.0
      %v1831 = vadd.f32 %v1829, %v1830
      %v1832 = vsel %vm746, %v1709, 0.0
      %v1833 = vadd.f32 %v1831, %v1832
      %v1834 = vsel %vm746, %v1710, 0.0
      %v1835 = vadd.f32 %v1833, %v1834
      %v1836 = vsel %vm746, %v1711, 0.0
      %v1837 = vadd.f32 %v1835, %v1836
      %v1838 = vsel %vm746, %v1712, 0.0
      %v1839 = vadd.f32 %v1837, %v1838
      %v1840 = vrot.slane %v1839, 4
      %v1841 = vadd.f32 %v1839, %v1840
      %v1842 = vrot.slane %v1841, 2
      %v1843 = vadd.f32 %v1841, %v1842
      %v1844 = vrot.slane %v1843, 1
      %v1845 = vadd.f32 %v1843, %v1844
      %1847 = vrot.lane.b32.xlu0 %v1845, 64
      %v1848 = vpop.permute.xlu0 %1847
      %v1850 = vsel %vm746, %v1648, %v1848
      %v1851 = vlaneseq
      %v1852 = vshrl.u32 %v1851, 7
      %v1853 = vsub.s32 0, %v1852
      %v1854 = vrot.slane %v1850, %v1853
      %1855 = vst [vmem:[%s339] sm:$0xff] %v1854
      %s1856 = smul.u32 64, %s23
      %p1857 = scmp.lt.s32.totalorder %s22, 1
      %s1858 = scalar_select %p1857, %s22, 1
      %p1859 = scmp.lt.s32.totalorder %s1856, 127
      %s1860 = scalar_select %p1859, %s1856, 127
      %s1861 = smul.addr %s1858, 128
      %s1862 = sadd.s32 %s1860, %s1861
      %s1863 = smul.addr %s1862, 4
      %s1864 = scalar_lea.vmem %s5, %s1863
      %p1865 = scmp.lt.s32.totalorder %s22, 1
      %s1866 = scalar_select %p1865, %s22, 1
      %p1867 = scmp.lt.s32.totalorder %s23, 1
      %s1868 = scalar_select %p1867, %s23, 1
      %s1869 = smul.addr %s1866, 2
      %s1870 = sadd.s32 %s1868, %s1869
      %s1871 = smul.addr %s1870, 8
      %s1872 = scalar_lea.vmem %s6, %s1871
      // Predicated region
      $region41: #{residual_cbn_decoder_forward.10} parent=39 // pred_check
        %p1873 = pneg %p172
      $region42: #{residual_cbn_decoder_forward.10} parent=39 // pred_check_branch
        %1875 = sbr.rel (%p1873) target = $region44
      $region43: #{residual_cbn_decoder_forward.10} parent=39 // pred_region
        %s1876 = smul.u32 64, %s23
      $region44: #{residual_cbn_decoder_forward.10} parent=39 // pred_fallthru
        _
      // Predicated region
      $region45: #{residual_cbn_decoder_forward.10} parent=39 // pred_check
        %p1877 = pneg %p200
      $region46: #{residual_cbn_decoder_forward.10} parent=39 // pred_check_branch
        %1879 = sbr.rel (%p1877) target = $region48
      $region47: #{residual_cbn_decoder_forward.10} parent=39 // pred_region
        _
      $region48: #{residual_cbn_decoder_forward.10} parent=39 // pred_fallthru
        _
    $region40: #{residual_cbn_decoder_forward.10} parent=5 // pred_fallthru
      _
    %p1880 = scmp.le.s32.totalorder 2, %s13
    // Predicated region
    $region49: #{residual_cbn_decoder_forward.10} parent=5 // pred_check
      %p1881 = pneg %p1880
    $region50: #{residual_cbn_decoder_forward.10} parent=5 // pred_check_branch
      %1883 = sbr.rel (%p1881) target = $region52
    $region51: #{residual_cbn_decoder_forward.10} parent=5 // pred_region
      %s1884 = ssub.s32 %s13, 2
      // Predicated region
      $region53: #{residual_cbn_decoder_forward.10} parent=51 // pred_check
        %p1885 = pneg %p178
      $region54: #{residual_cbn_decoder_forward.10} parent=51 // pred_check_branch
        %1887 = sbr.rel (%p1885) target = $region56
      $region55: #{residual_cbn_decoder_forward.10} parent=51 // pred_region
        %s1888 = smul.u32 64, %s25
        %p1889 = scmp.lt.s32.totalorder %s24, 1
        %s1890 = scalar_select %p1889, %s24, 1
        %p1891 = scmp.lt.s32.totalorder %s1888, 127
        %s1892 = scalar_select %p1891, %s1888, 127
        %s1893 = smul.addr %s1890, 128
        %s1894 = sadd.s32 %s1892, %s1893
        %s1895 = smul.addr %s1894, 4
        %s1896 = scalar_lea.vmem %s5, %s1895
      $region56: #{residual_cbn_decoder_forward.10} parent=51 // pred_fallthru
        _
      // Predicated region
      $region57: #{residual_cbn_decoder_forward.10} parent=51 // pred_check
        %p1897 = pneg %p206
      $region58: #{residual_cbn_decoder_forward.10} parent=51 // pred_check_branch
        %1899 = sbr.rel (%p1897) target = $region60
      $region59: #{residual_cbn_decoder_forward.10} parent=51 // pred_region
        %p1900 = scmp.lt.s32.totalorder %s24, 1
        %s1901 = scalar_select %p1900, %s24, 1
        %p1902 = scmp.lt.s32.totalorder %s25, 1
        %s1903 = scalar_select %p1902, %s25, 1
        %s1904 = smul.addr %s1901, 2
        %s1905 = sadd.s32 %s1903, %s1904
        %s1906 = smul.addr %s1905, 8
        %s1907 = scalar_lea.vmem %s6, %s1906
      $region60: #{residual_cbn_decoder_forward.10} parent=51 // pred_fallthru
        _
    $region52: #{residual_cbn_decoder_forward.10} parent=5 // pred_fallthru
      _
  $region6: #{residual_cbn_decoder_forward.10} parent=0 // loop_footer
    %s17 = sadd.s32 1, %s13
  $region7: #{residual_cbn_decoder_forward.10} parent=0 // loop_footer_branch
    %12 = sbr.rel target = $region3
  $region8: #{residual_cbn_decoder_forward.10} parent=0 // loop_exit
    _

// kernel: residual_cbn_decoder_forward.9
$region0: #{residual_cbn_decoder_forward.9}
  #allocation0 [shape = 'u32[]', space=smem, size = 0x4, offset = 0x4, fixed_abs, tag = 'smem constant byte address 0x4 - core index']
  #allocation1 [shape = 'u32[144,128]{1,0:T(1,128)}', space=vmem, size = 0x12000, scoped, tag = 'internal scratch']
  %s0 = inlined_call_operand.vmem [shape: f32[2,1024,32], index: 0, kind: input, shape index: {}]
  %s1 = inlined_call_operand.vmem [shape: f32[2,1024,3], index: 1, kind: input, shape index: {}]
  %s2 = inlined_call_operand.vmem [shape: f32[2,1024,512], index: 2, kind: input, shape index: {}]
  %s3 = inlined_call_operand.vmem [shape: bf16[512,256], index: 3, kind: input, shape index: {}]
  %s4 = inlined_call_operand.vmem [shape: f32[1,256], index: 4, kind: input, shape index: {}]
  %s5 = inlined_call_operand.vmem [shape: bf16[256,64], index: 5, kind: input, shape index: {}]
  %s6 = inlined_call_operand.vmem [shape: f32[1,64], index: 6, kind: input, shape index: {}]
  %s7 = inlined_call_operand.vmem [shape: bf16[128,128], index: 7, kind: input, shape index: {}]
  %s8 = inlined_call_operand.vmem [shape: f32[1,128], index: 8, kind: input, shape index: {}]
  %s9 = inlined_call_operand.vmem [shape: f32[2,1,128], index: 9, kind: input, shape index: {}]
  %s10 = inlined_call_operand.vmem [shape: bf16[2,1024,128], index: 10, kind: output, shape index: {0}]
  %s11 = inlined_call_operand.vmem [shape: f32[2,2,8,128], index: 11, kind: output, shape index: {1}]
  %12 = xla_tuple %s10, %s11
  %s13 = sld [smem:[#allocation0]]
  $region81: #{residual_cbn_decoder_forward.9} parent=0
    _
  %s15 = ssub.s32 1, %s13
  %s16 = scalar_select 0, %s15, %s13
  loop: start=0, step=1, limit=6
  $region2: #{residual_cbn_decoder_forward.9} parent=0 // loop_pre_header
    _
  $region3: #{residual_cbn_decoder_forward.9} parent=0 // loop_header
    %s18 = sphi 0, %s22
    %p19 = scmp.ge.s32.totalorder %s18, 6
    %s25 = sphi 0, %s37
    %s26 = sphi 0, %s33
    %s27 = sphi 0, %s25
    %s28 = sphi 0, %s26
    %s29 = sphi 0, %s27
    %s30 = sphi 0, %s28
    %s42 = sphi 0, %s44
    %s45 = sphi 0, %s42
    %s46 = sphi 0, %s45
    %s62 = sphi 0, %s46
    %s70 = sphi 0, %s72
    %s73 = sphi 0, %s70
    %s74 = sphi 0, %s73
    %s90 = sphi 0, %s74
    %s98 = sphi 0, %s100
    %s101 = sphi 0, %s98
    %s102 = sphi 0, %s101
    %s118 = sphi 0, %s102
    %s122 = sphi 0, %s122
    %s124 = sphi 0, %s122
    %s125 = sphi 0, %s124
    %s139 = sphi 0, %s125
    %s143 = sphi 0, %s143
    %s145 = sphi 0, %s143
    %s146 = sphi 0, %s145
    %s160 = sphi 0, %s146
    %s164 = sphi 0, %s164
    %s166 = sphi 0, %s164
    %s167 = sphi 0, %s166
    %s181 = sphi 0, %s167
    %s185 = sphi 0, %s185
    %s187 = sphi 0, %s185
    %s188 = sphi 0, %s187
    %s202 = sphi 0, %s188
    %s206 = sphi 0, %s206
    %s208 = sphi 0, %s206
    %s209 = sphi 0, %s208
    %s223 = sphi 0, %s209
    %s227 = sphi 0, %s227
    %s229 = sphi 0, %s227
    %s230 = sphi 0, %s229
    %s244 = sphi 0, %s230
    %s250 = sphi 0, %s252
    %s253 = sphi 0, %s250
    %s254 = sphi 0, %s253
    %s270 = sphi 0, %s254
    %s278 = sphi 0, %s280
    %s281 = sphi 0, %s278
    %s282 = sphi 0, %s281
    %s298 = sphi 0, %s282
    %s306 = sphi 0, %s308
    %s309 = sphi 0, %s306
    %s310 = sphi 0, %s309
    %s326 = sphi 0, %s310
  $region4: #{residual_cbn_decoder_forward.9} parent=0 // loop_header_branch
    %21 = sbr.rel (%p19) target = $region8
  $region5: #{residual_cbn_decoder_forward.9} parent=0 // loop_body
    %s23 = ssub.s32 %s18, 1
    %s24 = ssub.s32 %s18, 2
    %s31 = sadd.s32 1, %s26
    %p32 = scmp.ge.s32.totalorder %s31, 2
    %s33 = scalar_select %p32, 0, %s31
    %s34 = sadd.s32 1, %s25
    %s35 = scalar_select %p32, %s34, %s25
    %p36 = scmp.ge.s32.totalorder %s35, 2
    %s37 = scalar_select %p36, 0, %s35
    %s38 = ssub.s32 %s25, %s37
    %s39 = ssub.s32 %s26, %s33
    %s40 = sor.u32 %s38, %s39
    %p41 = scmp.eq.s32.totalorder %s40, 0
    %s43 = sadd.s32 %s42, 1
    %s44 = scalar_select %p41, %s42, %s43
    %p47 = pneg %p41
    %p48 = scmp.eq.s32.totalorder %s18, 3
    %p49 = por %p47, %p48
    %p50 = scmp.ne.s32.totalorder %s42, %s45
    %p51 = scmp.eq.s32.totalorder %s18, 0
    %p52 = por %p50, %p51
    %p53 = scmp.ne.s32.totalorder %s42, %s45
    %p54 = scmp.eq.s32.totalorder %s23, 3
    %p55 = por %p53, %p54
    %p56 = scmp.ne.s32.totalorder %s45, %s46
    %p57 = scmp.eq.s32.totalorder %s23, 0
    %p58 = por %p56, %p57
    %p59 = scmp.ne.s32.totalorder %s45, %s46
    %p60 = scmp.eq.s32.totalorder %s24, 3
    %p61 = por %p59, %p60
    %p63 = scmp.ne.s32.totalorder %s46, %s62
    %p64 = scmp.eq.s32.totalorder %s24, 0
    %p65 = por %p63, %p64
    %s66 = ssub.s32 %s25, %s37
    %s67 = ssub.s32 %s26, %s33
    %s68 = sor.u32 %s66, %s67
    %p69 = scmp.eq.s32.totalorder %s68, 0
    %s71 = sadd.s32 %s70, 1
    %s72 = scalar_select %p69, %s70, %s71
    %p75 = pneg %p69
    %p76 = scmp.eq.s32.totalorder %s18, 3
    %p77 = por %p75, %p76
    %p78 = scmp.ne.s32.totalorder %s70, %s73
    %p79 = scmp.eq.s32.totalorder %s18, 0
    %p80 = por %p78, %p79
    %p81 = scmp.ne.s32.totalorder %s70, %s73
    %p82 = scmp.eq.s32.totalorder %s23, 3
    %p83 = por %p81, %p82
    %p84 = scmp.ne.s32.totalorder %s73, %s74
    %p85 = scmp.eq.s32.totalorder %s23, 0
    %p86 = por %p84, %p85
    %p87 = scmp.ne.s32.totalorder %s73, %s74
    %p88 = scmp.eq.s32.totalorder %s24, 3
    %p89 = por %p87, %p88
    %p91 = scmp.ne.s32.totalorder %s74, %s90
    %p92 = scmp.eq.s32.totalorder %s24, 0
    %p93 = por %p91, %p92
    %s94 = ssub.s32 %s25, %s37
    %s95 = ssub.s32 %s26, %s33
    %s96 = sor.u32 %s94, %s95
    %p97 = scmp.eq.s32.totalorder %s96, 0
    %s99 = sadd.s32 %s98, 1
    %s100 = scalar_select %p97, %s98, %s99
    %p103 = pneg %p97
    %p104 = scmp.eq.s32.totalorder %s18, 3
    %p105 = por %p103, %p104
    %p106 = scmp.ne.s32.totalorder %s98, %s101
    %p107 = scmp.eq.s32.totalorder %s18, 0
    %p108 = por %p106, %p107
    %p109 = scmp.ne.s32.totalorder %s98, %s101
    %p110 = scmp.eq.s32.totalorder %s23, 3
    %p111 = por %p109, %p110
    %p112 = scmp.ne.s32.totalorder %s101, %s102
    %p113 = scmp.eq.s32.totalorder %s23, 0
    %p114 = por %p112, %p113
    %p115 = scmp.ne.s32.totalorder %s101, %s102
    %p116 = scmp.eq.s32.totalorder %s24, 3
    %p117 = por %p115, %p116
    %p119 = scmp.ne.s32.totalorder %s102, %s118
    %p120 = scmp.eq.s32.totalorder %s24, 0
    %p121 = por %p119, %p120
    %s123 = sadd.s32 %s122, 1
    %p126 = scmp.eq.s32.totalorder %s18, 3
    %p127 = scmp.ne.s32.totalorder %s122, %s124
    %p128 = scmp.eq.s32.totalorder %s18, 0
    %p129 = por %p127, %p128
    %p130 = scmp.ne.s32.totalorder %s122, %s124
    %p131 = scmp.eq.s32.totalorder %s23, 3
    %p132 = por %p130, %p131
    %p133 = scmp.ne.s32.totalorder %s124, %s125
    %p134 = scmp.eq.s32.totalorder %s23, 0
    %p135 = por %p133, %p134
    %p136 = scmp.ne.s32.totalorder %s124, %s125
    %p137 = scmp.eq.s32.totalorder %s24, 3
    %p138 = por %p136, %p137
    %p140 = scmp.ne.s32.totalorder %s125, %s139
    %p141 = scmp.eq.s32.totalorder %s24, 0
    %p142 = por %p140, %p141
    %s144 = sadd.s32 %s143, 1
    %p147 = scmp.eq.s32.totalorder %s18, 3
    %p148 = scmp.ne.s32.totalorder %s143, %s145
    %p149 = scmp.eq.s32.totalorder %s18, 0
    %p150 = por %p148, %p149
    %p151 = scmp.ne.s32.totalorder %s143, %s145
    %p152 = scmp.eq.s32.totalorder %s23, 3
    %p153 = por %p151, %p152
    %p154 = scmp.ne.s32.totalorder %s145, %s146
    %p155 = scmp.eq.s32.totalorder %s23, 0
    %p156 = por %p154, %p155
    %p157 = scmp.ne.s32.totalorder %s145, %s146
    %p158 = scmp.eq.s32.totalorder %s24, 3
    %p159 = por %p157, %p158
    %p161 = scmp.ne.s32.totalorder %s146, %s160
    %p162 = scmp.eq.s32.totalorder %s24, 0
    %p163 = por %p161, %p162
    %s165 = sadd.s32 %s164, 1
    %p168 = scmp.eq.s32.totalorder %s18, 3
    %p169 = scmp.ne.s32.totalorder %s164, %s166
    %p170 = scmp.eq.s32.totalorder %s18, 0
    %p171 = por %p169, %p170
    %p172 = scmp.ne.s32.totalorder %s164, %s166
    %p173 = scmp.eq.s32.totalorder %s23, 3
    %p174 = por %p172, %p173
    %p175 = scmp.ne.s32.totalorder %s166, %s167
    %p176 = scmp.eq.s32.totalorder %s23, 0
    %p177 = por %p175, %p176
    %p178 = scmp.ne.s32.totalorder %s166, %s167
    %p179 = scmp.eq.s32.totalorder %s24, 3
    %p180 = por %p178, %p179
    %p182 = scmp.ne.s32.totalorder %s167, %s181
    %p183 = scmp.eq.s32.totalorder %s24, 0
    %p184 = por %p182, %p183
    %s186 = sadd.s32 %s185, 1
    %p189 = scmp.eq.s32.totalorder %s18, 3
    %p190 = scmp.ne.s32.totalorder %s185, %s187
    %p191 = scmp.eq.s32.totalorder %s18, 0
    %p192 = por %p190, %p191
    %p193 = scmp.ne.s32.totalorder %s185, %s187
    %p194 = scmp.eq.s32.totalorder %s23, 3
    %p195 = por %p193, %p194
    %p196 = scmp.ne.s32.totalorder %s187, %s188
    %p197 = scmp.eq.s32.totalorder %s23, 0
    %p198 = por %p196, %p197
    %p199 = scmp.ne.s32.totalorder %s187, %s188
    %p200 = scmp.eq.s32.totalorder %s24, 3
    %p201 = por %p199, %p200
    %p203 = scmp.ne.s32.totalorder %s188, %s202
    %p204 = scmp.eq.s32.totalorder %s24, 0
    %p205 = por %p203, %p204
    %s207 = sadd.s32 %s206, 1
    %p210 = scmp.eq.s32.totalorder %s18, 3
    %p211 = scmp.ne.s32.totalorder %s206, %s208
    %p212 = scmp.eq.s32.totalorder %s18, 0
    %p213 = por %p211, %p212
    %p214 = scmp.ne.s32.totalorder %s206, %s208
    %p215 = scmp.eq.s32.totalorder %s23, 3
    %p216 = por %p214, %p215
    %p217 = scmp.ne.s32.totalorder %s208, %s209
    %p218 = scmp.eq.s32.totalorder %s23, 0
    %p219 = por %p217, %p218
    %p220 = scmp.ne.s32.totalorder %s208, %s209
    %p221 = scmp.eq.s32.totalorder %s24, 3
    %p222 = por %p220, %p221
    %p224 = scmp.ne.s32.totalorder %s209, %s223
    %p225 = scmp.eq.s32.totalorder %s24, 0
    %p226 = por %p224, %p225
    %s228 = sadd.s32 %s227, 1
    %p231 = scmp.eq.s32.totalorder %s18, 3
    %p232 = scmp.ne.s32.totalorder %s227, %s229
    %p233 = scmp.eq.s32.totalorder %s18, 0
    %p234 = por %p232, %p233
    %p235 = scmp.ne.s32.totalorder %s227, %s229
    %p236 = scmp.eq.s32.totalorder %s23, 3
    %p237 = por %p235, %p236
    %p238 = scmp.ne.s32.totalorder %s229, %s230
    %p239 = scmp.eq.s32.totalorder %s23, 0
    %p240 = por %p238, %p239
    %p241 = scmp.ne.s32.totalorder %s229, %s230
    %p242 = scmp.eq.s32.totalorder %s24, 3
    %p243 = por %p241, %p242
    %p245 = scmp.ne.s32.totalorder %s230, %s244
    %p246 = scmp.eq.s32.totalorder %s24, 0
    %p247 = por %p245, %p246
    %s248 = ssub.s32 %s25, %s37
    %p249 = scmp.eq.s32.totalorder %s248, 0
    %s251 = sadd.s32 %s250, 1
    %s252 = scalar_select %p249, %s250, %s251
    %p255 = pneg %p249
    %p256 = scmp.eq.s32.totalorder %s18, 3
    %p257 = por %p255, %p256
    %p258 = scmp.ne.s32.totalorder %s250, %s253
    %p259 = scmp.eq.s32.totalorder %s18, 0
    %p260 = por %p258, %p259
    %p261 = scmp.ne.s32.totalorder %s250, %s253
    %p262 = scmp.eq.s32.totalorder %s23, 3
    %p263 = por %p261, %p262
    %p264 = scmp.ne.s32.totalorder %s253, %s254
    %p265 = scmp.eq.s32.totalorder %s23, 0
    %p266 = por %p264, %p265
    %p267 = scmp.ne.s32.totalorder %s253, %s254
    %p268 = scmp.eq.s32.totalorder %s24, 3
    %p269 = por %p267, %p268
    %p271 = scmp.ne.s32.totalorder %s254, %s270
    %p272 = scmp.eq.s32.totalorder %s24, 0
    %p273 = por %p271, %p272
    %s274 = ssub.s32 %s25, %s37
    %s275 = ssub.s32 %s26, %s33
    %s276 = sor.u32 %s274, %s275
    %p277 = scmp.eq.s32.totalorder %s276, 0
    %s279 = sadd.s32 %s278, 1
    %s280 = scalar_select %p277, %s278, %s279
    %p283 = pneg %p277
    %p284 = scmp.eq.s32.totalorder %s18, 3
    %p285 = por %p283, %p284
    %p286 = scmp.ne.s32.totalorder %s278, %s281
    %p287 = scmp.eq.s32.totalorder %s18, 0
    %p288 = por %p286, %p287
    %p289 = scmp.ne.s32.totalorder %s278, %s281
    %p290 = scmp.eq.s32.totalorder %s23, 3
    %p291 = por %p289, %p290
    %p292 = scmp.ne.s32.totalorder %s281, %s282
    %p293 = scmp.eq.s32.totalorder %s23, 0
    %p294 = por %p292, %p293
    %p295 = scmp.ne.s32.totalorder %s281, %s282
    %p296 = scmp.eq.s32.totalorder %s24, 3
    %p297 = por %p295, %p296
    %p299 = scmp.ne.s32.totalorder %s282, %s298
    %p300 = scmp.eq.s32.totalorder %s24, 0
    %p301 = por %p299, %p300
    %s302 = ssub.s32 %s25, %s37
    %s303 = ssub.s32 %s26, %s33
    %s304 = sor.u32 %s302, %s303
    %p305 = scmp.eq.s32.totalorder %s304, 0
    %s307 = sadd.s32 %s306, 1
    %s308 = scalar_select %p305, %s306, %s307
    %p311 = pneg %p305
    %p312 = scmp.eq.s32.totalorder %s18, 3
    %p313 = por %p311, %p312
    %p314 = scmp.ne.s32.totalorder %s306, %s309
    %p315 = scmp.eq.s32.totalorder %s18, 0
    %p316 = por %p314, %p315
    %p317 = scmp.ne.s32.totalorder %s306, %s309
    %p318 = scmp.eq.s32.totalorder %s23, 3
    %p319 = por %p317, %p318
    %p320 = scmp.ne.s32.totalorder %s309, %s310
    %p321 = scmp.eq.s32.totalorder %s23, 0
    %p322 = por %p320, %p321
    %p323 = scmp.ne.s32.totalorder %s309, %s310
    %p324 = scmp.eq.s32.totalorder %s24, 3
    %p325 = por %p323, %p324
    %p327 = scmp.ne.s32.totalorder %s310, %s326
    %p328 = scmp.eq.s32.totalorder %s24, 0
    %p329 = por %p327, %p328
    %p330 = scmp.le.s32.totalorder 1, %s18
    %p331 = scmp.lt.s32.totalorder %s18, 5
    %p332 = pnand %p330, %p331
    %p333 = pneg %p332
    // Predicated region
    $region9: #{residual_cbn_decoder_forward.9} parent=5 // pred_check
      _
    $region10: #{residual_cbn_decoder_forward.9} parent=5 // pred_check_branch
      %335 = sbr.rel (%p332) target = $region12
    $region11: #{residual_cbn_decoder_forward.9} parent=5 // pred_region
      %s336 = ssub.s32 %s18, 1
      // Predicated region
      $region13: #{residual_cbn_decoder_forward.9} parent=11 // pred_check
        %p337 = pneg %p135
      $region14: #{residual_cbn_decoder_forward.9} parent=11 // pred_check_branch
        %339 = sbr.rel (%p337) target = $region16
      $region15: #{residual_cbn_decoder_forward.9} parent=11 // pred_region
        _
      $region16: #{residual_cbn_decoder_forward.9} parent=11 // pred_fallthru
        _
      // Predicated region
      $region17: #{residual_cbn_decoder_forward.9} parent=11 // pred_check
        %p340 = pneg %p156
      $region18: #{residual_cbn_decoder_forward.9} parent=11 // pred_check_branch
        %342 = sbr.rel (%p340) target = $region20
      $region19: #{residual_cbn_decoder_forward.9} parent=11 // pred_region
        _
      $region20: #{residual_cbn_decoder_forward.9} parent=11 // pred_fallthru
        _
      // Predicated region
      $region21: #{residual_cbn_decoder_forward.9} parent=11 // pred_check
        %p343 = pneg %p177
      $region22: #{residual_cbn_decoder_forward.9} parent=11 // pred_check_branch
        %345 = sbr.rel (%p343) target = $region24
      $region23: #{residual_cbn_decoder_forward.9} parent=11 // pred_region
        _
      $region24: #{residual_cbn_decoder_forward.9} parent=11 // pred_fallthru
        _
      // Predicated region
      $region25: #{residual_cbn_decoder_forward.9} parent=11 // pred_check
        %p346 = pneg %p198
      $region26: #{residual_cbn_decoder_forward.9} parent=11 // pred_check_branch
        %348 = sbr.rel (%p346) target = $region28
      $region27: #{residual_cbn_decoder_forward.9} parent=11 // pred_region
        _
      $region28: #{residual_cbn_decoder_forward.9} parent=11 // pred_fallthru
        _
      // Predicated region
      $region29: #{residual_cbn_decoder_forward.9} parent=11 // pred_check
        %p349 = pneg %p219
      $region30: #{residual_cbn_decoder_forward.9} parent=11 // pred_check_branch
        %351 = sbr.rel (%p349) target = $region32
      $region31: #{residual_cbn_decoder_forward.9} parent=11 // pred_region
        _
      $region32: #{residual_cbn_decoder_forward.9} parent=11 // pred_fallthru
        _
      // Predicated region
      $region33: #{residual_cbn_decoder_forward.9} parent=11 // pred_check
        %p352 = pneg %p240
      $region34: #{residual_cbn_decoder_forward.9} parent=11 // pred_check_branch
        %354 = sbr.rel (%p352) target = $region36
      $region35: #{residual_cbn_decoder_forward.9} parent=11 // pred_region
        _
      $region36: #{residual_cbn_decoder_forward.9} parent=11 // pred_fallthru
        _
    $region12: #{residual_cbn_decoder_forward.9} parent=5 // pred_fallthru
      _
    %p355 = scmp.lt.s32.totalorder %s18, 4
    // Predicated region
    $region37: #{residual_cbn_decoder_forward.9} parent=5 // pred_check
      %p356 = pneg %p355
    $region38: #{residual_cbn_decoder_forward.9} parent=5 // pred_check_branch
      %358 = sbr.rel (%p356) target = $region40
    $region39: #{residual_cbn_decoder_forward.9} parent=5 // pred_region
      // Predicated region
      $region41: #{residual_cbn_decoder_forward.9} parent=39 // pred_check
        %p359 = pneg %p52
      $region42: #{residual_cbn_decoder_forward.9} parent=39 // pred_check_branch
        %361 = sbr.rel (%p359) target = $region44
      $region43: #{residual_cbn_decoder_forward.9} parent=39 // pred_region
        %s362 = smul.u32 64, %s26
        %p363 = scmp.lt.s32.totalorder %s25, 1
        %s364 = scalar_select %p363, %s25, 1
        %p365 = scmp.lt.s32.totalorder %s362, 127
        %s366 = scalar_select %p365, %s362, 127
        %s367 = smul.addr %s364, 128
        %s368 = sadd.s32 %s366, %s367
        %s369 = smul.addr %s368, 8
        %s370 = scalar_lea.vmem %s0, %s369
        %s371 = smul.u32 64, %s26
      $region44: #{residual_cbn_decoder_forward.9} parent=39 // pred_fallthru
        _
      // Predicated region
      $region45: #{residual_cbn_decoder_forward.9} parent=39 // pred_check
        %p372 = pneg %p80
      $region46: #{residual_cbn_decoder_forward.9} parent=39 // pred_check_branch
        %374 = sbr.rel (%p372) target = $region48
      $region47: #{residual_cbn_decoder_forward.9} parent=39 // pred_region
        %s375 = smul.u32 64, %s26
        %p376 = scmp.lt.s32.totalorder %s25, 1
        %s377 = scalar_select %p376, %s25, 1
        %p378 = scmp.lt.s32.totalorder %s375, 127
        %s379 = scalar_select %p378, %s375, 127
        %s380 = smul.addr %s377, 128
        %s381 = sadd.s32 %s379, %s380
        %s382 = smul.addr %s381, 8
        %s383 = scalar_lea.vmem %s1, %s382
        %s384 = smul.u32 64, %s26
      $region48: #{residual_cbn_decoder_forward.9} parent=39 // pred_fallthru
        _
      // Predicated region
      $region49: #{residual_cbn_decoder_forward.9} parent=39 // pred_check
        %p385 = pneg %p108
      $region50: #{residual_cbn_decoder_forward.9} parent=39 // pred_check_branch
        %387 = sbr.rel (%p385) target = $region52
      $region51: #{residual_cbn_decoder_forward.9} parent=39 // pred_region
        %s388 = smul.u32 64, %s26
        %p389 = scmp.lt.s32.totalorder %s25, 1
        %s390 = scalar_select %p389, %s25, 1
        %p391 = scmp.lt.s32.totalorder %s388, 127
        %s392 = scalar_select %p391, %s388, 127
        %s393 = smul.addr %s392, 4
        %s394 = smul.addr %s390, 512
        %s395 = sadd.s32 %s393, %s394
        %s396 = smul.addr %s395, 8
        %s397 = scalar_lea.vmem %s2, %s396
        %s398 = smul.u32 64, %s26
      $region52: #{residual_cbn_decoder_forward.9} parent=39 // pred_fallthru
        _
      // Predicated region
      $region53: #{residual_cbn_decoder_forward.9} parent=39 // pred_check
        %p399 = pneg %p260
      $region54: #{residual_cbn_decoder_forward.9} parent=39 // pred_check_branch
        %401 = sbr.rel (%p399) target = $region56
      $region55: #{residual_cbn_decoder_forward.9} parent=39 // pred_region
        %p402 = scmp.lt.s32.totalorder %s25, 1
        %s403 = scalar_select %p402, %s25, 1
        %s404 = scalar_lea.vmem %s9, %s403
      $region56: #{residual_cbn_decoder_forward.9} parent=39 // pred_fallthru
        _
    $region40: #{residual_cbn_decoder_forward.9} parent=5 // pred_fallthru
      _
    %p405 = scmp.le.s32.totalorder 1, %s18
    %p406 = scmp.lt.s32.totalorder %s18, 5
    %p407 = pnand %p405, %p406
    %p408 = pneg %p407
    // Predicated region
    $region57: #{residual_cbn_decoder_forward.9} parent=5 // pred_check
      _
    $region58: #{residual_cbn_decoder_forward.9} parent=5 // pred_check_branch
      %410 = sbr.rel (%p407) target = $region60
    $region59: #{residual_cbn_decoder_forward.9} parent=5 // pred_region
      %s411 = ssub.s32 %s18, 1
      %s412 = smul.u32 64, %s28
      %p413 = scmp.lt.s32.totalorder %s27, 1
      %s414 = scalar_select %p413, %s27, 1
      %p415 = scmp.lt.s32.totalorder %s412, 127
      %s416 = scalar_select %p415, %s412, 127
      %s417 = smul.addr %s414, 128
      %s418 = sadd.s32 %s416, %s417
      %s419 = smul.addr %s418, 8
      %s420 = scalar_lea.vmem %s0, %s419
      %p421 = pneg %p58
      %p422 = pneg %p55
      %s423 = smul.u32 64, %s28
      %p424 = scmp.lt.s32.totalorder %s27, 1
      %s425 = scalar_select %p424, %s27, 1
      %p426 = scmp.lt.s32.totalorder %s423, 127
      %s427 = scalar_select %p426, %s423, 127
      %s428 = smul.addr %s425, 128
      %s429 = sadd.s32 %s427, %s428
      %s430 = smul.addr %s429, 8
      %s431 = scalar_lea.vmem %s1, %s430
      %p432 = pneg %p86
      %p433 = pneg %p83
      %s434 = smul.u32 64, %s28
      %p435 = scmp.lt.s32.totalorder %s27, 1
      %s436 = scalar_select %p435, %s27, 1
      %p437 = scmp.lt.s32.totalorder %s434, 127
      %s438 = scalar_select %p437, %s434, 127
      %s439 = smul.addr %s438, 4
      %s440 = smul.addr %s436, 512
      %s441 = sadd.s32 %s439, %s440
      %s442 = smul.addr %s441, 8
      %s443 = scalar_lea.vmem %s2, %s442
      %p444 = pneg %p114
      %p445 = pneg %p111
      %p446 = pneg %p135
      %p447 = pneg %p132
      %p448 = pneg %p156
      %p449 = pneg %p153
      %p450 = pneg %p177
      %p451 = pneg %p174
      %p452 = pneg %p198
      %p453 = pneg %p195
      %p454 = pneg %p219
      %p455 = pneg %p216
      %p456 = pneg %p240
      %p457 = pneg %p237
      %p458 = scmp.lt.s32.totalorder %s27, 1
      %s459 = scalar_select %p458, %s27, 1
      %s460 = scalar_lea.vmem %s9, %s459
      %p461 = pneg %p266
      %p462 = pneg %p263
      %p463 = pneg %p294
      %p464 = pneg %p291
      %s465 = smul.u32 64, %s28
      %p466 = scmp.lt.s32.totalorder %s27, 1
      %s467 = scalar_select %p466, %s27, 1
      %p468 = scmp.lt.s32.totalorder %s465, 127
      %s469 = scalar_select %p468, %s465, 127
      %s470 = smul.addr %s467, 128
      %s471 = sadd.s32 %s469, %s470
      %s472 = smul.addr %s471, 4
      %s473 = scalar_lea.vmem %s10, %s472
      %p474 = pneg %p322
      %p475 = pneg %p319
      %p476 = scmp.lt.s32.totalorder %s27, 1
      %s477 = scalar_select %p476, %s27, 1
      %p478 = scmp.lt.s32.totalorder %s28, 1
      %s479 = scalar_select %p478, %s28, 1
      %s480 = smul.addr %s477, 2
      %s481 = sadd.s32 %s479, %s480
      %s482 = smul.addr %s481, 8
      %s483 = scalar_lea.vmem %s11, %s482
      %s484 = smul.u32 64, %s28
      %p485 = scmp.lt.s32.totalorder %s27, 1
      %s486 = scalar_select %p485, %s27, 1
      %p487 = scmp.lt.s32.totalorder %s484, 127
      %s488 = scalar_select %p487, %s484, 127
      %s489 = smul.addr %s486, 128
      %s490 = sadd.s32 %s488, %s489
      %s491 = smul.addr %s490, 8
      %s492 = scalar_lea.vmem %s0, %s491
      %s493 = smul.u32 64, %s28
      %s494 = smul.u32 64, %s28
      %p495 = scmp.lt.s32.totalorder %s27, 1
      %s496 = scalar_select %p495, %s27, 1
      %p497 = scmp.lt.s32.totalorder %s494, 127
      %s498 = scalar_select %p497, %s494, 127
      %s499 = smul.addr %s496, 128
      %s500 = sadd.s32 %s498, %s499
      %s501 = smul.addr %s500, 8
      %s502 = scalar_lea.vmem %s1, %s501
      %s503 = smul.u32 64, %s28
      %s504 = smul.u32 64, %s28
      %p505 = scmp.lt.s32.totalorder %s27, 1
      %s506 = scalar_select %p505, %s27, 1
      %p507 = scmp.lt.s32.totalorder %s504, 127
      %s508 = scalar_select %p507, %s504, 127
      %s509 = smul.addr %s508, 4
      %s510 = smul.addr %s506, 512
      %s511 = sadd.s32 %s509, %s510
      %s512 = smul.addr %s511, 8
      %s513 = scalar_lea.vmem %s2, %s512
      %s514 = smul.u32 64, %s28
      %p515 = scmp.lt.s32.totalorder %s27, 1
      %s516 = scalar_select %p515, %s27, 1
      %s517 = scalar_lea.vmem %s9, %s516
      %s518 = smul.u32 64, %s28
      %p519 = scmp.lt.s32.totalorder %s27, 1
      %s520 = scalar_select %p519, %s27, 1
      %p521 = scmp.lt.s32.totalorder %s518, 127
      %s522 = scalar_select %p521, %s518, 127
      %s523 = smul.addr %s520, 128
      %s524 = sadd.s32 %s522, %s523
      %s525 = smul.addr %s524, 4
      %s526 = scalar_lea.vmem %s10, %s525
      %s527 = smul.u32 64, %s28
      %p528 = scmp.lt.s32.totalorder %s27, 1
      %s529 = scalar_select %p528, %s27, 1
      %p530 = scmp.lt.s32.totalorder %s28, 1
      %s531 = scalar_select %p530, %s28, 1
      %s532 = smul.addr %s529, 2
      %s533 = sadd.s32 %s531, %s532
      %s534 = smul.addr %s533, 8
      %s535 = scalar_lea.vmem %s11, %s534
      %v537 = vld [vmem:[%s492] sm:$0xff]
      %v538 = vld [vmem:[%s492 + $0x8] sm:$0xff]
      %v539 = vld [vmem:[%s492 + $0x10] sm:$0xff]
      %v540 = vld [vmem:[%s492 + $0x18] sm:$0xff]
      %v541 = vld [vmem:[%s492 + $0x20] sm:$0xff]
      %v542 = vld [vmem:[%s492 + $0x28] sm:$0xff]
      %v543 = vld [vmem:[%s492 + $0x30] sm:$0xff]
      %v544 = vld [vmem:[%s492 + $0x38] sm:$0xff]
      %v545 = vld [vmem:[%s492 + $0x40] sm:$0xff]
      %v546 = vld [vmem:[%s492 + $0x48] sm:$0xff]
      %v547 = vld [vmem:[%s492 + $0x50] sm:$0xff]
      %v548 = vld [vmem:[%s492 + $0x58] sm:$0xff]
      %v549 = vld [vmem:[%s492 + $0x60] sm:$0xff]
      %v550 = vld [vmem:[%s492 + $0x68] sm:$0xff]
      %v551 = vld [vmem:[%s492 + $0x70] sm:$0xff]
      %v552 = vld [vmem:[%s492 + $0x78] sm:$0xff]
      %v553 = vld [vmem:[%s492 + $0x80] sm:$0xff]
      %v554 = vld [vmem:[%s492 + $0x88] sm:$0xff]
      %v555 = vld [vmem:[%s492 + $0x90] sm:$0xff]
      %v556 = vld [vmem:[%s492 + $0x98] sm:$0xff]
      %v557 = vld [vmem:[%s492 + $0xa0] sm:$0xff]
      %v558 = vld [vmem:[%s492 + $0xa8] sm:$0xff]
      %v559 = vld [vmem:[%s492 + $0xb0] sm:$0xff]
      %v560 = vld [vmem:[%s492 + $0xb8] sm:$0xff]
      %v561 = vld [vmem:[%s492 + $0xc0] sm:$0xff]
      %v562 = vld [vmem:[%s492 + $0xc8] sm:$0xff]
      %v563 = vld [vmem:[%s492 + $0xd0] sm:$0xff]
      %v564 = vld [vmem:[%s492 + $0xd8] sm:$0xff]
      %v565 = vld [vmem:[%s492 + $0xe0] sm:$0xff]
      %v566 = vld [vmem:[%s492 + $0xe8] sm:$0xff]
      %v567 = vld [vmem:[%s492 + $0xf0] sm:$0xff]
      %v568 = vld [vmem:[%s492 + $0xf8] sm:$0xff]
      %v569 = vld [vmem:[%s492 + $0x100] sm:$0xff]
      %v570 = vld [vmem:[%s492 + $0x108] sm:$0xff]
      %v571 = vld [vmem:[%s492 + $0x110] sm:$0xff]
      %v572 = vld [vmem:[%s492 + $0x118] sm:$0xff]
      %v573 = vld [vmem:[%s492 + $0x120] sm:$0xff]
      %v574 = vld [vmem:[%s492 + $0x128] sm:$0xff]
      %v575 = vld [vmem:[%s492 + $0x130] sm:$0xff]
      %v576 = vld [vmem:[%s492 + $0x138] sm:$0xff]
      %v577 = vld [vmem:[%s492 + $0x140] sm:$0xff]
      %v578 = vld [vmem:[%s492 + $0x148] sm:$0xff]
      %v579 = vld [vmem:[%s492 + $0x150] sm:$0xff]
      %v580 = vld [vmem:[%s492 + $0x158] sm:$0xff]
      %v581 = vld [vmem:[%s492 + $0x160] sm:$0xff]
      %v582 = vld [vmem:[%s492 + $0x168] sm:$0xff]
      %v583 = vld [vmem:[%s492 + $0x170] sm:$0xff]
      %v584 = vld [vmem:[%s492 + $0x178] sm:$0xff]
      %v585 = vld [vmem:[%s492 + $0x180] sm:$0xff]
      %v586 = vld [vmem:[%s492 + $0x188] sm:$0xff]
      %v587 = vld [vmem:[%s492 + $0x190] sm:$0xff]
      %v588 = vld [vmem:[%s492 + $0x198] sm:$0xff]
      %v589 = vld [vmem:[%s492 + $0x1a0] sm:$0xff]
      %v590 = vld [vmem:[%s492 + $0x1a8] sm:$0xff]
      %v591 = vld [vmem:[%s492 + $0x1b0] sm:$0xff]
      %v592 = vld [vmem:[%s492 + $0x1b8] sm:$0xff]
      %v593 = vld [vmem:[%s492 + $0x1c0] sm:$0xff]
      %v594 = vld [vmem:[%s492 + $0x1c8] sm:$0xff]
      %v595 = vld [vmem:[%s492 + $0x1d0] sm:$0xff]
      %v596 = vld [vmem:[%s492 + $0x1d8] sm:$0xff]
      %v597 = vld [vmem:[%s492 + $0x1e0] sm:$0xff]
      %v598 = vld [vmem:[%s492 + $0x1e8] sm:$0xff]
      %v599 = vld [vmem:[%s492 + $0x1f0] sm:$0xff]
      %v600 = vld [vmem:[%s492 + $0x1f8] sm:$0xff]
      %v601 = vld [vmem:[%s502] sm:$0xff]
      %v602 = vld [vmem:[%s502 + $0x8] sm:$0xff]
      %v603 = vld [vmem:[%s502 + $0x10] sm:$0xff]
      %v604 = vld [vmem:[%s502 + $0x18] sm:$0xff]
      %v605 = vld [vmem:[%s502 + $0x20] sm:$0xff]
      %v606 = vld [vmem:[%s502 + $0x28] sm:$0xff]
      %v607 = vld [vmem:[%s502 + $0x30] sm:$0xff]
      %v608 = vld [vmem:[%s502 + $0x38] sm:$0xff]
      %v609 = vld [vmem:[%s502 + $0x40] sm:$0xff]
      %v610 = vld [vmem:[%s502 + $0x48] sm:$0xff]
      %v611 = vld [vmem:[%s502 + $0x50] sm:$0xff]
      %v612 = vld [vmem:[%s502 + $0x58] sm:$0xff]
      %v613 = vld [vmem:[%s502 + $0x60] sm:$0xff]
      %v614 = vld [vmem:[%s502 + $0x68] sm:$0xff]
      %v615 = vld [vmem:[%s502 + $0x70] sm:$0xff]
      %v616 = vld [vmem:[%s502 + $0x78] sm:$0xff]
      %v617 = vld [vmem:[%s502 + $0x80] sm:$0xff]
      %v618 = vld [vmem:[%s502 + $0x88] sm:$0xff]
      %v619 = vld [vmem:[%s502 + $0x90] sm:$0xff]
      %v620 = vld [vmem:[%s502 + $0x98] sm:$0xff]
      %v621 = vld [vmem:[%s502 + $0xa0] sm:$0xff]
      %v622 = vld [vmem:[%s502 + $0xa8] sm:$0xff]
      %v623 = vld [vmem:[%s502 + $0xb0] sm:$0xff]
      %v624 = vld [vmem:[%s502 + $0xb8] sm:$0xff]
      %v625 = vld [vmem:[%s502 + $0xc0] sm:$0xff]
      %v626 = vld [vmem:[%s502 + $0xc8] sm:$0xff]
      %v627 = vld [vmem:[%s502 + $0xd0] sm:$0xff]
      %v628 = vld [vmem:[%s502 + $0xd8] sm:$0xff]
      %v629 = vld [vmem:[%s502 + $0xe0] sm:$0xff]
      %v630 = vld [vmem:[%s502 + $0xe8] sm:$0xff]
      %v631 = vld [vmem:[%s502 + $0xf0] sm:$0xff]
      %v632 = vld [vmem:[%s502 + $0xf8] sm:$0xff]
      %v633 = vld [vmem:[%s502 + $0x100] sm:$0xff]
      %v634 = vld [vmem:[%s502 + $0x108] sm:$0xff]
      %v635 = vld [vmem:[%s502 + $0x110] sm:$0xff]
      %v636 = vld [vmem:[%s502 + $0x118] sm:$0xff]
      %v637 = vld [vmem:[%s502 + $0x120] sm:$0xff]
      %v638 = vld [vmem:[%s502 + $0x128] sm:$0xff]
      %v639 = vld [vmem:[%s502 + $0x130] sm:$0xff]
      %v640 = vld [vmem:[%s502 + $0x138] sm:$0xff]
      %v641 = vld [vmem:[%s502 + $0x140] sm:$0xff]
      %v642 = vld [vmem:[%s502 + $0x148] sm:$0xff]
      %v643 = vld [vmem:[%s502 + $0x150] sm:$0xff]
      %v644 = vld [vmem:[%s502 + $0x158] sm:$0xff]
      %v645 = vld [vmem:[%s502 + $0x160] sm:$0xff]
      %v646 = vld [vmem:[%s502 + $0x168] sm:$0xff]
      %v647 = vld [vmem:[%s502 + $0x170] sm:$0xff]
      %v648 = vld [vmem:[%s502 + $0x178] sm:$0xff]
      %v649 = vld [vmem:[%s502 + $0x180] sm:$0xff]
      %v650 = vld [vmem:[%s502 + $0x188] sm:$0xff]
      %v651 = vld [vmem:[%s502 + $0x190] sm:$0xff]
      %v652 = vld [vmem:[%s502 + $0x198] sm:$0xff]
      %v653 = vld [vmem:[%s502 + $0x1a0] sm:$0xff]
      %v654 = vld [vmem:[%s502 + $0x1a8] sm:$0xff]
      %v655 = vld [vmem:[%s502 + $0x1b0] sm:$0xff]
      %v656 = vld [vmem:[%s502 + $0x1b8] sm:$0xff]
      %v657 = vld [vmem:[%s502 + $0x1c0] sm:$0xff]
      %v658 = vld [vmem:[%s502 + $0x1c8] sm:$0xff]
      %v659 = vld [vmem:[%s502 + $0x1d0] sm:$0xff]
      %v660 = vld [vmem:[%s502 + $0x1d8] sm:$0xff]
      %v661 = vld [vmem:[%s502 + $0x1e0] sm:$0xff]
      %v662 = vld [vmem:[%s502 + $0x1e8] sm:$0xff]
      %v663 = vld [vmem:[%s502 + $0x1f0] sm:$0xff]
      %v664 = vld [vmem:[%s502 + $0x1f8] sm:$0xff]
      %v665 = vld [vmem:[%s513] sm:$0xff]
      %v666 = vld [vmem:[%s513 + $0x8] sm:$0xff]
      %v667 = vld [vmem:[%s513 + $0x10] sm:$0xff]
      %v668 = vld [vmem:[%s513 + $0x18] sm:$0xff]
      %v669 = vld [vmem:[%s513 + $0x20] sm:$0xff]
      %v670 = vld [vmem:[%s513 + $0x28] sm:$0xff]
      %v671 = vld [vmem:[%s513 + $0x30] sm:$0xff]
      %v672 = vld [vmem:[%s513 + $0x38] sm:$0xff]
      %v673 = vld [vmem:[%s513 + $0x40] sm:$0xff]
      %v674 = vld [vmem:[%s513 + $0x48] sm:$0xff]
      %v675 = vld [vmem:[%s513 + $0x50] sm:$0xff]
      %v676 = vld [vmem:[%s513 + $0x58] sm:$0xff]
      %v677 = vld [vmem:[%s513 + $0x60] sm:$0xff]
      %v678 = vld [vmem:[%s513 + $0x68] sm:$0xff]
      %v679 = vld [vmem:[%s513 + $0x70] sm:$0xff]
      %v680 = vld [vmem:[%s513 + $0x78] sm:$0xff]
      %v681 = vld [vmem:[%s513 + $0x80] sm:$0xff]
      %v682 = vld [vmem:[%s513 + $0x88] sm:$0xff]
      %v683 = vld [vmem:[%s513 + $0x90] sm:$0xff]
      %v684 = vld [vmem:[%s513 + $0x98] sm:$0xff]
      %v685 = vld [vmem:[%s513 + $0xa0] sm:$0xff]
      %v686 = vld [vmem:[%s513 + $0xa8] sm:$0xff]
      %v687 = vld [vmem:[%s513 + $0xb0] sm:$0xff]
      %v688 = vld [vmem:[%s513 + $0xb8] sm:$0xff]
      %v689 = vld [vmem:[%s513 + $0xc0] sm:$0xff]
      %v690 = vld [vmem:[%s513 + $0xc8] sm:$0xff]
      %v691 = vld [vmem:[%s513 + $0xd0] sm:$0xff]
      %v692 = vld [vmem:[%s513 + $0xd8] sm:$0xff]
      %v693 = vld [vmem:[%s513 + $0xe0] sm:$0xff]
      %v694 = vld [vmem:[%s513 + $0xe8] sm:$0xff]
      %v695 = vld [vmem:[%s513 + $0xf0] sm:$0xff]
      %v696 = vld [vmem:[%s513 + $0xf8] sm:$0xff]
      %v697 = vld [vmem:[%s513 + $0x100] sm:$0xff]
      %v698 = vld [vmem:[%s513 + $0x108] sm:$0xff]
      %v699 = vld [vmem:[%s513 + $0x110] sm:$0xff]
      %v700 = vld [vmem:[%s513 + $0x118] sm:$0xff]
      %v701 = vld [vmem:[%s513 + $0x120] sm:$0xff]
      %v702 = vld [vmem:[%s513 + $0x128] sm:$0xff]
      %v703 = vld [vmem:[%s513 + $0x130] sm:$0xff]
      %v704 = vld [vmem:[%s513 + $0x138] sm:$0xff]
      %v705 = vld [vmem:[%s513 + $0x140] sm:$0xff]
      %v706 = vld [vmem:[%s513 + $0x148] sm:$0xff]
      %v707 = vld [vmem:[%s513 + $0x150] sm:$0xff]
      %v708 = vld [vmem:[%s513 + $0x158] sm:$0xff]
      %v709 = vld [vmem:[%s513 + $0x160] sm:$0xff]
      %v710 = vld [vmem:[%s513 + $0x168] sm:$0xff]
      %v711 = vld [vmem:[%s513 + $0x170] sm:$0xff]
      %v712 = vld [vmem:[%s513 + $0x178] sm:$0xff]
      %v713 = vld [vmem:[%s513 + $0x180] sm:$0xff]
      %v714 = vld [vmem:[%s513 + $0x188] sm:$0xff]
      %v715 = vld [vmem:[%s513 + $0x190] sm:$0xff]
      %v716 = vld [vmem:[%s513 + $0x198] sm:$0xff]
      %v717 = vld [vmem:[%s513 + $0x1a0] sm:$0xff]
      %v718 = vld [vmem:[%s513 + $0x1a8] sm:$0xff]
      %v719 = vld [vmem:[%s513 + $0x1b0] sm:$0xff]
      %v720 = vld [vmem:[%s513 + $0x1b8] sm:$0xff]
      %v721 = vld [vmem:[%s513 + $0x1c0] sm:$0xff]
      %v722 = vld [vmem:[%s513 + $0x1c8] sm:$0xff]
      %v723 = vld [vmem:[%s513 + $0x1d0] sm:$0xff]
      %v724 = vld [vmem:[%s513 + $0x1d8] sm:$0xff]
      %v725 = vld [vmem:[%s513 + $0x1e0] sm:$0xff]
      %v726 = vld [vmem:[%s513 + $0x1e8] sm:$0xff]
      %v727 = vld [vmem:[%s513 + $0x1f0] sm:$0xff]
      %v728 = vld [vmem:[%s513 + $0x1f8] sm:$0xff]
      %v729 = vld [vmem:[%s513 + $0x200] sm:$0xff]
      %v730 = vld [vmem:[%s513 + $0x208] sm:$0xff]
      %v731 = vld [vmem:[%s513 + $0x210] sm:$0xff]
      %v732 = vld [vmem:[%s513 + $0x218] sm:$0xff]
      %v733 = vld [vmem:[%s513 + $0x220] sm:$0xff]
      %v734 = vld [vmem:[%s513 + $0x228] sm:$0xff]
      %v735 = vld [vmem:[%s513 + $0x230] sm:$0xff]
      %v736 = vld [vmem:[%s513 + $0x238] sm:$0xff]
      %v737 = vld [vmem:[%s513 + $0x240] sm:$0xff]
      %v738 = vld [vmem:[%s513 + $0x248] sm:$0xff]
      %v739 = vld [vmem:[%s513 + $0x250] sm:$0xff]
      %v740 = vld [vmem:[%s513 + $0x258] sm:$0xff]
      %v741 = vld [vmem:[%s513 + $0x260] sm:$0xff]
      %v742 = vld [vmem:[%s513 + $0x268] sm:$0xff]
      %v743 = vld [vmem:[%s513 + $0x270] sm:$0xff]
      %v744 = vld [vmem:[%s513 + $0x278] sm:$0xff]
      %v745 = vld [vmem:[%s513 + $0x280] sm:$0xff]
      %v746 = vld [vmem:[%s513 + $0x288] sm:$0xff]
      %v747 = vld [vmem:[%s513 + $0x290] sm:$0xff]
      %v748 = vld [vmem:[%s513 + $0x298] sm:$0xff]
      %v749 = vld [vmem:[%s513 + $0x2a0] sm:$0xff]
      %v750 = vld [vmem:[%s513 + $0x2a8] sm:$0xff]
      %v751 = vld [vmem:[%s513 + $0x2b0] sm:$0xff]
      %v752 = vld [vmem:[%s513 + $0x2b8] sm:$0xff]
      %v753 = vld [vmem:[%s513 + $0x2c0] sm:$0xff]
      %v754 = vld [vmem:[%s513 + $0x2c8] sm:$0xff]
      %v755 = vld [vmem:[%s513 + $0x2d0] sm:$0xff]
      %v756 = vld [vmem:[%s513 + $0x2d8] sm:$0xff]
      %v757 = vld [vmem:[%s513 + $0x2e0] sm:$0xff]
      %v758 = vld [vmem:[%s513 + $0x2e8] sm:$0xff]
      %v759 = vld [vmem:[%s513 + $0x2f0] sm:$0xff]
      %v760 = vld [vmem:[%s513 + $0x2f8] sm:$0xff]
      %v761 = vld [vmem:[%s513 + $0x300] sm:$0xff]
      %v762 = vld [vmem:[%s513 + $0x308] sm:$0xff]
      %v763 = vld [vmem:[%s513 + $0x310] sm:$0xff]
      %v764 = vld [vmem:[%s513 + $0x318] sm:$0xff]
      %v765 = vld [vmem:[%s513 + $0x320] sm:$0xff]
      %v766 = vld [vmem:[%s513 + $0x328] sm:$0xff]
      %v767 = vld [vmem:[%s513 + $0x330] sm:$0xff]
      %v768 = vld [vmem:[%s513 + $0x338] sm:$0xff]
      %v769 = vld [vmem:[%s513 + $0x340] sm:$0xff]
      %v770 = vld [vmem:[%s513 + $0x348] sm:$0xff]
      %v771 = vld [vmem:[%s513 + $0x350] sm:$0xff]
      %v772 = vld [vmem:[%s513 + $0x358] sm:$0xff]
      %v773 = vld [vmem:[%s513 + $0x360] sm:$0xff]
      %v774 = vld [vmem:[%s513 + $0x368] sm:$0xff]
      %v775 = vld [vmem:[%s513 + $0x370] sm:$0xff]
      %v776 = vld [vmem:[%s513 + $0x378] sm:$0xff]
      %v777 = vld [vmem:[%s513 + $0x380] sm:$0xff]
      %v778 = vld [vmem:[%s513 + $0x388] sm:$0xff]
      %v779 = vld [vmem:[%s513 + $0x390] sm:$0xff]
      %v780 = vld [vmem:[%s513 + $0x398] sm:$0xff]
      %v781 = vld [vmem:[%s513 + $0x3a0] sm:$0xff]
      %v782 = vld [vmem:[%s513 + $0x3a8] sm:$0xff]
      %v783 = vld [vmem:[%s513 + $0x3b0] sm:$0xff]
      %v784 = vld [vmem:[%s513 + $0x3b8] sm:$0xff]
      %v785 = vld [vmem:[%s513 + $0x3c0] sm:$0xff]
      %v786 = vld [vmem:[%s513 + $0x3c8] sm:$0xff]
      %v787 = vld [vmem:[%s513 + $0x3d0] sm:$0xff]
      %v788 = vld [vmem:[%s513 + $0x3d8] sm:$0xff]
      %v789 = vld [vmem:[%s513 + $0x3e0] sm:$0xff]
      %v790 = vld [vmem:[%s513 + $0x3e8] sm:$0xff]
      %v791 = vld [vmem:[%s513 + $0x3f0] sm:$0xff]
      %v792 = vld [vmem:[%s513 + $0x3f8] sm:$0xff]
      %v793 = vld [vmem:[%s513 + $0x400] sm:$0xff]
      %v794 = vld [vmem:[%s513 + $0x408] sm:$0xff]
      %v795 = vld [vmem:[%s513 + $0x410] sm:$0xff]
      %v796 = vld [vmem:[%s513 + $0x418] sm:$0xff]
      %v797 = vld [vmem:[%s513 + $0x420] sm:$0xff]
      %v798 = vld [vmem:[%s513 + $0x428] sm:$0xff]
      %v799 = vld [vmem:[%s513 + $0x430] sm:$0xff]
      %v800 = vld [vmem:[%s513 + $0x438] sm:$0xff]
      %v801 = vld [vmem:[%s513 + $0x440] sm:$0xff]
      %v802 = vld [vmem:[%s513 + $0x448] sm:$0xff]
      %v803 = vld [vmem:[%s513 + $0x450] sm:$0xff]
      %v804 = vld [vmem:[%s513 + $0x458] sm:$0xff]
      %v805 = vld [vmem:[%s513 + $0x460] sm:$0xff]
      %v806 = vld [vmem:[%s513 + $0x468] sm:$0xff]
      %v807 = vld [vmem:[%s513 + $0x470] sm:$0xff]
      %v808 = vld [vmem:[%s513 + $0x478] sm:$0xff]
      %v809 = vld [vmem:[%s513 + $0x480] sm:$0xff]
      %v810 = vld [vmem:[%s513 + $0x488] sm:$0xff]
      %v811 = vld [vmem:[%s513 + $0x490] sm:$0xff]
      %v812 = vld [vmem:[%s513 + $0x498] sm:$0xff]
      %v813 = vld [vmem:[%s513 + $0x4a0] sm:$0xff]
      %v814 = vld [vmem:[%s513 + $0x4a8] sm:$0xff]
      %v815 = vld [vmem:[%s513 + $0x4b0] sm:$0xff]
      %v816 = vld [vmem:[%s513 + $0x4b8] sm:$0xff]
      %v817 = vld [vmem:[%s513 + $0x4c0] sm:$0xff]
      %v818 = vld [vmem:[%s513 + $0x4c8] sm:$0xff]
      %v819 = vld [vmem:[%s513 + $0x4d0] sm:$0xff]
      %v820 = vld [vmem:[%s513 + $0x4d8] sm:$0xff]
      %v821 = vld [vmem:[%s513 + $0x4e0] sm:$0xff]
      %v822 = vld [vmem:[%s513 + $0x4e8] sm:$0xff]
      %v823 = vld [vmem:[%s513 + $0x4f0] sm:$0xff]
      %v824 = vld [vmem:[%s513 + $0x4f8] sm:$0xff]
      %v825 = vld [vmem:[%s513 + $0x500] sm:$0xff]
      %v826 = vld [vmem:[%s513 + $0x508] sm:$0xff]
      %v827 = vld [vmem:[%s513 + $0x510] sm:$0xff]
      %v828 = vld [vmem:[%s513 + $0x518] sm:$0xff]
      %v829 = vld [vmem:[%s513 + $0x520] sm:$0xff]
      %v830 = vld [vmem:[%s513 + $0x528] sm:$0xff]
      %v831 = vld [vmem:[%s513 + $0x530] sm:$0xff]
      %v832 = vld [vmem:[%s513 + $0x538] sm:$0xff]
      %v833 = vld [vmem:[%s513 + $0x540] sm:$0xff]
      %v834 = vld [vmem:[%s513 + $0x548] sm:$0xff]
      %v835 = vld [vmem:[%s513 + $0x550] sm:$0xff]
      %v836 = vld [vmem:[%s513 + $0x558] sm:$0xff]
      %v837 = vld [vmem:[%s513 + $0x560] sm:$0xff]
      %v838 = vld [vmem:[%s513 + $0x568] sm:$0xff]
      %v839 = vld [vmem:[%s513 + $0x570] sm:$0xff]
      %v840 = vld [vmem:[%s513 + $0x578] sm:$0xff]
      %v841 = vld [vmem:[%s513 + $0x580] sm:$0xff]
      %v842 = vld [vmem:[%s513 + $0x588] sm:$0xff]
      %v843 = vld [vmem:[%s513 + $0x590] sm:$0xff]
      %v844 = vld [vmem:[%s513 + $0x598] sm:$0xff]
      %v845 = vld [vmem:[%s513 + $0x5a0] sm:$0xff]
      %v846 = vld [vmem:[%s513 + $0x5a8] sm:$0xff]
      %v847 = vld [vmem:[%s513 + $0x5b0] sm:$0xff]
      %v848 = vld [vmem:[%s513 + $0x5b8] sm:$0xff]
      %v849 = vld [vmem:[%s513 + $0x5c0] sm:$0xff]
      %v850 = vld [vmem:[%s513 + $0x5c8] sm:$0xff]
      %v851 = vld [vmem:[%s513 + $0x5d0] sm:$0xff]
      %v852 = vld [vmem:[%s513 + $0x5d8] sm:$0xff]
      %v853 = vld [vmem:[%s513 + $0x5e0] sm:$0xff]
      %v854 = vld [vmem:[%s513 + $0x5e8] sm:$0xff]
      %v855 = vld [vmem:[%s513 + $0x5f0] sm:$0xff]
      %v856 = vld [vmem:[%s513 + $0x5f8] sm:$0xff]
      %v857 = vld [vmem:[%s513 + $0x600] sm:$0xff]
      %v858 = vld [vmem:[%s513 + $0x608] sm:$0xff]
      %v859 = vld [vmem:[%s513 + $0x610] sm:$0xff]
      %v860 = vld [vmem:[%s513 + $0x618] sm:$0xff]
      %v861 = vld [vmem:[%s513 + $0x620] sm:$0xff]
      %v862 = vld [vmem:[%s513 + $0x628] sm:$0xff]
      %v863 = vld [vmem:[%s513 + $0x630] sm:$0xff]
      %v864 = vld [vmem:[%s513 + $0x638] sm:$0xff]
      %v865 = vld [vmem:[%s513 + $0x640] sm:$0xff]
      %v866 = vld [vmem:[%s513 + $0x648] sm:$0xff]
      %v867 = vld [vmem:[%s513 + $0x650] sm:$0xff]
      %v868 = vld [vmem:[%s513 + $0x658] sm:$0xff]
      %v869 = vld [vmem:[%s513 + $0x660] sm:$0xff]
      %v870 = vld [vmem:[%s513 + $0x668] sm:$0xff]
      %v871 = vld [vmem:[%s513 + $0x670] sm:$0xff]
      %v872 = vld [vmem:[%s513 + $0x678] sm:$0xff]
      %v873 = vld [vmem:[%s513 + $0x680] sm:$0xff]
      %v874 = vld [vmem:[%s513 + $0x688] sm:$0xff]
      %v875 = vld [vmem:[%s513 + $0x690] sm:$0xff]
      %v876 = vld [vmem:[%s513 + $0x698] sm:$0xff]
      %v877 = vld [vmem:[%s513 + $0x6a0] sm:$0xff]
      %v878 = vld [vmem:[%s513 + $0x6a8] sm:$0xff]
      %v879 = vld [vmem:[%s513 + $0x6b0] sm:$0xff]
      %v880 = vld [vmem:[%s513 + $0x6b8] sm:$0xff]
      %v881 = vld [vmem:[%s513 + $0x6c0] sm:$0xff]
      %v882 = vld [vmem:[%s513 + $0x6c8] sm:$0xff]
      %v883 = vld [vmem:[%s513 + $0x6d0] sm:$0xff]
      %v884 = vld [vmem:[%s513 + $0x6d8] sm:$0xff]
      %v885 = vld [vmem:[%s513 + $0x6e0] sm:$0xff]
      %v886 = vld [vmem:[%s513 + $0x6e8] sm:$0xff]
      %v887 = vld [vmem:[%s513 + $0x6f0] sm:$0xff]
      %v888 = vld [vmem:[%s513 + $0x6f8] sm:$0xff]
      %v889 = vld [vmem:[%s513 + $0x700] sm:$0xff]
      %v890 = vld [vmem:[%s513 + $0x708] sm:$0xff]
      %v891 = vld [vmem:[%s513 + $0x710] sm:$0xff]
      %v892 = vld [vmem:[%s513 + $0x718] sm:$0xff]
      %v893 = vld [vmem:[%s513 + $0x720] sm:$0xff]
      %v894 = vld [vmem:[%s513 + $0x728] sm:$0xff]
      %v895 = vld [vmem:[%s513 + $0x730] sm:$0xff]
      %v896 = vld [vmem:[%s513 + $0x738] sm:$0xff]
      %v897 = vld [vmem:[%s513 + $0x740] sm:$0xff]
      %v898 = vld [vmem:[%s513 + $0x748] sm:$0xff]
      %v899 = vld [vmem:[%s513 + $0x750] sm:$0xff]
      %v900 = vld [vmem:[%s513 + $0x758] sm:$0xff]
      %v901 = vld [vmem:[%s513 + $0x760] sm:$0xff]
      %v902 = vld [vmem:[%s513 + $0x768] sm:$0xff]
      %v903 = vld [vmem:[%s513 + $0x770] sm:$0xff]
      %v904 = vld [vmem:[%s513 + $0x778] sm:$0xff]
      %v905 = vld [vmem:[%s513 + $0x780] sm:$0xff]
      %v906 = vld [vmem:[%s513 + $0x788] sm:$0xff]
      %v907 = vld [vmem:[%s513 + $0x790] sm:$0xff]
      %v908 = vld [vmem:[%s513 + $0x798] sm:$0xff]
      %v909 = vld [vmem:[%s513 + $0x7a0] sm:$0xff]
      %v910 = vld [vmem:[%s513 + $0x7a8] sm:$0xff]
      %v911 = vld [vmem:[%s513 + $0x7b0] sm:$0xff]
      %v912 = vld [vmem:[%s513 + $0x7b8] sm:$0xff]
      %v913 = vld [vmem:[%s513 + $0x7c0] sm:$0xff]
      %v914 = vld [vmem:[%s513 + $0x7c8] sm:$0xff]
      %v915 = vld [vmem:[%s513 + $0x7d0] sm:$0xff]
      %v916 = vld [vmem:[%s513 + $0x7d8] sm:$0xff]
      %v917 = vld [vmem:[%s513 + $0x7e0] sm:$0xff]
      %v918 = vld [vmem:[%s513 + $0x7e8] sm:$0xff]
      %v919 = vld [vmem:[%s513 + $0x7f0] sm:$0xff]
      %v920 = vld [vmem:[%s513 + $0x7f8] sm:$0xff]
      %v921 = vpack.c.bf16 %v669, %v665
      %v922 = vpack.c.bf16 %v670, %v666
      %v923 = vpack.c.bf16 %v671, %v667
      %v924 = vpack.c.bf16 %v672, %v668
      %v925 = vpack.c.bf16 %v677, %v673
      %v926 = vpack.c.bf16 %v678, %v674
      %v927 = vpack.c.bf16 %v679, %v675
      %v928 = vpack.c.bf16 %v680, %v676
      %v929 = vpack.c.bf16 %v685, %v681
      %v930 = vpack.c.bf16 %v686, %v682
      %v931 = vpack.c.bf16 %v687, %v683
      %v932 = vpack.c.bf16 %v688, %v684
      %v933 = vpack.c.bf16 %v693, %v689
      %v934 = vpack.c.bf16 %v694, %v690
      %v935 = vpack.c.bf16 %v695, %v691
      %v936 = vpack.c.bf16 %v696, %v692
      %v937 = vpack.c.bf16 %v701, %v697
      %v938 = vpack.c.bf16 %v702, %v698
      %v939 = vpack.c.bf16 %v703, %v699
      %v940 = vpack.c.bf16 %v704, %v700
      %v941 = vpack.c.bf16 %v709, %v705
      %v942 = vpack.c.bf16 %v710, %v706
      %v943 = vpack.c.bf16 %v711, %v707
      %v944 = vpack.c.bf16 %v712, %v708
      %v945 = vpack.c.bf16 %v717, %v713
      %v946 = vpack.c.bf16 %v718, %v714
      %v947 = vpack.c.bf16 %v719, %v715
      %v948 = vpack.c.bf16 %v720, %v716
      %v949 = vpack.c.bf16 %v725, %v721
      %v950 = vpack.c.bf16 %v726, %v722
      %v951 = vpack.c.bf16 %v727, %v723
      %v952 = vpack.c.bf16 %v728, %v724
      %v953 = vpack.c.bf16 %v733, %v729
      %v954 = vpack.c.bf16 %v734, %v730
      %v955 = vpack.c.bf16 %v735, %v731
      %v956 = vpack.c.bf16 %v736, %v732
      %v957 = vpack.c.bf16 %v741, %v737
      %v958 = vpack.c.bf16 %v742, %v738
      %v959 = vpack.c.bf16 %v743, %v739
      %v960 = vpack.c.bf16 %v744, %v740
      %v961 = vpack.c.bf16 %v749, %v745
      %v962 = vpack.c.bf16 %v750, %v746
      %v963 = vpack.c.bf16 %v751, %v747
      %v964 = vpack.c.bf16 %v752, %v748
      %v965 = vpack.c.bf16 %v757, %v753
      %v966 = vpack.c.bf16 %v758, %v754
      %v967 = vpack.c.bf16 %v759, %v755
      %v968 = vpack.c.bf16 %v760, %v756
      %v969 = vpack.c.bf16 %v765, %v761
      %v970 = vpack.c.bf16 %v766, %v762
      %v971 = vpack.c.bf16 %v767, %v763
      %v972 = vpack.c.bf16 %v768, %v764
      %v973 = vpack.c.bf16 %v773, %v769
      %v974 = vpack.c.bf16 %v774, %v770
      %v975 = vpack.c.bf16 %v775, %v771
      %v976 = vpack.c.bf16 %v776, %v772
      %v977 = vpack.c.bf16 %v781, %v777
      %v978 = vpack.c.bf16 %v782, %v778
      %v979 = vpack.c.bf16 %v783, %v779
      %v980 = vpack.c.bf16 %v784, %v780
      %v981 = vpack.c.bf16 %v789, %v785
      %v982 = vpack.c.bf16 %v790, %v786
      %v983 = vpack.c.bf16 %v791, %v787
      %v984 = vpack.c.bf16 %v792, %v788
      %v985 = vpack.c.bf16 %v797, %v793
      %v986 = vpack.c.bf16 %v798, %v794
      %v987 = vpack.c.bf16 %v799, %v795
      %v988 = vpack.c.bf16 %v800, %v796
      %v989 = vpack.c.bf16 %v805, %v801
      %v990 = vpack.c.bf16 %v806, %v802
      %v991 = vpack.c.bf16 %v807, %v803
      %v992 = vpack.c.bf16 %v808, %v804
      %v993 = vpack.c.bf16 %v813, %v809
      %v994 = vpack.c.bf16 %v814, %v810
      %v995 = vpack.c.bf16 %v815, %v811
      %v996 = vpack.c.bf16 %v816, %v812
      %v997 = vpack.c.bf16 %v821, %v817
      %v998 = vpack.c.bf16 %v822, %v818
      %v999 = vpack.c.bf16 %v823, %v819
      %v1000 = vpack.c.bf16 %v824, %v820
      %v1001 = vpack.c.bf16 %v829, %v825
      %v1002 = vpack.c.bf16 %v830, %v826
      %v1003 = vpack.c.bf16 %v831, %v827
      %v1004 = vpack.c.bf16 %v832, %v828
      %v1005 = vpack.c.bf16 %v837, %v833
      %v1006 = vpack.c.bf16 %v838, %v834
      %v1007 = vpack.c.bf16 %v839, %v835
      %v1008 = vpack.c.bf16 %v840, %v836
      %v1009 = vpack.c.bf16 %v845, %v841
      %v1010 = vpack.c.bf16 %v846, %v842
      %v1011 = vpack.c.bf16 %v847, %v843
      %v1012 = vpack.c.bf16 %v848, %v844
      %v1013 = vpack.c.bf16 %v853, %v849
      %v1014 = vpack.c.bf16 %v854, %v850
      %v1015 = vpack.c.bf16 %v855, %v851
      %v1016 = vpack.c.bf16 %v856, %v852
      %v1017 = vpack.c.bf16 %v861, %v857
      %v1018 = vpack.c.bf16 %v862, %v858
      %v1019 = vpack.c.bf16 %v863, %v859
      %v1020 = vpack.c.bf16 %v864, %v860
      %v1021 = vpack.c.bf16 %v869, %v865
      %v1022 = vpack.c.bf16 %v870, %v866
      %v1023 = vpack.c.bf16 %v871, %v867
      %v1024 = vpack.c.bf16 %v872, %v868
      %v1025 = vpack.c.bf16 %v877, %v873
      %v1026 = vpack.c.bf16 %v878, %v874
      %v1027 = vpack.c.bf16 %v879, %v875
      %v1028 = vpack.c.bf16 %v880, %v876
      %v1029 = vpack.c.bf16 %v885, %v881
      %v1030 = vpack.c.bf16 %v886, %v882
      %v1031 = vpack.c.bf16 %v887, %v883
      %v1032 = vpack.c.bf16 %v888, %v884
      %v1033 = vpack.c.bf16 %v893, %v889
      %v1034 = vpack.c.bf16 %v894, %v890
      %v1035 = vpack.c.bf16 %v895, %v891
      %v1036 = vpack.c.bf16 %v896, %v892
      %v1037 = vpack.c.bf16 %v901, %v897
      %v1038 = vpack.c.bf16 %v902, %v898
      %v1039 = vpack.c.bf16 %v903, %v899
      %v1040 = vpack.c.bf16 %v904, %v900
      %v1041 = vpack.c.bf16 %v909, %v905
      %v1042 = vpack.c.bf16 %v910, %v906
      %v1043 = vpack.c.bf16 %v911, %v907
      %v1044 = vpack.c.bf16 %v912, %v908
      %v1045 = vpack.c.bf16 %v917, %v913
      %v1046 = vpack.c.bf16 %v918, %v914
      %v1047 = vpack.c.bf16 %v919, %v915
      %v1048 = vpack.c.bf16 %v920, %v916
      %v1049 = vld [vmem:[%s3] sm:$0xff]
      %v1050 = vld [vmem:[%s3 + $0x8] sm:$0xff]
      %v1051 = vld [vmem:[%s3 + $0x10] sm:$0xff]
      %v1052 = vld [vmem:[%s3 + $0x18] sm:$0xff]
      %v1053 = vld [vmem:[%s3 + $0x20] sm:$0xff]
      %v1054 = vld [vmem:[%s3 + $0x28] sm:$0xff]
      %v1055 = vld [vmem:[%s3 + $0x30] sm:$0xff]
      %v1056 = vld [vmem:[%s3 + $0x38] sm:$0xff]
      %v1057 = vld [vmem:[%s3 + $0x40] sm:$0xff]
      %v1058 = vld [vmem:[%s3 + $0x48] sm:$0xff]
      %v1059 = vld [vmem:[%s3 + $0x50] sm:$0xff]
      %v1060 = vld [vmem:[%s3 + $0x58] sm:$0xff]
      %v1061 = vld [vmem:[%s3 + $0x60] sm:$0xff]
      %v1062 = vld [vmem:[%s3 + $0x68] sm:$0xff]
      %v1063 = vld [vmem:[%s3 + $0x70] sm:$0xff]
      %v1064 = vld [vmem:[%s3 + $0x78] sm:$0xff]
      %v1065 = vld [vmem:[%s3 + $0x80] sm:$0xff]
      %v1066 = vld [vmem:[%s3 + $0x88] sm:$0xff]
      %v1067 = vld [vmem:[%s3 + $0x90] sm:$0xff]
      %v1068 = vld [vmem:[%s3 + $0x98] sm:$0xff]
      %v1069 = vld [vmem:[%s3 + $0xa0] sm:$0xff]
      %v1070 = vld [vmem:[%s3 + $0xa8] sm:$0xff]
      %v1071 = vld [vmem:[%s3 + $0xb0] sm:$0xff]
      %v1072 = vld [vmem:[%s3 + $0xb8] sm:$0xff]
      %v1073 = vld [vmem:[%s3 + $0xc0] sm:$0xff]
      %v1074 = vld [vmem:[%s3 + $0xc8] sm:$0xff]
      %v1075 = vld [vmem:[%s3 + $0xd0] sm:$0xff]
      %v1076 = vld [vmem:[%s3 + $0xd8] sm:$0xff]
      %v1077 = vld [vmem:[%s3 + $0xe0] sm:$0xff]
      %v1078 = vld [vmem:[%s3 + $0xe8] sm:$0xff]
      %v1079 = vld [vmem:[%s3 + $0xf0] sm:$0xff]
      %v1080 = vld [vmem:[%s3 + $0xf8] sm:$0xff]
      %v1081 = vld [vmem:[%s3 + $0x100] sm:$0xff]
      %v1082 = vld [vmem:[%s3 + $0x108] sm:$0xff]
      %v1083 = vld [vmem:[%s3 + $0x110] sm:$0xff]
      %v1084 = vld [vmem:[%s3 + $0x118] sm:$0xff]
      %v1085 = vld [vmem:[%s3 + $0x120] sm:$0xff]
      %v1086 = vld [vmem:[%s3 + $0x128] sm:$0xff]
      %v1087 = vld [vmem:[%s3 + $0x130] sm:$0xff]
      %v1088 = vld [vmem:[%s3 + $0x138] sm:$0xff]
      %v1089 = vld [vmem:[%s3 + $0x140] sm:$0xff]
      %v1090 = vld [vmem:[%s3 + $0x148] sm:$0xff]
      %v1091 = vld [vmem:[%s3 + $0x150] sm:$0xff]
      %v1092 = vld [vmem:[%s3 + $0x158] sm:$0xff]
      %v1093 = vld [vmem:[%s3 + $0x160] sm:$0xff]
      %v1094 = vld [vmem:[%s3 + $0x168] sm:$0xff]
      %v1095 = vld [vmem:[%s3 + $0x170] sm:$0xff]
      %v1096 = vld [vmem:[%s3 + $0x178] sm:$0xff]
      %v1097 = vld [vmem:[%s3 + $0x180] sm:$0xff]
      %v1098 = vld [vmem:[%s3 + $0x188] sm:$0xff]
      %v1099 = vld [vmem:[%s3 + $0x190] sm:$0xff]
      %v1100 = vld [vmem:[%s3 + $0x198] sm:$0xff]
      %v1101 = vld [vmem:[%s3 + $0x1a0] sm:$0xff]
      %v1102 = vld [vmem:[%s3 + $0x1a8] sm:$0xff]
      %v1103 = vld [vmem:[%s3 + $0x1b0] sm:$0xff]
      %v1104 = vld [vmem:[%s3 + $0x1b8] sm:$0xff]
      %v1105 = vld [vmem:[%s3 + $0x1c0] sm:$0xff]
      %v1106 = vld [vmem:[%s3 + $0x1c8] sm:$0xff]
      %v1107 = vld [vmem:[%s3 + $0x1d0] sm:$0xff]
      %v1108 = vld [vmem:[%s3 + $0x1d8] sm:$0xff]
      %v1109 = vld [vmem:[%s3 + $0x1e0] sm:$0xff]
      %v1110 = vld [vmem:[%s3 + $0x1e8] sm:$0xff]
      %v1111 = vld [vmem:[%s3 + $0x1f0] sm:$0xff]
      %v1112 = vld [vmem:[%s3 + $0x1f8] sm:$0xff]
      %v1113 = vld [vmem:[%s4] sm:$0x3]
      %v1115 = vlaneseq
      %v1116 = vshrl.u32 %v1115, 7
      %v1117 = vsub.s32 0, %v1116
      %v1118 = vrot.slane %v1113, %v1117
      %v1119 = vlaneseq
      %v1120 = vshrl.u32 %v1119, 7
      %v1121 = vsub.s32 1, %v1120
      %v1122 = vrot.slane %v1113, %v1121
      %v1189 = vunpack.c.l.b16 %v1049
      %v1190 = vunpack.c.h.b16 %v1049
      %v1191 = vunpack.c.l.b16 %v1050
      %v1192 = vunpack.c.h.b16 %v1050
      %v1193 = vunpack.c.l.b16 %v1051
      %v1194 = vunpack.c.h.b16 %v1051
      %v1195 = vunpack.c.l.b16 %v1052
      %v1196 = vunpack.c.h.b16 %v1052
      %v1197 = vunpack.c.l.b16 %v1053
      %v1198 = vunpack.c.h.b16 %v1053
      %v1199 = vunpack.c.l.b16 %v1054
      %v1200 = vunpack.c.h.b16 %v1054
      %v1201 = vunpack.c.l.b16 %v1055
      %v1202 = vunpack.c.h.b16 %v1055
      %v1203 = vunpack.c.l.b16 %v1056
      %v1204 = vunpack.c.h.b16 %v1056
      %v1205 = vunpack.c.l.b16 %v1057
      %v1206 = vunpack.c.h.b16 %v1057
      %v1207 = vunpack.c.l.b16 %v1058
      %v1208 = vunpack.c.h.b16 %v1058
      %v1209 = vunpack.c.l.b16 %v1059
      %v1210 = vunpack.c.h.b16 %v1059
      %v1211 = vunpack.c.l.b16 %v1060
      %v1212 = vunpack.c.h.b16 %v1060
      %v1213 = vunpack.c.l.b16 %v1061
      %v1214 = vunpack.c.h.b16 %v1061
      %v1215 = vunpack.c.l.b16 %v1062
      %v1216 = vunpack.c.h.b16 %v1062
      %v1217 = vunpack.c.l.b16 %v1063
      %v1218 = vunpack.c.h.b16 %v1063
      %v1219 = vunpack.c.l.b16 %v1064
      %v1220 = vunpack.c.h.b16 %v1064
      %v1221 = vunpack.c.l.b16 %v1065
      %v1222 = vunpack.c.h.b16 %v1065
      %v1223 = vunpack.c.l.b16 %v1066
      %v1224 = vunpack.c.h.b16 %v1066
      %v1225 = vunpack.c.l.b16 %v1067
      %v1226 = vunpack.c.h.b16 %v1067
      %v1227 = vunpack.c.l.b16 %v1068
      %v1228 = vunpack.c.h.b16 %v1068
      %v1229 = vunpack.c.l.b16 %v1069
      %v1230 = vunpack.c.h.b16 %v1069
      %v1231 = vunpack.c.l.b16 %v1070
      %v1232 = vunpack.c.h.b16 %v1070
      %v1233 = vunpack.c.l.b16 %v1071
      %v1234 = vunpack.c.h.b16 %v1071
      %v1235 = vunpack.c.l.b16 %v1072
      %v1236 = vunpack.c.h.b16 %v1072
      %v1237 = vunpack.c.l.b16 %v1073
      %v1238 = vunpack.c.h.b16 %v1073
      %v1239 = vunpack.c.l.b16 %v1074
      %v1240 = vunpack.c.h.b16 %v1074
      %v1241 = vunpack.c.l.b16 %v1075
      %v1242 = vunpack.c.h.b16 %v1075
      %v1243 = vunpack.c.l.b16 %v1076
      %v1244 = vunpack.c.h.b16 %v1076
      %v1245 = vunpack.c.l.b16 %v1077
      %v1246 = vunpack.c.h.b16 %v1077
      %v1247 = vunpack.c.l.b16 %v1078
      %v1248 = vunpack.c.h.b16 %v1078
      %v1249 = vunpack.c.l.b16 %v1079
      %v1250 = vunpack.c.h.b16 %v1079
      %v1251 = vunpack.c.l.b16 %v1080
      %v1252 = vunpack.c.h.b16 %v1080
      %v1253 = vunpack.c.l.b16 %v1081
      %v1254 = vunpack.c.h.b16 %v1081
      %v1255 = vunpack.c.l.b16 %v1082
      %v1256 = vunpack.c.h.b16 %v1082
      %v1257 = vunpack.c.l.b16 %v1083
      %v1258 = vunpack.c.h.b16 %v1083
      %v1259 = vunpack.c.l.b16 %v1084
      %v1260 = vunpack.c.h.b16 %v1084
      %v1261 = vunpack.c.l.b16 %v1085
      %v1262 = vunpack.c.h.b16 %v1085
      %v1263 = vunpack.c.l.b16 %v1086
      %v1264 = vunpack.c.h.b16 %v1086
      %v1265 = vunpack.c.l.b16 %v1087
      %v1266 = vunpack.c.h.b16 %v1087
      %v1267 = vunpack.c.l.b16 %v1088
      %v1268 = vunpack.c.h.b16 %v1088
      %v1269 = vunpack.c.l.b16 %v1089
      %v1270 = vunpack.c.h.b16 %v1089
      %v1271 = vunpack.c.l.b16 %v1090
      %v1272 = vunpack.c.h.b16 %v1090
      %v1273 = vunpack.c.l.b16 %v1091
      %v1274 = vunpack.c.h.b16 %v1091
      %v1275 = vunpack.c.l.b16 %v1092
      %v1276 = vunpack.c.h.b16 %v1092
      %v1277 = vunpack.c.l.b16 %v1093
      %v1278 = vunpack.c.h.b16 %v1093
      %v1279 = vunpack.c.l.b16 %v1094
      %v1280 = vunpack.c.h.b16 %v1094
      %v1281 = vunpack.c.l.b16 %v1095
      %v1282 = vunpack.c.h.b16 %v1095
      %v1283 = vunpack.c.l.b16 %v1096
      %v1284 = vunpack.c.h.b16 %v1096
      %v1285 = vunpack.c.l.b16 %v1097
      %v1286 = vunpack.c.h.b16 %v1097
      %v1287 = vunpack.c.l.b16 %v1098
      %v1288 = vunpack.c.h.b16 %v1098
      %v1289 = vunpack.c.l.b16 %v1099
      %v1290 = vunpack.c.h.b16 %v1099
      %v1291 = vunpack.c.l.b16 %v1100
      %v1292 = vunpack.c.h.b16 %v1100
      %v1293 = vunpack.c.l.b16 %v1101
      %v1294 = vunpack.c.h.b16 %v1101
      %v1295 = vunpack.c.l.b16 %v1102
      %v1296 = vunpack.c.h.b16 %v1102
      %v1297 = vunpack.c.l.b16 %v1103
      %v1298 = vunpack.c.h.b16 %v1103
      %v1299 = vunpack.c.l.b16 %v1104
      %v1300 = vunpack.c.h.b16 %v1104
      %v1301 = vunpack.c.l.b16 %v1105
      %v1302 = vunpack.c.h.b16 %v1105
      %v1303 = vunpack.c.l.b16 %v1106
      %v1304 = vunpack.c.h.b16 %v1106
      %v1305 = vunpack.c.l.b16 %v1107
      %v1306 = vunpack.c.h.b16 %v1107
      %v1307 = vunpack.c.l.b16 %v1108
      %v1308 = vunpack.c.h.b16 %v1108
      %v1309 = vunpack.c.l.b16 %v1109
      %v1310 = vunpack.c.h.b16 %v1109
      %v1311 = vunpack.c.l.b16 %v1110
      %v1312 = vunpack.c.h.b16 %v1110
      %v1313 = vunpack.c.l.b16 %v1111
      %v1314 = vunpack.c.h.b16 %v1111
      %v1315 = vunpack.c.l.b16 %v1112
      %v1316 = vunpack.c.h.b16 %v1112
      %v1317 = vpack.c.b16 %v1191, %v1189
      %v1318 = vpack.c.b16 %v1192, %v1190
      %v1319 = vpack.c.b16 %v1195, %v1193
      %v1320 = vpack.c.b16 %v1196, %v1194
      %v1321 = vpack.c.b16 %v1199, %v1197
      %v1322 = vpack.c.b16 %v1200, %v1198
      %v1323 = vpack.c.b16 %v1203, %v1201
      %v1324 = vpack.c.b16 %v1204, %v1202
      %v1325 = vpack.c.b16 %v1207, %v1205
      %v1326 = vpack.c.b16 %v1208, %v1206
      %v1327 = vpack.c.b16 %v1211, %v1209
      %v1328 = vpack.c.b16 %v1212, %v1210
      %v1329 = vpack.c.b16 %v1215, %v1213
      %v1330 = vpack.c.b16 %v1216, %v1214
      %v1331 = vpack.c.b16 %v1219, %v1217
      %v1332 = vpack.c.b16 %v1220, %v1218
      %v1333 = vpack.c.b16 %v1223, %v1221
      %v1334 = vpack.c.b16 %v1224, %v1222
      %v1335 = vpack.c.b16 %v1227, %v1225
      %v1336 = vpack.c.b16 %v1228, %v1226
      %v1337 = vpack.c.b16 %v1231, %v1229
      %v1338 = vpack.c.b16 %v1232, %v1230
      %v1339 = vpack.c.b16 %v1235, %v1233
      %v1340 = vpack.c.b16 %v1236, %v1234
      %v1341 = vpack.c.b16 %v1239, %v1237
      %v1342 = vpack.c.b16 %v1240, %v1238
      %v1343 = vpack.c.b16 %v1243, %v1241
      %v1344 = vpack.c.b16 %v1244, %v1242
      %v1345 = vpack.c.b16 %v1247, %v1245
      %v1346 = vpack.c.b16 %v1248, %v1246
      %v1347 = vpack.c.b16 %v1251, %v1249
      %v1348 = vpack.c.b16 %v1252, %v1250
      %v1349 = vpack.c.b16 %v1255, %v1253
      %v1350 = vpack.c.b16 %v1256, %v1254
      %v1351 = vpack.c.b16 %v1259, %v1257
      %v1352 = vpack.c.b16 %v1260, %v1258
      %v1353 = vpack.c.b16 %v1263, %v1261
      %v1354 = vpack.c.b16 %v1264, %v1262
      %v1355 = vpack.c.b16 %v1267, %v1265
      %v1356 = vpack.c.b16 %v1268, %v1266
      %v1357 = vpack.c.b16 %v1271, %v1269
      %v1358 = vpack.c.b16 %v1272, %v1270
      %v1359 = vpack.c.b16 %v1275, %v1273
      %v1360 = vpack.c.b16 %v1276, %v1274
      %v1361 = vpack.c.b16 %v1279, %v1277
      %v1362 = vpack.c.b16 %v1280, %v1278
      %v1363 = vpack.c.b16 %v1283, %v1281
      %v1364 = vpack.c.b16 %v1284, %v1282
      %v1365 = vpack.c.b16 %v1287, %v1285
      %v1366 = vpack.c.b16 %v1288, %v1286
      %v1367 = vpack.c.b16 %v1291, %v1289
      %v1368 = vpack.c.b16 %v1292, %v1290
      %v1369 = vpack.c.b16 %v1295, %v1293
      %v1370 = vpack.c.b16 %v1296, %v1294
      %v1371 = vpack.c.b16 %v1299, %v1297
      %v1372 = vpack.c.b16 %v1300, %v1298
      %v1373 = vpack.c.b16 %v1303, %v1301
      %v1374 = vpack.c.b16 %v1304, %v1302
      %v1375 = vpack.c.b16 %v1307, %v1305
      %v1376 = vpack.c.b16 %v1308, %v1306
      %v1377 = vpack.c.b16 %v1311, %v1309
      %v1378 = vpack.c.b16 %v1312, %v1310
      %v1379 = vpack.c.b16 %v1315, %v1313
      %v1380 = vpack.c.b16 %v1316, %v1314
      %1445 = vmatprep.subr.bf16.mxu0 %v1332
      %1446 = vmatpush1.bf16.msra.mxu0 %v1331
      %1447 = vmatprep.subr.bf16.mxu0 %v1330
      %1448 = vmatpush1.bf16.msra.mxu0 %v1329
      %1449 = vmatprep.subr.bf16.mxu0 %v1328
      %1450 = vmatpush1.bf16.msra.mxu0 %v1327
      %1451 = vmatprep.subr.bf16.mxu0 %v1326
      %1452 = vmatpush1.bf16.msra.mxu0 %v1325
      %1453 = vmatprep.subr.bf16.mxu0 %v1324
      %1454 = vmatpush1.bf16.msra.mxu0 %v1323
      %1455 = vmatprep.subr.bf16.mxu0 %v1322
      %1456 = vmatpush1.bf16.msra.mxu0 %v1321
      %1457 = vmatprep.subr.bf16.mxu0 %v1320
      %1458 = vmatpush1.bf16.msra.mxu0 %v1319
      %1459 = vmatprep.subr.bf16.mxu0 %v1318
      %1460 = vmatpush1.bf16.msra.mxu0 %v1317
      %1461 = vmatprep.subr.bf16.mxu0 %v1348
      %1462 = vmatpush2.bf16.msra.mxu0 %v1347
      %1463 = vmatprep.subr.bf16.mxu0 %v1346
      %1464 = vmatpush2.bf16.msra.mxu0 %v1345
      %1465 = vmatprep.subr.bf16.mxu0 %v1344
      %1466 = vmatpush2.bf16.msra.mxu0 %v1343
      %1467 = vmatprep.subr.bf16.mxu0 %v1342
      %1468 = vmatpush2.bf16.msra.mxu0 %v1341
      %1469 = vmatprep.subr.bf16.mxu0 %v1340
      %1470 = vmatpush2.bf16.msra.mxu0 %v1339
      %1471 = vmatprep.subr.bf16.mxu0 %v1338
      %1472 = vmatpush2.bf16.msra.mxu0 %v1337
      %1473 = vmatprep.subr.bf16.mxu0 %v1336
      %1474 = vmatpush2.bf16.msra.mxu0 %v1335
      %1475 = vmatprep.subr.bf16.mxu0 %v1334
      %1476 = vmatpush2.bf16.msra.mxu0 %v1333
      %1477 = vmatprep.mubr.bf16.mxu0 %v922
      %1478 = vmatmul.mubr.bf16.gmra.mxu0 %v921
      %v1479 = vpop.f32.mrf.mxu0
      %v1480 = vadd.f32 %v1118, %v1479
      %v1481 = vpop.f32.mrf.mxu0
      %v1482 = vadd.f32 %v1122, %v1481
      %v1483 = vpop.f32.mrf.mxu0
      %v1484 = vadd.f32 %v1118, %v1483
      %v1485 = vpop.f32.mrf.mxu0
      %v1486 = vadd.f32 %v1122, %v1485
      %1487 = vmatprep.mubr.bf16.mxu0 %v926
      %1488 = vmatmul.mubr.bf16.gmra.mxu0 %v925
      %v1489 = vpop.f32.mrf.mxu0
      %v1490 = vadd.f32 %v1118, %v1489
      %v1491 = vpop.f32.mrf.mxu0
      %v1492 = vadd.f32 %v1122, %v1491
      %v1493 = vpop.f32.mrf.mxu0
      %v1494 = vadd.f32 %v1118, %v1493
      %v1495 = vpop.f32.mrf.mxu0
      %v1496 = vadd.f32 %v1122, %v1495
      %1497 = vmatprep.mubr.bf16.mxu0 %v930
      %1498 = vmatmul.mubr.bf16.gmra.mxu0 %v929
      %v1499 = vpop.f32.mrf.mxu0
      %v1500 = vadd.f32 %v1118, %v1499
      %v1501 = vpop.f32.mrf.mxu0
      %v1502 = vadd.f32 %v1122, %v1501
      %v1503 = vpop.f32.mrf.mxu0
      %v1504 = vadd.f32 %v1118, %v1503
      %v1505 = vpop.f32.mrf.mxu0
      %v1506 = vadd.f32 %v1122, %v1505
      %1507 = vmatprep.mubr.bf16.mxu0 %v934
      %1508 = vmatmul.mubr.bf16.gmra.mxu0 %v933
      %v1509 = vpop.f32.mrf.mxu0
      %v1510 = vadd.f32 %v1118, %v1509
      %v1511 = vpop.f32.mrf.mxu0
      %v1512 = vadd.f32 %v1122, %v1511
      %v1513 = vpop.f32.mrf.mxu0
      %v1514 = vadd.f32 %v1118, %v1513
      %v1515 = vpop.f32.mrf.mxu0
      %v1516 = vadd.f32 %v1122, %v1515
      %1517 = vmatprep.mubr.bf16.mxu0 %v938
      %1518 = vmatmul.mubr.bf16.gmra.mxu0 %v937
      %v1519 = vpop.f32.mrf.mxu0
      %v1520 = vadd.f32 %v1118, %v1519
      %v1521 = vpop.f32.mrf.mxu0
      %v1522 = vadd.f32 %v1122, %v1521
      %v1523 = vpop.f32.mrf.mxu0
      %v1524 = vadd.f32 %v1118, %v1523
      %v1525 = vpop.f32.mrf.mxu0
      %v1526 = vadd.f32 %v1122, %v1525
      %1527 = vmatprep.mubr.bf16.mxu0 %v942
      %1528 = vmatmul.mubr.bf16.gmra.mxu0 %v941
      %v1529 = vpop.f32.mrf.mxu0
      %v1530 = vadd.f32 %v1118, %v1529
      %v1531 = vpop.f32.mrf.mxu0
      %v1532 = vadd.f32 %v1122, %v1531
      %v1533 = vpop.f32.mrf.mxu0
      %v1534 = vadd.f32 %v1118, %v1533
      %v1535 = vpop.f32.mrf.mxu0
      %v1536 = vadd.f32 %v1122, %v1535
      %1537 = vmatprep.mubr.bf16.mxu0 %v946
      %1538 = vmatmul.mubr.bf16.gmra.mxu0 %v945
      %v1539 = vpop.f32.mrf.mxu0
      %v1540 = vadd.f32 %v1118, %v1539
      %v1541 = vpop.f32.mrf.mxu0
      %v1542 = vadd.f32 %v1122, %v1541
      %v1543 = vpop.f32.mrf.mxu0
      %v1544 = vadd.f32 %v1118, %v1543
      %v1545 = vpop.f32.mrf.mxu0
      %v1546 = vadd.f32 %v1122, %v1545
      %1547 = vmatprep.mubr.bf16.mxu0 %v950
      %1548 = vmatmul.mubr.bf16.gmra.mxu0 %v949
      %v1549 = vpop.f32.mrf.mxu0
      %v1550 = vadd.f32 %v1118, %v1549
      %v1551 = vpop.f32.mrf.mxu0
      %v1552 = vadd.f32 %v1122, %v1551
      %v1553 = vpop.f32.mrf.mxu0
      %v1554 = vadd.f32 %v1118, %v1553
      %v1555 = vpop.f32.mrf.mxu0
      %v1556 = vadd.f32 %v1122, %v1555
      %1557 = vmatprep.mubr.bf16.mxu0 %v954
      %1558 = vmatmul.mubr.bf16.gmra.mxu0 %v953
      %v1559 = vpop.f32.mrf.mxu0
      %v1560 = vadd.f32 %v1118, %v1559
      %v1561 = vpop.f32.mrf.mxu0
      %v1562 = vadd.f32 %v1122, %v1561
      %v1563 = vpop.f32.mrf.mxu0
      %v1564 = vadd.f32 %v1118, %v1563
      %v1565 = vpop.f32.mrf.mxu0
      %v1566 = vadd.f32 %v1122, %v1565
      %1567 = vmatprep.mubr.bf16.mxu0 %v958
      %1568 = vmatmul.mubr.bf16.gmra.mxu0 %v957
      %v1569 = vpop.f32.mrf.mxu0
      %v1570 = vadd.f32 %v1118, %v1569
      %v1571 = vpop.f32.mrf.mxu0
      %v1572 = vadd.f32 %v1122, %v1571
      %v1573 = vpop.f32.mrf.mxu0
      %v1574 = vadd.f32 %v1118, %v1573
      %v1575 = vpop.f32.mrf.mxu0
      %v1576 = vadd.f32 %v1122, %v1575
      %1577 = vmatprep.mubr.bf16.mxu0 %v962
      %1578 = vmatmul.mubr.bf16.gmra.mxu0 %v961
      %v1579 = vpop.f32.mrf.mxu0
      %v1580 = vadd.f32 %v1118, %v1579
      %v1581 = vpop.f32.mrf.mxu0
      %v1582 = vadd.f32 %v1122, %v1581
      %v1583 = vpop.f32.mrf.mxu0
      %v1584 = vadd.f32 %v1118, %v1583
      %v1585 = vpop.f32.mrf.mxu0
      %v1586 = vadd.f32 %v1122, %v1585
      %1587 = vmatprep.mubr.bf16.mxu0 %v966
      %1588 = vmatmul.mubr.bf16.gmra.mxu0 %v965
      %v1589 = vpop.f32.mrf.mxu0
      %v1590 = vadd.f32 %v1118, %v1589
      %v1591 = vpop.f32.mrf.mxu0
      %v1592 = vadd.f32 %v1122, %v1591
      %v1593 = vpop.f32.mrf.mxu0
      %v1594 = vadd.f32 %v1118, %v1593
      %v1595 = vpop.f32.mrf.mxu0
      %v1596 = vadd.f32 %v1122, %v1595
      %1597 = vmatprep.mubr.bf16.mxu0 %v970
      %1598 = vmatmul.mubr.bf16.gmra.mxu0 %v969
      %v1599 = vpop.f32.mrf.mxu0
      %v1600 = vadd.f32 %v1118, %v1599
      %v1601 = vpop.f32.mrf.mxu0
      %v1602 = vadd.f32 %v1122, %v1601
      %v1603 = vpop.f32.mrf.mxu0
      %v1604 = vadd.f32 %v1118, %v1603
      %v1605 = vpop.f32.mrf.mxu0
      %v1606 = vadd.f32 %v1122, %v1605
      %1607 = vmatprep.mubr.bf16.mxu0 %v974
      %1608 = vmatmul.mubr.bf16.gmra.mxu0 %v973
      %v1609 = vpop.f32.mrf.mxu0
      %v1610 = vadd.f32 %v1118, %v1609
      %v1611 = vpop.f32.mrf.mxu0
      %v1612 = vadd.f32 %v1122, %v1611
      %v1613 = vpop.f32.mrf.mxu0
      %v1614 = vadd.f32 %v1118, %v1613
      %v1615 = vpop.f32.mrf.mxu0
      %v1616 = vadd.f32 %v1122, %v1615
      %1617 = vmatprep.mubr.bf16.mxu0 %v978
      %1618 = vmatmul.mubr.bf16.gmra.mxu0 %v977
      %v1619 = vpop.f32.mrf.mxu0
      %v1620 = vadd.f32 %v1118, %v1619
      %v1621 = vpop.f32.mrf.mxu0
      %v1622 = vadd.f32 %v1122, %v1621
      %v1623 = vpop.f32.mrf.mxu0
      %v1624 = vadd.f32 %v1118, %v1623
      %v1625 = vpop.f32.mrf.mxu0
      %v1626 = vadd.f32 %v1122, %v1625
      %1627 = vmatprep.mubr.bf16.mxu0 %v982
      %1628 = vmatmul.mubr.bf16.gmra.mxu0 %v981
      %v1629 = vpop.f32.mrf.mxu0
      %v1630 = vadd.f32 %v1118, %v1629
      %v1631 = vpop.f32.mrf.mxu0
      %v1632 = vadd.f32 %v1122, %v1631
      %v1633 = vpop.f32.mrf.mxu0
      %v1634 = vadd.f32 %v1118, %v1633
      %v1635 = vpop.f32.mrf.mxu0
      %v1636 = vadd.f32 %v1122, %v1635
      %1637 = vmatprep.mubr.bf16.mxu0 %v986
      %1638 = vmatmul.mubr.bf16.gmra.mxu0 %v985
      %v1639 = vpop.f32.mrf.mxu0
      %v1640 = vadd.f32 %v1118, %v1639
      %v1641 = vpop.f32.mrf.mxu0
      %v1642 = vadd.f32 %v1122, %v1641
      %v1643 = vpop.f32.mrf.mxu0
      %v1644 = vadd.f32 %v1118, %v1643
      %v1645 = vpop.f32.mrf.mxu0
      %v1646 = vadd.f32 %v1122, %v1645
      %1647 = vmatprep.mubr.bf16.mxu0 %v990
      %1648 = vmatmul.mubr.bf16.gmra.mxu0 %v989
      %v1649 = vpop.f32.mrf.mxu0
      %v1650 = vadd.f32 %v1118, %v1649
      %v1651 = vpop.f32.mrf.mxu0
      %v1652 = vadd.f32 %v1122, %v1651
      %v1653 = vpop.f32.mrf.mxu0
      %v1654 = vadd.f32 %v1118, %v1653
      %v1655 = vpop.f32.mrf.mxu0
      %v1656 = vadd.f32 %v1122, %v1655
      %1657 = vmatprep.mubr.bf16.mxu0 %v994
      %1658 = vmatmul.mubr.bf16.gmra.mxu0 %v993
      %v1659 = vpop.f32.mrf.mxu0
      %v1660 = vadd.f32 %v1118, %v1659
      %v1661 = vpop.f32.mrf.mxu0
      %v1662 = vadd.f32 %v1122, %v1661
      %v1663 = vpop.f32.mrf.mxu0
      %v1664 = vadd.f32 %v1118, %v1663
      %v1665 = vpop.f32.mrf.mxu0
      %v1666 = vadd.f32 %v1122, %v1665
      %1667 = vmatprep.mubr.bf16.mxu0 %v998
      %1668 = vmatmul.mubr.bf16.gmra.mxu0 %v997
      %v1669 = vpop.f32.mrf.mxu0
      %v1670 = vadd.f32 %v1118, %v1669
      %v1671 = vpop.f32.mrf.mxu0
      %v1672 = vadd.f32 %v1122, %v1671
      %v1673 = vpop.f32.mrf.mxu0
      %v1674 = vadd.f32 %v1118, %v1673
      %v1675 = vpop.f32.mrf.mxu0
      %v1676 = vadd.f32 %v1122, %v1675
      %1677 = vmatprep.mubr.bf16.mxu0 %v1002
      %1678 = vmatmul.mubr.bf16.gmra.mxu0 %v1001
      %v1679 = vpop.f32.mrf.mxu0
      %v1680 = vadd.f32 %v1118, %v1679
      %v1681 = vpop.f32.mrf.mxu0
      %v1682 = vadd.f32 %v1122, %v1681
      %v1683 = vpop.f32.mrf.mxu0
      %v1684 = vadd.f32 %v1118, %v1683
      %v1685 = vpop.f32.mrf.mxu0
      %v1686 = vadd.f32 %v1122, %v1685
      %1687 = vmatprep.mubr.bf16.mxu0 %v1006
      %1688 = vmatmul.mubr.bf16.gmra.mxu0 %v1005
      %v1689 = vpop.f32.mrf.mxu0
      %v1690 = vadd.f32 %v1118, %v1689
      %v1691 = vpop.f32.mrf.mxu0
      %v1692 = vadd.f32 %v1122, %v1691
      %v1693 = vpop.f32.mrf.mxu0
      %v1694 = vadd.f32 %v1118, %v1693
      %v1695 = vpop.f32.mrf.mxu0
      %v1696 = vadd.f32 %v1122, %v1695
      %1697 = vmatprep.mubr.bf16.mxu0 %v1010
      %1698 = vmatmul.mubr.bf16.gmra.mxu0 %v1009
      %v1699 = vpop.f32.mrf.mxu0
      %v1700 = vadd.f32 %v1118, %v1699
      %v1701 = vpop.f32.mrf.mxu0
      %v1702 = vadd.f32 %v1122, %v1701
      %v1703 = vpop.f32.mrf.mxu0
      %v1704 = vadd.f32 %v1118, %v1703
      %v1705 = vpop.f32.mrf.mxu0
      %v1706 = vadd.f32 %v1122, %v1705
      %1707 = vmatprep.mubr.bf16.mxu0 %v1014
      %1708 = vmatmul.mubr.bf16.gmra.mxu0 %v1013
      %v1709 = vpop.f32.mrf.mxu0
      %v1710 = vadd.f32 %v1118, %v1709
      %v1711 = vpop.f32.mrf.mxu0
      %v1712 = vadd.f32 %v1122, %v1711
      %v1713 = vpop.f32.mrf.mxu0
      %v1714 = vadd.f32 %v1118, %v1713
      %v1715 = vpop.f32.mrf.mxu0
      %v1716 = vadd.f32 %v1122, %v1715
      %1717 = vmatprep.mubr.bf16.mxu0 %v1018
      %1718 = vmatmul.mubr.bf16.gmra.mxu0 %v1017
      %v1719 = vpop.f32.mrf.mxu0
      %v1720 = vadd.f32 %v1118, %v1719
      %v1721 = vpop.f32.mrf.mxu0
      %v1722 = vadd.f32 %v1122, %v1721
      %v1723 = vpop.f32.mrf.mxu0
      %v1724 = vadd.f32 %v1118, %v1723
      %v1725 = vpop.f32.mrf.mxu0
      %v1726 = vadd.f32 %v1122, %v1725
      %1727 = vmatprep.mubr.bf16.mxu0 %v1022
      %1728 = vmatmul.mubr.bf16.gmra.mxu0 %v1021
      %v1729 = vpop.f32.mrf.mxu0
      %v1730 = vadd.f32 %v1118, %v1729
      %v1731 = vpop.f32.mrf.mxu0
      %v1732 = vadd.f32 %v1122, %v1731
      %v1733 = vpop.f32.mrf.mxu0
      %v1734 = vadd.f32 %v1118, %v1733
      %v1735 = vpop.f32.mrf.mxu0
      %v1736 = vadd.f32 %v1122, %v1735
      %1737 = vmatprep.mubr.bf16.mxu0 %v1026
      %1738 = vmatmul.mubr.bf16.gmra.mxu0 %v1025
      %v1739 = vpop.f32.mrf.mxu0
      %v1740 = vadd.f32 %v1118, %v1739
      %v1741 = vpop.f32.mrf.mxu0
      %v1742 = vadd.f32 %v1122, %v1741
      %v1743 = vpop.f32.mrf.mxu0
      %v1744 = vadd.f32 %v1118, %v1743
      %v1745 = vpop.f32.mrf.mxu0
      %v1746 = vadd.f32 %v1122, %v1745
      %1747 = vmatprep.mubr.bf16.mxu0 %v1030
      %1748 = vmatmul.mubr.bf16.gmra.mxu0 %v1029
      %v1749 = vpop.f32.mrf.mxu0
      %v1750 = vadd.f32 %v1118, %v1749
      %v1751 = vpop.f32.mrf.mxu0
      %v1752 = vadd.f32 %v1122, %v1751
      %v1753 = vpop.f32.mrf.mxu0
      %v1754 = vadd.f32 %v1118, %v1753
      %v1755 = vpop.f32.mrf.mxu0
      %v1756 = vadd.f32 %v1122, %v1755
      %1757 = vmatprep.mubr.bf16.mxu0 %v1034
      %1758 = vmatmul.mubr.bf16.gmra.mxu0 %v1033
      %v1759 = vpop.f32.mrf.mxu0
      %v1760 = vadd.f32 %v1118, %v1759
      %v1761 = vpop.f32.mrf.mxu0
      %v1762 = vadd.f32 %v1122, %v1761
      %v1763 = vpop.f32.mrf.mxu0
      %v1764 = vadd.f32 %v1118, %v1763
      %v1765 = vpop.f32.mrf.mxu0
      %v1766 = vadd.f32 %v1122, %v1765
      %1767 = vmatprep.mubr.bf16.mxu0 %v1038
      %1768 = vmatmul.mubr.bf16.gmra.mxu0 %v1037
      %v1769 = vpop.f32.mrf.mxu0
      %v1770 = vadd.f32 %v1118, %v1769
      %v1771 = vpop.f32.mrf.mxu0
      %v1772 = vadd.f32 %v1122, %v1771
      %v1773 = vpop.f32.mrf.mxu0
      %v1774 = vadd.f32 %v1118, %v1773
      %v1775 = vpop.f32.mrf.mxu0
      %v1776 = vadd.f32 %v1122, %v1775
      %1777 = vmatprep.mubr.bf16.mxu0 %v1042
      %1778 = vmatmul.mubr.bf16.gmra.mxu0 %v1041
      %v1779 = vpop.f32.mrf.mxu0
      %v1780 = vadd.f32 %v1118, %v1779
      %v1781 = vpop.f32.mrf.mxu0
      %v1782 = vadd.f32 %v1122, %v1781
      %v1783 = vpop.f32.mrf.mxu0
      %v1784 = vadd.f32 %v1118, %v1783
      %v1785 = vpop.f32.mrf.mxu0
      %v1786 = vadd.f32 %v1122, %v1785
      %1787 = vmatprep.mubr.bf16.mxu0 %v1046
      %1788 = vmatmul.mubr.bf16.gmra.mxu0 %v1045
      %v1789 = vpop.f32.mrf.mxu0
      %v1790 = vadd.f32 %v1118, %v1789
      %v1791 = vpop.f32.mrf.mxu0
      %v1792 = vadd.f32 %v1122, %v1791
      %v1793 = vpop.f32.mrf.mxu0
      %v1794 = vadd.f32 %v1118, %v1793
      %v1795 = vpop.f32.mrf.mxu0
      %v1796 = vadd.f32 %v1122, %v1795
      %1797 = vdwg.mxu0
      %1798 = vmatprep.subr.bf16.mxu0 %v1364
      %1799 = vmatpush1.bf16.msra.mxu0 %v1363
      %1800 = vmatprep.subr.bf16.mxu0 %v1362
      %1801 = vmatpush1.bf16.msra.mxu0 %v1361
      %1802 = vmatprep.subr.bf16.mxu0 %v1360
      %1803 = vmatpush1.bf16.msra.mxu0 %v1359
      %1804 = vmatprep.subr.bf16.mxu0 %v1358
      %1805 = vmatpush1.bf16.msra.mxu0 %v1357
      %1806 = vmatprep.subr.bf16.mxu0 %v1356
      %1807 = vmatpush1.bf16.msra.mxu0 %v1355
      %1808 = vmatprep.subr.bf16.mxu0 %v1354
      %1809 = vmatpush1.bf16.msra.mxu0 %v1353
      %1810 = vmatprep.subr.bf16.mxu0 %v1352
      %1811 = vmatpush1.bf16.msra.mxu0 %v1351
      %1812 = vmatprep.subr.bf16.mxu0 %v1350
      %1813 = vmatpush1.bf16.msra.mxu0 %v1349
      %1814 = vmatprep.subr.bf16.mxu0 %v1380
      %1815 = vmatpush2.bf16.msra.mxu0 %v1379
      %1816 = vmatprep.subr.bf16.mxu0 %v1378
      %1817 = vmatpush2.bf16.msra.mxu0 %v1377
      %1818 = vmatprep.subr.bf16.mxu0 %v1376
      %1819 = vmatpush2.bf16.msra.mxu0 %v1375
      %1820 = vmatprep.subr.bf16.mxu0 %v1374
      %1821 = vmatpush2.bf16.msra.mxu0 %v1373
      %1822 = vmatprep.subr.bf16.mxu0 %v1372
      %1823 = vmatpush2.bf16.msra.mxu0 %v1371
      %1824 = vmatprep.subr.bf16.mxu0 %v1370
      %1825 = vmatpush2.bf16.msra.mxu0 %v1369
      %1826 = vmatprep.subr.bf16.mxu0 %v1368
      %1827 = vmatpush2.bf16.msra.mxu0 %v1367
      %1828 = vmatprep.subr.bf16.mxu0 %v1366
      %1829 = vmatpush2.bf16.msra.mxu0 %v1365
      %1830 = vmatprep.mubr.bf16.mxu0 %v924
      %1831 = vmatmul.mubr.bf16.gmra.mxu0 %v923
      %v1832 = vpop.f32.mrf.mxu0
      %v1833 = vadd.f32 %v1480, %v1832
      %v1834 = vpop.f32.mrf.mxu0
      %v1835 = vadd.f32 %v1482, %v1834
      %v1836 = vpop.f32.mrf.mxu0
      %v1837 = vadd.f32 %v1484, %v1836
      %v1838 = vpop.f32.mrf.mxu0
      %v1839 = vadd.f32 %v1486, %v1838
      %1840 = vmatprep.mubr.bf16.mxu0 %v928
      %1841 = vmatmul.mubr.bf16.gmra.mxu0 %v927
      %v1842 = vpop.f32.mrf.mxu0
      %v1843 = vadd.f32 %v1490, %v1842
      %v1844 = vpop.f32.mrf.mxu0
      %v1845 = vadd.f32 %v1492, %v1844
      %v1846 = vpop.f32.mrf.mxu0
      %v1847 = vadd.f32 %v1494, %v1846
      %v1848 = vpop.f32.mrf.mxu0
      %v1849 = vadd.f32 %v1496, %v1848
      %1850 = vmatprep.mubr.bf16.mxu0 %v932
      %1851 = vmatmul.mubr.bf16.gmra.mxu0 %v931
      %v1852 = vpop.f32.mrf.mxu0
      %v1853 = vadd.f32 %v1500, %v1852
      %v1854 = vpop.f32.mrf.mxu0
      %v1855 = vadd.f32 %v1502, %v1854
      %v1856 = vpop.f32.mrf.mxu0
      %v1857 = vadd.f32 %v1504, %v1856
      %v1858 = vpop.f32.mrf.mxu0
      %v1859 = vadd.f32 %v1506, %v1858
      %1860 = vmatprep.mubr.bf16.mxu0 %v936
      %1861 = vmatmul.mubr.bf16.gmra.mxu0 %v935
      %v1862 = vpop.f32.mrf.mxu0
      %v1863 = vadd.f32 %v1510, %v1862
      %v1864 = vpop.f32.mrf.mxu0
      %v1865 = vadd.f32 %v1512, %v1864
      %v1866 = vpop.f32.mrf.mxu0
      %v1867 = vadd.f32 %v1514, %v1866
      %v1868 = vpop.f32.mrf.mxu0
      %v1869 = vadd.f32 %v1516, %v1868
      %1870 = vmatprep.mubr.bf16.mxu0 %v940
      %1871 = vmatmul.mubr.bf16.gmra.mxu0 %v939
      %v1872 = vpop.f32.mrf.mxu0
      %v1873 = vadd.f32 %v1520, %v1872
      %v1874 = vpop.f32.mrf.mxu0
      %v1875 = vadd.f32 %v1522, %v1874
      %v1876 = vpop.f32.mrf.mxu0
      %v1877 = vadd.f32 %v1524, %v1876
      %v1878 = vpop.f32.mrf.mxu0
      %v1879 = vadd.f32 %v1526, %v1878
      %1880 = vmatprep.mubr.bf16.mxu0 %v944
      %1881 = vmatmul.mubr.bf16.gmra.mxu0 %v943
      %v1882 = vpop.f32.mrf.mxu0
      %v1883 = vadd.f32 %v1530, %v1882
      %v1884 = vpop.f32.mrf.mxu0
      %v1885 = vadd.f32 %v1532, %v1884
      %v1886 = vpop.f32.mrf.mxu0
      %v1887 = vadd.f32 %v1534, %v1886
      %v1888 = vpop.f32.mrf.mxu0
      %v1889 = vadd.f32 %v1536, %v1888
      %1890 = vmatprep.mubr.bf16.mxu0 %v948
      %1891 = vmatmul.mubr.bf16.gmra.mxu0 %v947
      %v1892 = vpop.f32.mrf.mxu0
      %v1893 = vadd.f32 %v1540, %v1892
      %v1894 = vpop.f32.mrf.mxu0
      %v1895 = vadd.f32 %v1542, %v1894
      %v1896 = vpop.f32.mrf.mxu0
      %v1897 = vadd.f32 %v1544, %v1896
      %v1898 = vpop.f32.mrf.mxu0
      %v1899 = vadd.f32 %v1546, %v1898
      %1900 = vmatprep.mubr.bf16.mxu0 %v952
      %1901 = vmatmul.mubr.bf16.gmra.mxu0 %v951
      %v1902 = vpop.f32.mrf.mxu0
      %v1903 = vadd.f32 %v1550, %v1902
      %v1904 = vpop.f32.mrf.mxu0
      %v1905 = vadd.f32 %v1552, %v1904
      %v1906 = vpop.f32.mrf.mxu0
      %v1907 = vadd.f32 %v1554, %v1906
      %v1908 = vpop.f32.mrf.mxu0
      %v1909 = vadd.f32 %v1556, %v1908
      %1910 = vmatprep.mubr.bf16.mxu0 %v956
      %1911 = vmatmul.mubr.bf16.gmra.mxu0 %v955
      %v1912 = vpop.f32.mrf.mxu0
      %v1913 = vadd.f32 %v1560, %v1912
      %v1914 = vpop.f32.mrf.mxu0
      %v1915 = vadd.f32 %v1562, %v1914
      %v1916 = vpop.f32.mrf.mxu0
      %v1917 = vadd.f32 %v1564, %v1916
      %v1918 = vpop.f32.mrf.mxu0
      %v1919 = vadd.f32 %v1566, %v1918
      %1920 = vmatprep.mubr.bf16.mxu0 %v960
      %1921 = vmatmul.mubr.bf16.gmra.mxu0 %v959
      %v1922 = vpop.f32.mrf.mxu0
      %v1923 = vadd.f32 %v1570, %v1922
      %v1924 = vpop.f32.mrf.mxu0
      %v1925 = vadd.f32 %v1572, %v1924
      %v1926 = vpop.f32.mrf.mxu0
      %v1927 = vadd.f32 %v1574, %v1926
      %v1928 = vpop.f32.mrf.mxu0
      %v1929 = vadd.f32 %v1576, %v1928
      %1930 = vmatprep.mubr.bf16.mxu0 %v964
      %1931 = vmatmul.mubr.bf16.gmra.mxu0 %v963
      %v1932 = vpop.f32.mrf.mxu0
      %v1933 = vadd.f32 %v1580, %v1932
      %v1934 = vpop.f32.mrf.mxu0
      %v1935 = vadd.f32 %v1582, %v1934
      %v1936 = vpop.f32.mrf.mxu0
      %v1937 = vadd.f32 %v1584, %v1936
      %v1938 = vpop.f32.mrf.mxu0
      %v1939 = vadd.f32 %v1586, %v1938
      %1940 = vmatprep.mubr.bf16.mxu0 %v968
      %1941 = vmatmul.mubr.bf16.gmra.mxu0 %v967
      %v1942 = vpop.f32.mrf.mxu0
      %v1943 = vadd.f32 %v1590, %v1942
      %v1944 = vpop.f32.mrf.mxu0
      %v1945 = vadd.f32 %v1592, %v1944
      %v1946 = vpop.f32.mrf.mxu0
      %v1947 = vadd.f32 %v1594, %v1946
      %v1948 = vpop.f32.mrf.mxu0
      %v1949 = vadd.f32 %v1596, %v1948
      %1950 = vmatprep.mubr.bf16.mxu0 %v972
      %1951 = vmatmul.mubr.bf16.gmra.mxu0 %v971
      %v1952 = vpop.f32.mrf.mxu0
      %v1953 = vadd.f32 %v1600, %v1952
      %v1954 = vpop.f32.mrf.mxu0
      %v1955 = vadd.f32 %v1602, %v1954
      %v1956 = vpop.f32.mrf.mxu0
      %v1957 = vadd.f32 %v1604, %v1956
      %v1958 = vpop.f32.mrf.mxu0
      %v1959 = vadd.f32 %v1606, %v1958
      %1960 = vmatprep.mubr.bf16.mxu0 %v976
      %1961 = vmatmul.mubr.bf16.gmra.mxu0 %v975
      %v1962 = vpop.f32.mrf.mxu0
      %v1963 = vadd.f32 %v1610, %v1962
      %v1964 = vpop.f32.mrf.mxu0
      %v1965 = vadd.f32 %v1612, %v1964
      %v1966 = vpop.f32.mrf.mxu0
      %v1967 = vadd.f32 %v1614, %v1966
      %v1968 = vpop.f32.mrf.mxu0
      %v1969 = vadd.f32 %v1616, %v1968
      %1970 = vmatprep.mubr.bf16.mxu0 %v980
      %1971 = vmatmul.mubr.bf16.gmra.mxu0 %v979
      %v1972 = vpop.f32.mrf.mxu0
      %v1973 = vadd.f32 %v1620, %v1972
      %v1974 = vpop.f32.mrf.mxu0
      %v1975 = vadd.f32 %v1622, %v1974
      %v1976 = vpop.f32.mrf.mxu0
      %v1977 = vadd.f32 %v1624, %v1976
      %v1978 = vpop.f32.mrf.mxu0
      %v1979 = vadd.f32 %v1626, %v1978
      %1980 = vmatprep.mubr.bf16.mxu0 %v984
      %1981 = vmatmul.mubr.bf16.gmra.mxu0 %v983
      %v1982 = vpop.f32.mrf.mxu0
      %v1983 = vadd.f32 %v1630, %v1982
      %v1984 = vpop.f32.mrf.mxu0
      %v1985 = vadd.f32 %v1632, %v1984
      %v1986 = vpop.f32.mrf.mxu0
      %v1987 = vadd.f32 %v1634, %v1986
      %v1988 = vpop.f32.mrf.mxu0
      %v1989 = vadd.f32 %v1636, %v1988
      %1990 = vmatprep.mubr.bf16.mxu0 %v988
      %1991 = vmatmul.mubr.bf16.gmra.mxu0 %v987
      %v1992 = vpop.f32.mrf.mxu0
      %v1993 = vadd.f32 %v1640, %v1992
      %v1994 = vpop.f32.mrf.mxu0
      %v1995 = vadd.f32 %v1642, %v1994
      %v1996 = vpop.f32.mrf.mxu0
      %v1997 = vadd.f32 %v1644, %v1996
      %v1998 = vpop.f32.mrf.mxu0
      %v1999 = vadd.f32 %v1646, %v1998
      %2000 = vmatprep.mubr.bf16.mxu0 %v992
      %2001 = vmatmul.mubr.bf16.gmra.mxu0 %v991
      %v2002 = vpop.f32.mrf.mxu0
      %v2003 = vadd.f32 %v1650, %v2002
      %v2004 = vpop.f32.mrf.mxu0
      %v2005 = vadd.f32 %v1652, %v2004
      %v2006 = vpop.f32.mrf.mxu0
      %v2007 = vadd.f32 %v1654, %v2006
      %v2008 = vpop.f32.mrf.mxu0
      %v2009 = vadd.f32 %v1656, %v2008
      %2010 = vmatprep.mubr.bf16.mxu0 %v996
      %2011 = vmatmul.mubr.bf16.gmra.mxu0 %v995
      %v2012 = vpop.f32.mrf.mxu0
      %v2013 = vadd.f32 %v1660, %v2012
      %v2014 = vpop.f32.mrf.mxu0
      %v2015 = vadd.f32 %v1662, %v2014
      %v2016 = vpop.f32.mrf.mxu0
      %v2017 = vadd.f32 %v1664, %v2016
      %v2018 = vpop.f32.mrf.mxu0
      %v2019 = vadd.f32 %v1666, %v2018
      %2020 = vmatprep.mubr.bf16.mxu0 %v1000
      %2021 = vmatmul.mubr.bf16.gmra.mxu0 %v999
      %v2022 = vpop.f32.mrf.mxu0
      %v2023 = vadd.f32 %v1670, %v2022
      %v2024 = vpop.f32.mrf.mxu0
      %v2025 = vadd.f32 %v1672, %v2024
      %v2026 = vpop.f32.mrf.mxu0
      %v2027 = vadd.f32 %v1674, %v2026
      %v2028 = vpop.f32.mrf.mxu0
      %v2029 = vadd.f32 %v1676, %v2028
      %2030 = vmatprep.mubr.bf16.mxu0 %v1004
      %2031 = vmatmul.mubr.bf16.gmra.mxu0 %v1003
      %v2032 = vpop.f32.mrf.mxu0
      %v2033 = vadd.f32 %v1680, %v2032
      %v2034 = vpop.f32.mrf.mxu0
      %v2035 = vadd.f32 %v1682, %v2034
      %v2036 = vpop.f32.mrf.mxu0
      %v2037 = vadd.f32 %v1684, %v2036
      %v2038 = vpop.f32.mrf.mxu0
      %v2039 = vadd.f32 %v1686, %v2038
      %2040 = vmatprep.mubr.bf16.mxu0 %v1008
      %2041 = vmatmul.mubr.bf16.gmra.mxu0 %v1007
      %v2042 = vpop.f32.mrf.mxu0
      %v2043 = vadd.f32 %v1690, %v2042
      %v2044 = vpop.f32.mrf.mxu0
      %v2045 = vadd.f32 %v1692, %v2044
      %v2046 = vpop.f32.mrf.mxu0
      %v2047 = vadd.f32 %v1694, %v2046
      %v2048 = vpop.f32.mrf.mxu0
      %v2049 = vadd.f32 %v1696, %v2048
      %2050 = vmatprep.mubr.bf16.mxu0 %v1012
      %2051 = vmatmul.mubr.bf16.gmra.mxu0 %v1011
      %v2052 = vpop.f32.mrf.mxu0
      %v2053 = vadd.f32 %v1700, %v2052
      %v2054 = vpop.f32.mrf.mxu0
      %v2055 = vadd.f32 %v1702, %v2054
      %v2056 = vpop.f32.mrf.mxu0
      %v2057 = vadd.f32 %v1704, %v2056
      %v2058 = vpop.f32.mrf.mxu0
      %v2059 = vadd.f32 %v1706, %v2058
      %2060 = vmatprep.mubr.bf16.mxu0 %v1016
      %2061 = vmatmul.mubr.bf16.gmra.mxu0 %v1015
      %v2062 = vpop.f32.mrf.mxu0
      %v2063 = vadd.f32 %v1710, %v2062
      %v2064 = vpop.f32.mrf.mxu0
      %v2065 = vadd.f32 %v1712, %v2064
      %v2066 = vpop.f32.mrf.mxu0
      %v2067 = vadd.f32 %v1714, %v2066
      %v2068 = vpop.f32.mrf.mxu0
      %v2069 = vadd.f32 %v1716, %v2068
      %2070 = vmatprep.mubr.bf16.mxu0 %v1020
      %2071 = vmatmul.mubr.bf16.gmra.mxu0 %v1019
      %v2072 = vpop.f32.mrf.mxu0
      %v2073 = vadd.f32 %v1720, %v2072
      %v2074 = vpop.f32.mrf.mxu0
      %v2075 = vadd.f32 %v1722, %v2074
      %v2076 = vpop.f32.mrf.mxu0
      %v2077 = vadd.f32 %v1724, %v2076
      %v2078 = vpop.f32.mrf.mxu0
      %v2079 = vadd.f32 %v1726, %v2078
      %2080 = vmatprep.mubr.bf16.mxu0 %v1024
      %2081 = vmatmul.mubr.bf16.gmra.mxu0 %v1023
      %v2082 = vpop.f32.mrf.mxu0
      %v2083 = vadd.f32 %v1730, %v2082
      %v2084 = vpop.f32.mrf.mxu0
      %v2085 = vadd.f32 %v1732, %v2084
      %v2086 = vpop.f32.mrf.mxu0
      %v2087 = vadd.f32 %v1734, %v2086
      %v2088 = vpop.f32.mrf.mxu0
      %v2089 = vadd.f32 %v1736, %v2088
      %2090 = vmatprep.mubr.bf16.mxu0 %v1028
      %2091 = vmatmul.mubr.bf16.gmra.mxu0 %v1027
      %v2092 = vpop.f32.mrf.mxu0
      %v2093 = vadd.f32 %v1740, %v2092
      %v2094 = vpop.f32.mrf.mxu0
      %v2095 = vadd.f32 %v1742, %v2094
      %v2096 = vpop.f32.mrf.mxu0
      %v2097 = vadd.f32 %v1744, %v2096
      %v2098 = vpop.f32.mrf.mxu0
      %v2099 = vadd.f32 %v1746, %v2098
      %2100 = vmatprep.mubr.bf16.mxu0 %v1032
      %2101 = vmatmul.mubr.bf16.gmra.mxu0 %v1031
      %v2102 = vpop.f32.mrf.mxu0
      %v2103 = vadd.f32 %v1750, %v2102
      %v2104 = vpop.f32.mrf.mxu0
      %v2105 = vadd.f32 %v1752, %v2104
      %v2106 = vpop.f32.mrf.mxu0
      %v2107 = vadd.f32 %v1754, %v2106
      %v2108 = vpop.f32.mrf.mxu0
      %v2109 = vadd.f32 %v1756, %v2108
      %2110 = vmatprep.mubr.bf16.mxu0 %v1036
      %2111 = vmatmul.mubr.bf16.gmra.mxu0 %v1035
      %v2112 = vpop.f32.mrf.mxu0
      %v2113 = vadd.f32 %v1760, %v2112
      %v2114 = vpop.f32.mrf.mxu0
      %v2115 = vadd.f32 %v1762, %v2114
      %v2116 = vpop.f32.mrf.mxu0
      %v2117 = vadd.f32 %v1764, %v2116
      %v2118 = vpop.f32.mrf.mxu0
      %v2119 = vadd.f32 %v1766, %v2118
      %2120 = vmatprep.mubr.bf16.mxu0 %v1040
      %2121 = vmatmul.mubr.bf16.gmra.mxu0 %v1039
      %v2122 = vpop.f32.mrf.mxu0
      %v2123 = vadd.f32 %v1770, %v2122
      %v2124 = vpop.f32.mrf.mxu0
      %v2125 = vadd.f32 %v1772, %v2124
      %v2126 = vpop.f32.mrf.mxu0
      %v2127 = vadd.f32 %v1774, %v2126
      %v2128 = vpop.f32.mrf.mxu0
      %v2129 = vadd.f32 %v1776, %v2128
      %2130 = vmatprep.mubr.bf16.mxu0 %v1044
      %2131 = vmatmul.mubr.bf16.gmra.mxu0 %v1043
      %v2132 = vpop.f32.mrf.mxu0
      %v2133 = vadd.f32 %v1780, %v2132
      %v2134 = vpop.f32.mrf.mxu0
      %v2135 = vadd.f32 %v1782, %v2134
      %v2136 = vpop.f32.mrf.mxu0
      %v2137 = vadd.f32 %v1784, %v2136
      %v2138 = vpop.f32.mrf.mxu0
      %v2139 = vadd.f32 %v1786, %v2138
      %2140 = vmatprep.mubr.bf16.mxu0 %v1048
      %2141 = vmatmul.mubr.bf16.gmra.mxu0 %v1047
      %v2142 = vpop.f32.mrf.mxu0
      %v2143 = vadd.f32 %v1790, %v2142
      %v2144 = vpop.f32.mrf.mxu0
      %v2145 = vadd.f32 %v1792, %v2144
      %v2146 = vpop.f32.mrf.mxu0
      %v2147 = vadd.f32 %v1794, %v2146
      %v2148 = vpop.f32.mrf.mxu0
      %v2149 = vadd.f32 %v1796, %v2148
      %2150 = vdwg.mxu0
      %v2151 = vmax.f32 %v1833, 0.0
      %v2152 = vmax.f32 %v1835, 0.0
      %v2153 = vmax.f32 %v1837, 0.0
      %v2154 = vmax.f32 %v1839, 0.0
      %v2155 = vmax.f32 %v1843, 0.0
      %v2156 = vmax.f32 %v1845, 0.0
      %v2157 = vmax.f32 %v1847, 0.0
      %v2158 = vmax.f32 %v1849, 0.0
      %v2159 = vmax.f32 %v1853, 0.0
      %v2160 = vmax.f32 %v1855, 0.0
      %v2161 = vmax.f32 %v1857, 0.0
      %v2162 = vmax.f32 %v1859, 0.0
      %v2163 = vmax.f32 %v1863, 0.0
      %v2164 = vmax.f32 %v1865, 0.0
      %v2165 = vmax.f32 %v1867, 0.0
      %v2166 = vmax.f32 %v1869, 0.0
      %v2167 = vmax.f32 %v1873, 0.0
      %v2168 = vmax.f32 %v1875, 0.0
      %v2169 = vmax.f32 %v1877, 0.0
      %v2170 = vmax.f32 %v1879, 0.0
      %v2171 = vmax.f32 %v1883, 0.0
      %v2172 = vmax.f32 %v1885, 0.0
      %v2173 = vmax.f32 %v1887, 0.0
      %v2174 = vmax.f32 %v1889, 0.0
      %v2175 = vmax.f32 %v1893, 0.0
      %v2176 = vmax.f32 %v1895, 0.0
      %v2177 = vmax.f32 %v1897, 0.0
      %v2178 = vmax.f32 %v1899, 0.0
      %v2179 = vmax.f32 %v1903, 0.0
      %v2180 = vmax.f32 %v1905, 0.0
      %v2181 = vmax.f32 %v1907, 0.0
      %v2182 = vmax.f32 %v1909, 0.0
      %v2183 = vmax.f32 %v1913, 0.0
      %v2184 = vmax.f32 %v1915, 0.0
      %v2185 = vmax.f32 %v1917, 0.0
      %v2186 = vmax.f32 %v1919, 0.0
      %v2187 = vmax.f32 %v1923, 0.0
      %v2188 = vmax.f32 %v1925, 0.0
      %v2189 = vmax.f32 %v1927, 0.0
      %v2190 = vmax.f32 %v1929, 0.0
      %v2191 = vmax.f32 %v1933, 0.0
      %v2192 = vmax.f32 %v1935, 0.0
      %v2193 = vmax.f32 %v1937, 0.0
      %v2194 = vmax.f32 %v1939, 0.0
      %v2195 = vmax.f32 %v1943, 0.0
      %v2196 = vmax.f32 %v1945, 0.0
      %v2197 = vmax.f32 %v1947, 0.0
      %v2198 = vmax.f32 %v1949, 0.0
      %v2199 = vmax.f32 %v1953, 0.0
      %v2200 = vmax.f32 %v1955, 0.0
      %v2201 = vmax.f32 %v1957, 0.0
      %v2202 = vmax.f32 %v1959, 0.0
      %v2203 = vmax.f32 %v1963, 0.0
      %v2204 = vmax.f32 %v1965, 0.0
      %v2205 = vmax.f32 %v1967, 0.0
      %v2206 = vmax.f32 %v1969, 0.0
      %v2207 = vmax.f32 %v1973, 0.0
      %v2208 = vmax.f32 %v1975, 0.0
      %v2209 = vmax.f32 %v1977, 0.0
      %v2210 = vmax.f32 %v1979, 0.0
      %v2211 = vmax.f32 %v1983, 0.0
      %v2212 = vmax.f32 %v1985, 0.0
      %v2213 = vmax.f32 %v1987, 0.0
      %v2214 = vmax.f32 %v1989, 0.0
      %v2215 = vmax.f32 %v1993, 0.0
      %v2216 = vmax.f32 %v1995, 0.0
      %v2217 = vmax.f32 %v1997, 0.0
      %v2218 = vmax.f32 %v1999, 0.0
      %v2219 = vmax.f32 %v2003, 0.0
      %v2220 = vmax.f32 %v2005, 0.0
      %v2221 = vmax.f32 %v2007, 0.0
      %v2222 = vmax.f32 %v2009, 0.0
      %v2223 = vmax.f32 %v2013, 0.0
      %v2224 = vmax.f32 %v2015, 0.0
      %v2225 = vmax.f32 %v2017, 0.0
      %v2226 = vmax.f32 %v2019, 0.0
      %v2227 = vmax.f32 %v2023, 0.0
      %v2228 = vmax.f32 %v2025, 0.0
      %v2229 = vmax.f32 %v2027, 0.0
      %v2230 = vmax.f32 %v2029, 0.0
      %v2231 = vmax.f32 %v2033, 0.0
      %v2232 = vmax.f32 %v2035, 0.0
      %v2233 = vmax.f32 %v2037, 0.0
      %v2234 = vmax.f32 %v2039, 0.0
      %v2235 = vmax.f32 %v2043, 0.0
      %v2236 = vmax.f32 %v2045, 0.0
      %v2237 = vmax.f32 %v2047, 0.0
      %v2238 = vmax.f32 %v2049, 0.0
      %v2239 = vmax.f32 %v2053, 0.0
      %v2240 = vmax.f32 %v2055, 0.0
      %v2241 = vmax.f32 %v2057, 0.0
      %v2242 = vmax.f32 %v2059, 0.0
      %v2243 = vmax.f32 %v2063, 0.0
      %v2244 = vmax.f32 %v2065, 0.0
      %v2245 = vmax.f32 %v2067, 0.0
      %v2246 = vmax.f32 %v2069, 0.0
      %v2247 = vmax.f32 %v2073, 0.0
      %v2248 = vmax.f32 %v2075, 0.0
      %v2249 = vmax.f32 %v2077, 0.0
      %v2250 = vmax.f32 %v2079, 0.0
      %v2251 = vmax.f32 %v2083, 0.0
      %v2252 = vmax.f32 %v2085, 0.0
      %v2253 = vmax.f32 %v2087, 0.0
      %v2254 = vmax.f32 %v2089, 0.0
      %v2255 = vmax.f32 %v2093, 0.0
      %v2256 = vmax.f32 %v2095, 0.0
      %v2257 = vmax.f32 %v2097, 0.0
      %v2258 = vmax.f32 %v2099, 0.0
      %v2259 = vmax.f32 %v2103, 0.0
      %v2260 = vmax.f32 %v2105, 0.0
      %v2261 = vmax.f32 %v2107, 0.0
      %v2262 = vmax.f32 %v2109, 0.0
      %v2263 = vmax.f32 %v2113, 0.0
      %v2264 = vmax.f32 %v2115, 0.0
      %v2265 = vmax.f32 %v2117, 0.0
      %v2266 = vmax.f32 %v2119, 0.0
      %v2267 = vmax.f32 %v2123, 0.0
      %v2268 = vmax.f32 %v2125, 0.0
      %v2269 = vmax.f32 %v2127, 0.0
      %v2270 = vmax.f32 %v2129, 0.0
      %v2271 = vmax.f32 %v2133, 0.0
      %v2272 = vmax.f32 %v2135, 0.0
      %v2273 = vmax.f32 %v2137, 0.0
      %v2274 = vmax.f32 %v2139, 0.0
      %v2275 = vmax.f32 %v2143, 0.0
      %v2276 = vmax.f32 %v2145, 0.0
      %v2277 = vmax.f32 %v2147, 0.0
      %v2278 = vmax.f32 %v2149, 0.0
      %v2279 = vpack.c.bf16 %v2153, %v2151
      %v2280 = vpack.c.bf16 %v2154, %v2152
      %v2281 = vpack.c.bf16 %v2157, %v2155
      %v2282 = vpack.c.bf16 %v2158, %v2156
      %v2283 = vpack.c.bf16 %v2161, %v2159
      %v2284 = vpack.c.bf16 %v2162, %v2160
      %v2285 = vpack.c.bf16 %v2165, %v2163
      %v2286 = vpack.c.bf16 %v2166, %v2164
      %v2287 = vpack.c.bf16 %v2169, %v2167
      %v2288 = vpack.c.bf16 %v2170, %v2168
      %v2289 = vpack.c.bf16 %v2173, %v2171
      %v2290 = vpack.c.bf16 %v2174, %v2172
      %v2291 = vpack.c.bf16 %v2177, %v2175
      %v2292 = vpack.c.bf16 %v2178, %v2176
      %v2293 = vpack.c.bf16 %v2181, %v2179
      %v2294 = vpack.c.bf16 %v2182, %v2180
      %v2295 = vpack.c.bf16 %v2185, %v2183
      %v2296 = vpack.c.bf16 %v2186, %v2184
      %v2297 = vpack.c.bf16 %v2189, %v2187
      %v2298 = vpack.c.bf16 %v2190, %v2188
      %v2299 = vpack.c.bf16 %v2193, %v2191
      %v2300 = vpack.c.bf16 %v2194, %v2192
      %v2301 = vpack.c.bf16 %v2197, %v2195
      %v2302 = vpack.c.bf16 %v2198, %v2196
      %v2303 = vpack.c.bf16 %v2201, %v2199
      %v2304 = vpack.c.bf16 %v2202, %v2200
      %v2305 = vpack.c.bf16 %v2205, %v2203
      %v2306 = vpack.c.bf16 %v2206, %v2204
      %v2307 = vpack.c.bf16 %v2209, %v2207
      %v2308 = vpack.c.bf16 %v2210, %v2208
      %v2309 = vpack.c.bf16 %v2213, %v2211
      %v2310 = vpack.c.bf16 %v2214, %v2212
      %v2311 = vpack.c.bf16 %v2217, %v2215
      %v2312 = vpack.c.bf16 %v2218, %v2216
      %v2313 = vpack.c.bf16 %v2221, %v2219
      %v2314 = vpack.c.bf16 %v2222, %v2220
      %v2315 = vpack.c.bf16 %v2225, %v2223
      %v2316 = vpack.c.bf16 %v2226, %v2224
      %v2317 = vpack.c.bf16 %v2229, %v2227
      %v2318 = vpack.c.bf16 %v2230, %v2228
      %v2319 = vpack.c.bf16 %v2233, %v2231
      %v2320 = vpack.c.bf16 %v2234, %v2232
      %v2321 = vpack.c.bf16 %v2237, %v2235
      %v2322 = vpack.c.bf16 %v2238, %v2236
      %v2323 = vpack.c.bf16 %v2241, %v2239
      %v2324 = vpack.c.bf16 %v2242, %v2240
      %v2325 = vpack.c.bf16 %v2245, %v2243
      %v2326 = vpack.c.bf16 %v2246, %v2244
      %v2327 = vpack.c.bf16 %v2249, %v2247
      %v2328 = vpack.c.bf16 %v2250, %v2248
      %v2329 = vpack.c.bf16 %v2253, %v2251
      %v2330 = vpack.c.bf16 %v2254, %v2252
      %v2331 = vpack.c.bf16 %v2257, %v2255
      %v2332 = vpack.c.bf16 %v2258, %v2256
      %v2333 = vpack.c.bf16 %v2261, %v2259
      %v2334 = vpack.c.bf16 %v2262, %v2260
      %v2335 = vpack.c.bf16 %v2265, %v2263
      %v2336 = vpack.c.bf16 %v2266, %v2264
      %v2337 = vpack.c.bf16 %v2269, %v2267
      %v2338 = vpack.c.bf16 %v2270, %v2268
      %v2339 = vpack.c.bf16 %v2273, %v2271
      %v2340 = vpack.c.bf16 %v2274, %v2272
      %v2341 = vpack.c.bf16 %v2277, %v2275
      %v2342 = vpack.c.bf16 %v2278, %v2276
      %v2343 = vld [vmem:[%s5] sm:$0xf]
      %v2344 = vld [vmem:[%s5 + $0x4] sm:$0xf]
      %v2345 = vld [vmem:[%s5 + $0x8] sm:$0xf]
      %v2346 = vld [vmem:[%s5 + $0xc] sm:$0xf]
      %v2347 = vld [vmem:[%s5 + $0x10] sm:$0xf]
      %v2348 = vld [vmem:[%s5 + $0x14] sm:$0xf]
      %v2349 = vld [vmem:[%s5 + $0x18] sm:$0xf]
      %v2350 = vld [vmem:[%s5 + $0x1c] sm:$0xf]
      %v2351 = vld [vmem:[%s5 + $0x20] sm:$0xf]
      %v2352 = vld [vmem:[%s5 + $0x24] sm:$0xf]
      %v2353 = vld [vmem:[%s5 + $0x28] sm:$0xf]
      %v2354 = vld [vmem:[%s5 + $0x2c] sm:$0xf]
      %v2355 = vld [vmem:[%s5 + $0x30] sm:$0xf]
      %v2356 = vld [vmem:[%s5 + $0x34] sm:$0xf]
      %v2357 = vld [vmem:[%s5 + $0x38] sm:$0xf]
      %v2358 = vld [vmem:[%s5 + $0x3c] sm:$0xf]
      %v2359 = vld [vmem:[%s5 + $0x40] sm:$0xf]
      %v2360 = vld [vmem:[%s5 + $0x44] sm:$0xf]
      %v2361 = vld [vmem:[%s5 + $0x48] sm:$0xf]
      %v2362 = vld [vmem:[%s5 + $0x4c] sm:$0xf]
      %v2363 = vld [vmem:[%s5 + $0x50] sm:$0xf]
      %v2364 = vld [vmem:[%s5 + $0x54] sm:$0xf]
      %v2365 = vld [vmem:[%s5 + $0x58] sm:$0xf]
      %v2366 = vld [vmem:[%s5 + $0x5c] sm:$0xf]
      %v2367 = vld [vmem:[%s5 + $0x60] sm:$0xf]
      %v2368 = vld [vmem:[%s5 + $0x64] sm:$0xf]
      %v2369 = vld [vmem:[%s5 + $0x68] sm:$0xf]
      %v2370 = vld [vmem:[%s5 + $0x6c] sm:$0xf]
      %v2371 = vld [vmem:[%s5 + $0x70] sm:$0xf]
      %v2372 = vld [vmem:[%s5 + $0x74] sm:$0xf]
      %v2373 = vld [vmem:[%s5 + $0x78] sm:$0xf]
      %v2374 = vld [vmem:[%s5 + $0x7c] sm:$0xf]
      %v2375 = vld [vmem:[%s6] sm:$0x1]
      %v2377 = vlaneseq
      %v2378 = vshrl.u32 %v2377, 7
      %v2379 = vsub.s32 0, %v2378
      %v2380 = vrot.slane %v2375, %v2379
      %v2414 = vunpack.c.l.b16 %v2343
      %v2415 = vunpack.c.l.b16 %v2344
      %v2416 = vunpack.c.l.b16 %v2345
      %v2417 = vunpack.c.l.b16 %v2346
      %v2418 = vunpack.c.l.b16 %v2347
      %v2419 = vunpack.c.l.b16 %v2348
      %v2420 = vunpack.c.l.b16 %v2349
      %v2421 = vunpack.c.l.b16 %v2350
      %v2422 = vunpack.c.l.b16 %v2351
      %v2423 = vunpack.c.l.b16 %v2352
      %v2424 = vunpack.c.l.b16 %v2353
      %v2425 = vunpack.c.l.b16 %v2354
      %v2426 = vunpack.c.l.b16 %v2355
      %v2427 = vunpack.c.l.b16 %v2356
      %v2428 = vunpack.c.l.b16 %v2357
      %v2429 = vunpack.c.l.b16 %v2358
      %v2430 = vunpack.c.l.b16 %v2359
      %v2431 = vunpack.c.l.b16 %v2360
      %v2432 = vunpack.c.l.b16 %v2361
      %v2433 = vunpack.c.l.b16 %v2362
      %v2434 = vunpack.c.l.b16 %v2363
      %v2435 = vunpack.c.l.b16 %v2364
      %v2436 = vunpack.c.l.b16 %v2365
      %v2437 = vunpack.c.l.b16 %v2366
      %v2438 = vunpack.c.l.b16 %v2367
      %v2439 = vunpack.c.l.b16 %v2368
      %v2440 = vunpack.c.l.b16 %v2369
      %v2441 = vunpack.c.l.b16 %v2370
      %v2442 = vunpack.c.l.b16 %v2371
      %v2443 = vunpack.c.l.b16 %v2372
      %v2444 = vunpack.c.l.b16 %v2373
      %v2445 = vunpack.c.l.b16 %v2374
      %v2446 = vpack.c.b16 %v2415, %v2414
      %v2447 = vpack.c.b16 %v2417, %v2416
      %v2448 = vpack.c.b16 %v2419, %v2418
      %v2449 = vpack.c.b16 %v2421, %v2420
      %v2450 = vpack.c.b16 %v2423, %v2422
      %v2451 = vpack.c.b16 %v2425, %v2424
      %v2452 = vpack.c.b16 %v2427, %v2426
      %v2453 = vpack.c.b16 %v2429, %v2428
      %v2454 = vpack.c.b16 %v2431, %v2430
      %v2455 = vpack.c.b16 %v2433, %v2432
      %v2456 = vpack.c.b16 %v2435, %v2434
      %v2457 = vpack.c.b16 %v2437, %v2436
      %v2458 = vpack.c.b16 %v2439, %v2438
      %v2459 = vpack.c.b16 %v2441, %v2440
      %v2460 = vpack.c.b16 %v2443, %v2442
      %v2461 = vpack.c.b16 %v2445, %v2444
      %2478 = vmatprep.subr.bf16.mxu0 0
      %2479 = vmatpush1.bf16.msra.mxu0 %v2453
      %2480 = vmatprep.subr.bf16.mxu0 0
      %2481 = vmatpush1.bf16.msra.mxu0 %v2452
      %2482 = vmatprep.subr.bf16.mxu0 0
      %2483 = vmatpush1.bf16.msra.mxu0 %v2451
      %2484 = vmatprep.subr.bf16.mxu0 0
      %2485 = vmatpush1.bf16.msra.mxu0 %v2450
      %2486 = vmatprep.subr.bf16.mxu0 0
      %2487 = vmatpush1.bf16.msra.mxu0 %v2449
      %2488 = vmatprep.subr.bf16.mxu0 0
      %2489 = vmatpush1.bf16.msra.mxu0 %v2448
      %2490 = vmatprep.subr.bf16.mxu0 0
      %2491 = vmatpush1.bf16.msra.mxu0 %v2447
      %2492 = vmatprep.subr.bf16.mxu0 0
      %2493 = vmatpush1.bf16.msra.mxu0 %v2446
      %2494 = vmatprep.subr.bf16.mxu0 0
      %2495 = vmatpush2.bf16.msra.mxu0 %v2461
      %2496 = vmatprep.subr.bf16.mxu0 0
      %2497 = vmatpush2.bf16.msra.mxu0 %v2460
      %2498 = vmatprep.subr.bf16.mxu0 0
      %2499 = vmatpush2.bf16.msra.mxu0 %v2459
      %2500 = vmatprep.subr.bf16.mxu0 0
      %2501 = vmatpush2.bf16.msra.mxu0 %v2458
      %2502 = vmatprep.subr.bf16.mxu0 0
      %2503 = vmatpush2.bf16.msra.mxu0 %v2457
      %2504 = vmatprep.subr.bf16.mxu0 0
      %2505 = vmatpush2.bf16.msra.mxu0 %v2456
      %2506 = vmatprep.subr.bf16.mxu0 0
      %2507 = vmatpush2.bf16.msra.mxu0 %v2455
      %2508 = vmatprep.subr.bf16.mxu0 0
      %2509 = vmatpush2.bf16.msra.mxu0 %v2454
      %2510 = vmatprep.mubr.bf16.mxu0 %v2280
      %2511 = vmatmul.mubr.bf16.gmra.mxu0 %v2279
      %v2512 = vpop.f32.mrf.mxu0
      %v2513 = vadd.f32 %v2380, %v2512
      %v2514 = vpop.f32.mrf.mxu0
      %v2515 = vpop.f32.mrf.mxu0
      %v2516 = vadd.f32 %v2380, %v2515
      %v2517 = vpop.f32.mrf.mxu0
      %2518 = vmatprep.mubr.bf16.mxu0 %v2282
      %2519 = vmatmul.mubr.bf16.gmra.mxu0 %v2281
      %v2520 = vpop.f32.mrf.mxu0
      %v2521 = vadd.f32 %v2380, %v2520
      %v2522 = vpop.f32.mrf.mxu0
      %v2523 = vpop.f32.mrf.mxu0
      %v2524 = vadd.f32 %v2380, %v2523
      %v2525 = vpop.f32.mrf.mxu0
      %2526 = vmatprep.mubr.bf16.mxu0 %v2284
      %2527 = vmatmul.mubr.bf16.gmra.mxu0 %v2283
      %v2528 = vpop.f32.mrf.mxu0
      %v2529 = vadd.f32 %v2380, %v2528
      %v2530 = vpop.f32.mrf.mxu0
      %v2531 = vpop.f32.mrf.mxu0
      %v2532 = vadd.f32 %v2380, %v2531
      %v2533 = vpop.f32.mrf.mxu0
      %2534 = vmatprep.mubr.bf16.mxu0 %v2286
      %2535 = vmatmul.mubr.bf16.gmra.mxu0 %v2285
      %v2536 = vpop.f32.mrf.mxu0
      %v2537 = vadd.f32 %v2380, %v2536
      %v2538 = vpop.f32.mrf.mxu0
      %v2539 = vpop.f32.mrf.mxu0
      %v2540 = vadd.f32 %v2380, %v2539
      %v2541 = vpop.f32.mrf.mxu0
      %2542 = vmatprep.mubr.bf16.mxu0 %v2288
      %2543 = vmatmul.mubr.bf16.gmra.mxu0 %v2287
      %v2544 = vpop.f32.mrf.mxu0
      %v2545 = vadd.f32 %v2380, %v2544
      %v2546 = vpop.f32.mrf.mxu0
      %v2547 = vpop.f32.mrf.mxu0
      %v2548 = vadd.f32 %v2380, %v2547
      %v2549 = vpop.f32.mrf.mxu0
      %2550 = vmatprep.mubr.bf16.mxu0 %v2290
      %2551 = vmatmul.mubr.bf16.gmra.mxu0 %v2289
      %v2552 = vpop.f32.mrf.mxu0
      %v2553 = vadd.f32 %v2380, %v2552
      %v2554 = vpop.f32.mrf.mxu0
      %v2555 = vpop.f32.mrf.mxu0
      %v2556 = vadd.f32 %v2380, %v2555
      %v2557 = vpop.f32.mrf.mxu0
      %2558 = vmatprep.mubr.bf16.mxu0 %v2292
      %2559 = vmatmul.mubr.bf16.gmra.mxu0 %v2291
      %v2560 = vpop.f32.mrf.mxu0
      %v2561 = vadd.f32 %v2380, %v2560
      %v2562 = vpop.f32.mrf.mxu0
      %v2563 = vpop.f32.mrf.mxu0
      %v2564 = vadd.f32 %v2380, %v2563
      %v2565 = vpop.f32.mrf.mxu0
      %2566 = vmatprep.mubr.bf16.mxu0 %v2294
      %2567 = vmatmul.mubr.bf16.gmra.mxu0 %v2293
      %v2568 = vpop.f32.mrf.mxu0
      %v2569 = vadd.f32 %v2380, %v2568
      %v2570 = vpop.f32.mrf.mxu0
      %v2571 = vpop.f32.mrf.mxu0
      %v2572 = vadd.f32 %v2380, %v2571
      %v2573 = vpop.f32.mrf.mxu0
      %2574 = vmatprep.mubr.bf16.mxu0 %v2296
      %2575 = vmatmul.mubr.bf16.gmra.mxu0 %v2295
      %v2576 = vpop.f32.mrf.mxu0
      %v2577 = vadd.f32 %v2380, %v2576
      %v2578 = vpop.f32.mrf.mxu0
      %v2579 = vpop.f32.mrf.mxu0
      %v2580 = vadd.f32 %v2380, %v2579
      %v2581 = vpop.f32.mrf.mxu0
      %2582 = vmatprep.mubr.bf16.mxu0 %v2298
      %2583 = vmatmul.mubr.bf16.gmra.mxu0 %v2297
      %v2584 = vpop.f32.mrf.mxu0
      %v2585 = vadd.f32 %v2380, %v2584
      %v2586 = vpop.f32.mrf.mxu0
      %v2587 = vpop.f32.mrf.mxu0
      %v2588 = vadd.f32 %v2380, %v2587
      %v2589 = vpop.f32.mrf.mxu0
      %2590 = vmatprep.mubr.bf16.mxu0 %v2300
      %2591 = vmatmul.mubr.bf16.gmra.mxu0 %v2299
      %v2592 = vpop.f32.mrf.mxu0
      %v2593 = vadd.f32 %v2380, %v2592
      %v2594 = vpop.f32.mrf.mxu0
      %v2595 = vpop.f32.mrf.mxu0
      %v2596 = vadd.f32 %v2380, %v2595
      %v2597 = vpop.f32.mrf.mxu0
      %2598 = vmatprep.mubr.bf16.mxu0 %v2302
      %2599 = vmatmul.mubr.bf16.gmra.mxu0 %v2301
      %v2600 = vpop.f32.mrf.mxu0
      %v2601 = vadd.f32 %v2380, %v2600
      %v2602 = vpop.f32.mrf.mxu0
      %v2603 = vpop.f32.mrf.mxu0
      %v2604 = vadd.f32 %v2380, %v2603
      %v2605 = vpop.f32.mrf.mxu0
      %2606 = vmatprep.mubr.bf16.mxu0 %v2304
      %2607 = vmatmul.mubr.bf16.gmra.mxu0 %v2303
      %v2608 = vpop.f32.mrf.mxu0
      %v2609 = vadd.f32 %v2380, %v2608
      %v2610 = vpop.f32.mrf.mxu0
      %v2611 = vpop.f32.mrf.mxu0
      %v2612 = vadd.f32 %v2380, %v2611
      %v2613 = vpop.f32.mrf.mxu0
      %2614 = vmatprep.mubr.bf16.mxu0 %v2306
      %2615 = vmatmul.mubr.bf16.gmra.mxu0 %v2305
      %v2616 = vpop.f32.mrf.mxu0
      %v2617 = vadd.f32 %v2380, %v2616
      %v2618 = vpop.f32.mrf.mxu0
      %v2619 = vpop.f32.mrf.mxu0
      %v2620 = vadd.f32 %v2380, %v2619
      %v2621 = vpop.f32.mrf.mxu0
      %2622 = vmatprep.mubr.bf16.mxu0 %v2308
      %2623 = vmatmul.mubr.bf16.gmra.mxu0 %v2307
      %v2624 = vpop.f32.mrf.mxu0
      %v2625 = vadd.f32 %v2380, %v2624
      %v2626 = vpop.f32.mrf.mxu0
      %v2627 = vpop.f32.mrf.mxu0
      %v2628 = vadd.f32 %v2380, %v2627
      %v2629 = vpop.f32.mrf.mxu0
      %2630 = vmatprep.mubr.bf16.mxu0 %v2310
      %2631 = vmatmul.mubr.bf16.gmra.mxu0 %v2309
      %v2632 = vpop.f32.mrf.mxu0
      %v2633 = vadd.f32 %v2380, %v2632
      %v2634 = vpop.f32.mrf.mxu0
      %v2635 = vpop.f32.mrf.mxu0
      %v2636 = vadd.f32 %v2380, %v2635
      %v2637 = vpop.f32.mrf.mxu0
      %2638 = vmatprep.mubr.bf16.mxu0 %v2312
      %2639 = vmatmul.mubr.bf16.gmra.mxu0 %v2311
      %v2640 = vpop.f32.mrf.mxu0
      %v2641 = vadd.f32 %v2380, %v2640
      %v2642 = vpop.f32.mrf.mxu0
      %v2643 = vpop.f32.mrf.mxu0
      %v2644 = vadd.f32 %v2380, %v2643
      %v2645 = vpop.f32.mrf.mxu0
      %2646 = vmatprep.mubr.bf16.mxu0 %v2314
      %2647 = vmatmul.mubr.bf16.gmra.mxu0 %v2313
      %v2648 = vpop.f32.mrf.mxu0
      %v2649 = vadd.f32 %v2380, %v2648
      %v2650 = vpop.f32.mrf.mxu0
      %v2651 = vpop.f32.mrf.mxu0
      %v2652 = vadd.f32 %v2380, %v2651
      %v2653 = vpop.f32.mrf.mxu0
      %2654 = vmatprep.mubr.bf16.mxu0 %v2316
      %2655 = vmatmul.mubr.bf16.gmra.mxu0 %v2315
      %v2656 = vpop.f32.mrf.mxu0
      %v2657 = vadd.f32 %v2380, %v2656
      %v2658 = vpop.f32.mrf.mxu0
      %v2659 = vpop.f32.mrf.mxu0
      %v2660 = vadd.f32 %v2380, %v2659
      %v2661 = vpop.f32.mrf.mxu0
      %2662 = vmatprep.mubr.bf16.mxu0 %v2318
      %2663 = vmatmul.mubr.bf16.gmra.mxu0 %v2317
      %v2664 = vpop.f32.mrf.mxu0
      %v2665 = vadd.f32 %v2380, %v2664
      %v2666 = vpop.f32.mrf.mxu0
      %v2667 = vpop.f32.mrf.mxu0
      %v2668 = vadd.f32 %v2380, %v2667
      %v2669 = vpop.f32.mrf.mxu0
      %2670 = vmatprep.mubr.bf16.mxu0 %v2320
      %2671 = vmatmul.mubr.bf16.gmra.mxu0 %v2319
      %v2672 = vpop.f32.mrf.mxu0
      %v2673 = vadd.f32 %v2380, %v2672
      %v2674 = vpop.f32.mrf.mxu0
      %v2675 = vpop.f32.mrf.mxu0
      %v2676 = vadd.f32 %v2380, %v2675
      %v2677 = vpop.f32.mrf.mxu0
      %2678 = vmatprep.mubr.bf16.mxu0 %v2322
      %2679 = vmatmul.mubr.bf16.gmra.mxu0 %v2321
      %v2680 = vpop.f32.mrf.mxu0
      %v2681 = vadd.f32 %v2380, %v2680
      %v2682 = vpop.f32.mrf.mxu0
      %v2683 = vpop.f32.mrf.mxu0
      %v2684 = vadd.f32 %v2380, %v2683
      %v2685 = vpop.f32.mrf.mxu0
      %2686 = vmatprep.mubr.bf16.mxu0 %v2324
      %2687 = vmatmul.mubr.bf16.gmra.mxu0 %v2323
      %v2688 = vpop.f32.mrf.mxu0
      %v2689 = vadd.f32 %v2380, %v2688
      %v2690 = vpop.f32.mrf.mxu0
      %v2691 = vpop.f32.mrf.mxu0
      %v2692 = vadd.f32 %v2380, %v2691
      %v2693 = vpop.f32.mrf.mxu0
      %2694 = vmatprep.mubr.bf16.mxu0 %v2326
      %2695 = vmatmul.mubr.bf16.gmra.mxu0 %v2325
      %v2696 = vpop.f32.mrf.mxu0
      %v2697 = vadd.f32 %v2380, %v2696
      %v2698 = vpop.f32.mrf.mxu0
      %v2699 = vpop.f32.mrf.mxu0
      %v2700 = vadd.f32 %v2380, %v2699
      %v2701 = vpop.f32.mrf.mxu0
      %2702 = vmatprep.mubr.bf16.mxu0 %v2328
      %2703 = vmatmul.mubr.bf16.gmra.mxu0 %v2327
      %v2704 = vpop.f32.mrf.mxu0
      %v2705 = vadd.f32 %v2380, %v2704
      %v2706 = vpop.f32.mrf.mxu0
      %v2707 = vpop.f32.mrf.mxu0
      %v2708 = vadd.f32 %v2380, %v2707
      %v2709 = vpop.f32.mrf.mxu0
      %2710 = vmatprep.mubr.bf16.mxu0 %v2330
      %2711 = vmatmul.mubr.bf16.gmra.mxu0 %v2329
      %v2712 = vpop.f32.mrf.mxu0
      %v2713 = vadd.f32 %v2380, %v2712
      %v2714 = vpop.f32.mrf.mxu0
      %v2715 = vpop.f32.mrf.mxu0
      %v2716 = vadd.f32 %v2380, %v2715
      %v2717 = vpop.f32.mrf.mxu0
      %2718 = vmatprep.mubr.bf16.mxu0 %v2332
      %2719 = vmatmul.mubr.bf16.gmra.mxu0 %v2331
      %v2720 = vpop.f32.mrf.mxu0
      %v2721 = vadd.f32 %v2380, %v2720
      %v2722 = vpop.f32.mrf.mxu0
      %v2723 = vpop.f32.mrf.mxu0
      %v2724 = vadd.f32 %v2380, %v2723
      %v2725 = vpop.f32.mrf.mxu0
      %2726 = vmatprep.mubr.bf16.mxu0 %v2334
      %2727 = vmatmul.mubr.bf16.gmra.mxu0 %v2333
      %v2728 = vpop.f32.mrf.mxu0
      %v2729 = vadd.f32 %v2380, %v2728
      %v2730 = vpop.f32.mrf.mxu0
      %v2731 = vpop.f32.mrf.mxu0
      %v2732 = vadd.f32 %v2380, %v2731
      %v2733 = vpop.f32.mrf.mxu0
      %2734 = vmatprep.mubr.bf16.mxu0 %v2336
      %2735 = vmatmul.mubr.bf16.gmra.mxu0 %v2335
      %v2736 = vpop.f32.mrf.mxu0
      %v2737 = vadd.f32 %v2380, %v2736
      %v2738 = vpop.f32.mrf.mxu0
      %v2739 = vpop.f32.mrf.mxu0
      %v2740 = vadd.f32 %v2380, %v2739
      %v2741 = vpop.f32.mrf.mxu0
      %2742 = vmatprep.mubr.bf16.mxu0 %v2338
      %2743 = vmatmul.mubr.bf16.gmra.mxu0 %v2337
      %v2744 = vpop.f32.mrf.mxu0
      %v2745 = vadd.f32 %v2380, %v2744
      %v2746 = vpop.f32.mrf.mxu0
      %v2747 = vpop.f32.mrf.mxu0
      %v2748 = vadd.f32 %v2380, %v2747
      %v2749 = vpop.f32.mrf.mxu0
      %2750 = vmatprep.mubr.bf16.mxu0 %v2340
      %2751 = vmatmul.mubr.bf16.gmra.mxu0 %v2339
      %v2752 = vpop.f32.mrf.mxu0
      %v2753 = vadd.f32 %v2380, %v2752
      %v2754 = vpop.f32.mrf.mxu0
      %v2755 = vpop.f32.mrf.mxu0
      %v2756 = vadd.f32 %v2380, %v2755
      %v2757 = vpop.f32.mrf.mxu0
      %2758 = vmatprep.mubr.bf16.mxu0 %v2342
      %2759 = vmatmul.mubr.bf16.gmra.mxu0 %v2341
      %v2760 = vpop.f32.mrf.mxu0
      %v2761 = vadd.f32 %v2380, %v2760
      %v2762 = vpop.f32.mrf.mxu0
      %v2763 = vpop.f32.mrf.mxu0
      %v2764 = vadd.f32 %v2380, %v2763
      %v2765 = vpop.f32.mrf.mxu0
      %2766 = vdwg.mxu0
      %v2767 = vmax.f32 %v2513, 0.0
      %v2768 = vmax.f32 %v2516, 0.0
      %v2769 = vmax.f32 %v2521, 0.0
      %v2770 = vmax.f32 %v2524, 0.0
      %v2771 = vmax.f32 %v2529, 0.0
      %v2772 = vmax.f32 %v2532, 0.0
      %v2773 = vmax.f32 %v2537, 0.0
      %v2774 = vmax.f32 %v2540, 0.0
      %v2775 = vmax.f32 %v2545, 0.0
      %v2776 = vmax.f32 %v2548, 0.0
      %v2777 = vmax.f32 %v2553, 0.0
      %v2778 = vmax.f32 %v2556, 0.0
      %v2779 = vmax.f32 %v2561, 0.0
      %v2780 = vmax.f32 %v2564, 0.0
      %v2781 = vmax.f32 %v2569, 0.0
      %v2782 = vmax.f32 %v2572, 0.0
      %v2783 = vmax.f32 %v2577, 0.0
      %v2784 = vmax.f32 %v2580, 0.0
      %v2785 = vmax.f32 %v2585, 0.0
      %v2786 = vmax.f32 %v2588, 0.0
      %v2787 = vmax.f32 %v2593, 0.0
      %v2788 = vmax.f32 %v2596, 0.0
      %v2789 = vmax.f32 %v2601, 0.0
      %v2790 = vmax.f32 %v2604, 0.0
      %v2791 = vmax.f32 %v2609, 0.0
      %v2792 = vmax.f32 %v2612, 0.0
      %v2793 = vmax.f32 %v2617, 0.0
      %v2794 = vmax.f32 %v2620, 0.0
      %v2795 = vmax.f32 %v2625, 0.0
      %v2796 = vmax.f32 %v2628, 0.0
      %v2797 = vmax.f32 %v2633, 0.0
      %v2798 = vmax.f32 %v2636, 0.0
      %v2799 = vmax.f32 %v2641, 0.0
      %v2800 = vmax.f32 %v2644, 0.0
      %v2801 = vmax.f32 %v2649, 0.0
      %v2802 = vmax.f32 %v2652, 0.0
      %v2803 = vmax.f32 %v2657, 0.0
      %v2804 = vmax.f32 %v2660, 0.0
      %v2805 = vmax.f32 %v2665, 0.0
      %v2806 = vmax.f32 %v2668, 0.0
      %v2807 = vmax.f32 %v2673, 0.0
      %v2808 = vmax.f32 %v2676, 0.0
      %v2809 = vmax.f32 %v2681, 0.0
      %v2810 = vmax.f32 %v2684, 0.0
      %v2811 = vmax.f32 %v2689, 0.0
      %v2812 = vmax.f32 %v2692, 0.0
      %v2813 = vmax.f32 %v2697, 0.0
      %v2814 = vmax.f32 %v2700, 0.0
      %v2815 = vmax.f32 %v2705, 0.0
      %v2816 = vmax.f32 %v2708, 0.0
      %v2817 = vmax.f32 %v2713, 0.0
      %v2818 = vmax.f32 %v2716, 0.0
      %v2819 = vmax.f32 %v2721, 0.0
      %v2820 = vmax.f32 %v2724, 0.0
      %v2821 = vmax.f32 %v2729, 0.0
      %v2822 = vmax.f32 %v2732, 0.0
      %v2823 = vmax.f32 %v2737, 0.0
      %v2824 = vmax.f32 %v2740, 0.0
      %v2825 = vmax.f32 %v2745, 0.0
      %v2826 = vmax.f32 %v2748, 0.0
      %v2827 = vmax.f32 %v2753, 0.0
      %v2828 = vmax.f32 %v2756, 0.0
      %v2829 = vmax.f32 %v2761, 0.0
      %v2830 = vmax.f32 %v2764, 0.0
      %2895 = vrot.lane.b32.xlu0 %v601, 32
      %v2896 = vpop.permute.xlu0 %2895
      %2897 = vrot.lane.b32.xlu0 %v602, 32
      %v2898 = vpop.permute.xlu0 %2897
      %2899 = vrot.lane.b32.xlu0 %v603, 32
      %v2900 = vpop.permute.xlu0 %2899
      %2901 = vrot.lane.b32.xlu0 %v604, 32
      %v2902 = vpop.permute.xlu0 %2901
      %2903 = vrot.lane.b32.xlu0 %v605, 32
      %v2904 = vpop.permute.xlu0 %2903
      %2905 = vrot.lane.b32.xlu0 %v606, 32
      %v2906 = vpop.permute.xlu0 %2905
      %2907 = vrot.lane.b32.xlu0 %v607, 32
      %v2908 = vpop.permute.xlu0 %2907
      %2909 = vrot.lane.b32.xlu0 %v608, 32
      %v2910 = vpop.permute.xlu0 %2909
      %2911 = vrot.lane.b32.xlu0 %v609, 32
      %v2912 = vpop.permute.xlu0 %2911
      %2913 = vrot.lane.b32.xlu0 %v610, 32
      %v2914 = vpop.permute.xlu0 %2913
      %2915 = vrot.lane.b32.xlu0 %v611, 32
      %v2916 = vpop.permute.xlu0 %2915
      %2917 = vrot.lane.b32.xlu0 %v612, 32
      %v2918 = vpop.permute.xlu0 %2917
      %2919 = vrot.lane.b32.xlu0 %v613, 32
      %v2920 = vpop.permute.xlu0 %2919
      %2921 = vrot.lane.b32.xlu0 %v614, 32
      %v2922 = vpop.permute.xlu0 %2921
      %2923 = vrot.lane.b32.xlu0 %v615, 32
      %v2924 = vpop.permute.xlu0 %2923
      %2925 = vrot.lane.b32.xlu0 %v616, 32
      %v2926 = vpop.permute.xlu0 %2925
      %2927 = vrot.lane.b32.xlu0 %v617, 32
      %v2928 = vpop.permute.xlu0 %2927
      %2929 = vrot.lane.b32.xlu0 %v618, 32
      %v2930 = vpop.permute.xlu0 %2929
      %2931 = vrot.lane.b32.xlu0 %v619, 32
      %v2932 = vpop.permute.xlu0 %2931
      %2933 = vrot.lane.b32.xlu0 %v620, 32
      %v2934 = vpop.permute.xlu0 %2933
      %2935 = vrot.lane.b32.xlu0 %v621, 32
      %v2936 = vpop.permute.xlu0 %2935
      %2937 = vrot.lane.b32.xlu0 %v622, 32
      %v2938 = vpop.permute.xlu0 %2937
      %2939 = vrot.lane.b32.xlu0 %v623, 32
      %v2940 = vpop.permute.xlu0 %2939
      %2941 = vrot.lane.b32.xlu0 %v624, 32
      %v2942 = vpop.permute.xlu0 %2941
      %2943 = vrot.lane.b32.xlu0 %v625, 32
      %v2944 = vpop.permute.xlu0 %2943
      %2945 = vrot.lane.b32.xlu0 %v626, 32
      %v2946 = vpop.permute.xlu0 %2945
      %2947 = vrot.lane.b32.xlu0 %v627, 32
      %v2948 = vpop.permute.xlu0 %2947
      %2949 = vrot.lane.b32.xlu0 %v628, 32
      %v2950 = vpop.permute.xlu0 %2949
      %2951 = vrot.lane.b32.xlu0 %v629, 32
      %v2952 = vpop.permute.xlu0 %2951
      %2953 = vrot.lane.b32.xlu0 %v630, 32
      %v2954 = vpop.permute.xlu0 %2953
      %2955 = vrot.lane.b32.xlu0 %v631, 32
      %v2956 = vpop.permute.xlu0 %2955
      %2957 = vrot.lane.b32.xlu0 %v632, 32
      %v2958 = vpop.permute.xlu0 %2957
      %2959 = vrot.lane.b32.xlu0 %v633, 32
      %v2960 = vpop.permute.xlu0 %2959
      %2961 = vrot.lane.b32.xlu0 %v634, 32
      %v2962 = vpop.permute.xlu0 %2961
      %2963 = vrot.lane.b32.xlu0 %v635, 32
      %v2964 = vpop.permute.xlu0 %2963
      %2965 = vrot.lane.b32.xlu0 %v636, 32
      %v2966 = vpop.permute.xlu0 %2965
      %2967 = vrot.lane.b32.xlu0 %v637, 32
      %v2968 = vpop.permute.xlu0 %2967
      %2969 = vrot.lane.b32.xlu0 %v638, 32
      %v2970 = vpop.permute.xlu0 %2969
      %2971 = vrot.lane.b32.xlu0 %v639, 32
      %v2972 = vpop.permute.xlu0 %2971
      %2973 = vrot.lane.b32.xlu0 %v640, 32
      %v2974 = vpop.permute.xlu0 %2973
      %2975 = vrot.lane.b32.xlu0 %v641, 32
      %v2976 = vpop.permute.xlu0 %2975
      %2977 = vrot.lane.b32.xlu0 %v642, 32
      %v2978 = vpop.permute.xlu0 %2977
      %2979 = vrot.lane.b32.xlu0 %v643, 32
      %v2980 = vpop.permute.xlu0 %2979
      %2981 = vrot.lane.b32.xlu0 %v644, 32
      %v2982 = vpop.permute.xlu0 %2981
      %2983 = vrot.lane.b32.xlu0 %v645, 32
      %v2984 = vpop.permute.xlu0 %2983
      %2985 = vrot.lane.b32.xlu0 %v646, 32
      %v2986 = vpop.permute.xlu0 %2985
      %2987 = vrot.lane.b32.xlu0 %v647, 32
      %v2988 = vpop.permute.xlu0 %2987
      %2989 = vrot.lane.b32.xlu0 %v648, 32
      %v2990 = vpop.permute.xlu0 %2989
      %2991 = vrot.lane.b32.xlu0 %v649, 32
      %v2992 = vpop.permute.xlu0 %2991
      %2993 = vrot.lane.b32.xlu0 %v650, 32
      %v2994 = vpop.permute.xlu0 %2993
      %2995 = vrot.lane.b32.xlu0 %v651, 32
      %v2996 = vpop.permute.xlu0 %2995
      %2997 = vrot.lane.b32.xlu0 %v652, 32
      %v2998 = vpop.permute.xlu0 %2997
      %2999 = vrot.lane.b32.xlu0 %v653, 32
      %v3000 = vpop.permute.xlu0 %2999
      %3001 = vrot.lane.b32.xlu0 %v654, 32
      %v3002 = vpop.permute.xlu0 %3001
      %3003 = vrot.lane.b32.xlu0 %v655, 32
      %v3004 = vpop.permute.xlu0 %3003
      %3005 = vrot.lane.b32.xlu0 %v656, 32
      %v3006 = vpop.permute.xlu0 %3005
      %3007 = vrot.lane.b32.xlu0 %v657, 32
      %v3008 = vpop.permute.xlu0 %3007
      %3009 = vrot.lane.b32.xlu0 %v658, 32
      %v3010 = vpop.permute.xlu0 %3009
      %3011 = vrot.lane.b32.xlu0 %v659, 32
      %v3012 = vpop.permute.xlu0 %3011
      %3013 = vrot.lane.b32.xlu0 %v660, 32
      %v3014 = vpop.permute.xlu0 %3013
      %3015 = vrot.lane.b32.xlu0 %v661, 32
      %v3016 = vpop.permute.xlu0 %3015
      %3017 = vrot.lane.b32.xlu0 %v662, 32
      %v3018 = vpop.permute.xlu0 %3017
      %3019 = vrot.lane.b32.xlu0 %v663, 32
      %v3020 = vpop.permute.xlu0 %3019
      %3021 = vrot.lane.b32.xlu0 %v664, 32
      %v3022 = vpop.permute.xlu0 %3021
      %3151 = vrot.lane.b32.xlu0 %v2767, 35
      %v3152 = vpop.permute.xlu0 %3151
      %3153 = vrot.lane.b32.xlu0 %v2768, 35
      %v3154 = vpop.permute.xlu0 %3153
      %3155 = vrot.lane.b32.xlu0 %v2769, 35
      %v3156 = vpop.permute.xlu0 %3155
      %3157 = vrot.lane.b32.xlu0 %v2770, 35
      %v3158 = vpop.permute.xlu0 %3157
      %3159 = vrot.lane.b32.xlu0 %v2771, 35
      %v3160 = vpop.permute.xlu0 %3159
      %3161 = vrot.lane.b32.xlu0 %v2772, 35
      %v3162 = vpop.permute.xlu0 %3161
      %3163 = vrot.lane.b32.xlu0 %v2773, 35
      %v3164 = vpop.permute.xlu0 %3163
      %3165 = vrot.lane.b32.xlu0 %v2774, 35
      %v3166 = vpop.permute.xlu0 %3165
      %3167 = vrot.lane.b32.xlu0 %v2775, 35
      %v3168 = vpop.permute.xlu0 %3167
      %3169 = vrot.lane.b32.xlu0 %v2776, 35
      %v3170 = vpop.permute.xlu0 %3169
      %3171 = vrot.lane.b32.xlu0 %v2777, 35
      %v3172 = vpop.permute.xlu0 %3171
      %3173 = vrot.lane.b32.xlu0 %v2778, 35
      %v3174 = vpop.permute.xlu0 %3173
      %3175 = vrot.lane.b32.xlu0 %v2779, 35
      %v3176 = vpop.permute.xlu0 %3175
      %3177 = vrot.lane.b32.xlu0 %v2780, 35
      %v3178 = vpop.permute.xlu0 %3177
      %3179 = vrot.lane.b32.xlu0 %v2781, 35
      %v3180 = vpop.permute.xlu0 %3179
      %3181 = vrot.lane.b32.xlu0 %v2782, 35
      %v3182 = vpop.permute.xlu0 %3181
      %3183 = vrot.lane.b32.xlu0 %v2783, 35
      %v3184 = vpop.permute.xlu0 %3183
      %3185 = vrot.lane.b32.xlu0 %v2784, 35
      %v3186 = vpop.permute.xlu0 %3185
      %3187 = vrot.lane.b32.xlu0 %v2785, 35
      %v3188 = vpop.permute.xlu0 %3187
      %3189 = vrot.lane.b32.xlu0 %v2786, 35
      %v3190 = vpop.permute.xlu0 %3189
      %3191 = vrot.lane.b32.xlu0 %v2787, 35
      %v3192 = vpop.permute.xlu0 %3191
      %3193 = vrot.lane.b32.xlu0 %v2788, 35
      %v3194 = vpop.permute.xlu0 %3193
      %3195 = vrot.lane.b32.xlu0 %v2789, 35
      %v3196 = vpop.permute.xlu0 %3195
      %3197 = vrot.lane.b32.xlu0 %v2790, 35
      %v3198 = vpop.permute.xlu0 %3197
      %3199 = vrot.lane.b32.xlu0 %v2791, 35
      %v3200 = vpop.permute.xlu0 %3199
      %3201 = vrot.lane.b32.xlu0 %v2792, 35
      %v3202 = vpop.permute.xlu0 %3201
      %3203 = vrot.lane.b32.xlu0 %v2793, 35
      %v3204 = vpop.permute.xlu0 %3203
      %3205 = vrot.lane.b32.xlu0 %v2794, 35
      %v3206 = vpop.permute.xlu0 %3205
      %3207 = vrot.lane.b32.xlu0 %v2795, 35
      %v3208 = vpop.permute.xlu0 %3207
      %3209 = vrot.lane.b32.xlu0 %v2796, 35
      %v3210 = vpop.permute.xlu0 %3209
      %3211 = vrot.lane.b32.xlu0 %v2797, 35
      %v3212 = vpop.permute.xlu0 %3211
      %3213 = vrot.lane.b32.xlu0 %v2798, 35
      %v3214 = vpop.permute.xlu0 %3213
      %3215 = vrot.lane.b32.xlu0 %v2799, 35
      %v3216 = vpop.permute.xlu0 %3215
      %3217 = vrot.lane.b32.xlu0 %v2800, 35
      %v3218 = vpop.permute.xlu0 %3217
      %3219 = vrot.lane.b32.xlu0 %v2801, 35
      %v3220 = vpop.permute.xlu0 %3219
      %3221 = vrot.lane.b32.xlu0 %v2802, 35
      %v3222 = vpop.permute.xlu0 %3221
      %3223 = vrot.lane.b32.xlu0 %v2803, 35
      %v3224 = vpop.permute.xlu0 %3223
      %3225 = vrot.lane.b32.xlu0 %v2804, 35
      %v3226 = vpop.permute.xlu0 %3225
      %3227 = vrot.lane.b32.xlu0 %v2805, 35
      %v3228 = vpop.permute.xlu0 %3227
      %3229 = vrot.lane.b32.xlu0 %v2806, 35
      %v3230 = vpop.permute.xlu0 %3229
      %3231 = vrot.lane.b32.xlu0 %v2807, 35
      %v3232 = vpop.permute.xlu0 %3231
      %3233 = vrot.lane.b32.xlu0 %v2808, 35
      %v3234 = vpop.permute.xlu0 %3233
      %3235 = vrot.lane.b32.xlu0 %v2809, 35
      %v3236 = vpop.permute.xlu0 %3235
      %3237 = vrot.lane.b32.xlu0 %v2810, 35
      %v3238 = vpop.permute.xlu0 %3237
      %3239 = vrot.lane.b32.xlu0 %v2811, 35
      %v3240 = vpop.permute.xlu0 %3239
      %3241 = vrot.lane.b32.xlu0 %v2812, 35
      %v3242 = vpop.permute.xlu0 %3241
      %3243 = vrot.lane.b32.xlu0 %v2813, 35
      %v3244 = vpop.permute.xlu0 %3243
      %3245 = vrot.lane.b32.xlu0 %v2814, 35
      %v3246 = vpop.permute.xlu0 %3245
      %3247 = vrot.lane.b32.xlu0 %v2815, 35
      %v3248 = vpop.permute.xlu0 %3247
      %3249 = vrot.lane.b32.xlu0 %v2816, 35
      %v3250 = vpop.permute.xlu0 %3249
      %3251 = vrot.lane.b32.xlu0 %v2817, 35
      %v3252 = vpop.permute.xlu0 %3251
      %3253 = vrot.lane.b32.xlu0 %v2818, 35
      %v3254 = vpop.permute.xlu0 %3253
      %3255 = vrot.lane.b32.xlu0 %v2819, 35
      %v3256 = vpop.permute.xlu0 %3255
      %3257 = vrot.lane.b32.xlu0 %v2820, 35
      %v3258 = vpop.permute.xlu0 %3257
      %3259 = vrot.lane.b32.xlu0 %v2821, 35
      %v3260 = vpop.permute.xlu0 %3259
      %3261 = vrot.lane.b32.xlu0 %v2822, 35
      %v3262 = vpop.permute.xlu0 %3261
      %3263 = vrot.lane.b32.xlu0 %v2823, 35
      %v3264 = vpop.permute.xlu0 %3263
      %3265 = vrot.lane.b32.xlu0 %v2824, 35
      %v3266 = vpop.permute.xlu0 %3265
      %3267 = vrot.lane.b32.xlu0 %v2825, 35
      %v3268 = vpop.permute.xlu0 %3267
      %3269 = vrot.lane.b32.xlu0 %v2826, 35
      %v3270 = vpop.permute.xlu0 %3269
      %3271 = vrot.lane.b32.xlu0 %v2827, 35
      %v3272 = vpop.permute.xlu0 %3271
      %3273 = vrot.lane.b32.xlu0 %v2828, 35
      %v3274 = vpop.permute.xlu0 %3273
      %3275 = vrot.lane.b32.xlu0 %v2829, 35
      %v3276 = vpop.permute.xlu0 %3275
      %3277 = vrot.lane.b32.xlu0 %v2830, 35
      %v3278 = vpop.permute.xlu0 %3277
      %vm3343 = vcmask 261120
      %v3344 = vsel %vm3343, %v537, %v2896
      %v3345 = vsel %vm3343, %v538, %v2898
      %v3346 = vsel %vm3343, %v539, %v2900
      %v3347 = vsel %vm3343, %v540, %v2902
      %v3348 = vsel %vm3343, %v541, %v2904
      %v3349 = vsel %vm3343, %v542, %v2906
      %v3350 = vsel %vm3343, %v543, %v2908
      %v3351 = vsel %vm3343, %v544, %v2910
      %v3352 = vsel %vm3343, %v545, %v2912
      %v3353 = vsel %vm3343, %v546, %v2914
      %v3354 = vsel %vm3343, %v547, %v2916
      %v3355 = vsel %vm3343, %v548, %v2918
      %v3356 = vsel %vm3343, %v549, %v2920
      %v3357 = vsel %vm3343, %v550, %v2922
      %v3358 = vsel %vm3343, %v551, %v2924
      %v3359 = vsel %vm3343, %v552, %v2926
      %v3360 = vsel %vm3343, %v553, %v2928
      %v3361 = vsel %vm3343, %v554, %v2930
      %v3362 = vsel %vm3343, %v555, %v2932
      %v3363 = vsel %vm3343, %v556, %v2934
      %v3364 = vsel %vm3343, %v557, %v2936
      %v3365 = vsel %vm3343, %v558, %v2938
      %v3366 = vsel %vm3343, %v559, %v2940
      %v3367 = vsel %vm3343, %v560, %v2942
      %v3368 = vsel %vm3343, %v561, %v2944
      %v3369 = vsel %vm3343, %v562, %v2946
      %v3370 = vsel %vm3343, %v563, %v2948
      %v3371 = vsel %vm3343, %v564, %v2950
      %v3372 = vsel %vm3343, %v565, %v2952
      %v3373 = vsel %vm3343, %v566, %v2954
      %v3374 = vsel %vm3343, %v567, %v2956
      %v3375 = vsel %vm3343, %v568, %v2958
      %v3376 = vsel %vm3343, %v569, %v2960
      %v3377 = vsel %vm3343, %v570, %v2962
      %v3378 = vsel %vm3343, %v571, %v2964
      %v3379 = vsel %vm3343, %v572, %v2966
      %v3380 = vsel %vm3343, %v573, %v2968
      %v3381 = vsel %vm3343, %v574, %v2970
      %v3382 = vsel %vm3343, %v575, %v2972
      %v3383 = vsel %vm3343, %v576, %v2974
      %v3384 = vsel %vm3343, %v577, %v2976
      %v3385 = vsel %vm3343, %v578, %v2978
      %v3386 = vsel %vm3343, %v579, %v2980
      %v3387 = vsel %vm3343, %v580, %v2982
      %v3388 = vsel %vm3343, %v581, %v2984
      %v3389 = vsel %vm3343, %v582, %v2986
      %v3390 = vsel %vm3343, %v583, %v2988
      %v3391 = vsel %vm3343, %v584, %v2990
      %v3392 = vsel %vm3343, %v585, %v2992
      %v3393 = vsel %vm3343, %v586, %v2994
      %v3394 = vsel %vm3343, %v587, %v2996
      %v3395 = vsel %vm3343, %v588, %v2998
      %v3396 = vsel %vm3343, %v589, %v3000
      %v3397 = vsel %vm3343, %v590, %v3002
      %v3398 = vsel %vm3343, %v591, %v3004
      %v3399 = vsel %vm3343, %v592, %v3006
      %v3400 = vsel %vm3343, %v593, %v3008
      %v3401 = vsel %vm3343, %v594, %v3010
      %v3402 = vsel %vm3343, %v595, %v3012
      %v3403 = vsel %vm3343, %v596, %v3014
      %v3404 = vsel %vm3343, %v597, %v3016
      %v3405 = vsel %vm3343, %v598, %v3018
      %v3406 = vsel %vm3343, %v599, %v3020
      %v3407 = vsel %vm3343, %v600, %v3022
      %vm3408 = vcmask 285696
      %v3409 = vsel %vm3408, %v3344, %v3152
      %v3410 = vsel %vm3408, %v3345, %v3154
      %v3411 = vsel %vm3408, %v3346, %v3156
      %v3412 = vsel %vm3408, %v3347, %v3158
      %v3413 = vsel %vm3408, %v3348, %v3160
      %v3414 = vsel %vm3408, %v3349, %v3162
      %v3415 = vsel %vm3408, %v3350, %v3164
      %v3416 = vsel %vm3408, %v3351, %v3166
      %v3417 = vsel %vm3408, %v3352, %v3168
      %v3418 = vsel %vm3408, %v3353, %v3170
      %v3419 = vsel %vm3408, %v3354, %v3172
      %v3420 = vsel %vm3408, %v3355, %v3174
      %v3421 = vsel %vm3408, %v3356, %v3176
      %v3422 = vsel %vm3408, %v3357, %v3178
      %v3423 = vsel %vm3408, %v3358, %v3180
      %v3424 = vsel %vm3408, %v3359, %v3182
      %v3425 = vsel %vm3408, %v3360, %v3184
      %v3426 = vsel %vm3408, %v3361, %v3186
      %v3427 = vsel %vm3408, %v3362, %v3188
      %v3428 = vsel %vm3408, %v3363, %v3190
      %v3429 = vsel %vm3408, %v3364, %v3192
      %v3430 = vsel %vm3408, %v3365, %v3194
      %v3431 = vsel %vm3408, %v3366, %v3196
      %v3432 = vsel %vm3408, %v3367, %v3198
      %v3433 = vsel %vm3408, %v3368, %v3200
      %v3434 = vsel %vm3408, %v3369, %v3202
      %v3435 = vsel %vm3408, %v3370, %v3204
      %v3436 = vsel %vm3408, %v3371, %v3206
      %v3437 = vsel %vm3408, %v3372, %v3208
      %v3438 = vsel %vm3408, %v3373, %v3210
      %v3439 = vsel %vm3408, %v3374, %v3212
      %v3440 = vsel %vm3408, %v3375, %v3214
      %v3441 = vsel %vm3408, %v3376, %v3216
      %v3442 = vsel %vm3408, %v3377, %v3218
      %v3443 = vsel %vm3408, %v3378, %v3220
      %v3444 = vsel %vm3408, %v3379, %v3222
      %v3445 = vsel %vm3408, %v3380, %v3224
      %v3446 = vsel %vm3408, %v3381, %v3226
      %v3447 = vsel %vm3408, %v3382, %v3228
      %v3448 = vsel %vm3408, %v3383, %v3230
      %v3449 = vsel %vm3408, %v3384, %v3232
      %v3450 = vsel %vm3408, %v3385, %v3234
      %v3451 = vsel %vm3408, %v3386, %v3236
      %v3452 = vsel %vm3408, %v3387, %v3238
      %v3453 = vsel %vm3408, %v3388, %v3240
      %v3454 = vsel %vm3408, %v3389, %v3242
      %v3455 = vsel %vm3408, %v3390, %v3244
      %v3456 = vsel %vm3408, %v3391, %v3246
      %v3457 = vsel %vm3408, %v3392, %v3248
      %v3458 = vsel %vm3408, %v3393, %v3250
      %v3459 = vsel %vm3408, %v3394, %v3252
      %v3460 = vsel %vm3408, %v3395, %v3254
      %v3461 = vsel %vm3408, %v3396, %v3256
      %v3462 = vsel %vm3408, %v3397, %v3258
      %v3463 = vsel %vm3408, %v3398, %v3260
      %v3464 = vsel %vm3408, %v3399, %v3262
      %v3465 = vsel %vm3408, %v3400, %v3264
      %v3466 = vsel %vm3408, %v3401, %v3266
      %v3467 = vsel %vm3408, %v3402, %v3268
      %v3468 = vsel %vm3408, %v3403, %v3270
      %v3469 = vsel %vm3408, %v3404, %v3272
      %v3470 = vsel %vm3408, %v3405, %v3274
      %v3471 = vsel %vm3408, %v3406, %v3276
      %v3472 = vsel %vm3408, %v3407, %v3278
      %vm3473 = vcmask 809984
      %v3474 = vsel %vm3473, %v3409, 0.0
      %v3475 = vsel %vm3473, %v3410, 0.0
      %v3476 = vsel %vm3473, %v3411, 0.0
      %v3477 = vsel %vm3473, %v3412, 0.0
      %v3478 = vsel %vm3473, %v3413, 0.0
      %v3479 = vsel %vm3473, %v3414, 0.0
      %v3480 = vsel %vm3473, %v3415, 0.0
      %v3481 = vsel %vm3473, %v3416, 0.0
      %v3482 = vsel %vm3473, %v3417, 0.0
      %v3483 = vsel %vm3473, %v3418, 0.0
      %v3484 = vsel %vm3473, %v3419, 0.0
      %v3485 = vsel %vm3473, %v3420, 0.0
      %v3486 = vsel %vm3473, %v3421, 0.0
      %v3487 = vsel %vm3473, %v3422, 0.0
      %v3488 = vsel %vm3473, %v3423, 0.0
      %v3489 = vsel %vm3473, %v3424, 0.0
      %v3490 = vsel %vm3473, %v3425, 0.0
      %v3491 = vsel %vm3473, %v3426, 0.0
      %v3492 = vsel %vm3473, %v3427, 0.0
      %v3493 = vsel %vm3473, %v3428, 0.0
      %v3494 = vsel %vm3473, %v3429, 0.0
      %v3495 = vsel %vm3473, %v3430, 0.0
      %v3496 = vsel %vm3473, %v3431, 0.0
      %v3497 = vsel %vm3473, %v3432, 0.0
      %v3498 = vsel %vm3473, %v3433, 0.0
      %v3499 = vsel %vm3473, %v3434, 0.0
      %v3500 = vsel %vm3473, %v3435, 0.0
      %v3501 = vsel %vm3473, %v3436, 0.0
      %v3502 = vsel %vm3473, %v3437, 0.0
      %v3503 = vsel %vm3473, %v3438, 0.0
      %v3504 = vsel %vm3473, %v3439, 0.0
      %v3505 = vsel %vm3473, %v3440, 0.0
      %v3506 = vsel %vm3473, %v3441, 0.0
      %v3507 = vsel %vm3473, %v3442, 0.0
      %v3508 = vsel %vm3473, %v3443, 0.0
      %v3509 = vsel %vm3473, %v3444, 0.0
      %v3510 = vsel %vm3473, %v3445, 0.0
      %v3511 = vsel %vm3473, %v3446, 0.0
      %v3512 = vsel %vm3473, %v3447, 0.0
      %v3513 = vsel %vm3473, %v3448, 0.0
      %v3514 = vsel %vm3473, %v3449, 0.0
      %v3515 = vsel %vm3473, %v3450, 0.0
      %v3516 = vsel %vm3473, %v3451, 0.0
      %v3517 = vsel %vm3473, %v3452, 0.0
      %v3518 = vsel %vm3473, %v3453, 0.0
      %v3519 = vsel %vm3473, %v3454, 0.0
      %v3520 = vsel %vm3473, %v3455, 0.0
      %v3521 = vsel %vm3473, %v3456, 0.0
      %v3522 = vsel %vm3473, %v3457, 0.0
      %v3523 = vsel %vm3473, %v3458, 0.0
      %v3524 = vsel %vm3473, %v3459, 0.0
      %v3525 = vsel %vm3473, %v3460, 0.0
      %v3526 = vsel %vm3473, %v3461, 0.0
      %v3527 = vsel %vm3473, %v3462, 0.0
      %v3528 = vsel %vm3473, %v3463, 0.0
      %v3529 = vsel %vm3473, %v3464, 0.0
      %v3530 = vsel %vm3473, %v3465, 0.0
      %v3531 = vsel %vm3473, %v3466, 0.0
      %v3532 = vsel %vm3473, %v3467, 0.0
      %v3533 = vsel %vm3473, %v3468, 0.0
      %v3534 = vsel %vm3473, %v3469, 0.0
      %v3535 = vsel %vm3473, %v3470, 0.0
      %v3536 = vsel %vm3473, %v3471, 0.0
      %v3537 = vsel %vm3473, %v3472, 0.0
      %v3538 = vpack.c.bf16 %v3475, %v3474
      %v3539 = vpack.c.bf16 %v3477, %v3476
      %v3540 = vpack.c.bf16 %v3479, %v3478
      %v3541 = vpack.c.bf16 %v3481, %v3480
      %v3542 = vpack.c.bf16 %v3483, %v3482
      %v3543 = vpack.c.bf16 %v3485, %v3484
      %v3544 = vpack.c.bf16 %v3487, %v3486
      %v3545 = vpack.c.bf16 %v3489, %v3488
      %v3546 = vpack.c.bf16 %v3491, %v3490
      %v3547 = vpack.c.bf16 %v3493, %v3492
      %v3548 = vpack.c.bf16 %v3495, %v3494
      %v3549 = vpack.c.bf16 %v3497, %v3496
      %v3550 = vpack.c.bf16 %v3499, %v3498
      %v3551 = vpack.c.bf16 %v3501, %v3500
      %v3552 = vpack.c.bf16 %v3503, %v3502
      %v3553 = vpack.c.bf16 %v3505, %v3504
      %v3554 = vpack.c.bf16 %v3507, %v3506
      %v3555 = vpack.c.bf16 %v3509, %v3508
      %v3556 = vpack.c.bf16 %v3511, %v3510
      %v3557 = vpack.c.bf16 %v3513, %v3512
      %v3558 = vpack.c.bf16 %v3515, %v3514
      %v3559 = vpack.c.bf16 %v3517, %v3516
      %v3560 = vpack.c.bf16 %v3519, %v3518
      %v3561 = vpack.c.bf16 %v3521, %v3520
      %v3562 = vpack.c.bf16 %v3523, %v3522
      %v3563 = vpack.c.bf16 %v3525, %v3524
      %v3564 = vpack.c.bf16 %v3527, %v3526
      %v3565 = vpack.c.bf16 %v3529, %v3528
      %v3566 = vpack.c.bf16 %v3531, %v3530
      %v3567 = vpack.c.bf16 %v3533, %v3532
      %v3568 = vpack.c.bf16 %v3535, %v3534
      %v3569 = vpack.c.bf16 %v3537, %v3536
      %v3570 = vld [vmem:[%s7] sm:$0xf]
      %v3571 = vld [vmem:[%s7 + $0x4] sm:$0xf]
      %v3572 = vld [vmem:[%s7 + $0x8] sm:$0xf]
      %v3573 = vld [vmem:[%s7 + $0xc] sm:$0xf]
      %v3574 = vld [vmem:[%s7 + $0x10] sm:$0xf]
      %v3575 = vld [vmem:[%s7 + $0x14] sm:$0xf]
      %v3576 = vld [vmem:[%s7 + $0x18] sm:$0xf]
      %v3577 = vld [vmem:[%s7 + $0x1c] sm:$0xf]
      %v3578 = vld [vmem:[%s7 + $0x20] sm:$0xf]
      %v3579 = vld [vmem:[%s7 + $0x24] sm:$0xf]
      %v3580 = vld [vmem:[%s7 + $0x28] sm:$0xf]
      %v3581 = vld [vmem:[%s7 + $0x2c] sm:$0xf]
      %v3582 = vld [vmem:[%s7 + $0x30] sm:$0xf]
      %v3583 = vld [vmem:[%s7 + $0x34] sm:$0xf]
      %v3584 = vld [vmem:[%s7 + $0x38] sm:$0xf]
      %v3585 = vld [vmem:[%s7 + $0x3c] sm:$0xf]
      %v3586 = vld [vmem:[%s8] sm:$0x1]
      %v3588 = vlaneseq
      %v3589 = vshrl.u32 %v3588, 7
      %v3590 = vsub.s32 0, %v3589
      %v3591 = vrot.slane %v3586, %v3590
      %v3609 = vunpack.c.l.b16 %v3570
      %v3610 = vunpack.c.l.b16 %v3571
      %v3611 = vunpack.c.l.b16 %v3572
      %v3612 = vunpack.c.l.b16 %v3573
      %v3613 = vunpack.c.l.b16 %v3574
      %v3614 = vunpack.c.l.b16 %v3575
      %v3615 = vunpack.c.l.b16 %v3576
      %v3616 = vunpack.c.l.b16 %v3577
      %v3617 = vunpack.c.l.b16 %v3578
      %v3618 = vunpack.c.l.b16 %v3579
      %v3619 = vunpack.c.l.b16 %v3580
      %v3620 = vunpack.c.l.b16 %v3581
      %v3621 = vunpack.c.l.b16 %v3582
      %v3622 = vunpack.c.l.b16 %v3583
      %v3623 = vunpack.c.l.b16 %v3584
      %v3624 = vunpack.c.l.b16 %v3585
      %v3625 = vpack.c.b16 %v3610, %v3609
      %v3626 = vpack.c.b16 %v3612, %v3611
      %v3627 = vpack.c.b16 %v3614, %v3613
      %v3628 = vpack.c.b16 %v3616, %v3615
      %v3629 = vpack.c.b16 %v3618, %v3617
      %v3630 = vpack.c.b16 %v3620, %v3619
      %v3631 = vpack.c.b16 %v3622, %v3621
      %v3632 = vpack.c.b16 %v3624, %v3623
      %3641 = vmatprep.subr.bf16.mxu0 0
      %3642 = vmatpush1.bf16.msra.mxu0 %v3632
      %3643 = vmatprep.subr.bf16.mxu0 0
      %3644 = vmatpush1.bf16.msra.mxu0 %v3631
      %3645 = vmatprep.subr.bf16.mxu0 0
      %3646 = vmatpush1.bf16.msra.mxu0 %v3630
      %3647 = vmatprep.subr.bf16.mxu0 0
      %3648 = vmatpush1.bf16.msra.mxu0 %v3629
      %3649 = vmatprep.subr.bf16.mxu0 0
      %3650 = vmatpush1.bf16.msra.mxu0 %v3628
      %3651 = vmatprep.subr.bf16.mxu0 0
      %3652 = vmatpush1.bf16.msra.mxu0 %v3627
      %3653 = vmatprep.subr.bf16.mxu0 0
      %3654 = vmatpush1.bf16.msra.mxu0 %v3626
      %3655 = vmatprep.subr.bf16.mxu0 0
      %3656 = vmatpush1.bf16.msra.mxu0 %v3625
      %3657 = vmatprep.subr.bf16.mxu0 0
      %3658 = vmatpush2.bf16.msra.mxu0 0
      %3659 = vmatprep.subr.bf16.mxu0 0
      %3660 = vmatpush2.bf16.msra.mxu0 0
      %3661 = vmatprep.subr.bf16.mxu0 0
      %3662 = vmatpush2.bf16.msra.mxu0 0
      %3663 = vmatprep.subr.bf16.mxu0 0
      %3664 = vmatpush2.bf16.msra.mxu0 0
      %3665 = vmatprep.subr.bf16.mxu0 0
      %3666 = vmatpush2.bf16.msra.mxu0 0
      %3667 = vmatprep.subr.bf16.mxu0 0
      %3668 = vmatpush2.bf16.msra.mxu0 0
      %3669 = vmatprep.subr.bf16.mxu0 0
      %3670 = vmatpush2.bf16.msra.mxu0 0
      %3671 = vmatprep.subr.bf16.mxu0 0
      %3672 = vmatpush2.bf16.msra.mxu0 0
      %3673 = vmatprep.mubr.bf16.mxu0 0
      %3674 = vmatmul.mubr.bf16.gmra.mxu0 %v3538
      %v3675 = vpop.f32.mrf.mxu0
      %v3676 = vadd.f32 %v3591, %v3675
      %v3677 = vpop.f32.mrf.mxu0
      %v3678 = vpop.f32.mrf.mxu0
      %v3679 = vadd.f32 %v3591, %v3678
      %v3680 = vpop.f32.mrf.mxu0
      %3681 = vmatprep.mubr.bf16.mxu0 0
      %3682 = vmatmul.mubr.bf16.gmra.mxu0 %v3539
      %v3683 = vpop.f32.mrf.mxu0
      %v3684 = vadd.f32 %v3591, %v3683
      %v3685 = vpop.f32.mrf.mxu0
      %v3686 = vpop.f32.mrf.mxu0
      %v3687 = vadd.f32 %v3591, %v3686
      %v3688 = vpop.f32.mrf.mxu0
      %3689 = vmatprep.mubr.bf16.mxu0 0
      %3690 = vmatmul.mubr.bf16.gmra.mxu0 %v3540
      %v3691 = vpop.f32.mrf.mxu0
      %v3692 = vadd.f32 %v3591, %v3691
      %v3693 = vpop.f32.mrf.mxu0
      %v3694 = vpop.f32.mrf.mxu0
      %v3695 = vadd.f32 %v3591, %v3694
      %v3696 = vpop.f32.mrf.mxu0
      %3697 = vmatprep.mubr.bf16.mxu0 0
      %3698 = vmatmul.mubr.bf16.gmra.mxu0 %v3541
      %v3699 = vpop.f32.mrf.mxu0
      %v3700 = vadd.f32 %v3591, %v3699
      %v3701 = vpop.f32.mrf.mxu0
      %v3702 = vpop.f32.mrf.mxu0
      %v3703 = vadd.f32 %v3591, %v3702
      %v3704 = vpop.f32.mrf.mxu0
      %3705 = vmatprep.mubr.bf16.mxu0 0
      %3706 = vmatmul.mubr.bf16.gmra.mxu0 %v3542
      %v3707 = vpop.f32.mrf.mxu0
      %v3708 = vadd.f32 %v3591, %v3707
      %v3709 = vpop.f32.mrf.mxu0
      %v3710 = vpop.f32.mrf.mxu0
      %v3711 = vadd.f32 %v3591, %v3710
      %v3712 = vpop.f32.mrf.mxu0
      %3713 = vmatprep.mubr.bf16.mxu0 0
      %3714 = vmatmul.mubr.bf16.gmra.mxu0 %v3543
      %v3715 = vpop.f32.mrf.mxu0
      %v3716 = vadd.f32 %v3591, %v3715
      %v3717 = vpop.f32.mrf.mxu0
      %v3718 = vpop.f32.mrf.mxu0
      %v3719 = vadd.f32 %v3591, %v3718
      %v3720 = vpop.f32.mrf.mxu0
      %3721 = vmatprep.mubr.bf16.mxu0 0
      %3722 = vmatmul.mubr.bf16.gmra.mxu0 %v3544
      %v3723 = vpop.f32.mrf.mxu0
      %v3724 = vadd.f32 %v3591, %v3723
      %v3725 = vpop.f32.mrf.mxu0
      %v3726 = vpop.f32.mrf.mxu0
      %v3727 = vadd.f32 %v3591, %v3726
      %v3728 = vpop.f32.mrf.mxu0
      %3729 = vmatprep.mubr.bf16.mxu0 0
      %3730 = vmatmul.mubr.bf16.gmra.mxu0 %v3545
      %v3731 = vpop.f32.mrf.mxu0
      %v3732 = vadd.f32 %v3591, %v3731
      %v3733 = vpop.f32.mrf.mxu0
      %v3734 = vpop.f32.mrf.mxu0
      %v3735 = vadd.f32 %v3591, %v3734
      %v3736 = vpop.f32.mrf.mxu0
      %3737 = vmatprep.mubr.bf16.mxu0 0
      %3738 = vmatmul.mubr.bf16.gmra.mxu0 %v3546
      %v3739 = vpop.f32.mrf.mxu0
      %v3740 = vadd.f32 %v3591, %v3739
      %v3741 = vpop.f32.mrf.mxu0
      %v3742 = vpop.f32.mrf.mxu0
      %v3743 = vadd.f32 %v3591, %v3742
      %v3744 = vpop.f32.mrf.mxu0
      %3745 = vmatprep.mubr.bf16.mxu0 0
      %3746 = vmatmul.mubr.bf16.gmra.mxu0 %v3547
      %v3747 = vpop.f32.mrf.mxu0
      %v3748 = vadd.f32 %v3591, %v3747
      %v3749 = vpop.f32.mrf.mxu0
      %v3750 = vpop.f32.mrf.mxu0
      %v3751 = vadd.f32 %v3591, %v3750
      %v3752 = vpop.f32.mrf.mxu0
      %3753 = vmatprep.mubr.bf16.mxu0 0
      %3754 = vmatmul.mubr.bf16.gmra.mxu0 %v3548
      %v3755 = vpop.f32.mrf.mxu0
      %v3756 = vadd.f32 %v3591, %v3755
      %v3757 = vpop.f32.mrf.mxu0
      %v3758 = vpop.f32.mrf.mxu0
      %v3759 = vadd.f32 %v3591, %v3758
      %v3760 = vpop.f32.mrf.mxu0
      %3761 = vmatprep.mubr.bf16.mxu0 0
      %3762 = vmatmul.mubr.bf16.gmra.mxu0 %v3549
      %v3763 = vpop.f32.mrf.mxu0
      %v3764 = vadd.f32 %v3591, %v3763
      %v3765 = vpop.f32.mrf.mxu0
      %v3766 = vpop.f32.mrf.mxu0
      %v3767 = vadd.f32 %v3591, %v3766
      %v3768 = vpop.f32.mrf.mxu0
      %3769 = vmatprep.mubr.bf16.mxu0 0
      %3770 = vmatmul.mubr.bf16.gmra.mxu0 %v3550
      %v3771 = vpop.f32.mrf.mxu0
      %v3772 = vadd.f32 %v3591, %v3771
      %v3773 = vpop.f32.mrf.mxu0
      %v3774 = vpop.f32.mrf.mxu0
      %v3775 = vadd.f32 %v3591, %v3774
      %v3776 = vpop.f32.mrf.mxu0
      %3777 = vmatprep.mubr.bf16.mxu0 0
      %3778 = vmatmul.mubr.bf16.gmra.mxu0 %v3551
      %v3779 = vpop.f32.mrf.mxu0
      %v3780 = vadd.f32 %v3591, %v3779
      %v3781 = vpop.f32.mrf.mxu0
      %v3782 = vpop.f32.mrf.mxu0
      %v3783 = vadd.f32 %v3591, %v3782
      %v3784 = vpop.f32.mrf.mxu0
      %3785 = vmatprep.mubr.bf16.mxu0 0
      %3786 = vmatmul.mubr.bf16.gmra.mxu0 %v3552
      %v3787 = vpop.f32.mrf.mxu0
      %v3788 = vadd.f32 %v3591, %v3787
      %v3789 = vpop.f32.mrf.mxu0
      %v3790 = vpop.f32.mrf.mxu0
      %v3791 = vadd.f32 %v3591, %v3790
      %v3792 = vpop.f32.mrf.mxu0
      %3793 = vmatprep.mubr.bf16.mxu0 0
      %3794 = vmatmul.mubr.bf16.gmra.mxu0 %v3553
      %v3795 = vpop.f32.mrf.mxu0
      %v3796 = vadd.f32 %v3591, %v3795
      %v3797 = vpop.f32.mrf.mxu0
      %v3798 = vpop.f32.mrf.mxu0
      %v3799 = vadd.f32 %v3591, %v3798
      %v3800 = vpop.f32.mrf.mxu0
      %3801 = vmatprep.mubr.bf16.mxu0 0
      %3802 = vmatmul.mubr.bf16.gmra.mxu0 %v3554
      %v3803 = vpop.f32.mrf.mxu0
      %v3804 = vadd.f32 %v3591, %v3803
      %v3805 = vpop.f32.mrf.mxu0
      %v3806 = vpop.f32.mrf.mxu0
      %v3807 = vadd.f32 %v3591, %v3806
      %v3808 = vpop.f32.mrf.mxu0
      %3809 = vmatprep.mubr.bf16.mxu0 0
      %3810 = vmatmul.mubr.bf16.gmra.mxu0 %v3555
      %v3811 = vpop.f32.mrf.mxu0
      %v3812 = vadd.f32 %v3591, %v3811
      %v3813 = vpop.f32.mrf.mxu0
      %v3814 = vpop.f32.mrf.mxu0
      %v3815 = vadd.f32 %v3591, %v3814
      %v3816 = vpop.f32.mrf.mxu0
      %3817 = vmatprep.mubr.bf16.mxu0 0
      %3818 = vmatmul.mubr.bf16.gmra.mxu0 %v3556
      %v3819 = vpop.f32.mrf.mxu0
      %v3820 = vadd.f32 %v3591, %v3819
      %v3821 = vpop.f32.mrf.mxu0
      %v3822 = vpop.f32.mrf.mxu0
      %v3823 = vadd.f32 %v3591, %v3822
      %v3824 = vpop.f32.mrf.mxu0
      %3825 = vmatprep.mubr.bf16.mxu0 0
      %3826 = vmatmul.mubr.bf16.gmra.mxu0 %v3557
      %v3827 = vpop.f32.mrf.mxu0
      %v3828 = vadd.f32 %v3591, %v3827
      %v3829 = vpop.f32.mrf.mxu0
      %v3830 = vpop.f32.mrf.mxu0
      %v3831 = vadd.f32 %v3591, %v3830
      %v3832 = vpop.f32.mrf.mxu0
      %3833 = vmatprep.mubr.bf16.mxu0 0
      %3834 = vmatmul.mubr.bf16.gmra.mxu0 %v3558
      %v3835 = vpop.f32.mrf.mxu0
      %v3836 = vadd.f32 %v3591, %v3835
      %v3837 = vpop.f32.mrf.mxu0
      %v3838 = vpop.f32.mrf.mxu0
      %v3839 = vadd.f32 %v3591, %v3838
      %v3840 = vpop.f32.mrf.mxu0
      %3841 = vmatprep.mubr.bf16.mxu0 0
      %3842 = vmatmul.mubr.bf16.gmra.mxu0 %v3559
      %v3843 = vpop.f32.mrf.mxu0
      %v3844 = vadd.f32 %v3591, %v3843
      %v3845 = vpop.f32.mrf.mxu0
      %v3846 = vpop.f32.mrf.mxu0
      %v3847 = vadd.f32 %v3591, %v3846
      %v3848 = vpop.f32.mrf.mxu0
      %3849 = vmatprep.mubr.bf16.mxu0 0
      %3850 = vmatmul.mubr.bf16.gmra.mxu0 %v3560
      %v3851 = vpop.f32.mrf.mxu0
      %v3852 = vadd.f32 %v3591, %v3851
      %v3853 = vpop.f32.mrf.mxu0
      %v3854 = vpop.f32.mrf.mxu0
      %v3855 = vadd.f32 %v3591, %v3854
      %v3856 = vpop.f32.mrf.mxu0
      %3857 = vmatprep.mubr.bf16.mxu0 0
      %3858 = vmatmul.mubr.bf16.gmra.mxu0 %v3561
      %v3859 = vpop.f32.mrf.mxu0
      %v3860 = vadd.f32 %v3591, %v3859
      %v3861 = vpop.f32.mrf.mxu0
      %v3862 = vpop.f32.mrf.mxu0
      %v3863 = vadd.f32 %v3591, %v3862
      %v3864 = vpop.f32.mrf.mxu0
      %3865 = vmatprep.mubr.bf16.mxu0 0
      %3866 = vmatmul.mubr.bf16.gmra.mxu0 %v3562
      %v3867 = vpop.f32.mrf.mxu0
      %v3868 = vadd.f32 %v3591, %v3867
      %v3869 = vpop.f32.mrf.mxu0
      %v3870 = vpop.f32.mrf.mxu0
      %v3871 = vadd.f32 %v3591, %v3870
      %v3872 = vpop.f32.mrf.mxu0
      %3873 = vmatprep.mubr.bf16.mxu0 0
      %3874 = vmatmul.mubr.bf16.gmra.mxu0 %v3563
      %v3875 = vpop.f32.mrf.mxu0
      %v3876 = vadd.f32 %v3591, %v3875
      %v3877 = vpop.f32.mrf.mxu0
      %v3878 = vpop.f32.mrf.mxu0
      %v3879 = vadd.f32 %v3591, %v3878
      %v3880 = vpop.f32.mrf.mxu0
      %3881 = vmatprep.mubr.bf16.mxu0 0
      %3882 = vmatmul.mubr.bf16.gmra.mxu0 %v3564
      %v3883 = vpop.f32.mrf.mxu0
      %v3884 = vadd.f32 %v3591, %v3883
      %v3885 = vpop.f32.mrf.mxu0
      %v3886 = vpop.f32.mrf.mxu0
      %v3887 = vadd.f32 %v3591, %v3886
      %v3888 = vpop.f32.mrf.mxu0
      %3889 = vmatprep.mubr.bf16.mxu0 0
      %3890 = vmatmul.mubr.bf16.gmra.mxu0 %v3565
      %v3891 = vpop.f32.mrf.mxu0
      %v3892 = vadd.f32 %v3591, %v3891
      %v3893 = vpop.f32.mrf.mxu0
      %v3894 = vpop.f32.mrf.mxu0
      %v3895 = vadd.f32 %v3591, %v3894
      %v3896 = vpop.f32.mrf.mxu0
      %3897 = vmatprep.mubr.bf16.mxu0 0
      %3898 = vmatmul.mubr.bf16.gmra.mxu0 %v3566
      %v3899 = vpop.f32.mrf.mxu0
      %v3900 = vadd.f32 %v3591, %v3899
      %v3901 = vpop.f32.mrf.mxu0
      %v3902 = vpop.f32.mrf.mxu0
      %v3903 = vadd.f32 %v3591, %v3902
      %v3904 = vpop.f32.mrf.mxu0
      %3905 = vmatprep.mubr.bf16.mxu0 0
      %3906 = vmatmul.mubr.bf16.gmra.mxu0 %v3567
      %v3907 = vpop.f32.mrf.mxu0
      %v3908 = vadd.f32 %v3591, %v3907
      %v3909 = vpop.f32.mrf.mxu0
      %v3910 = vpop.f32.mrf.mxu0
      %v3911 = vadd.f32 %v3591, %v3910
      %v3912 = vpop.f32.mrf.mxu0
      %3913 = vmatprep.mubr.bf16.mxu0 0
      %3914 = vmatmul.mubr.bf16.gmra.mxu0 %v3568
      %v3915 = vpop.f32.mrf.mxu0
      %v3916 = vadd.f32 %v3591, %v3915
      %v3917 = vpop.f32.mrf.mxu0
      %v3918 = vpop.f32.mrf.mxu0
      %v3919 = vadd.f32 %v3591, %v3918
      %v3920 = vpop.f32.mrf.mxu0
      %3921 = vmatprep.mubr.bf16.mxu0 0
      %3922 = vmatmul.mubr.bf16.gmra.mxu0 %v3569
      %v3923 = vpop.f32.mrf.mxu0
      %v3924 = vadd.f32 %v3591, %v3923
      %v3925 = vpop.f32.mrf.mxu0
      %v3926 = vpop.f32.mrf.mxu0
      %v3927 = vadd.f32 %v3591, %v3926
      %v3928 = vpop.f32.mrf.mxu0
      %3929 = vdwg.mxu0
      %v3930 = vld [vmem:[%s517] sm:$0x1]
      %v3932 = vlaneseq
      %v3933 = vshrl.u32 %v3932, 7
      %v3934 = vsub.s32 0, %v3933
      %v3935 = vrot.slane %v3930, %v3934
      %v3937 = vadd.f32 %v3676, %v3935
      %v3938 = vadd.f32 %v3679, %v3935
      %v3939 = vadd.f32 %v3684, %v3935
      %v3940 = vadd.f32 %v3687, %v3935
      %v3941 = vadd.f32 %v3692, %v3935
      %v3942 = vadd.f32 %v3695, %v3935
      %v3943 = vadd.f32 %v3700, %v3935
      %v3944 = vadd.f32 %v3703, %v3935
      %v3945 = vadd.f32 %v3708, %v3935
      %v3946 = vadd.f32 %v3711, %v3935
      %v3947 = vadd.f32 %v3716, %v3935
      %v3948 = vadd.f32 %v3719, %v3935
      %v3949 = vadd.f32 %v3724, %v3935
      %v3950 = vadd.f32 %v3727, %v3935
      %v3951 = vadd.f32 %v3732, %v3935
      %v3952 = vadd.f32 %v3735, %v3935
      %v3953 = vadd.f32 %v3740, %v3935
      %v3954 = vadd.f32 %v3743, %v3935
      %v3955 = vadd.f32 %v3748, %v3935
      %v3956 = vadd.f32 %v3751, %v3935
      %v3957 = vadd.f32 %v3756, %v3935
      %v3958 = vadd.f32 %v3759, %v3935
      %v3959 = vadd.f32 %v3764, %v3935
      %v3960 = vadd.f32 %v3767, %v3935
      %v3961 = vadd.f32 %v3772, %v3935
      %v3962 = vadd.f32 %v3775, %v3935
      %v3963 = vadd.f32 %v3780, %v3935
      %v3964 = vadd.f32 %v3783, %v3935
      %v3965 = vadd.f32 %v3788, %v3935
      %v3966 = vadd.f32 %v3791, %v3935
      %v3967 = vadd.f32 %v3796, %v3935
      %v3968 = vadd.f32 %v3799, %v3935
      %v3969 = vadd.f32 %v3804, %v3935
      %v3970 = vadd.f32 %v3807, %v3935
      %v3971 = vadd.f32 %v3812, %v3935
      %v3972 = vadd.f32 %v3815, %v3935
      %v3973 = vadd.f32 %v3820, %v3935
      %v3974 = vadd.f32 %v3823, %v3935
      %v3975 = vadd.f32 %v3828, %v3935
      %v3976 = vadd.f32 %v3831, %v3935
      %v3977 = vadd.f32 %v3836, %v3935
      %v3978 = vadd.f32 %v3839, %v3935
      %v3979 = vadd.f32 %v3844, %v3935
      %v3980 = vadd.f32 %v3847, %v3935
      %v3981 = vadd.f32 %v3852, %v3935
      %v3982 = vadd.f32 %v3855, %v3935
      %v3983 = vadd.f32 %v3860, %v3935
      %v3984 = vadd.f32 %v3863, %v3935
      %v3985 = vadd.f32 %v3868, %v3935
      %v3986 = vadd.f32 %v3871, %v3935
      %v3987 = vadd.f32 %v3876, %v3935
      %v3988 = vadd.f32 %v3879, %v3935
      %v3989 = vadd.f32 %v3884, %v3935
      %v3990 = vadd.f32 %v3887, %v3935
      %v3991 = vadd.f32 %v3892, %v3935
      %v3992 = vadd.f32 %v3895, %v3935
      %v3993 = vadd.f32 %v3900, %v3935
      %v3994 = vadd.f32 %v3903, %v3935
      %v3995 = vadd.f32 %v3908, %v3935
      %v3996 = vadd.f32 %v3911, %v3935
      %v3997 = vadd.f32 %v3916, %v3935
      %v3998 = vadd.f32 %v3919, %v3935
      %v3999 = vadd.f32 %v3924, %v3935
      %v4000 = vadd.f32 %v3927, %v3935
      %v4001 = vpack.c.bf16 %v3938, %v3937
      %v4002 = vpack.c.bf16 %v3940, %v3939
      %v4003 = vpack.c.bf16 %v3942, %v3941
      %v4004 = vpack.c.bf16 %v3944, %v3943
      %v4005 = vpack.c.bf16 %v3946, %v3945
      %v4006 = vpack.c.bf16 %v3948, %v3947
      %v4007 = vpack.c.bf16 %v3950, %v3949
      %v4008 = vpack.c.bf16 %v3952, %v3951
      %v4009 = vpack.c.bf16 %v3954, %v3953
      %v4010 = vpack.c.bf16 %v3956, %v3955
      %v4011 = vpack.c.bf16 %v3958, %v3957
      %v4012 = vpack.c.bf16 %v3960, %v3959
      %v4013 = vpack.c.bf16 %v3962, %v3961
      %v4014 = vpack.c.bf16 %v3964, %v3963
      %v4015 = vpack.c.bf16 %v3966, %v3965
      %v4016 = vpack.c.bf16 %v3968, %v3967
      %v4017 = vpack.c.bf16 %v3970, %v3969
      %v4018 = vpack.c.bf16 %v3972, %v3971
      %v4019 = vpack.c.bf16 %v3974, %v3973
      %v4020 = vpack.c.bf16 %v3976, %v3975
      %v4021 = vpack.c.bf16 %v3978, %v3977
      %v4022 = vpack.c.bf16 %v3980, %v3979
      %v4023 = vpack.c.bf16 %v3982, %v3981
      %v4024 = vpack.c.bf16 %v3984, %v3983
      %v4025 = vpack.c.bf16 %v3986, %v3985
      %v4026 = vpack.c.bf16 %v3988, %v3987
      %v4027 = vpack.c.bf16 %v3990, %v3989
      %v4028 = vpack.c.bf16 %v3992, %v3991
      %v4029 = vpack.c.bf16 %v3994, %v3993
      %v4030 = vpack.c.bf16 %v3996, %v3995
      %v4031 = vpack.c.bf16 %v3998, %v3997
      %v4032 = vpack.c.bf16 %v4000, %v3999
      %v4065 = vunpack.c.l.b16 %v4001
      %v4066 = vunpack.c.h.b16 %v4001
      %v4067 = vunpack.c.l.b16 %v4002
      %v4068 = vunpack.c.h.b16 %v4002
      %v4069 = vunpack.c.l.b16 %v4003
      %v4070 = vunpack.c.h.b16 %v4003
      %v4071 = vunpack.c.l.b16 %v4004
      %v4072 = vunpack.c.h.b16 %v4004
      %v4073 = vunpack.c.l.b16 %v4005
      %v4074 = vunpack.c.h.b16 %v4005
      %v4075 = vunpack.c.l.b16 %v4006
      %v4076 = vunpack.c.h.b16 %v4006
      %v4077 = vunpack.c.l.b16 %v4007
      %v4078 = vunpack.c.h.b16 %v4007
      %v4079 = vunpack.c.l.b16 %v4008
      %v4080 = vunpack.c.h.b16 %v4008
      %v4081 = vunpack.c.l.b16 %v4009
      %v4082 = vunpack.c.h.b16 %v4009
      %v4083 = vunpack.c.l.b16 %v4010
      %v4084 = vunpack.c.h.b16 %v4010
      %v4085 = vunpack.c.l.b16 %v4011
      %v4086 = vunpack.c.h.b16 %v4011
      %v4087 = vunpack.c.l.b16 %v4012
      %v4088 = vunpack.c.h.b16 %v4012
      %v4089 = vunpack.c.l.b16 %v4013
      %v4090 = vunpack.c.h.b16 %v4013
      %v4091 = vunpack.c.l.b16 %v4014
      %v4092 = vunpack.c.h.b16 %v4014
      %v4093 = vunpack.c.l.b16 %v4015
      %v4094 = vunpack.c.h.b16 %v4015
      %v4095 = vunpack.c.l.b16 %v4016
      %v4096 = vunpack.c.h.b16 %v4016
      %v4097 = vunpack.c.l.b16 %v4017
      %v4098 = vunpack.c.h.b16 %v4017
      %v4099 = vunpack.c.l.b16 %v4018
      %v4100 = vunpack.c.h.b16 %v4018
      %v4101 = vunpack.c.l.b16 %v4019
      %v4102 = vunpack.c.h.b16 %v4019
      %v4103 = vunpack.c.l.b16 %v4020
      %v4104 = vunpack.c.h.b16 %v4020
      %v4105 = vunpack.c.l.b16 %v4021
      %v4106 = vunpack.c.h.b16 %v4021
      %v4107 = vunpack.c.l.b16 %v4022
      %v4108 = vunpack.c.h.b16 %v4022
      %v4109 = vunpack.c.l.b16 %v4023
      %v4110 = vunpack.c.h.b16 %v4023
      %v4111 = vunpack.c.l.b16 %v4024
      %v4112 = vunpack.c.h.b16 %v4024
      %v4113 = vunpack.c.l.b16 %v4025
      %v4114 = vunpack.c.h.b16 %v4025
      %v4115 = vunpack.c.l.b16 %v4026
      %v4116 = vunpack.c.h.b16 %v4026
      %v4117 = vunpack.c.l.b16 %v4027
      %v4118 = vunpack.c.h.b16 %v4027
      %v4119 = vunpack.c.l.b16 %v4028
      %v4120 = vunpack.c.h.b16 %v4028
      %v4121 = vunpack.c.l.b16 %v4029
      %v4122 = vunpack.c.h.b16 %v4029
      %v4123 = vunpack.c.l.b16 %v4030
      %v4124 = vunpack.c.h.b16 %v4030
      %v4125 = vunpack.c.l.b16 %v4031
      %v4126 = vunpack.c.h.b16 %v4031
      %v4127 = vunpack.c.l.b16 %v4032
      %v4128 = vunpack.c.h.b16 %v4032
      %v4129 = vpack.c.b16 %v4065, %v4065
      %v4130 = vpack.c.b16 %v4066, %v4066
      %v4131 = vpack.c.b16 %v4067, %v4067
      %v4132 = vpack.c.b16 %v4068, %v4068
      %v4133 = vpack.c.b16 %v4069, %v4069
      %v4134 = vpack.c.b16 %v4070, %v4070
      %v4135 = vpack.c.b16 %v4071, %v4071
      %v4136 = vpack.c.b16 %v4072, %v4072
      %v4137 = vpack.c.b16 %v4073, %v4073
      %v4138 = vpack.c.b16 %v4074, %v4074
      %v4139 = vpack.c.b16 %v4075, %v4075
      %v4140 = vpack.c.b16 %v4076, %v4076
      %v4141 = vpack.c.b16 %v4077, %v4077
      %v4142 = vpack.c.b16 %v4078, %v4078
      %v4143 = vpack.c.b16 %v4079, %v4079
      %v4144 = vpack.c.b16 %v4080, %v4080
      %v4145 = vpack.c.b16 %v4081, %v4081
      %v4146 = vpack.c.b16 %v4082, %v4082
      %v4147 = vpack.c.b16 %v4083, %v4083
      %v4148 = vpack.c.b16 %v4084, %v4084
      %v4149 = vpack.c.b16 %v4085, %v4085
      %v4150 = vpack.c.b16 %v4086, %v4086
      %v4151 = vpack.c.b16 %v4087, %v4087
      %v4152 = vpack.c.b16 %v4088, %v4088
      %v4153 = vpack.c.b16 %v4089, %v4089
      %v4154 = vpack.c.b16 %v4090, %v4090
      %v4155 = vpack.c.b16 %v4091, %v4091
      %v4156 = vpack.c.b16 %v4092, %v4092
      %v4157 = vpack.c.b16 %v4093, %v4093
      %v4158 = vpack.c.b16 %v4094, %v4094
      %v4159 = vpack.c.b16 %v4095, %v4095
      %v4160 = vpack.c.b16 %v4096, %v4096
      %v4161 = vpack.c.b16 %v4097, %v4097
      %v4162 = vpack.c.b16 %v4098, %v4098
      %v4163 = vpack.c.b16 %v4099, %v4099
      %v4164 = vpack.c.b16 %v4100, %v4100
      %v4165 = vpack.c.b16 %v4101, %v4101
      %v4166 = vpack.c.b16 %v4102, %v4102
      %v4167 = vpack.c.b16 %v4103, %v4103
      %v4168 = vpack.c.b16 %v4104, %v4104
      %v4169 = vpack.c.b16 %v4105, %v4105
      %v4170 = vpack.c.b16 %v4106, %v4106
      %v4171 = vpack.c.b16 %v4107, %v4107
      %v4172 = vpack.c.b16 %v4108, %v4108
      %v4173 = vpack.c.b16 %v4109, %v4109
      %v4174 = vpack.c.b16 %v4110, %v4110
      %v4175 = vpack.c.b16 %v4111, %v4111
      %v4176 = vpack.c.b16 %v4112, %v4112
      %v4177 = vpack.c.b16 %v4113, %v4113
      %v4178 = vpack.c.b16 %v4114, %v4114
      %v4179 = vpack.c.b16 %v4115, %v4115
      %v4180 = vpack.c.b16 %v4116, %v4116
      %v4181 = vpack.c.b16 %v4117, %v4117
      %v4182 = vpack.c.b16 %v4118, %v4118
      %v4183 = vpack.c.b16 %v4119, %v4119
      %v4184 = vpack.c.b16 %v4120, %v4120
      %v4185 = vpack.c.b16 %v4121, %v4121
      %v4186 = vpack.c.b16 %v4122, %v4122
      %v4187 = vpack.c.b16 %v4123, %v4123
      %v4188 = vpack.c.b16 %v4124, %v4124
      %v4189 = vpack.c.b16 %v4125, %v4125
      %v4190 = vpack.c.b16 %v4126, %v4126
      %v4191 = vpack.c.b16 %v4127, %v4127
      %v4192 = vpack.c.b16 %v4128, %v4128
      %4257 = vst [vmem:[%s526] sm:$0xf] %v4129
      %4258 = vst [vmem:[%s526 + $0x4] sm:$0xf] %v4130
      %4259 = vst [vmem:[%s526 + $0x8] sm:$0xf] %v4131
      %4260 = vst [vmem:[%s526 + $0xc] sm:$0xf] %v4132
      %4261 = vst [vmem:[%s526 + $0x10] sm:$0xf] %v4133
      %4262 = vst [vmem:[%s526 + $0x14] sm:$0xf] %v4134
      %4263 = vst [vmem:[%s526 + $0x18] sm:$0xf] %v4135
      %4264 = vst [vmem:[%s526 + $0x1c] sm:$0xf] %v4136
      %4265 = vst [vmem:[%s526 + $0x20] sm:$0xf] %v4137
      %4266 = vst [vmem:[%s526 + $0x24] sm:$0xf] %v4138
      %4267 = vst [vmem:[%s526 + $0x28] sm:$0xf] %v4139
      %4268 = vst [vmem:[%s526 + $0x2c] sm:$0xf] %v4140
      %4269 = vst [vmem:[%s526 + $0x30] sm:$0xf] %v4141
      %4270 = vst [vmem:[%s526 + $0x34] sm:$0xf] %v4142
      %4271 = vst [vmem:[%s526 + $0x38] sm:$0xf] %v4143
      %4272 = vst [vmem:[%s526 + $0x3c] sm:$0xf] %v4144
      %4273 = vst [vmem:[%s526 + $0x40] sm:$0xf] %v4145
      %4274 = vst [vmem:[%s526 + $0x44] sm:$0xf] %v4146
      %4275 = vst [vmem:[%s526 + $0x48] sm:$0xf] %v4147
      %4276 = vst [vmem:[%s526 + $0x4c] sm:$0xf] %v4148
      %4277 = vst [vmem:[%s526 + $0x50] sm:$0xf] %v4149
      %4278 = vst [vmem:[%s526 + $0x54] sm:$0xf] %v4150
      %4279 = vst [vmem:[%s526 + $0x58] sm:$0xf] %v4151
      %4280 = vst [vmem:[%s526 + $0x5c] sm:$0xf] %v4152
      %4281 = vst [vmem:[%s526 + $0x60] sm:$0xf] %v4153
      %4282 = vst [vmem:[%s526 + $0x64] sm:$0xf] %v4154
      %4283 = vst [vmem:[%s526 + $0x68] sm:$0xf] %v4155
      %4284 = vst [vmem:[%s526 + $0x6c] sm:$0xf] %v4156
      %4285 = vst [vmem:[%s526 + $0x70] sm:$0xf] %v4157
      %4286 = vst [vmem:[%s526 + $0x74] sm:$0xf] %v4158
      %4287 = vst [vmem:[%s526 + $0x78] sm:$0xf] %v4159
      %4288 = vst [vmem:[%s526 + $0x7c] sm:$0xf] %v4160
      %4289 = vst [vmem:[%s526 + $0x80] sm:$0xf] %v4161
      %4290 = vst [vmem:[%s526 + $0x84] sm:$0xf] %v4162
      %4291 = vst [vmem:[%s526 + $0x88] sm:$0xf] %v4163
      %4292 = vst [vmem:[%s526 + $0x8c] sm:$0xf] %v4164
      %4293 = vst [vmem:[%s526 + $0x90] sm:$0xf] %v4165
      %4294 = vst [vmem:[%s526 + $0x94] sm:$0xf] %v4166
      %4295 = vst [vmem:[%s526 + $0x98] sm:$0xf] %v4167
      %4296 = vst [vmem:[%s526 + $0x9c] sm:$0xf] %v4168
      %4297 = vst [vmem:[%s526 + $0xa0] sm:$0xf] %v4169
      %4298 = vst [vmem:[%s526 + $0xa4] sm:$0xf] %v4170
      %4299 = vst [vmem:[%s526 + $0xa8] sm:$0xf] %v4171
      %4300 = vst [vmem:[%s526 + $0xac] sm:$0xf] %v4172
      %4301 = vst [vmem:[%s526 + $0xb0] sm:$0xf] %v4173
      %4302 = vst [vmem:[%s526 + $0xb4] sm:$0xf] %v4174
      %4303 = vst [vmem:[%s526 + $0xb8] sm:$0xf] %v4175
      %4304 = vst [vmem:[%s526 + $0xbc] sm:$0xf] %v4176
      %4305 = vst [vmem:[%s526 + $0xc0] sm:$0xf] %v4177
      %4306 = vst [vmem:[%s526 + $0xc4] sm:$0xf] %v4178
      %4307 = vst [vmem:[%s526 + $0xc8] sm:$0xf] %v4179
      %4308 = vst [vmem:[%s526 + $0xcc] sm:$0xf] %v4180
      %4309 = vst [vmem:[%s526 + $0xd0] sm:$0xf] %v4181
      %4310 = vst [vmem:[%s526 + $0xd4] sm:$0xf] %v4182
      %4311 = vst [vmem:[%s526 + $0xd8] sm:$0xf] %v4183
      %4312 = vst [vmem:[%s526 + $0xdc] sm:$0xf] %v4184
      %4313 = vst [vmem:[%s526 + $0xe0] sm:$0xf] %v4185
      %4314 = vst [vmem:[%s526 + $0xe4] sm:$0xf] %v4186
      %4315 = vst [vmem:[%s526 + $0xe8] sm:$0xf] %v4187
      %4316 = vst [vmem:[%s526 + $0xec] sm:$0xf] %v4188
      %4317 = vst [vmem:[%s526 + $0xf0] sm:$0xf] %v4189
      %4318 = vst [vmem:[%s526 + $0xf4] sm:$0xf] %v4190
      %4319 = vst [vmem:[%s526 + $0xf8] sm:$0xf] %v4191
      %4320 = vst [vmem:[%s526 + $0xfc] sm:$0xf] %v4192
      %vm4321 = vcmask 523264
      %v4322 = vsel %vm4321, %v3937, 0.0
      %v4323 = vsel %vm4321, %v3938, 0.0
      %v4324 = vadd.f32 %v4322, %v4323
      %v4325 = vsel %vm4321, %v3939, 0.0
      %v4326 = vadd.f32 %v4324, %v4325
      %v4327 = vsel %vm4321, %v3940, 0.0
      %v4328 = vadd.f32 %v4326, %v4327
      %v4329 = vsel %vm4321, %v3941, 0.0
      %v4330 = vadd.f32 %v4328, %v4329
      %v4331 = vsel %vm4321, %v3942, 0.0
      %v4332 = vadd.f32 %v4330, %v4331
      %v4333 = vsel %vm4321, %v3943, 0.0
      %v4334 = vadd.f32 %v4332, %v4333
      %v4335 = vsel %vm4321, %v3944, 0.0
      %v4336 = vadd.f32 %v4334, %v4335
      %v4337 = vsel %vm4321, %v3945, 0.0
      %v4338 = vadd.f32 %v4336, %v4337
      %v4339 = vsel %vm4321, %v3946, 0.0
      %v4340 = vadd.f32 %v4338, %v4339
      %v4341 = vsel %vm4321, %v3947, 0.0
      %v4342 = vadd.f32 %v4340, %v4341
      %v4343 = vsel %vm4321, %v3948, 0.0
      %v4344 = vadd.f32 %v4342, %v4343
      %v4345 = vsel %vm4321, %v3949, 0.0
      %v4346 = vadd.f32 %v4344, %v4345
      %v4347 = vsel %vm4321, %v3950, 0.0
      %v4348 = vadd.f32 %v4346, %v4347
      %v4349 = vsel %vm4321, %v3951, 0.0
      %v4350 = vadd.f32 %v4348, %v4349
      %v4351 = vsel %vm4321, %v3952, 0.0
      %v4352 = vadd.f32 %v4350, %v4351
      %v4353 = vsel %vm4321, %v3953, 0.0
      %v4354 = vadd.f32 %v4352, %v4353
      %v4355 = vsel %vm4321, %v3954, 0.0
      %v4356 = vadd.f32 %v4354, %v4355
      %v4357 = vsel %vm4321, %v3955, 0.0
      %v4358 = vadd.f32 %v4356, %v4357
      %v4359 = vsel %vm4321, %v3956, 0.0
      %v4360 = vadd.f32 %v4358, %v4359
      %v4361 = vsel %vm4321, %v3957, 0.0
      %v4362 = vadd.f32 %v4360, %v4361
      %v4363 = vsel %vm4321, %v3958, 0.0
      %v4364 = vadd.f32 %v4362, %v4363
      %v4365 = vsel %vm4321, %v3959, 0.0
      %v4366 = vadd.f32 %v4364, %v4365
      %v4367 = vsel %vm4321, %v3960, 0.0
      %v4368 = vadd.f32 %v4366, %v4367
      %v4369 = vsel %vm4321, %v3961, 0.0
      %v4370 = vadd.f32 %v4368, %v4369
      %v4371 = vsel %vm4321, %v3962, 0.0
      %v4372 = vadd.f32 %v4370, %v4371
      %v4373 = vsel %vm4321, %v3963, 0.0
      %v4374 = vadd.f32 %v4372, %v4373
      %v4375 = vsel %vm4321, %v3964, 0.0
      %v4376 = vadd.f32 %v4374, %v4375
      %v4377 = vsel %vm4321, %v3965, 0.0
      %v4378 = vadd.f32 %v4376, %v4377
      %v4379 = vsel %vm4321, %v3966, 0.0
      %v4380 = vadd.f32 %v4378, %v4379
      %v4381 = vsel %vm4321, %v3967, 0.0
      %v4382 = vadd.f32 %v4380, %v4381
      %v4383 = vsel %vm4321, %v3968, 0.0
      %v4384 = vadd.f32 %v4382, %v4383
      %v4385 = vsel %vm4321, %v3969, 0.0
      %v4386 = vadd.f32 %v4384, %v4385
      %v4387 = vsel %vm4321, %v3970, 0.0
      %v4388 = vadd.f32 %v4386, %v4387
      %v4389 = vsel %vm4321, %v3971, 0.0
      %v4390 = vadd.f32 %v4388, %v4389
      %v4391 = vsel %vm4321, %v3972, 0.0
      %v4392 = vadd.f32 %v4390, %v4391
      %v4393 = vsel %vm4321, %v3973, 0.0
      %v4394 = vadd.f32 %v4392, %v4393
      %v4395 = vsel %vm4321, %v3974, 0.0
      %v4396 = vadd.f32 %v4394, %v4395
      %v4397 = vsel %vm4321, %v3975, 0.0
      %v4398 = vadd.f32 %v4396, %v4397
      %v4399 = vsel %vm4321, %v3976, 0.0
      %v4400 = vadd.f32 %v4398, %v4399
      %v4401 = vsel %vm4321, %v3977, 0.0
      %v4402 = vadd.f32 %v4400, %v4401
      %v4403 = vsel %vm4321, %v3978, 0.0
      %v4404 = vadd.f32 %v4402, %v4403
      %v4405 = vsel %vm4321, %v3979, 0.0
      %v4406 = vadd.f32 %v4404, %v4405
      %v4407 = vsel %vm4321, %v3980, 0.0
      %v4408 = vadd.f32 %v4406, %v4407
      %v4409 = vsel %vm4321, %v3981, 0.0
      %v4410 = vadd.f32 %v4408, %v4409
      %v4411 = vsel %vm4321, %v3982, 0.0
      %v4412 = vadd.f32 %v4410, %v4411
      %v4413 = vsel %vm4321, %v3983, 0.0
      %v4414 = vadd.f32 %v4412, %v4413
      %v4415 = vsel %vm4321, %v3984, 0.0
      %v4416 = vadd.f32 %v4414, %v4415
      %v4417 = vsel %vm4321, %v3985, 0.0
      %v4418 = vadd.f32 %v4416, %v4417
      %v4419 = vsel %vm4321, %v3986, 0.0
      %v4420 = vadd.f32 %v4418, %v4419
      %v4421 = vsel %vm4321, %v3987, 0.0
      %v4422 = vadd.f32 %v4420, %v4421
      %v4423 = vsel %vm4321, %v3988, 0.0
      %v4424 = vadd.f32 %v4422, %v4423
      %v4425 = vsel %vm4321, %v3989, 0.0
      %v4426 = vadd.f32 %v4424, %v4425
      %v4427 = vsel %vm4321, %v3990, 0.0
      %v4428 = vadd.f32 %v4426, %v4427
      %v4429 = vsel %vm4321, %v3991, 0.0
      %v4430 = vadd.f32 %v4428, %v4429
      %v4431 = vsel %vm4321, %v3992, 0.0
      %v4432 = vadd.f32 %v4430, %v4431
      %v4433 = vsel %vm4321, %v3993, 0.0
      %v4434 = vadd.f32 %v4432, %v4433
      %v4435 = vsel %vm4321, %v3994, 0.0
      %v4436 = vadd.f32 %v4434, %v4435
      %v4437 = vsel %vm4321, %v3995, 0.0
      %v4438 = vadd.f32 %v4436, %v4437
      %v4439 = vsel %vm4321, %v3996, 0.0
      %v4440 = vadd.f32 %v4438, %v4439
      %v4441 = vsel %vm4321, %v3997, 0.0
      %v4442 = vadd.f32 %v4440, %v4441
      %v4443 = vsel %vm4321, %v3998, 0.0
      %v4444 = vadd.f32 %v4442, %v4443
      %v4445 = vsel %vm4321, %v3999, 0.0
      %v4446 = vadd.f32 %v4444, %v4445
      %v4447 = vsel %vm4321, %v4000, 0.0
      %v4448 = vadd.f32 %v4446, %v4447
      %v4449 = vrot.slane %v4448, 4
      %v4450 = vadd.f32 %v4448, %v4449
      %v4451 = vrot.slane %v4450, 2
      %v4452 = vadd.f32 %v4450, %v4451
      %v4453 = vrot.slane %v4452, 1
      %v4454 = vadd.f32 %v4452, %v4453
      %v4455 = vmul.f32 %v3937, %v3937
      %v4456 = vmul.f32 %v3938, %v3938
      %v4457 = vmul.f32 %v3939, %v3939
      %v4458 = vmul.f32 %v3940, %v3940
      %v4459 = vmul.f32 %v3941, %v3941
      %v4460 = vmul.f32 %v3942, %v3942
      %v4461 = vmul.f32 %v3943, %v3943
      %v4462 = vmul.f32 %v3944, %v3944
      %v4463 = vmul.f32 %v3945, %v3945
      %v4464 = vmul.f32 %v3946, %v3946
      %v4465 = vmul.f32 %v3947, %v3947
      %v4466 = vmul.f32 %v3948, %v3948
      %v4467 = vmul.f32 %v3949, %v3949
      %v4468 = vmul.f32 %v3950, %v3950
      %v4469 = vmul.f32 %v3951, %v3951
      %v4470 = vmul.f32 %v3952, %v3952
      %v4471 = vmul.f32 %v3953, %v3953
      %v4472 = vmul.f32 %v3954, %v3954
      %v4473 = vmul.f32 %v3955, %v3955
      %v4474 = vmul.f32 %v3956, %v3956
      %v4475 = vmul.f32 %v3957, %v3957
      %v4476 = vmul.f32 %v3958, %v3958
      %v4477 = vmul.f32 %v3959, %v3959
      %v4478 = vmul.f32 %v3960, %v3960
      %v4479 = vmul.f32 %v3961, %v3961
      %v4480 = vmul.f32 %v3962, %v3962
      %v4481 = vmul.f32 %v3963, %v3963
      %v4482 = vmul.f32 %v3964, %v3964
      %v4483 = vmul.f32 %v3965, %v3965
      %v4484 = vmul.f32 %v3966, %v3966
      %v4485 = vmul.f32 %v3967, %v3967
      %v4486 = vmul.f32 %v3968, %v3968
      %v4487 = vmul.f32 %v3969, %v3969
      %v4488 = vmul.f32 %v3970, %v3970
      %v4489 = vmul.f32 %v3971, %v3971
      %v4490 = vmul.f32 %v3972, %v3972
      %v4491 = vmul.f32 %v3973, %v3973
      %v4492 = vmul.f32 %v3974, %v3974
      %v4493 = vmul.f32 %v3975, %v3975
      %v4494 = vmul.f32 %v3976, %v3976
      %v4495 = vmul.f32 %v3977, %v3977
      %v4496 = vmul.f32 %v3978, %v3978
      %v4497 = vmul.f32 %v3979, %v3979
      %v4498 = vmul.f32 %v3980, %v3980
      %v4499 = vmul.f32 %v3981, %v3981
      %v4500 = vmul.f32 %v3982, %v3982
      %v4501 = vmul.f32 %v3983, %v3983
      %v4502 = vmul.f32 %v3984, %v3984
      %v4503 = vmul.f32 %v3985, %v3985
      %v4504 = vmul.f32 %v3986, %v3986
      %v4505 = vmul.f32 %v3987, %v3987
      %v4506 = vmul.f32 %v3988, %v3988
      %v4507 = vmul.f32 %v3989, %v3989
      %v4508 = vmul.f32 %v3990, %v3990
      %v4509 = vmul.f32 %v3991, %v3991
      %v4510 = vmul.f32 %v3992, %v3992
      %v4511 = vmul.f32 %v3993, %v3993
      %v4512 = vmul.f32 %v3994, %v3994
      %v4513 = vmul.f32 %v3995, %v3995
      %v4514 = vmul.f32 %v3996, %v3996
      %v4515 = vmul.f32 %v3997, %v3997
      %v4516 = vmul.f32 %v3998, %v3998
      %v4517 = vmul.f32 %v3999, %v3999
      %v4518 = vmul.f32 %v4000, %v4000
      %v4519 = vsel %vm4321, %v4455, 0.0
      %v4520 = vsel %vm4321, %v4456, 0.0
      %v4521 = vadd.f32 %v4519, %v4520
      %v4522 = vsel %vm4321, %v4457, 0.0
      %v4523 = vadd.f32 %v4521, %v4522
      %v4524 = vsel %vm4321, %v4458, 0.0
      %v4525 = vadd.f32 %v4523, %v4524
      %v4526 = vsel %vm4321, %v4459, 0.0
      %v4527 = vadd.f32 %v4525, %v4526
      %v4528 = vsel %vm4321, %v4460, 0.0
      %v4529 = vadd.f32 %v4527, %v4528
      %v4530 = vsel %vm4321, %v4461, 0.0
      %v4531 = vadd.f32 %v4529, %v4530
      %v4532 = vsel %vm4321, %v4462, 0.0
      %v4533 = vadd.f32 %v4531, %v4532
      %v4534 = vsel %vm4321, %v4463, 0.0
      %v4535 = vadd.f32 %v4533, %v4534
      %v4536 = vsel %vm4321, %v4464, 0.0
      %v4537 = vadd.f32 %v4535, %v4536
      %v4538 = vsel %vm4321, %v4465, 0.0
      %v4539 = vadd.f32 %v4537, %v4538
      %v4540 = vsel %vm4321, %v4466, 0.0
      %v4541 = vadd.f32 %v4539, %v4540
      %v4542 = vsel %vm4321, %v4467, 0.0
      %v4543 = vadd.f32 %v4541, %v4542
      %v4544 = vsel %vm4321, %v4468, 0.0
      %v4545 = vadd.f32 %v4543, %v4544
      %v4546 = vsel %vm4321, %v4469, 0.0
      %v4547 = vadd.f32 %v4545, %v4546
      %v4548 = vsel %vm4321, %v4470, 0.0
      %v4549 = vadd.f32 %v4547, %v4548
      %v4550 = vsel %vm4321, %v4471, 0.0
      %v4551 = vadd.f32 %v4549, %v4550
      %v4552 = vsel %vm4321, %v4472, 0.0
      %v4553 = vadd.f32 %v4551, %v4552
      %v4554 = vsel %vm4321, %v4473, 0.0
      %v4555 = vadd.f32 %v4553, %v4554
      %v4556 = vsel %vm4321, %v4474, 0.0
      %v4557 = vadd.f32 %v4555, %v4556
      %v4558 = vsel %vm4321, %v4475, 0.0
      %v4559 = vadd.f32 %v4557, %v4558
      %v4560 = vsel %vm4321, %v4476, 0.0
      %v4561 = vadd.f32 %v4559, %v4560
      %v4562 = vsel %vm4321, %v4477, 0.0
      %v4563 = vadd.f32 %v4561, %v4562
      %v4564 = vsel %vm4321, %v4478, 0.0
      %v4565 = vadd.f32 %v4563, %v4564
      %v4566 = vsel %vm4321, %v4479, 0.0
      %v4567 = vadd.f32 %v4565, %v4566
      %v4568 = vsel %vm4321, %v4480, 0.0
      %v4569 = vadd.f32 %v4567, %v4568
      %v4570 = vsel %vm4321, %v4481, 0.0
      %v4571 = vadd.f32 %v4569, %v4570
      %v4572 = vsel %vm4321, %v4482, 0.0
      %v4573 = vadd.f32 %v4571, %v4572
      %v4574 = vsel %vm4321, %v4483, 0.0
      %v4575 = vadd.f32 %v4573, %v4574
      %v4576 = vsel %vm4321, %v4484, 0.0
      %v4577 = vadd.f32 %v4575, %v4576
      %v4578 = vsel %vm4321, %v4485, 0.0
      %v4579 = vadd.f32 %v4577, %v4578
      %v4580 = vsel %vm4321, %v4486, 0.0
      %v4581 = vadd.f32 %v4579, %v4580
      %v4582 = vsel %vm4321, %v4487, 0.0
      %v4583 = vadd.f32 %v4581, %v4582
      %v4584 = vsel %vm4321, %v4488, 0.0
      %v4585 = vadd.f32 %v4583, %v4584
      %v4586 = vsel %vm4321, %v4489, 0.0
      %v4587 = vadd.f32 %v4585, %v4586
      %v4588 = vsel %vm4321, %v4490, 0.0
      %v4589 = vadd.f32 %v4587, %v4588
      %v4590 = vsel %vm4321, %v4491, 0.0
      %v4591 = vadd.f32 %v4589, %v4590
      %v4592 = vsel %vm4321, %v4492, 0.0
      %v4593 = vadd.f32 %v4591, %v4592
      %v4594 = vsel %vm4321, %v4493, 0.0
      %v4595 = vadd.f32 %v4593, %v4594
      %v4596 = vsel %vm4321, %v4494, 0.0
      %v4597 = vadd.f32 %v4595, %v4596
      %v4598 = vsel %vm4321, %v4495, 0.0
      %v4599 = vadd.f32 %v4597, %v4598
      %v4600 = vsel %vm4321, %v4496, 0.0
      %v4601 = vadd.f32 %v4599, %v4600
      %v4602 = vsel %vm4321, %v4497, 0.0
      %v4603 = vadd.f32 %v4601, %v4602
      %v4604 = vsel %vm4321, %v4498, 0.0
      %v4605 = vadd.f32 %v4603, %v4604
      %v4606 = vsel %vm4321, %v4499, 0.0
      %v4607 = vadd.f32 %v4605, %v4606
      %v4608 = vsel %vm4321, %v4500, 0.0
      %v4609 = vadd.f32 %v4607, %v4608
      %v4610 = vsel %vm4321, %v4501, 0.0
      %v4611 = vadd.f32 %v4609, %v4610
      %v4612 = vsel %vm4321, %v4502, 0.0
      %v4613 = vadd.f32 %v4611, %v4612
      %v4614 = vsel %vm4321, %v4503, 0.0
      %v4615 = vadd.f32 %v4613, %v4614
      %v4616 = vsel %vm4321, %v4504, 0.0
      %v4617 = vadd.f32 %v4615, %v4616
      %v4618 = vsel %vm4321, %v4505, 0.0
      %v4619 = vadd.f32 %v4617, %v4618
      %v4620 = vsel %vm4321, %v4506, 0.0
      %v4621 = vadd.f32 %v4619, %v4620
      %v4622 = vsel %vm4321, %v4507, 0.0
      %v4623 = vadd.f32 %v4621, %v4622
      %v4624 = vsel %vm4321, %v4508, 0.0
      %v4625 = vadd.f32 %v4623, %v4624
      %v4626 = vsel %vm4321, %v4509, 0.0
      %v4627 = vadd.f32 %v4625, %v4626
      %v4628 = vsel %vm4321, %v4510, 0.0
      %v4629 = vadd.f32 %v4627, %v4628
      %v4630 = vsel %vm4321, %v4511, 0.0
      %v4631 = vadd.f32 %v4629, %v4630
      %v4632 = vsel %vm4321, %v4512, 0.0
      %v4633 = vadd.f32 %v4631, %v4632
      %v4634 = vsel %vm4321, %v4513, 0.0
      %v4635 = vadd.f32 %v4633, %v4634
      %v4636 = vsel %vm4321, %v4514, 0.0
      %v4637 = vadd.f32 %v4635, %v4636
      %v4638 = vsel %vm4321, %v4515, 0.0
      %v4639 = vadd.f32 %v4637, %v4638
      %v4640 = vsel %vm4321, %v4516, 0.0
      %v4641 = vadd.f32 %v4639, %v4640
      %v4642 = vsel %vm4321, %v4517, 0.0
      %v4643 = vadd.f32 %v4641, %v4642
      %v4644 = vsel %vm4321, %v4518, 0.0
      %v4645 = vadd.f32 %v4643, %v4644
      %v4646 = vrot.slane %v4645, 4
      %v4647 = vadd.f32 %v4645, %v4646
      %v4648 = vrot.slane %v4647, 2
      %v4649 = vadd.f32 %v4647, %v4648
      %v4650 = vrot.slane %v4649, 1
      %v4651 = vadd.f32 %v4649, %v4650
      %4653 = vrot.lane.b32.xlu0 %v4651, 64
      %v4654 = vpop.permute.xlu0 %4653
      %v4656 = vsel %vm4321, %v4454, %v4654
      %v4657 = vlaneseq
      %v4658 = vshrl.u32 %v4657, 7
      %v4659 = vsub.s32 0, %v4658
      %v4660 = vrot.slane %v4656, %v4659
      %4661 = vst [vmem:[%s535] sm:$0xff] %v4660
      %s4662 = smul.u32 64, %s28
      %p4663 = scmp.lt.s32.totalorder %s27, 1
      %s4664 = scalar_select %p4663, %s27, 1
      %p4665 = scmp.lt.s32.totalorder %s4662, 127
      %s4666 = scalar_select %p4665, %s4662, 127
      %s4667 = smul.addr %s4664, 128
      %s4668 = sadd.s32 %s4666, %s4667
      %s4669 = smul.addr %s4668, 4
      %s4670 = scalar_lea.vmem %s10, %s4669
      %p4671 = scmp.lt.s32.totalorder %s27, 1
      %s4672 = scalar_select %p4671, %s27, 1
      %p4673 = scmp.lt.s32.totalorder %s28, 1
      %s4674 = scalar_select %p4673, %s28, 1
      %s4675 = smul.addr %s4672, 2
      %s4676 = sadd.s32 %s4674, %s4675
      %s4677 = smul.addr %s4676, 8
      %s4678 = scalar_lea.vmem %s11, %s4677
      // Predicated region
      $region61: #{residual_cbn_decoder_forward.9} parent=59 // pred_check
        %p4679 = pneg %p291
      $region62: #{residual_cbn_decoder_forward.9} parent=59 // pred_check_branch
        %4681 = sbr.rel (%p4679) target = $region64
      $region63: #{residual_cbn_decoder_forward.9} parent=59 // pred_region
        %s4682 = smul.u32 64, %s28
      $region64: #{residual_cbn_decoder_forward.9} parent=59 // pred_fallthru
        _
      // Predicated region
      $region65: #{residual_cbn_decoder_forward.9} parent=59 // pred_check
        %p4683 = pneg %p319
      $region66: #{residual_cbn_decoder_forward.9} parent=59 // pred_check_branch
        %4685 = sbr.rel (%p4683) target = $region68
      $region67: #{residual_cbn_decoder_forward.9} parent=59 // pred_region
        _
      $region68: #{residual_cbn_decoder_forward.9} parent=59 // pred_fallthru
        _
    $region60: #{residual_cbn_decoder_forward.9} parent=5 // pred_fallthru
      _
    %p4686 = scmp.le.s32.totalorder 2, %s18
    // Predicated region
    $region69: #{residual_cbn_decoder_forward.9} parent=5 // pred_check
      %p4687 = pneg %p4686
    $region70: #{residual_cbn_decoder_forward.9} parent=5 // pred_check_branch
      %4689 = sbr.rel (%p4687) target = $region72
    $region71: #{residual_cbn_decoder_forward.9} parent=5 // pred_region
      %s4690 = ssub.s32 %s18, 2
      // Predicated region
      $region73: #{residual_cbn_decoder_forward.9} parent=71 // pred_check
        %p4691 = pneg %p297
      $region74: #{residual_cbn_decoder_forward.9} parent=71 // pred_check_branch
        %4693 = sbr.rel (%p4691) target = $region76
      $region75: #{residual_cbn_decoder_forward.9} parent=71 // pred_region
        %s4694 = smul.u32 64, %s30
        %p4695 = scmp.lt.s32.totalorder %s29, 1
        %s4696 = scalar_select %p4695, %s29, 1
        %p4697 = scmp.lt.s32.totalorder %s4694, 127
        %s4698 = scalar_select %p4697, %s4694, 127
        %s4699 = smul.addr %s4696, 128
        %s4700 = sadd.s32 %s4698, %s4699
        %s4701 = smul.addr %s4700, 4
        %s4702 = scalar_lea.vmem %s10, %s4701
      $region76: #{residual_cbn_decoder_forward.9} parent=71 // pred_fallthru
        _
      // Predicated region
      $region77: #{residual_cbn_decoder_forward.9} parent=71 // pred_check
        %p4703 = pneg %p325
      $region78: #{residual_cbn_decoder_forward.9} parent=71 // pred_check_branch
        %4705 = sbr.rel (%p4703) target = $region80
      $region79: #{residual_cbn_decoder_forward.9} parent=71 // pred_region
        %p4706 = scmp.lt.s32.totalorder %s29, 1
        %s4707 = scalar_select %p4706, %s29, 1
        %p4708 = scmp.lt.s32.totalorder %s30, 1
        %s4709 = scalar_select %p4708, %s30, 1
        %s4710 = smul.addr %s4707, 2
        %s4711 = sadd.s32 %s4709, %s4710
        %s4712 = smul.addr %s4711, 8
        %s4713 = scalar_lea.vmem %s11, %s4712
      $region80: #{residual_cbn_decoder_forward.9} parent=71 // pred_fallthru
        _
    $region72: #{residual_cbn_decoder_forward.9} parent=5 // pred_fallthru
      _
  $region6: #{residual_cbn_decoder_forward.9} parent=0 // loop_footer
    %s22 = sadd.s32 1, %s18
  $region7: #{residual_cbn_decoder_forward.9} parent=0 // loop_footer_branch
    %17 = sbr.rel target = $region3
  $region8: #{residual_cbn_decoder_forward.9} parent=0 // loop_exit
    _

// kernel: residual_cbn_decoder_forward.15
$region0: #{residual_cbn_decoder_forward.15}
  #allocation0 [shape = 'u32[]', space=smem, size = 0x4, offset = 0x4, fixed_abs, tag = 'smem constant byte address 0x4 - core index']
  #allocation1 [shape = 'u32[144,128]{1,0:T(1,128)}', space=vmem, size = 0x12000, scoped, tag = 'internal scratch']
  %s0 = inlined_call_operand.vmem [shape: bf16[2,1024,128], index: 0, kind: input, shape index: {}]
  %s1 = inlined_call_operand.vmem [shape: f32[2,1,64], index: 1, kind: input, shape index: {}]
  %s2 = inlined_call_operand.vmem [shape: f32[2,1,64], index: 2, kind: input, shape index: {}]
  %s3 = inlined_call_operand.vmem [shape: f32[1,64], index: 3, kind: input, shape index: {}]
  %s4 = inlined_call_operand.vmem [shape: f32[2,1024,1], index: 4, kind: output, shape index: {}]
  %s5 = sld [smem:[#allocation0]]
  $region49: #{residual_cbn_decoder_forward.15} parent=0
    _
  %s7 = ssub.s32 1, %s5
  %s8 = scalar_select 0, %s7, %s5
  loop: start=0, step=1, limit=6
  $region2: #{residual_cbn_decoder_forward.15} parent=0 // loop_pre_header
    _
  $region3: #{residual_cbn_decoder_forward.15} parent=0 // loop_header
    %s10 = sphi 0, %s14
    %p11 = scmp.ge.s32.totalorder %s10, 6
    %s17 = sphi 0, %s29
    %s18 = sphi 0, %s25
    %s19 = sphi 0, %s17
    %s20 = sphi 0, %s18
    %s21 = sphi 0, %s19
    %s22 = sphi 0, %s20
    %s34 = sphi 0, %s36
    %s37 = sphi 0, %s34
    %s38 = sphi 0, %s37
    %s54 = sphi 0, %s38
    %s60 = sphi 0, %s62
    %s63 = sphi 0, %s60
    %s64 = sphi 0, %s63
    %s80 = sphi 0, %s64
    %s86 = sphi 0, %s88
    %s89 = sphi 0, %s86
    %s90 = sphi 0, %s89
    %s106 = sphi 0, %s90
    %s110 = sphi 0, %s110
    %s112 = sphi 0, %s110
    %s113 = sphi 0, %s112
    %s127 = sphi 0, %s113
    %s135 = sphi 0, %s137
    %s138 = sphi 0, %s135
    %s139 = sphi 0, %s138
    %s155 = sphi 0, %s139
  $region4: #{residual_cbn_decoder_forward.15} parent=0 // loop_header_branch
    %13 = sbr.rel (%p11) target = $region8
  $region5: #{residual_cbn_decoder_forward.15} parent=0 // loop_body
    %s15 = ssub.s32 %s10, 1
    %s16 = ssub.s32 %s10, 2
    %s23 = sadd.s32 1, %s18
    %p24 = scmp.ge.s32.totalorder %s23, 2
    %s25 = scalar_select %p24, 0, %s23
    %s26 = sadd.s32 1, %s17
    %s27 = scalar_select %p24, %s26, %s17
    %p28 = scmp.ge.s32.totalorder %s27, 2
    %s29 = scalar_select %p28, 0, %s27
    %s30 = ssub.s32 %s17, %s29
    %s31 = ssub.s32 %s18, %s25
    %s32 = sor.u32 %s30, %s31
    %p33 = scmp.eq.s32.totalorder %s32, 0
    %s35 = sadd.s32 %s34, 1
    %s36 = scalar_select %p33, %s34, %s35
    %p39 = pneg %p33
    %p40 = scmp.eq.s32.totalorder %s10, 3
    %p41 = por %p39, %p40
    %p42 = scmp.ne.s32.totalorder %s34, %s37
    %p43 = scmp.eq.s32.totalorder %s10, 0
    %p44 = por %p42, %p43
    %p45 = scmp.ne.s32.totalorder %s34, %s37
    %p46 = scmp.eq.s32.totalorder %s15, 3
    %p47 = por %p45, %p46
    %p48 = scmp.ne.s32.totalorder %s37, %s38
    %p49 = scmp.eq.s32.totalorder %s15, 0
    %p50 = por %p48, %p49
    %p51 = scmp.ne.s32.totalorder %s37, %s38
    %p52 = scmp.eq.s32.totalorder %s16, 3
    %p53 = por %p51, %p52
    %p55 = scmp.ne.s32.totalorder %s38, %s54
    %p56 = scmp.eq.s32.totalorder %s16, 0
    %p57 = por %p55, %p56
    %s58 = ssub.s32 %s17, %s29
    %p59 = scmp.eq.s32.totalorder %s58, 0
    %s61 = sadd.s32 %s60, 1
    %s62 = scalar_select %p59, %s60, %s61
    %p65 = pneg %p59
    %p66 = scmp.eq.s32.totalorder %s10, 3
    %p67 = por %p65, %p66
    %p68 = scmp.ne.s32.totalorder %s60, %s63
    %p69 = scmp.eq.s32.totalorder %s10, 0
    %p70 = por %p68, %p69
    %p71 = scmp.ne.s32.totalorder %s60, %s63
    %p72 = scmp.eq.s32.totalorder %s15, 3
    %p73 = por %p71, %p72
    %p74 = scmp.ne.s32.totalorder %s63, %s64
    %p75 = scmp.eq.s32.totalorder %s15, 0
    %p76 = por %p74, %p75
    %p77 = scmp.ne.s32.totalorder %s63, %s64
    %p78 = scmp.eq.s32.totalorder %s16, 3
    %p79 = por %p77, %p78
    %p81 = scmp.ne.s32.totalorder %s64, %s80
    %p82 = scmp.eq.s32.totalorder %s16, 0
    %p83 = por %p81, %p82
    %s84 = ssub.s32 %s17, %s29
    %p85 = scmp.eq.s32.totalorder %s84, 0
    %s87 = sadd.s32 %s86, 1
    %s88 = scalar_select %p85, %s86, %s87
    %p91 = pneg %p85
    %p92 = scmp.eq.s32.totalorder %s10, 3
    %p93 = por %p91, %p92
    %p94 = scmp.ne.s32.totalorder %s86, %s89
    %p95 = scmp.eq.s32.totalorder %s10, 0
    %p96 = por %p94, %p95
    %p97 = scmp.ne.s32.totalorder %s86, %s89
    %p98 = scmp.eq.s32.totalorder %s15, 3
    %p99 = por %p97, %p98
    %p100 = scmp.ne.s32.totalorder %s89, %s90
    %p101 = scmp.eq.s32.totalorder %s15, 0
    %p102 = por %p100, %p101
    %p103 = scmp.ne.s32.totalorder %s89, %s90
    %p104 = scmp.eq.s32.totalorder %s16, 3
    %p105 = por %p103, %p104
    %p107 = scmp.ne.s32.totalorder %s90, %s106
    %p108 = scmp.eq.s32.totalorder %s16, 0
    %p109 = por %p107, %p108
    %s111 = sadd.s32 %s110, 1
    %p114 = scmp.eq.s32.totalorder %s10, 3
    %p115 = scmp.ne.s32.totalorder %s110, %s112
    %p116 = scmp.eq.s32.totalorder %s10, 0
    %p117 = por %p115, %p116
    %p118 = scmp.ne.s32.totalorder %s110, %s112
    %p119 = scmp.eq.s32.totalorder %s15, 3
    %p120 = por %p118, %p119
    %p121 = scmp.ne.s32.totalorder %s112, %s113
    %p122 = scmp.eq.s32.totalorder %s15, 0
    %p123 = por %p121, %p122
    %p124 = scmp.ne.s32.totalorder %s112, %s113
    %p125 = scmp.eq.s32.totalorder %s16, 3
    %p126 = por %p124, %p125
    %p128 = scmp.ne.s32.totalorder %s113, %s127
    %p129 = scmp.eq.s32.totalorder %s16, 0
    %p130 = por %p128, %p129
    %s131 = ssub.s32 %s17, %s29
    %s132 = ssub.s32 %s18, %s25
    %s133 = sor.u32 %s131, %s132
    %p134 = scmp.eq.s32.totalorder %s133, 0
    %s136 = sadd.s32 %s135, 1
    %s137 = scalar_select %p134, %s135, %s136
    %p140 = pneg %p134
    %p141 = scmp.eq.s32.totalorder %s10, 3
    %p142 = por %p140, %p141
    %p143 = scmp.ne.s32.totalorder %s135, %s138
    %p144 = scmp.eq.s32.totalorder %s10, 0
    %p145 = por %p143, %p144
    %p146 = scmp.ne.s32.totalorder %s135, %s138
    %p147 = scmp.eq.s32.totalorder %s15, 3
    %p148 = por %p146, %p147
    %p149 = scmp.ne.s32.totalorder %s138, %s139
    %p150 = scmp.eq.s32.totalorder %s15, 0
    %p151 = por %p149, %p150
    %p152 = scmp.ne.s32.totalorder %s138, %s139
    %p153 = scmp.eq.s32.totalorder %s16, 3
    %p154 = por %p152, %p153
    %p156 = scmp.ne.s32.totalorder %s139, %s155
    %p157 = scmp.eq.s32.totalorder %s16, 0
    %p158 = por %p156, %p157
    %p159 = scmp.le.s32.totalorder 1, %s10
    %p160 = scmp.lt.s32.totalorder %s10, 5
    %p161 = pnand %p159, %p160
    %p162 = pneg %p161
    // Predicated region
    $region9: #{residual_cbn_decoder_forward.15} parent=5 // pred_check
      _
    $region10: #{residual_cbn_decoder_forward.15} parent=5 // pred_check_branch
      %164 = sbr.rel (%p161) target = $region12
    $region11: #{residual_cbn_decoder_forward.15} parent=5 // pred_region
      %s165 = ssub.s32 %s10, 1
      // Predicated region
      $region13: #{residual_cbn_decoder_forward.15} parent=11 // pred_check
        %p166 = pneg %p123
      $region14: #{residual_cbn_decoder_forward.15} parent=11 // pred_check_branch
        %168 = sbr.rel (%p166) target = $region16
      $region15: #{residual_cbn_decoder_forward.15} parent=11 // pred_region
        _
      $region16: #{residual_cbn_decoder_forward.15} parent=11 // pred_fallthru
        _
    $region12: #{residual_cbn_decoder_forward.15} parent=5 // pred_fallthru
      _
    %p169 = scmp.lt.s32.totalorder %s10, 4
    // Predicated region
    $region17: #{residual_cbn_decoder_forward.15} parent=5 // pred_check
      %p170 = pneg %p169
    $region18: #{residual_cbn_decoder_forward.15} parent=5 // pred_check_branch
      %172 = sbr.rel (%p170) target = $region20
    $region19: #{residual_cbn_decoder_forward.15} parent=5 // pred_region
      // Predicated region
      $region21: #{residual_cbn_decoder_forward.15} parent=19 // pred_check
        %p173 = pneg %p44
      $region22: #{residual_cbn_decoder_forward.15} parent=19 // pred_check_branch
        %175 = sbr.rel (%p173) target = $region24
      $region23: #{residual_cbn_decoder_forward.15} parent=19 // pred_region
        %s176 = smul.u32 64, %s18
        %p177 = scmp.lt.s32.totalorder %s17, 1
        %s178 = scalar_select %p177, %s17, 1
        %p179 = scmp.lt.s32.totalorder %s176, 127
        %s180 = scalar_select %p179, %s176, 127
        %s181 = smul.addr %s178, 128
        %s182 = sadd.s32 %s180, %s181
        %s183 = smul.addr %s182, 4
        %s184 = scalar_lea.vmem %s0, %s183
        %s185 = smul.u32 64, %s18
      $region24: #{residual_cbn_decoder_forward.15} parent=19 // pred_fallthru
        _
      // Predicated region
      $region25: #{residual_cbn_decoder_forward.15} parent=19 // pred_check
        %p186 = pneg %p70
      $region26: #{residual_cbn_decoder_forward.15} parent=19 // pred_check_branch
        %188 = sbr.rel (%p186) target = $region28
      $region27: #{residual_cbn_decoder_forward.15} parent=19 // pred_region
        %p189 = scmp.lt.s32.totalorder %s17, 1
        %s190 = scalar_select %p189, %s17, 1
        %s191 = scalar_lea.vmem %s1, %s190
      $region28: #{residual_cbn_decoder_forward.15} parent=19 // pred_fallthru
        _
      // Predicated region
      $region29: #{residual_cbn_decoder_forward.15} parent=19 // pred_check
        %p192 = pneg %p96
      $region30: #{residual_cbn_decoder_forward.15} parent=19 // pred_check_branch
        %194 = sbr.rel (%p192) target = $region32
      $region31: #{residual_cbn_decoder_forward.15} parent=19 // pred_region
        %p195 = scmp.lt.s32.totalorder %s17, 1
        %s196 = scalar_select %p195, %s17, 1
        %s197 = scalar_lea.vmem %s2, %s196
      $region32: #{residual_cbn_decoder_forward.15} parent=19 // pred_fallthru
        _
    $region20: #{residual_cbn_decoder_forward.15} parent=5 // pred_fallthru
      _
    %p198 = scmp.le.s32.totalorder 1, %s10
    %p199 = scmp.lt.s32.totalorder %s10, 5
    %p200 = pnand %p198, %p199
    %p201 = pneg %p200
    // Predicated region
    $region33: #{residual_cbn_decoder_forward.15} parent=5 // pred_check
      _
    $region34: #{residual_cbn_decoder_forward.15} parent=5 // pred_check_branch
      %203 = sbr.rel (%p200) target = $region36
    $region35: #{residual_cbn_decoder_forward.15} parent=5 // pred_region
      %s204 = ssub.s32 %s10, 1
      %s205 = smul.u32 64, %s20
      %p206 = scmp.lt.s32.totalorder %s19, 1
      %s207 = scalar_select %p206, %s19, 1
      %p208 = scmp.lt.s32.totalorder %s205, 127
      %s209 = scalar_select %p208, %s205, 127
      %s210 = smul.addr %s207, 128
      %s211 = sadd.s32 %s209, %s210
      %s212 = smul.addr %s211, 4
      %s213 = scalar_lea.vmem %s0, %s212
      %p214 = pneg %p50
      %p215 = pneg %p47
      %p216 = scmp.lt.s32.totalorder %s19, 1
      %s217 = scalar_select %p216, %s19, 1
      %s218 = scalar_lea.vmem %s1, %s217
      %p219 = pneg %p76
      %p220 = pneg %p73
      %p221 = scmp.lt.s32.totalorder %s19, 1
      %s222 = scalar_select %p221, %s19, 1
      %s223 = scalar_lea.vmem %s2, %s222
      %p224 = pneg %p102
      %p225 = pneg %p99
      %p226 = pneg %p123
      %p227 = pneg %p120
      %p228 = pneg %p151
      %p229 = pneg %p148
      %s230 = smul.u32 64, %s20
      %p231 = scmp.lt.s32.totalorder %s19, 1
      %s232 = scalar_select %p231, %s19, 1
      %p233 = scmp.lt.s32.totalorder %s230, 127
      %s234 = scalar_select %p233, %s230, 127
      %s235 = smul.addr %s232, 128
      %s236 = sadd.s32 %s234, %s235
      %s237 = smul.addr %s236, 8
      %s238 = scalar_lea.vmem %s4, %s237
      %s239 = smul.u32 64, %s20
      %p240 = scmp.lt.s32.totalorder %s19, 1
      %s241 = scalar_select %p240, %s19, 1
      %p242 = scmp.lt.s32.totalorder %s239, 127
      %s243 = scalar_select %p242, %s239, 127
      %s244 = smul.addr %s241, 128
      %s245 = sadd.s32 %s243, %s244
      %s246 = smul.addr %s245, 4
      %s247 = scalar_lea.vmem %s0, %s246
      %s248 = smul.u32 64, %s20
      %p249 = scmp.lt.s32.totalorder %s19, 1
      %s250 = scalar_select %p249, %s19, 1
      %s251 = scalar_lea.vmem %s1, %s250
      %p252 = scmp.lt.s32.totalorder %s19, 1
      %s253 = scalar_select %p252, %s19, 1
      %s254 = scalar_lea.vmem %s2, %s253
      %s255 = smul.u32 64, %s20
      %p256 = scmp.lt.s32.totalorder %s19, 1
      %s257 = scalar_select %p256, %s19, 1
      %p258 = scmp.lt.s32.totalorder %s255, 127
      %s259 = scalar_select %p258, %s255, 127
      %s260 = smul.addr %s257, 128
      %s261 = sadd.s32 %s259, %s260
      %s262 = smul.addr %s261, 8
      %s263 = scalar_lea.vmem %s4, %s262
      %s264 = smul.u32 64, %s20
      %v265 = vld [vmem:[%s247] sm:$0xf]
      %v266 = vld [vmem:[%s247 + $0x4] sm:$0xf]
      %v267 = vld [vmem:[%s247 + $0x8] sm:$0xf]
      %v268 = vld [vmem:[%s247 + $0xc] sm:$0xf]
      %v269 = vld [vmem:[%s247 + $0x10] sm:$0xf]
      %v270 = vld [vmem:[%s247 + $0x14] sm:$0xf]
      %v271 = vld [vmem:[%s247 + $0x18] sm:$0xf]
      %v272 = vld [vmem:[%s247 + $0x1c] sm:$0xf]
      %v273 = vld [vmem:[%s247 + $0x20] sm:$0xf]
      %v274 = vld [vmem:[%s247 + $0x24] sm:$0xf]
      %v275 = vld [vmem:[%s247 + $0x28] sm:$0xf]
      %v276 = vld [vmem:[%s247 + $0x2c] sm:$0xf]
      %v277 = vld [vmem:[%s247 + $0x30] sm:$0xf]
      %v278 = vld [vmem:[%s247 + $0x34] sm:$0xf]
      %v279 = vld [vmem:[%s247 + $0x38] sm:$0xf]
      %v280 = vld [vmem:[%s247 + $0x3c] sm:$0xf]
      %v281 = vld [vmem:[%s247 + $0x40] sm:$0xf]
      %v282 = vld [vmem:[%s247 + $0x44] sm:$0xf]
      %v283 = vld [vmem:[%s247 + $0x48] sm:$0xf]
      %v284 = vld [vmem:[%s247 + $0x4c] sm:$0xf]
      %v285 = vld [vmem:[%s247 + $0x50] sm:$0xf]
      %v286 = vld [vmem:[%s247 + $0x54] sm:$0xf]
      %v287 = vld [vmem:[%s247 + $0x58] sm:$0xf]
      %v288 = vld [vmem:[%s247 + $0x5c] sm:$0xf]
      %v289 = vld [vmem:[%s247 + $0x60] sm:$0xf]
      %v290 = vld [vmem:[%s247 + $0x64] sm:$0xf]
      %v291 = vld [vmem:[%s247 + $0x68] sm:$0xf]
      %v292 = vld [vmem:[%s247 + $0x6c] sm:$0xf]
      %v293 = vld [vmem:[%s247 + $0x70] sm:$0xf]
      %v294 = vld [vmem:[%s247 + $0x74] sm:$0xf]
      %v295 = vld [vmem:[%s247 + $0x78] sm:$0xf]
      %v296 = vld [vmem:[%s247 + $0x7c] sm:$0xf]
      %v297 = vld [vmem:[%s247 + $0x80] sm:$0xf]
      %v298 = vld [vmem:[%s247 + $0x84] sm:$0xf]
      %v299 = vld [vmem:[%s247 + $0x88] sm:$0xf]
      %v300 = vld [vmem:[%s247 + $0x8c] sm:$0xf]
      %v301 = vld [vmem:[%s247 + $0x90] sm:$0xf]
      %v302 = vld [vmem:[%s247 + $0x94] sm:$0xf]
      %v303 = vld [vmem:[%s247 + $0x98] sm:$0xf]
      %v304 = vld [vmem:[%s247 + $0x9c] sm:$0xf]
      %v305 = vld [vmem:[%s247 + $0xa0] sm:$0xf]
      %v306 = vld [vmem:[%s247 + $0xa4] sm:$0xf]
      %v307 = vld [vmem:[%s247 + $0xa8] sm:$0xf]
      %v308 = vld [vmem:[%s247 + $0xac] sm:$0xf]
      %v309 = vld [vmem:[%s247 + $0xb0] sm:$0xf]
      %v310 = vld [vmem:[%s247 + $0xb4] sm:$0xf]
      %v311 = vld [vmem:[%s247 + $0xb8] sm:$0xf]
      %v312 = vld [vmem:[%s247 + $0xbc] sm:$0xf]
      %v313 = vld [vmem:[%s247 + $0xc0] sm:$0xf]
      %v314 = vld [vmem:[%s247 + $0xc4] sm:$0xf]
      %v315 = vld [vmem:[%s247 + $0xc8] sm:$0xf]
      %v316 = vld [vmem:[%s247 + $0xcc] sm:$0xf]
      %v317 = vld [vmem:[%s247 + $0xd0] sm:$0xf]
      %v318 = vld [vmem:[%s247 + $0xd4] sm:$0xf]
      %v319 = vld [vmem:[%s247 + $0xd8] sm:$0xf]
      %v320 = vld [vmem:[%s247 + $0xdc] sm:$0xf]
      %v321 = vld [vmem:[%s247 + $0xe0] sm:$0xf]
      %v322 = vld [vmem:[%s247 + $0xe4] sm:$0xf]
      %v323 = vld [vmem:[%s247 + $0xe8] sm:$0xf]
      %v324 = vld [vmem:[%s247 + $0xec] sm:$0xf]
      %v325 = vld [vmem:[%s247 + $0xf0] sm:$0xf]
      %v326 = vld [vmem:[%s247 + $0xf4] sm:$0xf]
      %v327 = vld [vmem:[%s247 + $0xf8] sm:$0xf]
      %v328 = vld [vmem:[%s247 + $0xfc] sm:$0xf]
      %v329 = vunpack.c.l.bf16 %v265
      %v330 = vunpack.c.l.bf16 %v266
      %v331 = vunpack.c.l.bf16 %v267
      %v332 = vunpack.c.l.bf16 %v268
      %v333 = vunpack.c.l.bf16 %v269
      %v334 = vunpack.c.l.bf16 %v270
      %v335 = vunpack.c.l.bf16 %v271
      %v336 = vunpack.c.l.bf16 %v272
      %v337 = vunpack.c.l.bf16 %v273
      %v338 = vunpack.c.l.bf16 %v274
      %v339 = vunpack.c.l.bf16 %v275
      %v340 = vunpack.c.l.bf16 %v276
      %v341 = vunpack.c.l.bf16 %v277
      %v342 = vunpack.c.l.bf16 %v278
      %v343 = vunpack.c.l.bf16 %v279
      %v344 = vunpack.c.l.bf16 %v280
      %v345 = vunpack.c.l.bf16 %v281
      %v346 = vunpack.c.l.bf16 %v282
      %v347 = vunpack.c.l.bf16 %v283
      %v348 = vunpack.c.l.bf16 %v284
      %v349 = vunpack.c.l.bf16 %v285
      %v350 = vunpack.c.l.bf16 %v286
      %v351 = vunpack.c.l.bf16 %v287
      %v352 = vunpack.c.l.bf16 %v288
      %v353 = vunpack.c.l.bf16 %v289
      %v354 = vunpack.c.l.bf16 %v290
      %v355 = vunpack.c.l.bf16 %v291
      %v356 = vunpack.c.l.bf16 %v292
      %v357 = vunpack.c.l.bf16 %v293
      %v358 = vunpack.c.l.bf16 %v294
      %v359 = vunpack.c.l.bf16 %v295
      %v360 = vunpack.c.l.bf16 %v296
      %v361 = vunpack.c.l.bf16 %v297
      %v362 = vunpack.c.l.bf16 %v298
      %v363 = vunpack.c.l.bf16 %v299
      %v364 = vunpack.c.l.bf16 %v300
      %v365 = vunpack.c.l.bf16 %v301
      %v366 = vunpack.c.l.bf16 %v302
      %v367 = vunpack.c.l.bf16 %v303
      %v368 = vunpack.c.l.bf16 %v304
      %v369 = vunpack.c.l.bf16 %v305
      %v370 = vunpack.c.l.bf16 %v306
      %v371 = vunpack.c.l.bf16 %v307
      %v372 = vunpack.c.l.bf16 %v308
      %v373 = vunpack.c.l.bf16 %v309
      %v374 = vunpack.c.l.bf16 %v310
      %v375 = vunpack.c.l.bf16 %v311
      %v376 = vunpack.c.l.bf16 %v312
      %v377 = vunpack.c.l.bf16 %v313
      %v378 = vunpack.c.l.bf16 %v314
      %v379 = vunpack.c.l.bf16 %v315
      %v380 = vunpack.c.l.bf16 %v316
      %v381 = vunpack.c.l.bf16 %v317
      %v382 = vunpack.c.l.bf16 %v318
      %v383 = vunpack.c.l.bf16 %v319
      %v384 = vunpack.c.l.bf16 %v320
      %v385 = vunpack.c.l.bf16 %v321
      %v386 = vunpack.c.l.bf16 %v322
      %v387 = vunpack.c.l.bf16 %v323
      %v388 = vunpack.c.l.bf16 %v324
      %v389 = vunpack.c.l.bf16 %v325
      %v390 = vunpack.c.l.bf16 %v326
      %v391 = vunpack.c.l.bf16 %v327
      %v392 = vunpack.c.l.bf16 %v328
      %v393 = vld [vmem:[%s251] sm:$0x1]
      %v395 = vlaneseq
      %v396 = vshrl.u32 %v395, 7
      %v397 = vsub.s32 0, %v396
      %v398 = vrot.slane %v393, %v397
      %v400 = vmul.f32 %v398, %v329
      %v401 = vmul.f32 %v398, %v330
      %v402 = vmul.f32 %v398, %v331
      %v403 = vmul.f32 %v398, %v332
      %v404 = vmul.f32 %v398, %v333
      %v405 = vmul.f32 %v398, %v334
      %v406 = vmul.f32 %v398, %v335
      %v407 = vmul.f32 %v398, %v336
      %v408 = vmul.f32 %v398, %v337
      %v409 = vmul.f32 %v398, %v338
      %v410 = vmul.f32 %v398, %v339
      %v411 = vmul.f32 %v398, %v340
      %v412 = vmul.f32 %v398, %v341
      %v413 = vmul.f32 %v398, %v342
      %v414 = vmul.f32 %v398, %v343
      %v415 = vmul.f32 %v398, %v344
      %v416 = vmul.f32 %v398, %v345
      %v417 = vmul.f32 %v398, %v346
      %v418 = vmul.f32 %v398, %v347
      %v419 = vmul.f32 %v398, %v348
      %v420 = vmul.f32 %v398, %v349
      %v421 = vmul.f32 %v398, %v350
      %v422 = vmul.f32 %v398, %v351
      %v423 = vmul.f32 %v398, %v352
      %v424 = vmul.f32 %v398, %v353
      %v425 = vmul.f32 %v398, %v354
      %v426 = vmul.f32 %v398, %v355
      %v427 = vmul.f32 %v398, %v356
      %v428 = vmul.f32 %v398, %v357
      %v429 = vmul.f32 %v398, %v358
      %v430 = vmul.f32 %v398, %v359
      %v431 = vmul.f32 %v398, %v360
      %v432 = vmul.f32 %v398, %v361
      %v433 = vmul.f32 %v398, %v362
      %v434 = vmul.f32 %v398, %v363
      %v435 = vmul.f32 %v398, %v364
      %v436 = vmul.f32 %v398, %v365
      %v437 = vmul.f32 %v398, %v366
      %v438 = vmul.f32 %v398, %v367
      %v439 = vmul.f32 %v398, %v368
      %v440 = vmul.f32 %v398, %v369
      %v441 = vmul.f32 %v398, %v370
      %v442 = vmul.f32 %v398, %v371
      %v443 = vmul.f32 %v398, %v372
      %v444 = vmul.f32 %v398, %v373
      %v445 = vmul.f32 %v398, %v374
      %v446 = vmul.f32 %v398, %v375
      %v447 = vmul.f32 %v398, %v376
      %v448 = vmul.f32 %v398, %v377
      %v449 = vmul.f32 %v398, %v378
      %v450 = vmul.f32 %v398, %v379
      %v451 = vmul.f32 %v398, %v380
      %v452 = vmul.f32 %v398, %v381
      %v453 = vmul.f32 %v398, %v382
      %v454 = vmul.f32 %v398, %v383
      %v455 = vmul.f32 %v398, %v384
      %v456 = vmul.f32 %v398, %v385
      %v457 = vmul.f32 %v398, %v386
      %v458 = vmul.f32 %v398, %v387
      %v459 = vmul.f32 %v398, %v388
      %v460 = vmul.f32 %v398, %v389
      %v461 = vmul.f32 %v398, %v390
      %v462 = vmul.f32 %v398, %v391
      %v463 = vmul.f32 %v398, %v392
      %v464 = vld [vmem:[%s254] sm:$0x1]
      %v466 = vlaneseq
      %v467 = vshrl.u32 %v466, 7
      %v468 = vsub.s32 0, %v467
      %v469 = vrot.slane %v464, %v468
      %v471 = vadd.f32 %v400, %v469
      %v472 = vadd.f32 %v401, %v469
      %v473 = vadd.f32 %v402, %v469
      %v474 = vadd.f32 %v403, %v469
      %v475 = vadd.f32 %v404, %v469
      %v476 = vadd.f32 %v405, %v469
      %v477 = vadd.f32 %v406, %v469
      %v478 = vadd.f32 %v407, %v469
      %v479 = vadd.f32 %v408, %v469
      %v480 = vadd.f32 %v409, %v469
      %v481 = vadd.f32 %v410, %v469
      %v482 = vadd.f32 %v411, %v469
      %v483 = vadd.f32 %v412, %v469
      %v484 = vadd.f32 %v413, %v469
      %v485 = vadd.f32 %v414, %v469
      %v486 = vadd.f32 %v415, %v469
      %v487 = vadd.f32 %v416, %v469
      %v488 = vadd.f32 %v417, %v469
      %v489 = vadd.f32 %v418, %v469
      %v490 = vadd.f32 %v419, %v469
      %v491 = vadd.f32 %v420, %v469
      %v492 = vadd.f32 %v421, %v469
      %v493 = vadd.f32 %v422, %v469
      %v494 = vadd.f32 %v423, %v469
      %v495 = vadd.f32 %v424, %v469
      %v496 = vadd.f32 %v425, %v469
      %v497 = vadd.f32 %v426, %v469
      %v498 = vadd.f32 %v427, %v469
      %v499 = vadd.f32 %v428, %v469
      %v500 = vadd.f32 %v429, %v469
      %v501 = vadd.f32 %v430, %v469
      %v502 = vadd.f32 %v431, %v469
      %v503 = vadd.f32 %v432, %v469
      %v504 = vadd.f32 %v433, %v469
      %v505 = vadd.f32 %v434, %v469
      %v506 = vadd.f32 %v435, %v469
      %v507 = vadd.f32 %v436, %v469
      %v508 = vadd.f32 %v437, %v469
      %v509 = vadd.f32 %v438, %v469
      %v510 = vadd.f32 %v439, %v469
      %v511 = vadd.f32 %v440, %v469
      %v512 = vadd.f32 %v441, %v469
      %v513 = vadd.f32 %v442, %v469
      %v514 = vadd.f32 %v443, %v469
      %v515 = vadd.f32 %v444, %v469
      %v516 = vadd.f32 %v445, %v469
      %v517 = vadd.f32 %v446, %v469
      %v518 = vadd.f32 %v447, %v469
      %v519 = vadd.f32 %v448, %v469
      %v520 = vadd.f32 %v449, %v469
      %v521 = vadd.f32 %v450, %v469
      %v522 = vadd.f32 %v451, %v469
      %v523 = vadd.f32 %v452, %v469
      %v524 = vadd.f32 %v453, %v469
      %v525 = vadd.f32 %v454, %v469
      %v526 = vadd.f32 %v455, %v469
      %v527 = vadd.f32 %v456, %v469
      %v528 = vadd.f32 %v457, %v469
      %v529 = vadd.f32 %v458, %v469
      %v530 = vadd.f32 %v459, %v469
      %v531 = vadd.f32 %v460, %v469
      %v532 = vadd.f32 %v461, %v469
      %v533 = vadd.f32 %v462, %v469
      %v534 = vadd.f32 %v463, %v469
      %599 = vrot.lane.b32.xlu0 %v329, 64
      %v600 = vpop.permute.xlu0 %599
      %601 = vrot.lane.b32.xlu0 %v330, 64
      %v602 = vpop.permute.xlu0 %601
      %603 = vrot.lane.b32.xlu0 %v331, 64
      %v604 = vpop.permute.xlu0 %603
      %605 = vrot.lane.b32.xlu0 %v332, 64
      %v606 = vpop.permute.xlu0 %605
      %607 = vrot.lane.b32.xlu0 %v333, 64
      %v608 = vpop.permute.xlu0 %607
      %609 = vrot.lane.b32.xlu0 %v334, 64
      %v610 = vpop.permute.xlu0 %609
      %611 = vrot.lane.b32.xlu0 %v335, 64
      %v612 = vpop.permute.xlu0 %611
      %613 = vrot.lane.b32.xlu0 %v336, 64
      %v614 = vpop.permute.xlu0 %613
      %615 = vrot.lane.b32.xlu0 %v337, 64
      %v616 = vpop.permute.xlu0 %615
      %617 = vrot.lane.b32.xlu0 %v338, 64
      %v618 = vpop.permute.xlu0 %617
      %619 = vrot.lane.b32.xlu0 %v339, 64
      %v620 = vpop.permute.xlu0 %619
      %621 = vrot.lane.b32.xlu0 %v340, 64
      %v622 = vpop.permute.xlu0 %621
      %623 = vrot.lane.b32.xlu0 %v341, 64
      %v624 = vpop.permute.xlu0 %623
      %625 = vrot.lane.b32.xlu0 %v342, 64
      %v626 = vpop.permute.xlu0 %625
      %627 = vrot.lane.b32.xlu0 %v343, 64
      %v628 = vpop.permute.xlu0 %627
      %629 = vrot.lane.b32.xlu0 %v344, 64
      %v630 = vpop.permute.xlu0 %629
      %631 = vrot.lane.b32.xlu0 %v345, 64
      %v632 = vpop.permute.xlu0 %631
      %633 = vrot.lane.b32.xlu0 %v346, 64
      %v634 = vpop.permute.xlu0 %633
      %635 = vrot.lane.b32.xlu0 %v347, 64
      %v636 = vpop.permute.xlu0 %635
      %637 = vrot.lane.b32.xlu0 %v348, 64
      %v638 = vpop.permute.xlu0 %637
      %639 = vrot.lane.b32.xlu0 %v349, 64
      %v640 = vpop.permute.xlu0 %639
      %641 = vrot.lane.b32.xlu0 %v350, 64
      %v642 = vpop.permute.xlu0 %641
      %643 = vrot.lane.b32.xlu0 %v351, 64
      %v644 = vpop.permute.xlu0 %643
      %645 = vrot.lane.b32.xlu0 %v352, 64
      %v646 = vpop.permute.xlu0 %645
      %647 = vrot.lane.b32.xlu0 %v353, 64
      %v648 = vpop.permute.xlu0 %647
      %649 = vrot.lane.b32.xlu0 %v354, 64
      %v650 = vpop.permute.xlu0 %649
      %651 = vrot.lane.b32.xlu0 %v355, 64
      %v652 = vpop.permute.xlu0 %651
      %653 = vrot.lane.b32.xlu0 %v356, 64
      %v654 = vpop.permute.xlu0 %653
      %655 = vrot.lane.b32.xlu0 %v357, 64
      %v656 = vpop.permute.xlu0 %655
      %657 = vrot.lane.b32.xlu0 %v358, 64
      %v658 = vpop.permute.xlu0 %657
      %659 = vrot.lane.b32.xlu0 %v359, 64
      %v660 = vpop.permute.xlu0 %659
      %661 = vrot.lane.b32.xlu0 %v360, 64
      %v662 = vpop.permute.xlu0 %661
      %663 = vrot.lane.b32.xlu0 %v361, 64
      %v664 = vpop.permute.xlu0 %663
      %665 = vrot.lane.b32.xlu0 %v362, 64
      %v666 = vpop.permute.xlu0 %665
      %667 = vrot.lane.b32.xlu0 %v363, 64
      %v668 = vpop.permute.xlu0 %667
      %669 = vrot.lane.b32.xlu0 %v364, 64
      %v670 = vpop.permute.xlu0 %669
      %671 = vrot.lane.b32.xlu0 %v365, 64
      %v672 = vpop.permute.xlu0 %671
      %673 = vrot.lane.b32.xlu0 %v366, 64
      %v674 = vpop.permute.xlu0 %673
      %675 = vrot.lane.b32.xlu0 %v367, 64
      %v676 = vpop.permute.xlu0 %675
      %677 = vrot.lane.b32.xlu0 %v368, 64
      %v678 = vpop.permute.xlu0 %677
      %679 = vrot.lane.b32.xlu0 %v369, 64
      %v680 = vpop.permute.xlu0 %679
      %681 = vrot.lane.b32.xlu0 %v370, 64
      %v682 = vpop.permute.xlu0 %681
      %683 = vrot.lane.b32.xlu0 %v371, 64
      %v684 = vpop.permute.xlu0 %683
      %685 = vrot.lane.b32.xlu0 %v372, 64
      %v686 = vpop.permute.xlu0 %685
      %687 = vrot.lane.b32.xlu0 %v373, 64
      %v688 = vpop.permute.xlu0 %687
      %689 = vrot.lane.b32.xlu0 %v374, 64
      %v690 = vpop.permute.xlu0 %689
      %691 = vrot.lane.b32.xlu0 %v375, 64
      %v692 = vpop.permute.xlu0 %691
      %693 = vrot.lane.b32.xlu0 %v376, 64
      %v694 = vpop.permute.xlu0 %693
      %695 = vrot.lane.b32.xlu0 %v377, 64
      %v696 = vpop.permute.xlu0 %695
      %697 = vrot.lane.b32.xlu0 %v378, 64
      %v698 = vpop.permute.xlu0 %697
      %699 = vrot.lane.b32.xlu0 %v379, 64
      %v700 = vpop.permute.xlu0 %699
      %701 = vrot.lane.b32.xlu0 %v380, 64
      %v702 = vpop.permute.xlu0 %701
      %703 = vrot.lane.b32.xlu0 %v381, 64
      %v704 = vpop.permute.xlu0 %703
      %705 = vrot.lane.b32.xlu0 %v382, 64
      %v706 = vpop.permute.xlu0 %705
      %707 = vrot.lane.b32.xlu0 %v383, 64
      %v708 = vpop.permute.xlu0 %707
      %709 = vrot.lane.b32.xlu0 %v384, 64
      %v710 = vpop.permute.xlu0 %709
      %711 = vrot.lane.b32.xlu0 %v385, 64
      %v712 = vpop.permute.xlu0 %711
      %713 = vrot.lane.b32.xlu0 %v386, 64
      %v714 = vpop.permute.xlu0 %713
      %715 = vrot.lane.b32.xlu0 %v387, 64
      %v716 = vpop.permute.xlu0 %715
      %717 = vrot.lane.b32.xlu0 %v388, 64
      %v718 = vpop.permute.xlu0 %717
      %719 = vrot.lane.b32.xlu0 %v389, 64
      %v720 = vpop.permute.xlu0 %719
      %721 = vrot.lane.b32.xlu0 %v390, 64
      %v722 = vpop.permute.xlu0 %721
      %723 = vrot.lane.b32.xlu0 %v391, 64
      %v724 = vpop.permute.xlu0 %723
      %725 = vrot.lane.b32.xlu0 %v392, 64
      %v726 = vpop.permute.xlu0 %725
      %v791 = vadd.f32 %v471, %v600
      %v792 = vadd.f32 %v472, %v602
      %v793 = vadd.f32 %v473, %v604
      %v794 = vadd.f32 %v474, %v606
      %v795 = vadd.f32 %v475, %v608
      %v796 = vadd.f32 %v476, %v610
      %v797 = vadd.f32 %v477, %v612
      %v798 = vadd.f32 %v478, %v614
      %v799 = vadd.f32 %v479, %v616
      %v800 = vadd.f32 %v480, %v618
      %v801 = vadd.f32 %v481, %v620
      %v802 = vadd.f32 %v482, %v622
      %v803 = vadd.f32 %v483, %v624
      %v804 = vadd.f32 %v484, %v626
      %v805 = vadd.f32 %v485, %v628
      %v806 = vadd.f32 %v486, %v630
      %v807 = vadd.f32 %v487, %v632
      %v808 = vadd.f32 %v488, %v634
      %v809 = vadd.f32 %v489, %v636
      %v810 = vadd.f32 %v490, %v638
      %v811 = vadd.f32 %v491, %v640
      %v812 = vadd.f32 %v492, %v642
      %v813 = vadd.f32 %v493, %v644
      %v814 = vadd.f32 %v494, %v646
      %v815 = vadd.f32 %v495, %v648
      %v816 = vadd.f32 %v496, %v650
      %v817 = vadd.f32 %v497, %v652
      %v818 = vadd.f32 %v498, %v654
      %v819 = vadd.f32 %v499, %v656
      %v820 = vadd.f32 %v500, %v658
      %v821 = vadd.f32 %v501, %v660
      %v822 = vadd.f32 %v502, %v662
      %v823 = vadd.f32 %v503, %v664
      %v824 = vadd.f32 %v504, %v666
      %v825 = vadd.f32 %v505, %v668
      %v826 = vadd.f32 %v506, %v670
      %v827 = vadd.f32 %v507, %v672
      %v828 = vadd.f32 %v508, %v674
      %v829 = vadd.f32 %v509, %v676
      %v830 = vadd.f32 %v510, %v678
      %v831 = vadd.f32 %v511, %v680
      %v832 = vadd.f32 %v512, %v682
      %v833 = vadd.f32 %v513, %v684
      %v834 = vadd.f32 %v514, %v686
      %v835 = vadd.f32 %v515, %v688
      %v836 = vadd.f32 %v516, %v690
      %v837 = vadd.f32 %v517, %v692
      %v838 = vadd.f32 %v518, %v694
      %v839 = vadd.f32 %v519, %v696
      %v840 = vadd.f32 %v520, %v698
      %v841 = vadd.f32 %v521, %v700
      %v842 = vadd.f32 %v522, %v702
      %v843 = vadd.f32 %v523, %v704
      %v844 = vadd.f32 %v524, %v706
      %v845 = vadd.f32 %v525, %v708
      %v846 = vadd.f32 %v526, %v710
      %v847 = vadd.f32 %v527, %v712
      %v848 = vadd.f32 %v528, %v714
      %v849 = vadd.f32 %v529, %v716
      %v850 = vadd.f32 %v530, %v718
      %v851 = vadd.f32 %v531, %v720
      %v852 = vadd.f32 %v532, %v722
      %v853 = vadd.f32 %v533, %v724
      %v854 = vadd.f32 %v534, %v726
      %v855 = vmax.f32 %v791, 0.0
      %v856 = vmax.f32 %v792, 0.0
      %v857 = vmax.f32 %v793, 0.0
      %v858 = vmax.f32 %v794, 0.0
      %v859 = vmax.f32 %v795, 0.0
      %v860 = vmax.f32 %v796, 0.0
      %v861 = vmax.f32 %v797, 0.0
      %v862 = vmax.f32 %v798, 0.0
      %v863 = vmax.f32 %v799, 0.0
      %v864 = vmax.f32 %v800, 0.0
      %v865 = vmax.f32 %v801, 0.0
      %v866 = vmax.f32 %v802, 0.0
      %v867 = vmax.f32 %v803, 0.0
      %v868 = vmax.f32 %v804, 0.0
      %v869 = vmax.f32 %v805, 0.0
      %v870 = vmax.f32 %v806, 0.0
      %v871 = vmax.f32 %v807, 0.0
      %v872 = vmax.f32 %v808, 0.0
      %v873 = vmax.f32 %v809, 0.0
      %v874 = vmax.f32 %v810, 0.0
      %v875 = vmax.f32 %v811, 0.0
      %v876 = vmax.f32 %v812, 0.0
      %v877 = vmax.f32 %v813, 0.0
      %v878 = vmax.f32 %v814, 0.0
      %v879 = vmax.f32 %v815, 0.0
      %v880 = vmax.f32 %v816, 0.0
      %v881 = vmax.f32 %v817, 0.0
      %v882 = vmax.f32 %v818, 0.0
      %v883 = vmax.f32 %v819, 0.0
      %v884 = vmax.f32 %v820, 0.0
      %v885 = vmax.f32 %v821, 0.0
      %v886 = vmax.f32 %v822, 0.0
      %v887 = vmax.f32 %v823, 0.0
      %v888 = vmax.f32 %v824, 0.0
      %v889 = vmax.f32 %v825, 0.0
      %v890 = vmax.f32 %v826, 0.0
      %v891 = vmax.f32 %v827, 0.0
      %v892 = vmax.f32 %v828, 0.0
      %v893 = vmax.f32 %v829, 0.0
      %v894 = vmax.f32 %v830, 0.0
      %v895 = vmax.f32 %v831, 0.0
      %v896 = vmax.f32 %v832, 0.0
      %v897 = vmax.f32 %v833, 0.0
      %v898 = vmax.f32 %v834, 0.0
      %v899 = vmax.f32 %v835, 0.0
      %v900 = vmax.f32 %v836, 0.0
      %v901 = vmax.f32 %v837, 0.0
      %v902 = vmax.f32 %v838, 0.0
      %v903 = vmax.f32 %v839, 0.0
      %v904 = vmax.f32 %v840, 0.0
      %v905 = vmax.f32 %v841, 0.0
      %v906 = vmax.f32 %v842, 0.0
      %v907 = vmax.f32 %v843, 0.0
      %v908 = vmax.f32 %v844, 0.0
      %v909 = vmax.f32 %v845, 0.0
      %v910 = vmax.f32 %v846, 0.0
      %v911 = vmax.f32 %v847, 0.0
      %v912 = vmax.f32 %v848, 0.0
      %v913 = vmax.f32 %v849, 0.0
      %v914 = vmax.f32 %v850, 0.0
      %v915 = vmax.f32 %v851, 0.0
      %v916 = vmax.f32 %v852, 0.0
      %v917 = vmax.f32 %v853, 0.0
      %v918 = vmax.f32 %v854, 0.0
      %v919 = vld [vmem:[%s3] sm:$0x1]
      %v921 = vlaneseq
      %v922 = vshrl.u32 %v921, 7
      %v923 = vsub.s32 0, %v922
      %v924 = vrot.slane %v919, %v923
      %v926 = vmul.f32 %v855, %v924
      %v927 = vmul.f32 %v856, %v924
      %v928 = vmul.f32 %v857, %v924
      %v929 = vmul.f32 %v858, %v924
      %v930 = vmul.f32 %v859, %v924
      %v931 = vmul.f32 %v860, %v924
      %v932 = vmul.f32 %v861, %v924
      %v933 = vmul.f32 %v862, %v924
      %v934 = vmul.f32 %v863, %v924
      %v935 = vmul.f32 %v864, %v924
      %v936 = vmul.f32 %v865, %v924
      %v937 = vmul.f32 %v866, %v924
      %v938 = vmul.f32 %v867, %v924
      %v939 = vmul.f32 %v868, %v924
      %v940 = vmul.f32 %v869, %v924
      %v941 = vmul.f32 %v870, %v924
      %v942 = vmul.f32 %v871, %v924
      %v943 = vmul.f32 %v872, %v924
      %v944 = vmul.f32 %v873, %v924
      %v945 = vmul.f32 %v874, %v924
      %v946 = vmul.f32 %v875, %v924
      %v947 = vmul.f32 %v876, %v924
      %v948 = vmul.f32 %v877, %v924
      %v949 = vmul.f32 %v878, %v924
      %v950 = vmul.f32 %v879, %v924
      %v951 = vmul.f32 %v880, %v924
      %v952 = vmul.f32 %v881, %v924
      %v953 = vmul.f32 %v882, %v924
      %v954 = vmul.f32 %v883, %v924
      %v955 = vmul.f32 %v884, %v924
      %v956 = vmul.f32 %v885, %v924
      %v957 = vmul.f32 %v886, %v924
      %v958 = vmul.f32 %v887, %v924
      %v959 = vmul.f32 %v888, %v924
      %v960 = vmul.f32 %v889, %v924
      %v961 = vmul.f32 %v890, %v924
      %v962 = vmul.f32 %v891, %v924
      %v963 = vmul.f32 %v892, %v924
      %v964 = vmul.f32 %v893, %v924
      %v965 = vmul.f32 %v894, %v924
      %v966 = vmul.f32 %v895, %v924
      %v967 = vmul.f32 %v896, %v924
      %v968 = vmul.f32 %v897, %v924
      %v969 = vmul.f32 %v898, %v924
      %v970 = vmul.f32 %v899, %v924
      %v971 = vmul.f32 %v900, %v924
      %v972 = vmul.f32 %v901, %v924
      %v973 = vmul.f32 %v902, %v924
      %v974 = vmul.f32 %v903, %v924
      %v975 = vmul.f32 %v904, %v924
      %v976 = vmul.f32 %v905, %v924
      %v977 = vmul.f32 %v906, %v924
      %v978 = vmul.f32 %v907, %v924
      %v979 = vmul.f32 %v908, %v924
      %v980 = vmul.f32 %v909, %v924
      %v981 = vmul.f32 %v910, %v924
      %v982 = vmul.f32 %v911, %v924
      %v983 = vmul.f32 %v912, %v924
      %v984 = vmul.f32 %v913, %v924
      %v985 = vmul.f32 %v914, %v924
      %v986 = vmul.f32 %v915, %v924
      %v987 = vmul.f32 %v916, %v924
      %v988 = vmul.f32 %v917, %v924
      %v989 = vmul.f32 %v918, %v924
      %vm990 = vcmask 523264
      %v991 = vsel %vm990, %v926, 0.0
      %992 = vadd.xlane.f32.xlu0 %v991
      %v993 = vpop.xlane.xlu0 %992
      %v994 = vsel %vm990, %v927, 0.0
      %995 = vadd.xlane.f32.xlu0 %v994
      %v996 = vpop.xlane.xlu0 %995
      %v997 = vsel %vm990, %v928, 0.0
      %998 = vadd.xlane.f32.xlu0 %v997
      %v999 = vpop.xlane.xlu0 %998
      %v1000 = vsel %vm990, %v929, 0.0
      %1001 = vadd.xlane.f32.xlu0 %v1000
      %v1002 = vpop.xlane.xlu0 %1001
      %v1003 = vsel %vm990, %v930, 0.0
      %1004 = vadd.xlane.f32.xlu0 %v1003
      %v1005 = vpop.xlane.xlu0 %1004
      %v1006 = vsel %vm990, %v931, 0.0
      %1007 = vadd.xlane.f32.xlu0 %v1006
      %v1008 = vpop.xlane.xlu0 %1007
      %v1009 = vsel %vm990, %v932, 0.0
      %1010 = vadd.xlane.f32.xlu0 %v1009
      %v1011 = vpop.xlane.xlu0 %1010
      %v1012 = vsel %vm990, %v933, 0.0
      %1013 = vadd.xlane.f32.xlu0 %v1012
      %v1014 = vpop.xlane.xlu0 %1013
      %v1015 = vsel %vm990, %v934, 0.0
      %1016 = vadd.xlane.f32.xlu0 %v1015
      %v1017 = vpop.xlane.xlu0 %1016
      %v1018 = vsel %vm990, %v935, 0.0
      %1019 = vadd.xlane.f32.xlu0 %v1018
      %v1020 = vpop.xlane.xlu0 %1019
      %v1021 = vsel %vm990, %v936, 0.0
      %1022 = vadd.xlane.f32.xlu0 %v1021
      %v1023 = vpop.xlane.xlu0 %1022
      %v1024 = vsel %vm990, %v937, 0.0
      %1025 = vadd.xlane.f32.xlu0 %v1024
      %v1026 = vpop.xlane.xlu0 %1025
      %v1027 = vsel %vm990, %v938, 0.0
      %1028 = vadd.xlane.f32.xlu0 %v1027
      %v1029 = vpop.xlane.xlu0 %1028
      %v1030 = vsel %vm990, %v939, 0.0
      %1031 = vadd.xlane.f32.xlu0 %v1030
      %v1032 = vpop.xlane.xlu0 %1031
      %v1033 = vsel %vm990, %v940, 0.0
      %1034 = vadd.xlane.f32.xlu0 %v1033
      %v1035 = vpop.xlane.xlu0 %1034
      %v1036 = vsel %vm990, %v941, 0.0
      %1037 = vadd.xlane.f32.xlu0 %v1036
      %v1038 = vpop.xlane.xlu0 %1037
      %v1039 = vsel %vm990, %v942, 0.0
      %1040 = vadd.xlane.f32.xlu0 %v1039
      %v1041 = vpop.xlane.xlu0 %1040
      %v1042 = vsel %vm990, %v943, 0.0
      %1043 = vadd.xlane.f32.xlu0 %v1042
      %v1044 = vpop.xlane.xlu0 %1043
      %v1045 = vsel %vm990, %v944, 0.0
      %1046 = vadd.xlane.f32.xlu0 %v1045
      %v1047 = vpop.xlane.xlu0 %1046
      %v1048 = vsel %vm990, %v945, 0.0
      %1049 = vadd.xlane.f32.xlu0 %v1048
      %v1050 = vpop.xlane.xlu0 %1049
      %v1051 = vsel %vm990, %v946, 0.0
      %1052 = vadd.xlane.f32.xlu0 %v1051
      %v1053 = vpop.xlane.xlu0 %1052
      %v1054 = vsel %vm990, %v947, 0.0
      %1055 = vadd.xlane.f32.xlu0 %v1054
      %v1056 = vpop.xlane.xlu0 %1055
      %v1057 = vsel %vm990, %v948, 0.0
      %1058 = vadd.xlane.f32.xlu0 %v1057
      %v1059 = vpop.xlane.xlu0 %1058
      %v1060 = vsel %vm990, %v949, 0.0
      %1061 = vadd.xlane.f32.xlu0 %v1060
      %v1062 = vpop.xlane.xlu0 %1061
      %v1063 = vsel %vm990, %v950, 0.0
      %1064 = vadd.xlane.f32.xlu0 %v1063
      %v1065 = vpop.xlane.xlu0 %1064
      %v1066 = vsel %vm990, %v951, 0.0
      %1067 = vadd.xlane.f32.xlu0 %v1066
      %v1068 = vpop.xlane.xlu0 %1067
      %v1069 = vsel %vm990, %v952, 0.0
      %1070 = vadd.xlane.f32.xlu0 %v1069
      %v1071 = vpop.xlane.xlu0 %1070
      %v1072 = vsel %vm990, %v953, 0.0
      %1073 = vadd.xlane.f32.xlu0 %v1072
      %v1074 = vpop.xlane.xlu0 %1073
      %v1075 = vsel %vm990, %v954, 0.0
      %1076 = vadd.xlane.f32.xlu0 %v1075
      %v1077 = vpop.xlane.xlu0 %1076
      %v1078 = vsel %vm990, %v955, 0.0
      %1079 = vadd.xlane.f32.xlu0 %v1078
      %v1080 = vpop.xlane.xlu0 %1079
      %v1081 = vsel %vm990, %v956, 0.0
      %1082 = vadd.xlane.f32.xlu0 %v1081
      %v1083 = vpop.xlane.xlu0 %1082
      %v1084 = vsel %vm990, %v957, 0.0
      %1085 = vadd.xlane.f32.xlu0 %v1084
      %v1086 = vpop.xlane.xlu0 %1085
      %v1087 = vsel %vm990, %v958, 0.0
      %1088 = vadd.xlane.f32.xlu0 %v1087
      %v1089 = vpop.xlane.xlu0 %1088
      %v1090 = vsel %vm990, %v959, 0.0
      %1091 = vadd.xlane.f32.xlu0 %v1090
      %v1092 = vpop.xlane.xlu0 %1091
      %v1093 = vsel %vm990, %v960, 0.0
      %1094 = vadd.xlane.f32.xlu0 %v1093
      %v1095 = vpop.xlane.xlu0 %1094
      %v1096 = vsel %vm990, %v961, 0.0
      %1097 = vadd.xlane.f32.xlu0 %v1096
      %v1098 = vpop.xlane.xlu0 %1097
      %v1099 = vsel %vm990, %v962, 0.0
      %1100 = vadd.xlane.f32.xlu0 %v1099
      %v1101 = vpop.xlane.xlu0 %1100
      %v1102 = vsel %vm990, %v963, 0.0
      %1103 = vadd.xlane.f32.xlu0 %v1102
      %v1104 = vpop.xlane.xlu0 %1103
      %v1105 = vsel %vm990, %v964, 0.0
      %1106 = vadd.xlane.f32.xlu0 %v1105
      %v1107 = vpop.xlane.xlu0 %1106
      %v1108 = vsel %vm990, %v965, 0.0
      %1109 = vadd.xlane.f32.xlu0 %v1108
      %v1110 = vpop.xlane.xlu0 %1109
      %v1111 = vsel %vm990, %v966, 0.0
      %1112 = vadd.xlane.f32.xlu0 %v1111
      %v1113 = vpop.xlane.xlu0 %1112
      %v1114 = vsel %vm990, %v967, 0.0
      %1115 = vadd.xlane.f32.xlu0 %v1114
      %v1116 = vpop.xlane.xlu0 %1115
      %v1117 = vsel %vm990, %v968, 0.0
      %1118 = vadd.xlane.f32.xlu0 %v1117
      %v1119 = vpop.xlane.xlu0 %1118
      %v1120 = vsel %vm990, %v969, 0.0
      %1121 = vadd.xlane.f32.xlu0 %v1120
      %v1122 = vpop.xlane.xlu0 %1121
      %v1123 = vsel %vm990, %v970, 0.0
      %1124 = vadd.xlane.f32.xlu0 %v1123
      %v1125 = vpop.xlane.xlu0 %1124
      %v1126 = vsel %vm990, %v971, 0.0
      %1127 = vadd.xlane.f32.xlu0 %v1126
      %v1128 = vpop.xlane.xlu0 %1127
      %v1129 = vsel %vm990, %v972, 0.0
      %1130 = vadd.xlane.f32.xlu0 %v1129
      %v1131 = vpop.xlane.xlu0 %1130
      %v1132 = vsel %vm990, %v973, 0.0
      %1133 = vadd.xlane.f32.xlu0 %v1132
      %v1134 = vpop.xlane.xlu0 %1133
      %v1135 = vsel %vm990, %v974, 0.0
      %1136 = vadd.xlane.f32.xlu0 %v1135
      %v1137 = vpop.xlane.xlu0 %1136
      %v1138 = vsel %vm990, %v975, 0.0
      %1139 = vadd.xlane.f32.xlu0 %v1138
      %v1140 = vpop.xlane.xlu0 %1139
      %v1141 = vsel %vm990, %v976, 0.0
      %1142 = vadd.xlane.f32.xlu0 %v1141
      %v1143 = vpop.xlane.xlu0 %1142
      %v1144 = vsel %vm990, %v977, 0.0
      %1145 = vadd.xlane.f32.xlu0 %v1144
      %v1146 = vpop.xlane.xlu0 %1145
      %v1147 = vsel %vm990, %v978, 0.0
      %1148 = vadd.xlane.f32.xlu0 %v1147
      %v1149 = vpop.xlane.xlu0 %1148
      %v1150 = vsel %vm990, %v979, 0.0
      %1151 = vadd.xlane.f32.xlu0 %v1150
      %v1152 = vpop.xlane.xlu0 %1151
      %v1153 = vsel %vm990, %v980, 0.0
      %1154 = vadd.xlane.f32.xlu0 %v1153
      %v1155 = vpop.xlane.xlu0 %1154
      %v1156 = vsel %vm990, %v981, 0.0
      %1157 = vadd.xlane.f32.xlu0 %v1156
      %v1158 = vpop.xlane.xlu0 %1157
      %v1159 = vsel %vm990, %v982, 0.0
      %1160 = vadd.xlane.f32.xlu0 %v1159
      %v1161 = vpop.xlane.xlu0 %1160
      %v1162 = vsel %vm990, %v983, 0.0
      %1163 = vadd.xlane.f32.xlu0 %v1162
      %v1164 = vpop.xlane.xlu0 %1163
      %v1165 = vsel %vm990, %v984, 0.0
      %1166 = vadd.xlane.f32.xlu0 %v1165
      %v1167 = vpop.xlane.xlu0 %1166
      %v1168 = vsel %vm990, %v985, 0.0
      %1169 = vadd.xlane.f32.xlu0 %v1168
      %v1170 = vpop.xlane.xlu0 %1169
      %v1171 = vsel %vm990, %v986, 0.0
      %1172 = vadd.xlane.f32.xlu0 %v1171
      %v1173 = vpop.xlane.xlu0 %1172
      %v1174 = vsel %vm990, %v987, 0.0
      %1175 = vadd.xlane.f32.xlu0 %v1174
      %v1176 = vpop.xlane.xlu0 %1175
      %v1177 = vsel %vm990, %v988, 0.0
      %1178 = vadd.xlane.f32.xlu0 %v1177
      %v1179 = vpop.xlane.xlu0 %1178
      %v1180 = vsel %vm990, %v989, 0.0
      %1181 = vadd.xlane.f32.xlu0 %v1180
      %v1182 = vpop.xlane.xlu0 %1181
      %v1183 = vand.u32 2147483647, %v993
      %v1184 = vand.u32 2147483647, %v996
      %v1185 = vand.u32 2147483647, %v999
      %v1186 = vand.u32 2147483647, %v1002
      %v1187 = vand.u32 2147483647, %v1005
      %v1188 = vand.u32 2147483647, %v1008
      %v1189 = vand.u32 2147483647, %v1011
      %v1190 = vand.u32 2147483647, %v1014
      %v1191 = vand.u32 2147483647, %v1017
      %v1192 = vand.u32 2147483647, %v1020
      %v1193 = vand.u32 2147483647, %v1023
      %v1194 = vand.u32 2147483647, %v1026
      %v1195 = vand.u32 2147483647, %v1029
      %v1196 = vand.u32 2147483647, %v1032
      %v1197 = vand.u32 2147483647, %v1035
      %v1198 = vand.u32 2147483647, %v1038
      %v1199 = vand.u32 2147483647, %v1041
      %v1200 = vand.u32 2147483647, %v1044
      %v1201 = vand.u32 2147483647, %v1047
      %v1202 = vand.u32 2147483647, %v1050
      %v1203 = vand.u32 2147483647, %v1053
      %v1204 = vand.u32 2147483647, %v1056
      %v1205 = vand.u32 2147483647, %v1059
      %v1206 = vand.u32 2147483647, %v1062
      %v1207 = vand.u32 2147483647, %v1065
      %v1208 = vand.u32 2147483647, %v1068
      %v1209 = vand.u32 2147483647, %v1071
      %v1210 = vand.u32 2147483647, %v1074
      %v1211 = vand.u32 2147483647, %v1077
      %v1212 = vand.u32 2147483647, %v1080
      %v1213 = vand.u32 2147483647, %v1083
      %v1214 = vand.u32 2147483647, %v1086
      %v1215 = vand.u32 2147483647, %v1089
      %v1216 = vand.u32 2147483647, %v1092
      %v1217 = vand.u32 2147483647, %v1095
      %v1218 = vand.u32 2147483647, %v1098
      %v1219 = vand.u32 2147483647, %v1101
      %v1220 = vand.u32 2147483647, %v1104
      %v1221 = vand.u32 2147483647, %v1107
      %v1222 = vand.u32 2147483647, %v1110
      %v1223 = vand.u32 2147483647, %v1113
      %v1224 = vand.u32 2147483647, %v1116
      %v1225 = vand.u32 2147483647, %v1119
      %v1226 = vand.u32 2147483647, %v1122
      %v1227 = vand.u32 2147483647, %v1125
      %v1228 = vand.u32 2147483647, %v1128
      %v1229 = vand.u32 2147483647, %v1131
      %v1230 = vand.u32 2147483647, %v1134
      %v1231 = vand.u32 2147483647, %v1137
      %v1232 = vand.u32 2147483647, %v1140
      %v1233 = vand.u32 2147483647, %v1143
      %v1234 = vand.u32 2147483647, %v1146
      %v1235 = vand.u32 2147483647, %v1149
      %v1236 = vand.u32 2147483647, %v1152
      %v1237 = vand.u32 2147483647, %v1155
      %v1238 = vand.u32 2147483647, %v1158
      %v1239 = vand.u32 2147483647, %v1161
      %v1240 = vand.u32 2147483647, %v1164
      %v1241 = vand.u32 2147483647, %v1167
      %v1242 = vand.u32 2147483647, %v1170
      %v1243 = vand.u32 2147483647, %v1173
      %v1244 = vand.u32 2147483647, %v1176
      %v1245 = vand.u32 2147483647, %v1179
      %v1246 = vand.u32 2147483647, %v1182
      %v1247 = vsub.f32 0.0, %v1183
      %v1248 = vsub.f32 0.0, %v1184
      %v1249 = vsub.f32 0.0, %v1185
      %v1250 = vsub.f32 0.0, %v1186
      %v1251 = vsub.f32 0.0, %v1187
      %v1252 = vsub.f32 0.0, %v1188
      %v1253 = vsub.f32 0.0, %v1189
      %v1254 = vsub.f32 0.0, %v1190
      %v1255 = vsub.f32 0.0, %v1191
      %v1256 = vsub.f32 0.0, %v1192
      %v1257 = vsub.f32 0.0, %v1193
      %v1258 = vsub.f32 0.0, %v1194
      %v1259 = vsub.f32 0.0, %v1195
      %v1260 = vsub.f32 0.0, %v1196
      %v1261 = vsub.f32 0.0, %v1197
      %v1262 = vsub.f32 0.0, %v1198
      %v1263 = vsub.f32 0.0, %v1199
      %v1264 = vsub.f32 0.0, %v1200
      %v1265 = vsub.f32 0.0, %v1201
      %v1266 = vsub.f32 0.0, %v1202
      %v1267 = vsub.f32 0.0, %v1203
      %v1268 = vsub.f32 0.0, %v1204
      %v1269 = vsub.f32 0.0, %v1205
      %v1270 = vsub.f32 0.0, %v1206
      %v1271 = vsub.f32 0.0, %v1207
      %v1272 = vsub.f32 0.0, %v1208
      %v1273 = vsub.f32 0.0, %v1209
      %v1274 = vsub.f32 0.0, %v1210
      %v1275 = vsub.f32 0.0, %v1211
      %v1276 = vsub.f32 0.0, %v1212
      %v1277 = vsub.f32 0.0, %v1213
      %v1278 = vsub.f32 0.0, %v1214
      %v1279 = vsub.f32 0.0, %v1215
      %v1280 = vsub.f32 0.0, %v1216
      %v1281 = vsub.f32 0.0, %v1217
      %v1282 = vsub.f32 0.0, %v1218
      %v1283 = vsub.f32 0.0, %v1219
      %v1284 = vsub.f32 0.0, %v1220
      %v1285 = vsub.f32 0.0, %v1221
      %v1286 = vsub.f32 0.0, %v1222
      %v1287 = vsub.f32 0.0, %v1223
      %v1288 = vsub.f32 0.0, %v1224
      %v1289 = vsub.f32 0.0, %v1225
      %v1290 = vsub.f32 0.0, %v1226
      %v1291 = vsub.f32 0.0, %v1227
      %v1292 = vsub.f32 0.0, %v1228
      %v1293 = vsub.f32 0.0, %v1229
      %v1294 = vsub.f32 0.0, %v1230
      %v1295 = vsub.f32 0.0, %v1231
      %v1296 = vsub.f32 0.0, %v1232
      %v1297 = vsub.f32 0.0, %v1233
      %v1298 = vsub.f32 0.0, %v1234
      %v1299 = vsub.f32 0.0, %v1235
      %v1300 = vsub.f32 0.0, %v1236
      %v1301 = vsub.f32 0.0, %v1237
      %v1302 = vsub.f32 0.0, %v1238
      %v1303 = vsub.f32 0.0, %v1239
      %v1304 = vsub.f32 0.0, %v1240
      %v1305 = vsub.f32 0.0, %v1241
      %v1306 = vsub.f32 0.0, %v1242
      %v1307 = vsub.f32 0.0, %v1243
      %v1308 = vsub.f32 0.0, %v1244
      %v1309 = vsub.f32 0.0, %v1245
      %v1310 = vsub.f32 0.0, %v1246
      %v1311 = vmul.f32 %v1247, 1.442695
      %v1312 = vpow.pop %v1311
      %v1313 = vmul.f32 %v1248, 1.442695
      %v1314 = vpow.pop %v1313
      %v1315 = vmul.f32 %v1249, 1.442695
      %v1316 = vpow.pop %v1315
      %v1317 = vmul.f32 %v1250, 1.442695
      %v1318 = vpow.pop %v1317
      %v1319 = vmul.f32 %v1251, 1.442695
      %v1320 = vpow.pop %v1319
      %v1321 = vmul.f32 %v1252, 1.442695
      %v1322 = vpow.pop %v1321
      %v1323 = vmul.f32 %v1253, 1.442695
      %v1324 = vpow.pop %v1323
      %v1325 = vmul.f32 %v1254, 1.442695
      %v1326 = vpow.pop %v1325
      %v1327 = vmul.f32 %v1255, 1.442695
      %v1328 = vpow.pop %v1327
      %v1329 = vmul.f32 %v1256, 1.442695
      %v1330 = vpow.pop %v1329
      %v1331 = vmul.f32 %v1257, 1.442695
      %v1332 = vpow.pop %v1331
      %v1333 = vmul.f32 %v1258, 1.442695
      %v1334 = vpow.pop %v1333
      %v1335 = vmul.f32 %v1259, 1.442695
      %v1336 = vpow.pop %v1335
      %v1337 = vmul.f32 %v1260, 1.442695
      %v1338 = vpow.pop %v1337
      %v1339 = vmul.f32 %v1261, 1.442695
      %v1340 = vpow.pop %v1339
      %v1341 = vmul.f32 %v1262, 1.442695
      %v1342 = vpow.pop %v1341
      %v1343 = vmul.f32 %v1263, 1.442695
      %v1344 = vpow.pop %v1343
      %v1345 = vmul.f32 %v1264, 1.442695
      %v1346 = vpow.pop %v1345
      %v1347 = vmul.f32 %v1265, 1.442695
      %v1348 = vpow.pop %v1347
      %v1349 = vmul.f32 %v1266, 1.442695
      %v1350 = vpow.pop %v1349
      %v1351 = vmul.f32 %v1267, 1.442695
      %v1352 = vpow.pop %v1351
      %v1353 = vmul.f32 %v1268, 1.442695
      %v1354 = vpow.pop %v1353
      %v1355 = vmul.f32 %v1269, 1.442695
      %v1356 = vpow.pop %v1355
      %v1357 = vmul.f32 %v1270, 1.442695
      %v1358 = vpow.pop %v1357
      %v1359 = vmul.f32 %v1271, 1.442695
      %v1360 = vpow.pop %v1359
      %v1361 = vmul.f32 %v1272, 1.442695
      %v1362 = vpow.pop %v1361
      %v1363 = vmul.f32 %v1273, 1.442695
      %v1364 = vpow.pop %v1363
      %v1365 = vmul.f32 %v1274, 1.442695
      %v1366 = vpow.pop %v1365
      %v1367 = vmul.f32 %v1275, 1.442695
      %v1368 = vpow.pop %v1367
      %v1369 = vmul.f32 %v1276, 1.442695
      %v1370 = vpow.pop %v1369
      %v1371 = vmul.f32 %v1277, 1.442695
      %v1372 = vpow.pop %v1371
      %v1373 = vmul.f32 %v1278, 1.442695
      %v1374 = vpow.pop %v1373
      %v1375 = vmul.f32 %v1279, 1.442695
      %v1376 = vpow.pop %v1375
      %v1377 = vmul.f32 %v1280, 1.442695
      %v1378 = vpow.pop %v1377
      %v1379 = vmul.f32 %v1281, 1.442695
      %v1380 = vpow.pop %v1379
      %v1381 = vmul.f32 %v1282, 1.442695
      %v1382 = vpow.pop %v1381
      %v1383 = vmul.f32 %v1283, 1.442695
      %v1384 = vpow.pop %v1383
      %v1385 = vmul.f32 %v1284, 1.442695
      %v1386 = vpow.pop %v1385
      %v1387 = vmul.f32 %v1285, 1.442695
      %v1388 = vpow.pop %v1387
      %v1389 = vmul.f32 %v1286, 1.442695
      %v1390 = vpow.pop %v1389
      %v1391 = vmul.f32 %v1287, 1.442695
      %v1392 = vpow.pop %v1391
      %v1393 = vmul.f32 %v1288, 1.442695
      %v1394 = vpow.pop %v1393
      %v1395 = vmul.f32 %v1289, 1.442695
      %v1396 = vpow.pop %v1395
      %v1397 = vmul.f32 %v1290, 1.442695
      %v1398 = vpow.pop %v1397
      %v1399 = vmul.f32 %v1291, 1.442695
      %v1400 = vpow.pop %v1399
      %v1401 = vmul.f32 %v1292, 1.442695
      %v1402 = vpow.pop %v1401
      %v1403 = vmul.f32 %v1293, 1.442695
      %v1404 = vpow.pop %v1403
      %v1405 = vmul.f32 %v1294, 1.442695
      %v1406 = vpow.pop %v1405
      %v1407 = vmul.f32 %v1295, 1.442695
      %v1408 = vpow.pop %v1407
      %v1409 = vmul.f32 %v1296, 1.442695
      %v1410 = vpow.pop %v1409
      %v1411 = vmul.f32 %v1297, 1.442695
      %v1412 = vpow.pop %v1411
      %v1413 = vmul.f32 %v1298, 1.442695
      %v1414 = vpow.pop %v1413
      %v1415 = vmul.f32 %v1299, 1.442695
      %v1416 = vpow.pop %v1415
      %v1417 = vmul.f32 %v1300, 1.442695
      %v1418 = vpow.pop %v1417
      %v1419 = vmul.f32 %v1301, 1.442695
      %v1420 = vpow.pop %v1419
      %v1421 = vmul.f32 %v1302, 1.442695
      %v1422 = vpow.pop %v1421
      %v1423 = vmul.f32 %v1303, 1.442695
      %v1424 = vpow.pop %v1423
      %v1425 = vmul.f32 %v1304, 1.442695
      %v1426 = vpow.pop %v1425
      %v1427 = vmul.f32 %v1305, 1.442695
      %v1428 = vpow.pop %v1427
      %v1429 = vmul.f32 %v1306, 1.442695
      %v1430 = vpow.pop %v1429
      %v1431 = vmul.f32 %v1307, 1.442695
      %v1432 = vpow.pop %v1431
      %v1433 = vmul.f32 %v1308, 1.442695
      %v1434 = vpow.pop %v1433
      %v1435 = vmul.f32 %v1309, 1.442695
      %v1436 = vpow.pop %v1435
      %v1437 = vmul.f32 %v1310, 1.442695
      %v1438 = vpow.pop %v1437
      %vm1439 = vcmp.ge.f32.partialorder %v993, 0.0
      %vm1440 = vcmp.ge.f32.partialorder %v996, 0.0
      %vm1441 = vcmp.ge.f32.partialorder %v999, 0.0
      %vm1442 = vcmp.ge.f32.partialorder %v1002, 0.0
      %vm1443 = vcmp.ge.f32.partialorder %v1005, 0.0
      %vm1444 = vcmp.ge.f32.partialorder %v1008, 0.0
      %vm1445 = vcmp.ge.f32.partialorder %v1011, 0.0
      %vm1446 = vcmp.ge.f32.partialorder %v1014, 0.0
      %vm1447 = vcmp.ge.f32.partialorder %v1017, 0.0
      %vm1448 = vcmp.ge.f32.partialorder %v1020, 0.0
      %vm1449 = vcmp.ge.f32.partialorder %v1023, 0.0
      %vm1450 = vcmp.ge.f32.partialorder %v1026, 0.0
      %vm1451 = vcmp.ge.f32.partialorder %v1029, 0.0
      %vm1452 = vcmp.ge.f32.partialorder %v1032, 0.0
      %vm1453 = vcmp.ge.f32.partialorder %v1035, 0.0
      %vm1454 = vcmp.ge.f32.partialorder %v1038, 0.0
      %vm1455 = vcmp.ge.f32.partialorder %v1041, 0.0
      %vm1456 = vcmp.ge.f32.partialorder %v1044, 0.0
      %vm1457 = vcmp.ge.f32.partialorder %v1047, 0.0
      %vm1458 = vcmp.ge.f32.partialorder %v1050, 0.0
      %vm1459 = vcmp.ge.f32.partialorder %v1053, 0.0
      %vm1460 = vcmp.ge.f32.partialorder %v1056, 0.0
      %vm1461 = vcmp.ge.f32.partialorder %v1059, 0.0
      %vm1462 = vcmp.ge.f32.partialorder %v1062, 0.0
      %vm1463 = vcmp.ge.f32.partialorder %v1065, 0.0
      %vm1464 = vcmp.ge.f32.partialorder %v1068, 0.0
      %vm1465 = vcmp.ge.f32.partialorder %v1071, 0.0
      %vm1466 = vcmp.ge.f32.partialorder %v1074, 0.0
      %vm1467 = vcmp.ge.f32.partialorder %v1077, 0.0
      %vm1468 = vcmp.ge.f32.partialorder %v1080, 0.0
      %vm1469 = vcmp.ge.f32.partialorder %v1083, 0.0
      %vm1470 = vcmp.ge.f32.partialorder %v1086, 0.0
      %vm1471 = vcmp.ge.f32.partialorder %v1089, 0.0
      %vm1472 = vcmp.ge.f32.partialorder %v1092, 0.0
      %vm1473 = vcmp.ge.f32.partialorder %v1095, 0.0
      %vm1474 = vcmp.ge.f32.partialorder %v1098, 0.0
      %vm1475 = vcmp.ge.f32.partialorder %v1101, 0.0
      %vm1476 = vcmp.ge.f32.partialorder %v1104, 0.0
      %vm1477 = vcmp.ge.f32.partialorder %v1107, 0.0
      %vm1478 = vcmp.ge.f32.partialorder %v1110, 0.0
      %vm1479 = vcmp.ge.f32.partialorder %v1113, 0.0
      %vm1480 = vcmp.ge.f32.partialorder %v1116, 0.0
      %vm1481 = vcmp.ge.f32.partialorder %v1119, 0.0
      %vm1482 = vcmp.ge.f32.partialorder %v1122, 0.0
      %vm1483 = vcmp.ge.f32.partialorder %v1125, 0.0
      %vm1484 = vcmp.ge.f32.partialorder %v1128, 0.0
      %vm1485 = vcmp.ge.f32.partialorder %v1131, 0.0
      %vm1486 = vcmp.ge.f32.partialorder %v1134, 0.0
      %vm1487 = vcmp.ge.f32.partialorder %v1137, 0.0
      %vm1488 = vcmp.ge.f32.partialorder %v1140, 0.0
      %vm1489 = vcmp.ge.f32.partialorder %v1143, 0.0
      %vm1490 = vcmp.ge.f32.partialorder %v1146, 0.0
      %vm1491 = vcmp.ge.f32.partialorder %v1149, 0.0
      %vm1492 = vcmp.ge.f32.partialorder %v1152, 0.0
      %vm1493 = vcmp.ge.f32.partialorder %v1155, 0.0
      %vm1494 = vcmp.ge.f32.partialorder %v1158, 0.0
      %vm1495 = vcmp.ge.f32.partialorder %v1161, 0.0
      %vm1496 = vcmp.ge.f32.partialorder %v1164, 0.0
      %vm1497 = vcmp.ge.f32.partialorder %v1167, 0.0
      %vm1498 = vcmp.ge.f32.partialorder %v1170, 0.0
      %vm1499 = vcmp.ge.f32.partialorder %v1173, 0.0
      %vm1500 = vcmp.ge.f32.partialorder %v1176, 0.0
      %vm1501 = vcmp.ge.f32.partialorder %v1179, 0.0
      %vm1502 = vcmp.ge.f32.partialorder %v1182, 0.0
      %v1503 = vadd.f32 %v1312, 1.0
      %v1504 = vadd.f32 %v1314, 1.0
      %v1505 = vadd.f32 %v1316, 1.0
      %v1506 = vadd.f32 %v1318, 1.0
      %v1507 = vadd.f32 %v1320, 1.0
      %v1508 = vadd.f32 %v1322, 1.0
      %v1509 = vadd.f32 %v1324, 1.0
      %v1510 = vadd.f32 %v1326, 1.0
      %v1511 = vadd.f32 %v1328, 1.0
      %v1512 = vadd.f32 %v1330, 1.0
      %v1513 = vadd.f32 %v1332, 1.0
      %v1514 = vadd.f32 %v1334, 1.0
      %v1515 = vadd.f32 %v1336, 1.0
      %v1516 = vadd.f32 %v1338, 1.0
      %v1517 = vadd.f32 %v1340, 1.0
      %v1518 = vadd.f32 %v1342, 1.0
      %v1519 = vadd.f32 %v1344, 1.0
      %v1520 = vadd.f32 %v1346, 1.0
      %v1521 = vadd.f32 %v1348, 1.0
      %v1522 = vadd.f32 %v1350, 1.0
      %v1523 = vadd.f32 %v1352, 1.0
      %v1524 = vadd.f32 %v1354, 1.0
      %v1525 = vadd.f32 %v1356, 1.0
      %v1526 = vadd.f32 %v1358, 1.0
      %v1527 = vadd.f32 %v1360, 1.0
      %v1528 = vadd.f32 %v1362, 1.0
      %v1529 = vadd.f32 %v1364, 1.0
      %v1530 = vadd.f32 %v1366, 1.0
      %v1531 = vadd.f32 %v1368, 1.0
      %v1532 = vadd.f32 %v1370, 1.0
      %v1533 = vadd.f32 %v1372, 1.0
      %v1534 = vadd.f32 %v1374, 1.0
      %v1535 = vadd.f32 %v1376, 1.0
      %v1536 = vadd.f32 %v1378, 1.0
      %v1537 = vadd.f32 %v1380, 1.0
      %v1538 = vadd.f32 %v1382, 1.0
      %v1539 = vadd.f32 %v1384, 1.0
      %v1540 = vadd.f32 %v1386, 1.0
      %v1541 = vadd.f32 %v1388, 1.0
      %v1542 = vadd.f32 %v1390, 1.0
      %v1543 = vadd.f32 %v1392, 1.0
      %v1544 = vadd.f32 %v1394, 1.0
      %v1545 = vadd.f32 %v1396, 1.0
      %v1546 = vadd.f32 %v1398, 1.0
      %v1547 = vadd.f32 %v1400, 1.0
      %v1548 = vadd.f32 %v1402, 1.0
      %v1549 = vadd.f32 %v1404, 1.0
      %v1550 = vadd.f32 %v1406, 1.0
      %v1551 = vadd.f32 %v1408, 1.0
      %v1552 = vadd.f32 %v1410, 1.0
      %v1553 = vadd.f32 %v1412, 1.0
      %v1554 = vadd.f32 %v1414, 1.0
      %v1555 = vadd.f32 %v1416, 1.0
      %v1556 = vadd.f32 %v1418, 1.0
      %v1557 = vadd.f32 %v1420, 1.0
      %v1558 = vadd.f32 %v1422, 1.0
      %v1559 = vadd.f32 %v1424, 1.0
      %v1560 = vadd.f32 %v1426, 1.0
      %v1561 = vadd.f32 %v1428, 1.0
      %v1562 = vadd.f32 %v1430, 1.0
      %v1563 = vadd.f32 %v1432, 1.0
      %v1564 = vadd.f32 %v1434, 1.0
      %v1565 = vadd.f32 %v1436, 1.0
      %v1566 = vadd.f32 %v1438, 1.0
      %v1567 = vrcp.pop %v1503
      %v1568 = vmul.f32 1.0, %v1567
      %v1569 = vrcp.pop %v1504
      %v1570 = vmul.f32 1.0, %v1569
      %v1571 = vrcp.pop %v1505
      %v1572 = vmul.f32 1.0, %v1571
      %v1573 = vrcp.pop %v1506
      %v1574 = vmul.f32 1.0, %v1573
      %v1575 = vrcp.pop %v1507
      %v1576 = vmul.f32 1.0, %v1575
      %v1577 = vrcp.pop %v1508
      %v1578 = vmul.f32 1.0, %v1577
      %v1579 = vrcp.pop %v1509
      %v1580 = vmul.f32 1.0, %v1579
      %v1581 = vrcp.pop %v1510
      %v1582 = vmul.f32 1.0, %v1581
      %v1583 = vrcp.pop %v1511
      %v1584 = vmul.f32 1.0, %v1583
      %v1585 = vrcp.pop %v1512
      %v1586 = vmul.f32 1.0, %v1585
      %v1587 = vrcp.pop %v1513
      %v1588 = vmul.f32 1.0, %v1587
      %v1589 = vrcp.pop %v1514
      %v1590 = vmul.f32 1.0, %v1589
      %v1591 = vrcp.pop %v1515
      %v1592 = vmul.f32 1.0, %v1591
      %v1593 = vrcp.pop %v1516
      %v1594 = vmul.f32 1.0, %v1593
      %v1595 = vrcp.pop %v1517
      %v1596 = vmul.f32 1.0, %v1595
      %v1597 = vrcp.pop %v1518
      %v1598 = vmul.f32 1.0, %v1597
      %v1599 = vrcp.pop %v1519
      %v1600 = vmul.f32 1.0, %v1599
      %v1601 = vrcp.pop %v1520
      %v1602 = vmul.f32 1.0, %v1601
      %v1603 = vrcp.pop %v1521
      %v1604 = vmul.f32 1.0, %v1603
      %v1605 = vrcp.pop %v1522
      %v1606 = vmul.f32 1.0, %v1605
      %v1607 = vrcp.pop %v1523
      %v1608 = vmul.f32 1.0, %v1607
      %v1609 = vrcp.pop %v1524
      %v1610 = vmul.f32 1.0, %v1609
      %v1611 = vrcp.pop %v1525
      %v1612 = vmul.f32 1.0, %v1611
      %v1613 = vrcp.pop %v1526
      %v1614 = vmul.f32 1.0, %v1613
      %v1615 = vrcp.pop %v1527
      %v1616 = vmul.f32 1.0, %v1615
      %v1617 = vrcp.pop %v1528
      %v1618 = vmul.f32 1.0, %v1617
      %v1619 = vrcp.pop %v1529
      %v1620 = vmul.f32 1.0, %v1619
      %v1621 = vrcp.pop %v1530
      %v1622 = vmul.f32 1.0, %v1621
      %v1623 = vrcp.pop %v1531
      %v1624 = vmul.f32 1.0, %v1623
      %v1625 = vrcp.pop %v1532
      %v1626 = vmul.f32 1.0, %v1625
      %v1627 = vrcp.pop %v1533
      %v1628 = vmul.f32 1.0, %v1627
      %v1629 = vrcp.pop %v1534
      %v1630 = vmul.f32 1.0, %v1629
      %v1631 = vrcp.pop %v1535
      %v1632 = vmul.f32 1.0, %v1631
      %v1633 = vrcp.pop %v1536
      %v1634 = vmul.f32 1.0, %v1633
      %v1635 = vrcp.pop %v1537
      %v1636 = vmul.f32 1.0, %v1635
      %v1637 = vrcp.pop %v1538
      %v1638 = vmul.f32 1.0, %v1637
      %v1639 = vrcp.pop %v1539
      %v1640 = vmul.f32 1.0, %v1639
      %v1641 = vrcp.pop %v1540
      %v1642 = vmul.f32 1.0, %v1641
      %v1643 = vrcp.pop %v1541
      %v1644 = vmul.f32 1.0, %v1643
      %v1645 = vrcp.pop %v1542
      %v1646 = vmul.f32 1.0, %v1645
      %v1647 = vrcp.pop %v1543
      %v1648 = vmul.f32 1.0, %v1647
      %v1649 = vrcp.pop %v1544
      %v1650 = vmul.f32 1.0, %v1649
      %v1651 = vrcp.pop %v1545
      %v1652 = vmul.f32 1.0, %v1651
      %v1653 = vrcp.pop %v1546
      %v1654 = vmul.f32 1.0, %v1653
      %v1655 = vrcp.pop %v1547
      %v1656 = vmul.f32 1.0, %v1655
      %v1657 = vrcp.pop %v1548
      %v1658 = vmul.f32 1.0, %v1657
      %v1659 = vrcp.pop %v1549
      %v1660 = vmul.f32 1.0, %v1659
      %v1661 = vrcp.pop %v1550
      %v1662 = vmul.f32 1.0, %v1661
      %v1663 = vrcp.pop %v1551
      %v1664 = vmul.f32 1.0, %v1663
      %v1665 = vrcp.pop %v1552
      %v1666 = vmul.f32 1.0, %v1665
      %v1667 = vrcp.pop %v1553
      %v1668 = vmul.f32 1.0, %v1667
      %v1669 = vrcp.pop %v1554
      %v1670 = vmul.f32 1.0, %v1669
      %v1671 = vrcp.pop %v1555
      %v1672 = vmul.f32 1.0, %v1671
      %v1673 = vrcp.pop %v1556
      %v1674 = vmul.f32 1.0, %v1673
      %v1675 = vrcp.pop %v1557
      %v1676 = vmul.f32 1.0, %v1675
      %v1677 = vrcp.pop %v1558
      %v1678 = vmul.f32 1.0, %v1677
      %v1679 = vrcp.pop %v1559
      %v1680 = vmul.f32 1.0, %v1679
      %v1681 = vrcp.pop %v1560
      %v1682 = vmul.f32 1.0, %v1681
      %v1683 = vrcp.pop %v1561
      %v1684 = vmul.f32 1.0, %v1683
      %v1685 = vrcp.pop %v1562
      %v1686 = vmul.f32 1.0, %v1685
      %v1687 = vrcp.pop %v1563
      %v1688 = vmul.f32 1.0, %v1687
      %v1689 = vrcp.pop %v1564
      %v1690 = vmul.f32 1.0, %v1689
      %v1691 = vrcp.pop %v1565
      %v1692 = vmul.f32 1.0, %v1691
      %v1693 = vrcp.pop %v1566
      %v1694 = vmul.f32 1.0, %v1693
      %v1695 = vmul.f32 %v1312, %v1567
      %v1696 = vmul.f32 %v1314, %v1569
      %v1697 = vmul.f32 %v1316, %v1571
      %v1698 = vmul.f32 %v1318, %v1573
      %v1699 = vmul.f32 %v1320, %v1575
      %v1700 = vmul.f32 %v1322, %v1577
      %v1701 = vmul.f32 %v1324, %v1579
      %v1702 = vmul.f32 %v1326, %v1581
      %v1703 = vmul.f32 %v1328, %v1583
      %v1704 = vmul.f32 %v1330, %v1585
      %v1705 = vmul.f32 %v1332, %v1587
      %v1706 = vmul.f32 %v1334, %v1589
      %v1707 = vmul.f32 %v1336, %v1591
      %v1708 = vmul.f32 %v1338, %v1593
      %v1709 = vmul.f32 %v1340, %v1595
      %v1710 = vmul.f32 %v1342, %v1597
      %v1711 = vmul.f32 %v1344, %v1599
      %v1712 = vmul.f32 %v1346, %v1601
      %v1713 = vmul.f32 %v1348, %v1603
      %v1714 = vmul.f32 %v1350, %v1605
      %v1715 = vmul.f32 %v1352, %v1607
      %v1716 = vmul.f32 %v1354, %v1609
      %v1717 = vmul.f32 %v1356, %v1611
      %v1718 = vmul.f32 %v1358, %v1613
      %v1719 = vmul.f32 %v1360, %v1615
      %v1720 = vmul.f32 %v1362, %v1617
      %v1721 = vmul.f32 %v1364, %v1619
      %v1722 = vmul.f32 %v1366, %v1621
      %v1723 = vmul.f32 %v1368, %v1623
      %v1724 = vmul.f32 %v1370, %v1625
      %v1725 = vmul.f32 %v1372, %v1627
      %v1726 = vmul.f32 %v1374, %v1629
      %v1727 = vmul.f32 %v1376, %v1631
      %v1728 = vmul.f32 %v1378, %v1633
      %v1729 = vmul.f32 %v1380, %v1635
      %v1730 = vmul.f32 %v1382, %v1637
      %v1731 = vmul.f32 %v1384, %v1639
      %v1732 = vmul.f32 %v1386, %v1641
      %v1733 = vmul.f32 %v1388, %v1643
      %v1734 = vmul.f32 %v1390, %v1645
      %v1735 = vmul.f32 %v1392, %v1647
      %v1736 = vmul.f32 %v1394, %v1649
      %v1737 = vmul.f32 %v1396, %v1651
      %v1738 = vmul.f32 %v1398, %v1653
      %v1739 = vmul.f32 %v1400, %v1655
      %v1740 = vmul.f32 %v1402, %v1657
      %v1741 = vmul.f32 %v1404, %v1659
      %v1742 = vmul.f32 %v1406, %v1661
      %v1743 = vmul.f32 %v1408, %v1663
      %v1744 = vmul.f32 %v1410, %v1665
      %v1745 = vmul.f32 %v1412, %v1667
      %v1746 = vmul.f32 %v1414, %v1669
      %v1747 = vmul.f32 %v1416, %v1671
      %v1748 = vmul.f32 %v1418, %v1673
      %v1749 = vmul.f32 %v1420, %v1675
      %v1750 = vmul.f32 %v1422, %v1677
      %v1751 = vmul.f32 %v1424, %v1679
      %v1752 = vmul.f32 %v1426, %v1681
      %v1753 = vmul.f32 %v1428, %v1683
      %v1754 = vmul.f32 %v1430, %v1685
      %v1755 = vmul.f32 %v1432, %v1687
      %v1756 = vmul.f32 %v1434, %v1689
      %v1757 = vmul.f32 %v1436, %v1691
      %v1758 = vmul.f32 %v1438, %v1693
      %v1759 = vsel %vm1439, %v1568, %v1695
      %v1760 = vsel %vm1440, %v1570, %v1696
      %v1761 = vsel %vm1441, %v1572, %v1697
      %v1762 = vsel %vm1442, %v1574, %v1698
      %v1763 = vsel %vm1443, %v1576, %v1699
      %v1764 = vsel %vm1444, %v1578, %v1700
      %v1765 = vsel %vm1445, %v1580, %v1701
      %v1766 = vsel %vm1446, %v1582, %v1702
      %v1767 = vsel %vm1447, %v1584, %v1703
      %v1768 = vsel %vm1448, %v1586, %v1704
      %v1769 = vsel %vm1449, %v1588, %v1705
      %v1770 = vsel %vm1450, %v1590, %v1706
      %v1771 = vsel %vm1451, %v1592, %v1707
      %v1772 = vsel %vm1452, %v1594, %v1708
      %v1773 = vsel %vm1453, %v1596, %v1709
      %v1774 = vsel %vm1454, %v1598, %v1710
      %v1775 = vsel %vm1455, %v1600, %v1711
      %v1776 = vsel %vm1456, %v1602, %v1712
      %v1777 = vsel %vm1457, %v1604, %v1713
      %v1778 = vsel %vm1458, %v1606, %v1714
      %v1779 = vsel %vm1459, %v1608, %v1715
      %v1780 = vsel %vm1460, %v1610, %v1716
      %v1781 = vsel %vm1461, %v1612, %v1717
      %v1782 = vsel %vm1462, %v1614, %v1718
      %v1783 = vsel %vm1463, %v1616, %v1719
      %v1784 = vsel %vm1464, %v1618, %v1720
      %v1785 = vsel %vm1465, %v1620, %v1721
      %v1786 = vsel %vm1466, %v1622, %v1722
      %v1787 = vsel %vm1467, %v1624, %v1723
      %v1788 = vsel %vm1468, %v1626, %v1724
      %v1789 = vsel %vm1469, %v1628, %v1725
      %v1790 = vsel %vm1470, %v1630, %v1726
      %v1791 = vsel %vm1471, %v1632, %v1727
      %v1792 = vsel %vm1472, %v1634, %v1728
      %v1793 = vsel %vm1473, %v1636, %v1729
      %v1794 = vsel %vm1474, %v1638, %v1730
      %v1795 = vsel %vm1475, %v1640, %v1731
      %v1796 = vsel %vm1476, %v1642, %v1732
      %v1797 = vsel %vm1477, %v1644, %v1733
      %v1798 = vsel %vm1478, %v1646, %v1734
      %v1799 = vsel %vm1479, %v1648, %v1735
      %v1800 = vsel %vm1480, %v1650, %v1736
      %v1801 = vsel %vm1481, %v1652, %v1737
      %v1802 = vsel %vm1482, %v1654, %v1738
      %v1803 = vsel %vm1483, %v1656, %v1739
      %v1804 = vsel %vm1484, %v1658, %v1740
      %v1805 = vsel %vm1485, %v1660, %v1741
      %v1806 = vsel %vm1486, %v1662, %v1742
      %v1807 = vsel %vm1487, %v1664, %v1743
      %v1808 = vsel %vm1488, %v1666, %v1744
      %v1809 = vsel %vm1489, %v1668, %v1745
      %v1810 = vsel %vm1490, %v1670, %v1746
      %v1811 = vsel %vm1491, %v1672, %v1747
      %v1812 = vsel %vm1492, %v1674, %v1748
      %v1813 = vsel %vm1493, %v1676, %v1749
      %v1814 = vsel %vm1494, %v1678, %v1750
      %v1815 = vsel %vm1495, %v1680, %v1751
      %v1816 = vsel %vm1496, %v1682, %v1752
      %v1817 = vsel %vm1497, %v1684, %v1753
      %v1818 = vsel %vm1498, %v1686, %v1754
      %v1819 = vsel %vm1499, %v1688, %v1755
      %v1820 = vsel %vm1500, %v1690, %v1756
      %v1821 = vsel %vm1501, %v1692, %v1757
      %v1822 = vsel %vm1502, %v1694, %v1758
      %vm1823 = vcmask 7168
      %1824 = vst.msk [vmem:[%s263] sm:$0xff] %vm1823, %v1759
      %1825 = vst.msk [vmem:[%s263 + $0x8] sm:$0xff] %vm1823, %v1760
      %1826 = vst.msk [vmem:[%s263 + $0x10] sm:$0xff] %vm1823, %v1761
      %1827 = vst.msk [vmem:[%s263 + $0x18] sm:$0xff] %vm1823, %v1762
      %1828 = vst.msk [vmem:[%s263 + $0x20] sm:$0xff] %vm1823, %v1763
      %1829 = vst.msk [vmem:[%s263 + $0x28] sm:$0xff] %vm1823, %v1764
      %1830 = vst.msk [vmem:[%s263 + $0x30] sm:$0xff] %vm1823, %v1765
      %1831 = vst.msk [vmem:[%s263 + $0x38] sm:$0xff] %vm1823, %v1766
      %1832 = vst.msk [vmem:[%s263 + $0x40] sm:$0xff] %vm1823, %v1767
      %1833 = vst.msk [vmem:[%s263 + $0x48] sm:$0xff] %vm1823, %v1768
      %1834 = vst.msk [vmem:[%s263 + $0x50] sm:$0xff] %vm1823, %v1769
      %1835 = vst.msk [vmem:[%s263 + $0x58] sm:$0xff] %vm1823, %v1770
      %1836 = vst.msk [vmem:[%s263 + $0x60] sm:$0xff] %vm1823, %v1771
      %1837 = vst.msk [vmem:[%s263 + $0x68] sm:$0xff] %vm1823, %v1772
      %1838 = vst.msk [vmem:[%s263 + $0x70] sm:$0xff] %vm1823, %v1773
      %1839 = vst.msk [vmem:[%s263 + $0x78] sm:$0xff] %vm1823, %v1774
      %1840 = vst.msk [vmem:[%s263 + $0x80] sm:$0xff] %vm1823, %v1775
      %1841 = vst.msk [vmem:[%s263 + $0x88] sm:$0xff] %vm1823, %v1776
      %1842 = vst.msk [vmem:[%s263 + $0x90] sm:$0xff] %vm1823, %v1777
      %1843 = vst.msk [vmem:[%s263 + $0x98] sm:$0xff] %vm1823, %v1778
      %1844 = vst.msk [vmem:[%s263 + $0xa0] sm:$0xff] %vm1823, %v1779
      %1845 = vst.msk [vmem:[%s263 + $0xa8] sm:$0xff] %vm1823, %v1780
      %1846 = vst.msk [vmem:[%s263 + $0xb0] sm:$0xff] %vm1823, %v1781
      %1847 = vst.msk [vmem:[%s263 + $0xb8] sm:$0xff] %vm1823, %v1782
      %1848 = vst.msk [vmem:[%s263 + $0xc0] sm:$0xff] %vm1823, %v1783
      %1849 = vst.msk [vmem:[%s263 + $0xc8] sm:$0xff] %vm1823, %v1784
      %1850 = vst.msk [vmem:[%s263 + $0xd0] sm:$0xff] %vm1823, %v1785
      %1851 = vst.msk [vmem:[%s263 + $0xd8] sm:$0xff] %vm1823, %v1786
      %1852 = vst.msk [vmem:[%s263 + $0xe0] sm:$0xff] %vm1823, %v1787
      %1853 = vst.msk [vmem:[%s263 + $0xe8] sm:$0xff] %vm1823, %v1788
      %1854 = vst.msk [vmem:[%s263 + $0xf0] sm:$0xff] %vm1823, %v1789
      %1855 = vst.msk [vmem:[%s263 + $0xf8] sm:$0xff] %vm1823, %v1790
      %1856 = vst.msk [vmem:[%s263 + $0x100] sm:$0xff] %vm1823, %v1791
      %1857 = vst.msk [vmem:[%s263 + $0x108] sm:$0xff] %vm1823, %v1792
      %1858 = vst.msk [vmem:[%s263 + $0x110] sm:$0xff] %vm1823, %v1793
      %1859 = vst.msk [vmem:[%s263 + $0x118] sm:$0xff] %vm1823, %v1794
      %1860 = vst.msk [vmem:[%s263 + $0x120] sm:$0xff] %vm1823, %v1795
      %1861 = vst.msk [vmem:[%s263 + $0x128] sm:$0xff] %vm1823, %v1796
      %1862 = vst.msk [vmem:[%s263 + $0x130] sm:$0xff] %vm1823, %v1797
      %1863 = vst.msk [vmem:[%s263 + $0x138] sm:$0xff] %vm1823, %v1798
      %1864 = vst.msk [vmem:[%s263 + $0x140] sm:$0xff] %vm1823, %v1799
      %1865 = vst.msk [vmem:[%s263 + $0x148] sm:$0xff] %vm1823, %v1800
      %1866 = vst.msk [vmem:[%s263 + $0x150] sm:$0xff] %vm1823, %v1801
      %1867 = vst.msk [vmem:[%s263 + $0x158] sm:$0xff] %vm1823, %v1802
      %1868 = vst.msk [vmem:[%s263 + $0x160] sm:$0xff] %vm1823, %v1803
      %1869 = vst.msk [vmem:[%s263 + $0x168] sm:$0xff] %vm1823, %v1804
      %1870 = vst.msk [vmem:[%s263 + $0x170] sm:$0xff] %vm1823, %v1805
      %1871 = vst.msk [vmem:[%s263 + $0x178] sm:$0xff] %vm1823, %v1806
      %1872 = vst.msk [vmem:[%s263 + $0x180] sm:$0xff] %vm1823, %v1807
      %1873 = vst.msk [vmem:[%s263 + $0x188] sm:$0xff] %vm1823, %v1808
      %1874 = vst.msk [vmem:[%s263 + $0x190] sm:$0xff] %vm1823, %v1809
      %1875 = vst.msk [vmem:[%s263 + $0x198] sm:$0xff] %vm1823, %v1810
      %1876 = vst.msk [vmem:[%s263 + $0x1a0] sm:$0xff] %vm1823, %v1811
      %1877 = vst.msk [vmem:[%s263 + $0x1a8] sm:$0xff] %vm1823, %v1812
      %1878 = vst.msk [vmem:[%s263 + $0x1b0] sm:$0xff] %vm1823, %v1813
      %1879 = vst.msk [vmem:[%s263 + $0x1b8] sm:$0xff] %vm1823, %v1814
      %1880 = vst.msk [vmem:[%s263 + $0x1c0] sm:$0xff] %vm1823, %v1815
      %1881 = vst.msk [vmem:[%s263 + $0x1c8] sm:$0xff] %vm1823, %v1816
      %1882 = vst.msk [vmem:[%s263 + $0x1d0] sm:$0xff] %vm1823, %v1817
      %1883 = vst.msk [vmem:[%s263 + $0x1d8] sm:$0xff] %vm1823, %v1818
      %1884 = vst.msk [vmem:[%s263 + $0x1e0] sm:$0xff] %vm1823, %v1819
      %1885 = vst.msk [vmem:[%s263 + $0x1e8] sm:$0xff] %vm1823, %v1820
      %1886 = vst.msk [vmem:[%s263 + $0x1f0] sm:$0xff] %vm1823, %v1821
      %1887 = vst.msk [vmem:[%s263 + $0x1f8] sm:$0xff] %vm1823, %v1822
      %s1888 = smul.u32 64, %s20
      %p1889 = scmp.lt.s32.totalorder %s19, 1
      %s1890 = scalar_select %p1889, %s19, 1
      %p1891 = scmp.lt.s32.totalorder %s1888, 127
      %s1892 = scalar_select %p1891, %s1888, 127
      %s1893 = smul.addr %s1890, 128
      %s1894 = sadd.s32 %s1892, %s1893
      %s1895 = smul.addr %s1894, 8
      %s1896 = scalar_lea.vmem %s4, %s1895
      // Predicated region
      $region37: #{residual_cbn_decoder_forward.15} parent=35 // pred_check
        %p1897 = pneg %p148
      $region38: #{residual_cbn_decoder_forward.15} parent=35 // pred_check_branch
        %1899 = sbr.rel (%p1897) target = $region40
      $region39: #{residual_cbn_decoder_forward.15} parent=35 // pred_region
        %s1900 = smul.u32 64, %s20
      $region40: #{residual_cbn_decoder_forward.15} parent=35 // pred_fallthru
        _
    $region36: #{residual_cbn_decoder_forward.15} parent=5 // pred_fallthru
      _
    %p1901 = scmp.le.s32.totalorder 2, %s10
    // Predicated region
    $region41: #{residual_cbn_decoder_forward.15} parent=5 // pred_check
      %p1902 = pneg %p1901
    $region42: #{residual_cbn_decoder_forward.15} parent=5 // pred_check_branch
      %1904 = sbr.rel (%p1902) target = $region44
    $region43: #{residual_cbn_decoder_forward.15} parent=5 // pred_region
      %s1905 = ssub.s32 %s10, 2
      // Predicated region
      $region45: #{residual_cbn_decoder_forward.15} parent=43 // pred_check
        %p1906 = pneg %p154
      $region46: #{residual_cbn_decoder_forward.15} parent=43 // pred_check_branch
        %1908 = sbr.rel (%p1906) target = $region48
      $region47: #{residual_cbn_decoder_forward.15} parent=43 // pred_region
        %s1909 = smul.u32 64, %s22
        %p1910 = scmp.lt.s32.totalorder %s21, 1
        %s1911 = scalar_select %p1910, %s21, 1
        %p1912 = scmp.lt.s32.totalorder %s1909, 127
        %s1913 = scalar_select %p1912, %s1909, 127
        %s1914 = smul.addr %s1911, 128
        %s1915 = sadd.s32 %s1913, %s1914
        %s1916 = smul.addr %s1915, 8
        %s1917 = scalar_lea.vmem %s4, %s1916
      $region48: #{residual_cbn_decoder_forward.15} parent=43 // pred_fallthru
        _
    $region44: #{residual_cbn_decoder_forward.15} parent=5 // pred_fallthru
      _
  $region6: #{residual_cbn_decoder_forward.15} parent=0 // loop_footer
    %s14 = sadd.s32 1, %s10
  $region7: #{residual_cbn_decoder_forward.15} parent=0 // loop_footer_branch
    %9 = sbr.rel target = $region3
  $region8: #{residual_cbn_decoder_forward.15} parent=0 // loop_exit
    _

// kernel: residual_cbn_decoder_forward.11
$region0: #{residual_cbn_decoder_forward.11}
  #allocation0 [shape = 'u32[]', space=smem, size = 0x4, offset = 0x4, fixed_abs, tag = 'smem constant byte address 0x4 - core index']
  #allocation1 [shape = 'u32[144,128]{1,0:T(1,128)}', space=vmem, size = 0x12000, scoped, tag = 'internal scratch']
  %s0 = inlined_call_operand.vmem [shape: bf16[2,1024,128], index: 0, kind: input, shape index: {}]
  %s1 = inlined_call_operand.vmem [shape: f32[2,1,64], index: 1, kind: input, shape index: {}]
  %s2 = inlined_call_operand.vmem [shape: f32[2,1,64], index: 2, kind: input, shape index: {}]
  %s3 = inlined_call_operand.vmem [shape: bf16[64,64], index: 3, kind: input, shape index: {}]
  %s4 = inlined_call_operand.vmem [shape: f32[1,64], index: 4, kind: input, shape index: {}]
  %s5 = inlined_call_operand.vmem [shape: bf16[2,1024,128], index: 5, kind: output, shape index: {0}]
  %s6 = inlined_call_operand.vmem [shape: f32[2,2,8,128], index: 6, kind: output, shape index: {1}]
  %7 = xla_tuple %s5, %s6
  %s8 = sld [smem:[#allocation0]]
  $region61: #{residual_cbn_decoder_forward.11} parent=0
    _
  %s10 = ssub.s32 1, %s8
  %s11 = scalar_select 0, %s10, %s8
  loop: start=0, step=1, limit=6
  $region2: #{residual_cbn_decoder_forward.11} parent=0 // loop_pre_header
    _
  $region3: #{residual_cbn_decoder_forward.11} parent=0 // loop_header
    %s13 = sphi 0, %s17
    %p14 = scmp.ge.s32.totalorder %s13, 6
    %s20 = sphi 0, %s32
    %s21 = sphi 0, %s28
    %s22 = sphi 0, %s20
    %s23 = sphi 0, %s21
    %s24 = sphi 0, %s22
    %s25 = sphi 0, %s23
    %s37 = sphi 0, %s39
    %s40 = sphi 0, %s37
    %s41 = sphi 0, %s40
    %s57 = sphi 0, %s41
    %s63 = sphi 0, %s65
    %s66 = sphi 0, %s63
    %s67 = sphi 0, %s66
    %s83 = sphi 0, %s67
    %s89 = sphi 0, %s91
    %s92 = sphi 0, %s89
    %s93 = sphi 0, %s92
    %s109 = sphi 0, %s93
    %s113 = sphi 0, %s113
    %s115 = sphi 0, %s113
    %s116 = sphi 0, %s115
    %s130 = sphi 0, %s116
    %s134 = sphi 0, %s134
    %s136 = sphi 0, %s134
    %s137 = sphi 0, %s136
    %s151 = sphi 0, %s137
    %s159 = sphi 0, %s161
    %s162 = sphi 0, %s159
    %s163 = sphi 0, %s162
    %s179 = sphi 0, %s163
    %s187 = sphi 0, %s189
    %s190 = sphi 0, %s187
    %s191 = sphi 0, %s190
    %s207 = sphi 0, %s191
  $region4: #{residual_cbn_decoder_forward.11} parent=0 // loop_header_branch
    %16 = sbr.rel (%p14) target = $region8
  $region5: #{residual_cbn_decoder_forward.11} parent=0 // loop_body
    %s18 = ssub.s32 %s13, 1
    %s19 = ssub.s32 %s13, 2
    %s26 = sadd.s32 1, %s21
    %p27 = scmp.ge.s32.totalorder %s26, 2
    %s28 = scalar_select %p27, 0, %s26
    %s29 = sadd.s32 1, %s20
    %s30 = scalar_select %p27, %s29, %s20
    %p31 = scmp.ge.s32.totalorder %s30, 2
    %s32 = scalar_select %p31, 0, %s30
    %s33 = ssub.s32 %s20, %s32
    %s34 = ssub.s32 %s21, %s28
    %s35 = sor.u32 %s33, %s34
    %p36 = scmp.eq.s32.totalorder %s35, 0
    %s38 = sadd.s32 %s37, 1
    %s39 = scalar_select %p36, %s37, %s38
    %p42 = pneg %p36
    %p43 = scmp.eq.s32.totalorder %s13, 3
    %p44 = por %p42, %p43
    %p45 = scmp.ne.s32.totalorder %s37, %s40
    %p46 = scmp.eq.s32.totalorder %s13, 0
    %p47 = por %p45, %p46
    %p48 = scmp.ne.s32.totalorder %s37, %s40
    %p49 = scmp.eq.s32.totalorder %s18, 3
    %p50 = por %p48, %p49
    %p51 = scmp.ne.s32.totalorder %s40, %s41
    %p52 = scmp.eq.s32.totalorder %s18, 0
    %p53 = por %p51, %p52
    %p54 = scmp.ne.s32.totalorder %s40, %s41
    %p55 = scmp.eq.s32.totalorder %s19, 3
    %p56 = por %p54, %p55
    %p58 = scmp.ne.s32.totalorder %s41, %s57
    %p59 = scmp.eq.s32.totalorder %s19, 0
    %p60 = por %p58, %p59
    %s61 = ssub.s32 %s20, %s32
    %p62 = scmp.eq.s32.totalorder %s61, 0
    %s64 = sadd.s32 %s63, 1
    %s65 = scalar_select %p62, %s63, %s64
    %p68 = pneg %p62
    %p69 = scmp.eq.s32.totalorder %s13, 3
    %p70 = por %p68, %p69
    %p71 = scmp.ne.s32.totalorder %s63, %s66
    %p72 = scmp.eq.s32.totalorder %s13, 0
    %p73 = por %p71, %p72
    %p74 = scmp.ne.s32.totalorder %s63, %s66
    %p75 = scmp.eq.s32.totalorder %s18, 3
    %p76 = por %p74, %p75
    %p77 = scmp.ne.s32.totalorder %s66, %s67
    %p78 = scmp.eq.s32.totalorder %s18, 0
    %p79 = por %p77, %p78
    %p80 = scmp.ne.s32.totalorder %s66, %s67
    %p81 = scmp.eq.s32.totalorder %s19, 3
    %p82 = por %p80, %p81
    %p84 = scmp.ne.s32.totalorder %s67, %s83
    %p85 = scmp.eq.s32.totalorder %s19, 0
    %p86 = por %p84, %p85
    %s87 = ssub.s32 %s20, %s32
    %p88 = scmp.eq.s32.totalorder %s87, 0
    %s90 = sadd.s32 %s89, 1
    %s91 = scalar_select %p88, %s89, %s90
    %p94 = pneg %p88
    %p95 = scmp.eq.s32.totalorder %s13, 3
    %p96 = por %p94, %p95
    %p97 = scmp.ne.s32.totalorder %s89, %s92
    %p98 = scmp.eq.s32.totalorder %s13, 0
    %p99 = por %p97, %p98
    %p100 = scmp.ne.s32.totalorder %s89, %s92
    %p101 = scmp.eq.s32.totalorder %s18, 3
    %p102 = por %p100, %p101
    %p103 = scmp.ne.s32.totalorder %s92, %s93
    %p104 = scmp.eq.s32.totalorder %s18, 0
    %p105 = por %p103, %p104
    %p106 = scmp.ne.s32.totalorder %s92, %s93
    %p107 = scmp.eq.s32.totalorder %s19, 3
    %p108 = por %p106, %p107
    %p110 = scmp.ne.s32.totalorder %s93, %s109
    %p111 = scmp.eq.s32.totalorder %s19, 0
    %p112 = por %p110, %p111
    %s114 = sadd.s32 %s113, 1
    %p117 = scmp.eq.s32.totalorder %s13, 3
    %p118 = scmp.ne.s32.totalorder %s113, %s115
    %p119 = scmp.eq.s32.totalorder %s13, 0
    %p120 = por %p118, %p119
    %p121 = scmp.ne.s32.totalorder %s113, %s115
    %p122 = scmp.eq.s32.totalorder %s18, 3
    %p123 = por %p121, %p122
    %p124 = scmp.ne.s32.totalorder %s115, %s116
    %p125 = scmp.eq.s32.totalorder %s18, 0
    %p126 = por %p124, %p125
    %p127 = scmp.ne.s32.totalorder %s115, %s116
    %p128 = scmp.eq.s32.totalorder %s19, 3
    %p129 = por %p127, %p128
    %p131 = scmp.ne.s32.totalorder %s116, %s130
    %p132 = scmp.eq.s32.totalorder %s19, 0
    %p133 = por %p131, %p132
    %s135 = sadd.s32 %s134, 1
    %p138 = scmp.eq.s32.totalorder %s13, 3
    %p139 = scmp.ne.s32.totalorder %s134, %s136
    %p140 = scmp.eq.s32.totalorder %s13, 0
    %p141 = por %p139, %p140
    %p142 = scmp.ne.s32.totalorder %s134, %s136
    %p143 = scmp.eq.s32.totalorder %s18, 3
    %p144 = por %p142, %p143
    %p145 = scmp.ne.s32.totalorder %s136, %s137
    %p146 = scmp.eq.s32.totalorder %s18, 0
    %p147 = por %p145, %p146
    %p148 = scmp.ne.s32.totalorder %s136, %s137
    %p149 = scmp.eq.s32.totalorder %s19, 3
    %p150 = por %p148, %p149
    %p152 = scmp.ne.s32.totalorder %s137, %s151
    %p153 = scmp.eq.s32.totalorder %s19, 0
    %p154 = por %p152, %p153
    %s155 = ssub.s32 %s20, %s32
    %s156 = ssub.s32 %s21, %s28
    %s157 = sor.u32 %s155, %s156
    %p158 = scmp.eq.s32.totalorder %s157, 0
    %s160 = sadd.s32 %s159, 1
    %s161 = scalar_select %p158, %s159, %s160
    %p164 = pneg %p158
    %p165 = scmp.eq.s32.totalorder %s13, 3
    %p166 = por %p164, %p165
    %p167 = scmp.ne.s32.totalorder %s159, %s162
    %p168 = scmp.eq.s32.totalorder %s13, 0
    %p169 = por %p167, %p168
    %p170 = scmp.ne.s32.totalorder %s159, %s162
    %p171 = scmp.eq.s32.totalorder %s18, 3
    %p172 = por %p170, %p171
    %p173 = scmp.ne.s32.totalorder %s162, %s163
    %p174 = scmp.eq.s32.totalorder %s18, 0
    %p175 = por %p173, %p174
    %p176 = scmp.ne.s32.totalorder %s162, %s163
    %p177 = scmp.eq.s32.totalorder %s19, 3
    %p178 = por %p176, %p177
    %p180 = scmp.ne.s32.totalorder %s163, %s179
    %p181 = scmp.eq.s32.totalorder %s19, 0
    %p182 = por %p180, %p181
    %s183 = ssub.s32 %s20, %s32
    %s184 = ssub.s32 %s21, %s28
    %s185 = sor.u32 %s183, %s184
    %p186 = scmp.eq.s32.totalorder %s185, 0
    %s188 = sadd.s32 %s187, 1
    %s189 = scalar_select %p186, %s187, %s188
    %p192 = pneg %p186
    %p193 = scmp.eq.s32.totalorder %s13, 3
    %p194 = por %p192, %p193
    %p195 = scmp.ne.s32.totalorder %s187, %s190
    %p196 = scmp.eq.s32.totalorder %s13, 0
    %p197 = por %p195, %p196
    %p198 = scmp.ne.s32.totalorder %s187, %s190
    %p199 = scmp.eq.s32.totalorder %s18, 3
    %p200 = por %p198, %p199
    %p201 = scmp.ne.s32.totalorder %s190, %s191
    %p202 = scmp.eq.s32.totalorder %s18, 0
    %p203 = por %p201, %p202
    %p204 = scmp.ne.s32.totalorder %s190, %s191
    %p205 = scmp.eq.s32.totalorder %s19, 3
    %p206 = por %p204, %p205
    %p208 = scmp.ne.s32.totalorder %s191, %s207
    %p209 = scmp.eq.s32.totalorder %s19, 0
    %p210 = por %p208, %p209
    %p211 = scmp.le.s32.totalorder 1, %s13
    %p212 = scmp.lt.s32.totalorder %s13, 5
    %p213 = pnand %p211, %p212
    %p214 = pneg %p213
    // Predicated region
    $region9: #{residual_cbn_decoder_forward.11} parent=5 // pred_check
      _
    $region10: #{residual_cbn_decoder_forward.11} parent=5 // pred_check_branch
      %216 = sbr.rel (%p213) target = $region12
    $region11: #{residual_cbn_decoder_forward.11} parent=5 // pred_region
      %s217 = ssub.s32 %s13, 1
      // Predicated region
      $region13: #{residual_cbn_decoder_forward.11} parent=11 // pred_check
        %p218 = pneg %p126
      $region14: #{residual_cbn_decoder_forward.11} parent=11 // pred_check_branch
        %220 = sbr.rel (%p218) target = $region16
      $region15: #{residual_cbn_decoder_forward.11} parent=11 // pred_region
        _
      $region16: #{residual_cbn_decoder_forward.11} parent=11 // pred_fallthru
        _
      // Predicated region
      $region17: #{residual_cbn_decoder_forward.11} parent=11 // pred_check
        %p221 = pneg %p147
      $region18: #{residual_cbn_decoder_forward.11} parent=11 // pred_check_branch
        %223 = sbr.rel (%p221) target = $region20
      $region19: #{residual_cbn_decoder_forward.11} parent=11 // pred_region
        _
      $region20: #{residual_cbn_decoder_forward.11} parent=11 // pred_fallthru
        _
    $region12: #{residual_cbn_decoder_forward.11} parent=5 // pred_fallthru
      _
    %p224 = scmp.lt.s32.totalorder %s13, 4
    // Predicated region
    $region21: #{residual_cbn_decoder_forward.11} parent=5 // pred_check
      %p225 = pneg %p224
    $region22: #{residual_cbn_decoder_forward.11} parent=5 // pred_check_branch
      %227 = sbr.rel (%p225) target = $region24
    $region23: #{residual_cbn_decoder_forward.11} parent=5 // pred_region
      // Predicated region
      $region25: #{residual_cbn_decoder_forward.11} parent=23 // pred_check
        %p228 = pneg %p47
      $region26: #{residual_cbn_decoder_forward.11} parent=23 // pred_check_branch
        %230 = sbr.rel (%p228) target = $region28
      $region27: #{residual_cbn_decoder_forward.11} parent=23 // pred_region
        %s231 = smul.u32 64, %s21
        %p232 = scmp.lt.s32.totalorder %s20, 1
        %s233 = scalar_select %p232, %s20, 1
        %p234 = scmp.lt.s32.totalorder %s231, 127
        %s235 = scalar_select %p234, %s231, 127
        %s236 = smul.addr %s233, 128
        %s237 = sadd.s32 %s235, %s236
        %s238 = smul.addr %s237, 4
        %s239 = scalar_lea.vmem %s0, %s238
        %s240 = smul.u32 64, %s21
      $region28: #{residual_cbn_decoder_forward.11} parent=23 // pred_fallthru
        _
      // Predicated region
      $region29: #{residual_cbn_decoder_forward.11} parent=23 // pred_check
        %p241 = pneg %p73
      $region30: #{residual_cbn_decoder_forward.11} parent=23 // pred_check_branch
        %243 = sbr.rel (%p241) target = $region32
      $region31: #{residual_cbn_decoder_forward.11} parent=23 // pred_region
        %p244 = scmp.lt.s32.totalorder %s20, 1
        %s245 = scalar_select %p244, %s20, 1
        %s246 = scalar_lea.vmem %s1, %s245
      $region32: #{residual_cbn_decoder_forward.11} parent=23 // pred_fallthru
        _
      // Predicated region
      $region33: #{residual_cbn_decoder_forward.11} parent=23 // pred_check
        %p247 = pneg %p99
      $region34: #{residual_cbn_decoder_forward.11} parent=23 // pred_check_branch
        %249 = sbr.rel (%p247) target = $region36
      $region35: #{residual_cbn_decoder_forward.11} parent=23 // pred_region
        %p250 = scmp.lt.s32.totalorder %s20, 1
        %s251 = scalar_select %p250, %s20, 1
        %s252 = scalar_lea.vmem %s2, %s251
      $region36: #{residual_cbn_decoder_forward.11} parent=23 // pred_fallthru
        _
    $region24: #{residual_cbn_decoder_forward.11} parent=5 // pred_fallthru
      _
    %p253 = scmp.le.s32.totalorder 1, %s13
    %p254 = scmp.lt.s32.totalorder %s13, 5
    %p255 = pnand %p253, %p254
    %p256 = pneg %p255
    // Predicated region
    $region37: #{residual_cbn_decoder_forward.11} parent=5 // pred_check
      _
    $region38: #{residual_cbn_decoder_forward.11} parent=5 // pred_check_branch
      %258 = sbr.rel (%p255) target = $region40
    $region39: #{residual_cbn_decoder_forward.11} parent=5 // pred_region
      %s259 = ssub.s32 %s13, 1
      %s260 = smul.u32 64, %s23
      %p261 = scmp.lt.s32.totalorder %s22, 1
      %s262 = scalar_select %p261, %s22, 1
      %p263 = scmp.lt.s32.totalorder %s260, 127
      %s264 = scalar_select %p263, %s260, 127
      %s265 = smul.addr %s262, 128
      %s266 = sadd.s32 %s264, %s265
      %s267 = smul.addr %s266, 4
      %s268 = scalar_lea.vmem %s0, %s267
      %p269 = pneg %p53
      %p270 = pneg %p50
      %p271 = scmp.lt.s32.totalorder %s22, 1
      %s272 = scalar_select %p271, %s22, 1
      %s273 = scalar_lea.vmem %s1, %s272
      %p274 = pneg %p79
      %p275 = pneg %p76
      %p276 = scmp.lt.s32.totalorder %s22, 1
      %s277 = scalar_select %p276, %s22, 1
      %s278 = scalar_lea.vmem %s2, %s277
      %p279 = pneg %p105
      %p280 = pneg %p102
      %p281 = pneg %p126
      %p282 = pneg %p123
      %p283 = pneg %p147
      %p284 = pneg %p144
      %p285 = pneg %p175
      %p286 = pneg %p172
      %s287 = smul.u32 64, %s23
      %p288 = scmp.lt.s32.totalorder %s22, 1
      %s289 = scalar_select %p288, %s22, 1
      %p290 = scmp.lt.s32.totalorder %s287, 127
      %s291 = scalar_select %p290, %s287, 127
      %s292 = smul.addr %s289, 128
      %s293 = sadd.s32 %s291, %s292
      %s294 = smul.addr %s293, 4
      %s295 = scalar_lea.vmem %s5, %s294
      %p296 = pneg %p203
      %p297 = pneg %p200
      %p298 = scmp.lt.s32.totalorder %s22, 1
      %s299 = scalar_select %p298, %s22, 1
      %p300 = scmp.lt.s32.totalorder %s23, 1
      %s301 = scalar_select %p300, %s23, 1
      %s302 = smul.addr %s299, 2
      %s303 = sadd.s32 %s301, %s302
      %s304 = smul.addr %s303, 8
      %s305 = scalar_lea.vmem %s6, %s304
      %s306 = smul.u32 64, %s23
      %p307 = scmp.lt.s32.totalorder %s22, 1
      %s308 = scalar_select %p307, %s22, 1
      %p309 = scmp.lt.s32.totalorder %s306, 127
      %s310 = scalar_select %p309, %s306, 127
      %s311 = smul.addr %s308, 128
      %s312 = sadd.s32 %s310, %s311
      %s313 = smul.addr %s312, 4
      %s314 = scalar_lea.vmem %s0, %s313
      %s315 = smul.u32 64, %s23
      %p316 = scmp.lt.s32.totalorder %s22, 1
      %s317 = scalar_select %p316, %s22, 1
      %s318 = scalar_lea.vmem %s1, %s317
      %p319 = scmp.lt.s32.totalorder %s22, 1
      %s320 = scalar_select %p319, %s22, 1
      %s321 = scalar_lea.vmem %s2, %s320
      %s322 = smul.u32 64, %s23
      %p323 = scmp.lt.s32.totalorder %s22, 1
      %s324 = scalar_select %p323, %s22, 1
      %p325 = scmp.lt.s32.totalorder %s322, 127
      %s326 = scalar_select %p325, %s322, 127
      %s327 = smul.addr %s324, 128
      %s328 = sadd.s32 %s326, %s327
      %s329 = smul.addr %s328, 4
      %s330 = scalar_lea.vmem %s5, %s329
      %s331 = smul.u32 64, %s23
      %p332 = scmp.lt.s32.totalorder %s22, 1
      %s333 = scalar_select %p332, %s22, 1
      %p334 = scmp.lt.s32.totalorder %s23, 1
      %s335 = scalar_select %p334, %s23, 1
      %s336 = smul.addr %s333, 2
      %s337 = sadd.s32 %s335, %s336
      %s338 = smul.addr %s337, 8
      %s339 = scalar_lea.vmem %s6, %s338
      %v341 = vld [vmem:[%s314] sm:$0xf]
      %v342 = vld [vmem:[%s314 + $0x4] sm:$0xf]
      %v343 = vld [vmem:[%s314 + $0x8] sm:$0xf]
      %v344 = vld [vmem:[%s314 + $0xc] sm:$0xf]
      %v345 = vld [vmem:[%s314 + $0x10] sm:$0xf]
      %v346 = vld [vmem:[%s314 + $0x14] sm:$0xf]
      %v347 = vld [vmem:[%s314 + $0x18] sm:$0xf]
      %v348 = vld [vmem:[%s314 + $0x1c] sm:$0xf]
      %v349 = vld [vmem:[%s314 + $0x20] sm:$0xf]
      %v350 = vld [vmem:[%s314 + $0x24] sm:$0xf]
      %v351 = vld [vmem:[%s314 + $0x28] sm:$0xf]
      %v352 = vld [vmem:[%s314 + $0x2c] sm:$0xf]
      %v353 = vld [vmem:[%s314 + $0x30] sm:$0xf]
      %v354 = vld [vmem:[%s314 + $0x34] sm:$0xf]
      %v355 = vld [vmem:[%s314 + $0x38] sm:$0xf]
      %v356 = vld [vmem:[%s314 + $0x3c] sm:$0xf]
      %v357 = vld [vmem:[%s314 + $0x40] sm:$0xf]
      %v358 = vld [vmem:[%s314 + $0x44] sm:$0xf]
      %v359 = vld [vmem:[%s314 + $0x48] sm:$0xf]
      %v360 = vld [vmem:[%s314 + $0x4c] sm:$0xf]
      %v361 = vld [vmem:[%s314 + $0x50] sm:$0xf]
      %v362 = vld [vmem:[%s314 + $0x54] sm:$0xf]
      %v363 = vld [vmem:[%s314 + $0x58] sm:$0xf]
      %v364 = vld [vmem:[%s314 + $0x5c] sm:$0xf]
      %v365 = vld [vmem:[%s314 + $0x60] sm:$0xf]
      %v366 = vld [vmem:[%s314 + $0x64] sm:$0xf]
      %v367 = vld [vmem:[%s314 + $0x68] sm:$0xf]
      %v368 = vld [vmem:[%s314 + $0x6c] sm:$0xf]
      %v369 = vld [vmem:[%s314 + $0x70] sm:$0xf]
      %v370 = vld [vmem:[%s314 + $0x74] sm:$0xf]
      %v371 = vld [vmem:[%s314 + $0x78] sm:$0xf]
      %v372 = vld [vmem:[%s314 + $0x7c] sm:$0xf]
      %v373 = vld [vmem:[%s314 + $0x80] sm:$0xf]
      %v374 = vld [vmem:[%s314 + $0x84] sm:$0xf]
      %v375 = vld [vmem:[%s314 + $0x88] sm:$0xf]
      %v376 = vld [vmem:[%s314 + $0x8c] sm:$0xf]
      %v377 = vld [vmem:[%s314 + $0x90] sm:$0xf]
      %v378 = vld [vmem:[%s314 + $0x94] sm:$0xf]
      %v379 = vld [vmem:[%s314 + $0x98] sm:$0xf]
      %v380 = vld [vmem:[%s314 + $0x9c] sm:$0xf]
      %v381 = vld [vmem:[%s314 + $0xa0] sm:$0xf]
      %v382 = vld [vmem:[%s314 + $0xa4] sm:$0xf]
      %v383 = vld [vmem:[%s314 + $0xa8] sm:$0xf]
      %v384 = vld [vmem:[%s314 + $0xac] sm:$0xf]
      %v385 = vld [vmem:[%s314 + $0xb0] sm:$0xf]
      %v386 = vld [vmem:[%s314 + $0xb4] sm:$0xf]
      %v387 = vld [vmem:[%s314 + $0xb8] sm:$0xf]
      %v388 = vld [vmem:[%s314 + $0xbc] sm:$0xf]
      %v389 = vld [vmem:[%s314 + $0xc0] sm:$0xf]
      %v390 = vld [vmem:[%s314 + $0xc4] sm:$0xf]
      %v391 = vld [vmem:[%s314 + $0xc8] sm:$0xf]
      %v392 = vld [vmem:[%s314 + $0xcc] sm:$0xf]
      %v393 = vld [vmem:[%s314 + $0xd0] sm:$0xf]
      %v394 = vld [vmem:[%s314 + $0xd4] sm:$0xf]
      %v395 = vld [vmem:[%s314 + $0xd8] sm:$0xf]
      %v396 = vld [vmem:[%s314 + $0xdc] sm:$0xf]
      %v397 = vld [vmem:[%s314 + $0xe0] sm:$0xf]
      %v398 = vld [vmem:[%s314 + $0xe4] sm:$0xf]
      %v399 = vld [vmem:[%s314 + $0xe8] sm:$0xf]
      %v400 = vld [vmem:[%s314 + $0xec] sm:$0xf]
      %v401 = vld [vmem:[%s314 + $0xf0] sm:$0xf]
      %v402 = vld [vmem:[%s314 + $0xf4] sm:$0xf]
      %v403 = vld [vmem:[%s314 + $0xf8] sm:$0xf]
      %v404 = vld [vmem:[%s314 + $0xfc] sm:$0xf]
      %v405 = vunpack.c.l.bf16 %v341
      %v406 = vunpack.c.l.bf16 %v342
      %v407 = vunpack.c.l.bf16 %v343
      %v408 = vunpack.c.l.bf16 %v344
      %v409 = vunpack.c.l.bf16 %v345
      %v410 = vunpack.c.l.bf16 %v346
      %v411 = vunpack.c.l.bf16 %v347
      %v412 = vunpack.c.l.bf16 %v348
      %v413 = vunpack.c.l.bf16 %v349
      %v414 = vunpack.c.l.bf16 %v350
      %v415 = vunpack.c.l.bf16 %v351
      %v416 = vunpack.c.l.bf16 %v352
      %v417 = vunpack.c.l.bf16 %v353
      %v418 = vunpack.c.l.bf16 %v354
      %v419 = vunpack.c.l.bf16 %v355
      %v420 = vunpack.c.l.bf16 %v356
      %v421 = vunpack.c.l.bf16 %v357
      %v422 = vunpack.c.l.bf16 %v358
      %v423 = vunpack.c.l.bf16 %v359
      %v424 = vunpack.c.l.bf16 %v360
      %v425 = vunpack.c.l.bf16 %v361
      %v426 = vunpack.c.l.bf16 %v362
      %v427 = vunpack.c.l.bf16 %v363
      %v428 = vunpack.c.l.bf16 %v364
      %v429 = vunpack.c.l.bf16 %v365
      %v430 = vunpack.c.l.bf16 %v366
      %v431 = vunpack.c.l.bf16 %v367
      %v432 = vunpack.c.l.bf16 %v368
      %v433 = vunpack.c.l.bf16 %v369
      %v434 = vunpack.c.l.bf16 %v370
      %v435 = vunpack.c.l.bf16 %v371
      %v436 = vunpack.c.l.bf16 %v372
      %v437 = vunpack.c.l.bf16 %v373
      %v438 = vunpack.c.l.bf16 %v374
      %v439 = vunpack.c.l.bf16 %v375
      %v440 = vunpack.c.l.bf16 %v376
      %v441 = vunpack.c.l.bf16 %v377
      %v442 = vunpack.c.l.bf16 %v378
      %v443 = vunpack.c.l.bf16 %v379
      %v444 = vunpack.c.l.bf16 %v380
      %v445 = vunpack.c.l.bf16 %v381
      %v446 = vunpack.c.l.bf16 %v382
      %v447 = vunpack.c.l.bf16 %v383
      %v448 = vunpack.c.l.bf16 %v384
      %v449 = vunpack.c.l.bf16 %v385
      %v450 = vunpack.c.l.bf16 %v386
      %v451 = vunpack.c.l.bf16 %v387
      %v452 = vunpack.c.l.bf16 %v388
      %v453 = vunpack.c.l.bf16 %v389
      %v454 = vunpack.c.l.bf16 %v390
      %v455 = vunpack.c.l.bf16 %v391
      %v456 = vunpack.c.l.bf16 %v392
      %v457 = vunpack.c.l.bf16 %v393
      %v458 = vunpack.c.l.bf16 %v394
      %v459 = vunpack.c.l.bf16 %v395
      %v460 = vunpack.c.l.bf16 %v396
      %v461 = vunpack.c.l.bf16 %v397
      %v462 = vunpack.c.l.bf16 %v398
      %v463 = vunpack.c.l.bf16 %v399
      %v464 = vunpack.c.l.bf16 %v400
      %v465 = vunpack.c.l.bf16 %v401
      %v466 = vunpack.c.l.bf16 %v402
      %v467 = vunpack.c.l.bf16 %v403
      %v468 = vunpack.c.l.bf16 %v404
      %v469 = vld [vmem:[%s318] sm:$0x1]
      %v471 = vlaneseq
      %v472 = vshrl.u32 %v471, 7
      %v473 = vsub.s32 0, %v472
      %v474 = vrot.slane %v469, %v473
      %v476 = vmul.f32 %v474, %v405
      %v477 = vmul.f32 %v474, %v406
      %v478 = vmul.f32 %v474, %v407
      %v479 = vmul.f32 %v474, %v408
      %v480 = vmul.f32 %v474, %v409
      %v481 = vmul.f32 %v474, %v410
      %v482 = vmul.f32 %v474, %v411
      %v483 = vmul.f32 %v474, %v412
      %v484 = vmul.f32 %v474, %v413
      %v485 = vmul.f32 %v474, %v414
      %v486 = vmul.f32 %v474, %v415
      %v487 = vmul.f32 %v474, %v416
      %v488 = vmul.f32 %v474, %v417
      %v489 = vmul.f32 %v474, %v418
      %v490 = vmul.f32 %v474, %v419
      %v491 = vmul.f32 %v474, %v420
      %v492 = vmul.f32 %v474, %v421
      %v493 = vmul.f32 %v474, %v422
      %v494 = vmul.f32 %v474, %v423
      %v495 = vmul.f32 %v474, %v424
      %v496 = vmul.f32 %v474, %v425
      %v497 = vmul.f32 %v474, %v426
      %v498 = vmul.f32 %v474, %v427
      %v499 = vmul.f32 %v474, %v428
      %v500 = vmul.f32 %v474, %v429
      %v501 = vmul.f32 %v474, %v430
      %v502 = vmul.f32 %v474, %v431
      %v503 = vmul.f32 %v474, %v432
      %v504 = vmul.f32 %v474, %v433
      %v505 = vmul.f32 %v474, %v434
      %v506 = vmul.f32 %v474, %v435
      %v507 = vmul.f32 %v474, %v436
      %v508 = vmul.f32 %v474, %v437
      %v509 = vmul.f32 %v474, %v438
      %v510 = vmul.f32 %v474, %v439
      %v511 = vmul.f32 %v474, %v440
      %v512 = vmul.f32 %v474, %v441
      %v513 = vmul.f32 %v474, %v442
      %v514 = vmul.f32 %v474, %v443
      %v515 = vmul.f32 %v474, %v444
      %v516 = vmul.f32 %v474, %v445
      %v517 = vmul.f32 %v474, %v446
      %v518 = vmul.f32 %v474, %v447
      %v519 = vmul.f32 %v474, %v448
      %v520 = vmul.f32 %v474, %v449
      %v521 = vmul.f32 %v474, %v450
      %v522 = vmul.f32 %v474, %v451
      %v523 = vmul.f32 %v474, %v452
      %v524 = vmul.f32 %v474, %v453
      %v525 = vmul.f32 %v474, %v454
      %v526 = vmul.f32 %v474, %v455
      %v527 = vmul.f32 %v474, %v456
      %v528 = vmul.f32 %v474, %v457
      %v529 = vmul.f32 %v474, %v458
      %v530 = vmul.f32 %v474, %v459
      %v531 = vmul.f32 %v474, %v460
      %v532 = vmul.f32 %v474, %v461
      %v533 = vmul.f32 %v474, %v462
      %v534 = vmul.f32 %v474, %v463
      %v535 = vmul.f32 %v474, %v464
      %v536 = vmul.f32 %v474, %v465
      %v537 = vmul.f32 %v474, %v466
      %v538 = vmul.f32 %v474, %v467
      %v539 = vmul.f32 %v474, %v468
      %v540 = vld [vmem:[%s321] sm:$0x1]
      %v542 = vlaneseq
      %v543 = vshrl.u32 %v542, 7
      %v544 = vsub.s32 0, %v543
      %v545 = vrot.slane %v540, %v544
      %v547 = vadd.f32 %v476, %v545
      %v548 = vadd.f32 %v477, %v545
      %v549 = vadd.f32 %v478, %v545
      %v550 = vadd.f32 %v479, %v545
      %v551 = vadd.f32 %v480, %v545
      %v552 = vadd.f32 %v481, %v545
      %v553 = vadd.f32 %v482, %v545
      %v554 = vadd.f32 %v483, %v545
      %v555 = vadd.f32 %v484, %v545
      %v556 = vadd.f32 %v485, %v545
      %v557 = vadd.f32 %v486, %v545
      %v558 = vadd.f32 %v487, %v545
      %v559 = vadd.f32 %v488, %v545
      %v560 = vadd.f32 %v489, %v545
      %v561 = vadd.f32 %v490, %v545
      %v562 = vadd.f32 %v491, %v545
      %v563 = vadd.f32 %v492, %v545
      %v564 = vadd.f32 %v493, %v545
      %v565 = vadd.f32 %v494, %v545
      %v566 = vadd.f32 %v495, %v545
      %v567 = vadd.f32 %v496, %v545
      %v568 = vadd.f32 %v497, %v545
      %v569 = vadd.f32 %v498, %v545
      %v570 = vadd.f32 %v499, %v545
      %v571 = vadd.f32 %v500, %v545
      %v572 = vadd.f32 %v501, %v545
      %v573 = vadd.f32 %v502, %v545
      %v574 = vadd.f32 %v503, %v545
      %v575 = vadd.f32 %v504, %v545
      %v576 = vadd.f32 %v505, %v545
      %v577 = vadd.f32 %v506, %v545
      %v578 = vadd.f32 %v507, %v545
      %v579 = vadd.f32 %v508, %v545
      %v580 = vadd.f32 %v509, %v545
      %v581 = vadd.f32 %v510, %v545
      %v582 = vadd.f32 %v511, %v545
      %v583 = vadd.f32 %v512, %v545
      %v584 = vadd.f32 %v513, %v545
      %v585 = vadd.f32 %v514, %v545
      %v586 = vadd.f32 %v515, %v545
      %v587 = vadd.f32 %v516, %v545
      %v588 = vadd.f32 %v517, %v545
      %v589 = vadd.f32 %v518, %v545
      %v590 = vadd.f32 %v519, %v545
      %v591 = vadd.f32 %v520, %v545
      %v592 = vadd.f32 %v521, %v545
      %v593 = vadd.f32 %v522, %v545
      %v594 = vadd.f32 %v523, %v545
      %v595 = vadd.f32 %v524, %v545
      %v596 = vadd.f32 %v525, %v545
      %v597 = vadd.f32 %v526, %v545
      %v598 = vadd.f32 %v527, %v545
      %v599 = vadd.f32 %v528, %v545
      %v600 = vadd.f32 %v529, %v545
      %v601 = vadd.f32 %v530, %v545
      %v602 = vadd.f32 %v531, %v545
      %v603 = vadd.f32 %v532, %v545
      %v604 = vadd.f32 %v533, %v545
      %v605 = vadd.f32 %v534, %v545
      %v606 = vadd.f32 %v535, %v545
      %v607 = vadd.f32 %v536, %v545
      %v608 = vadd.f32 %v537, %v545
      %v609 = vadd.f32 %v538, %v545
      %v610 = vadd.f32 %v539, %v545
      %675 = vrot.lane.b32.xlu0 %v405, 64
      %v676 = vpop.permute.xlu0 %675
      %677 = vrot.lane.b32.xlu0 %v406, 64
      %v678 = vpop.permute.xlu0 %677
      %679 = vrot.lane.b32.xlu0 %v407, 64
      %v680 = vpop.permute.xlu0 %679
      %681 = vrot.lane.b32.xlu0 %v408, 64
      %v682 = vpop.permute.xlu0 %681
      %683 = vrot.lane.b32.xlu0 %v409, 64
      %v684 = vpop.permute.xlu0 %683
      %685 = vrot.lane.b32.xlu0 %v410, 64
      %v686 = vpop.permute.xlu0 %685
      %687 = vrot.lane.b32.xlu0 %v411, 64
      %v688 = vpop.permute.xlu0 %687
      %689 = vrot.lane.b32.xlu0 %v412, 64
      %v690 = vpop.permute.xlu0 %689
      %691 = vrot.lane.b32.xlu0 %v413, 64
      %v692 = vpop.permute.xlu0 %691
      %693 = vrot.lane.b32.xlu0 %v414, 64
      %v694 = vpop.permute.xlu0 %693
      %695 = vrot.lane.b32.xlu0 %v415, 64
      %v696 = vpop.permute.xlu0 %695
      %697 = vrot.lane.b32.xlu0 %v416, 64
      %v698 = vpop.permute.xlu0 %697
      %699 = vrot.lane.b32.xlu0 %v417, 64
      %v700 = vpop.permute.xlu0 %699
      %701 = vrot.lane.b32.xlu0 %v418, 64
      %v702 = vpop.permute.xlu0 %701
      %703 = vrot.lane.b32.xlu0 %v419, 64
      %v704 = vpop.permute.xlu0 %703
      %705 = vrot.lane.b32.xlu0 %v420, 64
      %v706 = vpop.permute.xlu0 %705
      %707 = vrot.lane.b32.xlu0 %v421, 64
      %v708 = vpop.permute.xlu0 %707
      %709 = vrot.lane.b32.xlu0 %v422, 64
      %v710 = vpop.permute.xlu0 %709
      %711 = vrot.lane.b32.xlu0 %v423, 64
      %v712 = vpop.permute.xlu0 %711
      %713 = vrot.lane.b32.xlu0 %v424, 64
      %v714 = vpop.permute.xlu0 %713
      %715 = vrot.lane.b32.xlu0 %v425, 64
      %v716 = vpop.permute.xlu0 %715
      %717 = vrot.lane.b32.xlu0 %v426, 64
      %v718 = vpop.permute.xlu0 %717
      %719 = vrot.lane.b32.xlu0 %v427, 64
      %v720 = vpop.permute.xlu0 %719
      %721 = vrot.lane.b32.xlu0 %v428, 64
      %v722 = vpop.permute.xlu0 %721
      %723 = vrot.lane.b32.xlu0 %v429, 64
      %v724 = vpop.permute.xlu0 %723
      %725 = vrot.lane.b32.xlu0 %v430, 64
      %v726 = vpop.permute.xlu0 %725
      %727 = vrot.lane.b32.xlu0 %v431, 64
      %v728 = vpop.permute.xlu0 %727
      %729 = vrot.lane.b32.xlu0 %v432, 64
      %v730 = vpop.permute.xlu0 %729
      %731 = vrot.lane.b32.xlu0 %v433, 64
      %v732 = vpop.permute.xlu0 %731
      %733 = vrot.lane.b32.xlu0 %v434, 64
      %v734 = vpop.permute.xlu0 %733
      %735 = vrot.lane.b32.xlu0 %v435, 64
      %v736 = vpop.permute.xlu0 %735
      %737 = vrot.lane.b32.xlu0 %v436, 64
      %v738 = vpop.permute.xlu0 %737
      %739 = vrot.lane.b32.xlu0 %v437, 64
      %v740 = vpop.permute.xlu0 %739
      %741 = vrot.lane.b32.xlu0 %v438, 64
      %v742 = vpop.permute.xlu0 %741
      %743 = vrot.lane.b32.xlu0 %v439, 64
      %v744 = vpop.permute.xlu0 %743
      %745 = vrot.lane.b32.xlu0 %v440, 64
      %v746 = vpop.permute.xlu0 %745
      %747 = vrot.lane.b32.xlu0 %v441, 64
      %v748 = vpop.permute.xlu0 %747
      %749 = vrot.lane.b32.xlu0 %v442, 64
      %v750 = vpop.permute.xlu0 %749
      %751 = vrot.lane.b32.xlu0 %v443, 64
      %v752 = vpop.permute.xlu0 %751
      %753 = vrot.lane.b32.xlu0 %v444, 64
      %v754 = vpop.permute.xlu0 %753
      %755 = vrot.lane.b32.xlu0 %v445, 64
      %v756 = vpop.permute.xlu0 %755
      %757 = vrot.lane.b32.xlu0 %v446, 64
      %v758 = vpop.permute.xlu0 %757
      %759 = vrot.lane.b32.xlu0 %v447, 64
      %v760 = vpop.permute.xlu0 %759
      %761 = vrot.lane.b32.xlu0 %v448, 64
      %v762 = vpop.permute.xlu0 %761
      %763 = vrot.lane.b32.xlu0 %v449, 64
      %v764 = vpop.permute.xlu0 %763
      %765 = vrot.lane.b32.xlu0 %v450, 64
      %v766 = vpop.permute.xlu0 %765
      %767 = vrot.lane.b32.xlu0 %v451, 64
      %v768 = vpop.permute.xlu0 %767
      %769 = vrot.lane.b32.xlu0 %v452, 64
      %v770 = vpop.permute.xlu0 %769
      %771 = vrot.lane.b32.xlu0 %v453, 64
      %v772 = vpop.permute.xlu0 %771
      %773 = vrot.lane.b32.xlu0 %v454, 64
      %v774 = vpop.permute.xlu0 %773
      %775 = vrot.lane.b32.xlu0 %v455, 64
      %v776 = vpop.permute.xlu0 %775
      %777 = vrot.lane.b32.xlu0 %v456, 64
      %v778 = vpop.permute.xlu0 %777
      %779 = vrot.lane.b32.xlu0 %v457, 64
      %v780 = vpop.permute.xlu0 %779
      %781 = vrot.lane.b32.xlu0 %v458, 64
      %v782 = vpop.permute.xlu0 %781
      %783 = vrot.lane.b32.xlu0 %v459, 64
      %v784 = vpop.permute.xlu0 %783
      %785 = vrot.lane.b32.xlu0 %v460, 64
      %v786 = vpop.permute.xlu0 %785
      %787 = vrot.lane.b32.xlu0 %v461, 64
      %v788 = vpop.permute.xlu0 %787
      %789 = vrot.lane.b32.xlu0 %v462, 64
      %v790 = vpop.permute.xlu0 %789
      %791 = vrot.lane.b32.xlu0 %v463, 64
      %v792 = vpop.permute.xlu0 %791
      %793 = vrot.lane.b32.xlu0 %v464, 64
      %v794 = vpop.permute.xlu0 %793
      %795 = vrot.lane.b32.xlu0 %v465, 64
      %v796 = vpop.permute.xlu0 %795
      %797 = vrot.lane.b32.xlu0 %v466, 64
      %v798 = vpop.permute.xlu0 %797
      %799 = vrot.lane.b32.xlu0 %v467, 64
      %v800 = vpop.permute.xlu0 %799
      %801 = vrot.lane.b32.xlu0 %v468, 64
      %v802 = vpop.permute.xlu0 %801
      %v867 = vadd.f32 %v547, %v676
      %v868 = vadd.f32 %v548, %v678
      %v869 = vadd.f32 %v549, %v680
      %v870 = vadd.f32 %v550, %v682
      %v871 = vadd.f32 %v551, %v684
      %v872 = vadd.f32 %v552, %v686
      %v873 = vadd.f32 %v553, %v688
      %v874 = vadd.f32 %v554, %v690
      %v875 = vadd.f32 %v555, %v692
      %v876 = vadd.f32 %v556, %v694
      %v877 = vadd.f32 %v557, %v696
      %v878 = vadd.f32 %v558, %v698
      %v879 = vadd.f32 %v559, %v700
      %v880 = vadd.f32 %v560, %v702
      %v881 = vadd.f32 %v561, %v704
      %v882 = vadd.f32 %v562, %v706
      %v883 = vadd.f32 %v563, %v708
      %v884 = vadd.f32 %v564, %v710
      %v885 = vadd.f32 %v565, %v712
      %v886 = vadd.f32 %v566, %v714
      %v887 = vadd.f32 %v567, %v716
      %v888 = vadd.f32 %v568, %v718
      %v889 = vadd.f32 %v569, %v720
      %v890 = vadd.f32 %v570, %v722
      %v891 = vadd.f32 %v571, %v724
      %v892 = vadd.f32 %v572, %v726
      %v893 = vadd.f32 %v573, %v728
      %v894 = vadd.f32 %v574, %v730
      %v895 = vadd.f32 %v575, %v732
      %v896 = vadd.f32 %v576, %v734
      %v897 = vadd.f32 %v577, %v736
      %v898 = vadd.f32 %v578, %v738
      %v899 = vadd.f32 %v579, %v740
      %v900 = vadd.f32 %v580, %v742
      %v901 = vadd.f32 %v581, %v744
      %v902 = vadd.f32 %v582, %v746
      %v903 = vadd.f32 %v583, %v748
      %v904 = vadd.f32 %v584, %v750
      %v905 = vadd.f32 %v585, %v752
      %v906 = vadd.f32 %v586, %v754
      %v907 = vadd.f32 %v587, %v756
      %v908 = vadd.f32 %v588, %v758
      %v909 = vadd.f32 %v589, %v760
      %v910 = vadd.f32 %v590, %v762
      %v911 = vadd.f32 %v591, %v764
      %v912 = vadd.f32 %v592, %v766
      %v913 = vadd.f32 %v593, %v768
      %v914 = vadd.f32 %v594, %v770
      %v915 = vadd.f32 %v595, %v772
      %v916 = vadd.f32 %v596, %v774
      %v917 = vadd.f32 %v597, %v776
      %v918 = vadd.f32 %v598, %v778
      %v919 = vadd.f32 %v599, %v780
      %v920 = vadd.f32 %v600, %v782
      %v921 = vadd.f32 %v601, %v784
      %v922 = vadd.f32 %v602, %v786
      %v923 = vadd.f32 %v603, %v788
      %v924 = vadd.f32 %v604, %v790
      %v925 = vadd.f32 %v605, %v792
      %v926 = vadd.f32 %v606, %v794
      %v927 = vadd.f32 %v607, %v796
      %v928 = vadd.f32 %v608, %v798
      %v929 = vadd.f32 %v609, %v800
      %v930 = vadd.f32 %v610, %v802
      %v931 = vmax.f32 %v867, 0.0
      %v932 = vmax.f32 %v868, 0.0
      %v933 = vmax.f32 %v869, 0.0
      %v934 = vmax.f32 %v870, 0.0
      %v935 = vmax.f32 %v871, 0.0
      %v936 = vmax.f32 %v872, 0.0
      %v937 = vmax.f32 %v873, 0.0
      %v938 = vmax.f32 %v874, 0.0
      %v939 = vmax.f32 %v875, 0.0
      %v940 = vmax.f32 %v876, 0.0
      %v941 = vmax.f32 %v877, 0.0
      %v942 = vmax.f32 %v878, 0.0
      %v943 = vmax.f32 %v879, 0.0
      %v944 = vmax.f32 %v880, 0.0
      %v945 = vmax.f32 %v881, 0.0
      %v946 = vmax.f32 %v882, 0.0
      %v947 = vmax.f32 %v883, 0.0
      %v948 = vmax.f32 %v884, 0.0
      %v949 = vmax.f32 %v885, 0.0
      %v950 = vmax.f32 %v886, 0.0
      %v951 = vmax.f32 %v887, 0.0
      %v952 = vmax.f32 %v888, 0.0
      %v953 = vmax.f32 %v889, 0.0
      %v954 = vmax.f32 %v890, 0.0
      %v955 = vmax.f32 %v891, 0.0
      %v956 = vmax.f32 %v892, 0.0
      %v957 = vmax.f32 %v893, 0.0
      %v958 = vmax.f32 %v894, 0.0
      %v959 = vmax.f32 %v895, 0.0
      %v960 = vmax.f32 %v896, 0.0
      %v961 = vmax.f32 %v897, 0.0
      %v962 = vmax.f32 %v898, 0.0
      %v963 = vmax.f32 %v899, 0.0
      %v964 = vmax.f32 %v900, 0.0
      %v965 = vmax.f32 %v901, 0.0
      %v966 = vmax.f32 %v902, 0.0
      %v967 = vmax.f32 %v903, 0.0
      %v968 = vmax.f32 %v904, 0.0
      %v969 = vmax.f32 %v905, 0.0
      %v970 = vmax.f32 %v906, 0.0
      %v971 = vmax.f32 %v907, 0.0
      %v972 = vmax.f32 %v908, 0.0
      %v973 = vmax.f32 %v909, 0.0
      %v974 = vmax.f32 %v910, 0.0
      %v975 = vmax.f32 %v911, 0.0
      %v976 = vmax.f32 %v912, 0.0
      %v977 = vmax.f32 %v913, 0.0
      %v978 = vmax.f32 %v914, 0.0
      %v979 = vmax.f32 %v915, 0.0
      %v980 = vmax.f32 %v916, 0.0
      %v981 = vmax.f32 %v917, 0.0
      %v982 = vmax.f32 %v918, 0.0
      %v983 = vmax.f32 %v919, 0.0
      %v984 = vmax.f32 %v920, 0.0
      %v985 = vmax.f32 %v921, 0.0
      %v986 = vmax.f32 %v922, 0.0
      %v987 = vmax.f32 %v923, 0.0
      %v988 = vmax.f32 %v924, 0.0
      %v989 = vmax.f32 %v925, 0.0
      %v990 = vmax.f32 %v926, 0.0
      %v991 = vmax.f32 %v927, 0.0
      %v992 = vmax.f32 %v928, 0.0
      %v993 = vmax.f32 %v929, 0.0
      %v994 = vmax.f32 %v930, 0.0
      %v995 = vpack.c.bf16 %v932, %v931
      %v996 = vpack.c.bf16 %v934, %v933
      %v997 = vpack.c.bf16 %v936, %v935
      %v998 = vpack.c.bf16 %v938, %v937
      %v999 = vpack.c.bf16 %v940, %v939
      %v1000 = vpack.c.bf16 %v942, %v941
      %v1001 = vpack.c.bf16 %v944, %v943
      %v1002 = vpack.c.bf16 %v946, %v945
      %v1003 = vpack.c.bf16 %v948, %v947
      %v1004 = vpack.c.bf16 %v950, %v949
      %v1005 = vpack.c.bf16 %v952, %v951
      %v1006 = vpack.c.bf16 %v954, %v953
      %v1007 = vpack.c.bf16 %v956, %v955
      %v1008 = vpack.c.bf16 %v958, %v957
      %v1009 = vpack.c.bf16 %v960, %v959
      %v1010 = vpack.c.bf16 %v962, %v961
      %v1011 = vpack.c.bf16 %v964, %v963
      %v1012 = vpack.c.bf16 %v966, %v965
      %v1013 = vpack.c.bf16 %v968, %v967
      %v1014 = vpack.c.bf16 %v970, %v969
      %v1015 = vpack.c.bf16 %v972, %v971
      %v1016 = vpack.c.bf16 %v974, %v973
      %v1017 = vpack.c.bf16 %v976, %v975
      %v1018 = vpack.c.bf16 %v978, %v977
      %v1019 = vpack.c.bf16 %v980, %v979
      %v1020 = vpack.c.bf16 %v982, %v981
      %v1021 = vpack.c.bf16 %v984, %v983
      %v1022 = vpack.c.bf16 %v986, %v985
      %v1023 = vpack.c.bf16 %v988, %v987
      %v1024 = vpack.c.bf16 %v990, %v989
      %v1025 = vpack.c.bf16 %v992, %v991
      %v1026 = vpack.c.bf16 %v994, %v993
      %v1027 = vld [vmem:[%s3] sm:$0xf]
      %v1028 = vld [vmem:[%s3 + $0x4] sm:$0xf]
      %v1029 = vld [vmem:[%s3 + $0x8] sm:$0xf]
      %v1030 = vld [vmem:[%s3 + $0xc] sm:$0xf]
      %v1031 = vld [vmem:[%s3 + $0x10] sm:$0xf]
      %v1032 = vld [vmem:[%s3 + $0x14] sm:$0xf]
      %v1033 = vld [vmem:[%s3 + $0x18] sm:$0xf]
      %v1034 = vld [vmem:[%s3 + $0x1c] sm:$0xf]
      %v1035 = vld [vmem:[%s4] sm:$0x1]
      %v1037 = vlaneseq
      %v1038 = vshrl.u32 %v1037, 7
      %v1039 = vsub.s32 0, %v1038
      %v1040 = vrot.slane %v1035, %v1039
      %v1050 = vunpack.c.l.b16 %v1027
      %v1051 = vunpack.c.l.b16 %v1028
      %v1052 = vunpack.c.l.b16 %v1029
      %v1053 = vunpack.c.l.b16 %v1030
      %v1054 = vunpack.c.l.b16 %v1031
      %v1055 = vunpack.c.l.b16 %v1032
      %v1056 = vunpack.c.l.b16 %v1033
      %v1057 = vunpack.c.l.b16 %v1034
      %v1058 = vpack.c.b16 %v1051, %v1050
      %v1059 = vpack.c.b16 %v1053, %v1052
      %v1060 = vpack.c.b16 %v1055, %v1054
      %v1061 = vpack.c.b16 %v1057, %v1056
      %vm1066 = vcmask 523264
      %v1068 = vsel %vm1066, %v995, 0
      %v1071 = vsel %vm1066, %v996, 0
      %v1074 = vsel %vm1066, %v997, 0
      %v1077 = vsel %vm1066, %v998, 0
      %v1080 = vsel %vm1066, %v999, 0
      %v1083 = vsel %vm1066, %v1000, 0
      %v1086 = vsel %vm1066, %v1001, 0
      %v1089 = vsel %vm1066, %v1002, 0
      %v1092 = vsel %vm1066, %v1003, 0
      %v1095 = vsel %vm1066, %v1004, 0
      %v1098 = vsel %vm1066, %v1005, 0
      %v1101 = vsel %vm1066, %v1006, 0
      %v1104 = vsel %vm1066, %v1007, 0
      %v1107 = vsel %vm1066, %v1008, 0
      %v1110 = vsel %vm1066, %v1009, 0
      %v1113 = vsel %vm1066, %v1010, 0
      %v1116 = vsel %vm1066, %v1011, 0
      %v1119 = vsel %vm1066, %v1012, 0
      %v1122 = vsel %vm1066, %v1013, 0
      %v1125 = vsel %vm1066, %v1014, 0
      %v1128 = vsel %vm1066, %v1015, 0
      %v1131 = vsel %vm1066, %v1016, 0
      %v1134 = vsel %vm1066, %v1017, 0
      %v1137 = vsel %vm1066, %v1018, 0
      %v1140 = vsel %vm1066, %v1019, 0
      %v1143 = vsel %vm1066, %v1020, 0
      %v1146 = vsel %vm1066, %v1021, 0
      %v1149 = vsel %vm1066, %v1022, 0
      %v1152 = vsel %vm1066, %v1023, 0
      %v1155 = vsel %vm1066, %v1024, 0
      %v1158 = vsel %vm1066, %v1025, 0
      %v1161 = vsel %vm1066, %v1026, 0
      %1163 = vmatprep.subr.bf16.mxu0 0
      %1164 = vmatpush1.bf16.msra.mxu0 0
      %1165 = vmatprep.subr.bf16.mxu0 0
      %1166 = vmatpush1.bf16.msra.mxu0 0
      %1167 = vmatprep.subr.bf16.mxu0 0
      %1168 = vmatpush1.bf16.msra.mxu0 0
      %1169 = vmatprep.subr.bf16.mxu0 0
      %1170 = vmatpush1.bf16.msra.mxu0 0
      %1171 = vmatprep.subr.bf16.mxu0 0
      %1172 = vmatpush1.bf16.msra.mxu0 %v1061
      %1173 = vmatprep.subr.bf16.mxu0 0
      %1174 = vmatpush1.bf16.msra.mxu0 %v1060
      %1175 = vmatprep.subr.bf16.mxu0 0
      %1176 = vmatpush1.bf16.msra.mxu0 %v1059
      %1177 = vmatprep.subr.bf16.mxu0 0
      %1178 = vmatpush1.bf16.msra.mxu0 %v1058
      %1179 = vmatprep.subr.bf16.mxu0 0
      %1180 = vmatpush2.bf16.msra.mxu0 0
      %1181 = vmatprep.subr.bf16.mxu0 0
      %1182 = vmatpush2.bf16.msra.mxu0 0
      %1183 = vmatprep.subr.bf16.mxu0 0
      %1184 = vmatpush2.bf16.msra.mxu0 0
      %1185 = vmatprep.subr.bf16.mxu0 0
      %1186 = vmatpush2.bf16.msra.mxu0 0
      %1187 = vmatprep.subr.bf16.mxu0 0
      %1188 = vmatpush2.bf16.msra.mxu0 0
      %1189 = vmatprep.subr.bf16.mxu0 0
      %1190 = vmatpush2.bf16.msra.mxu0 0
      %1191 = vmatprep.subr.bf16.mxu0 0
      %1192 = vmatpush2.bf16.msra.mxu0 0
      %1193 = vmatprep.subr.bf16.mxu0 0
      %1194 = vmatpush2.bf16.msra.mxu0 0
      %1195 = vmatprep.mubr.bf16.mxu0 0
      %1196 = vmatmul.mubr.bf16.gmra.mxu0 %v1068
      %v1197 = vpop.f32.mrf.mxu0
      %v1198 = vadd.f32 %v1040, %v1197
      %v1199 = vpop.f32.mrf.mxu0
      %v1200 = vpop.f32.mrf.mxu0
      %v1201 = vadd.f32 %v1040, %v1200
      %v1202 = vpop.f32.mrf.mxu0
      %1203 = vmatprep.mubr.bf16.mxu0 0
      %1204 = vmatmul.mubr.bf16.gmra.mxu0 %v1071
      %v1205 = vpop.f32.mrf.mxu0
      %v1206 = vadd.f32 %v1040, %v1205
      %v1207 = vpop.f32.mrf.mxu0
      %v1208 = vpop.f32.mrf.mxu0
      %v1209 = vadd.f32 %v1040, %v1208
      %v1210 = vpop.f32.mrf.mxu0
      %1211 = vmatprep.mubr.bf16.mxu0 0
      %1212 = vmatmul.mubr.bf16.gmra.mxu0 %v1074
      %v1213 = vpop.f32.mrf.mxu0
      %v1214 = vadd.f32 %v1040, %v1213
      %v1215 = vpop.f32.mrf.mxu0
      %v1216 = vpop.f32.mrf.mxu0
      %v1217 = vadd.f32 %v1040, %v1216
      %v1218 = vpop.f32.mrf.mxu0
      %1219 = vmatprep.mubr.bf16.mxu0 0
      %1220 = vmatmul.mubr.bf16.gmra.mxu0 %v1077
      %v1221 = vpop.f32.mrf.mxu0
      %v1222 = vadd.f32 %v1040, %v1221
      %v1223 = vpop.f32.mrf.mxu0
      %v1224 = vpop.f32.mrf.mxu0
      %v1225 = vadd.f32 %v1040, %v1224
      %v1226 = vpop.f32.mrf.mxu0
      %1227 = vmatprep.mubr.bf16.mxu0 0
      %1228 = vmatmul.mubr.bf16.gmra.mxu0 %v1080
      %v1229 = vpop.f32.mrf.mxu0
      %v1230 = vadd.f32 %v1040, %v1229
      %v1231 = vpop.f32.mrf.mxu0
      %v1232 = vpop.f32.mrf.mxu0
      %v1233 = vadd.f32 %v1040, %v1232
      %v1234 = vpop.f32.mrf.mxu0
      %1235 = vmatprep.mubr.bf16.mxu0 0
      %1236 = vmatmul.mubr.bf16.gmra.mxu0 %v1083
      %v1237 = vpop.f32.mrf.mxu0
      %v1238 = vadd.f32 %v1040, %v1237
      %v1239 = vpop.f32.mrf.mxu0
      %v1240 = vpop.f32.mrf.mxu0
      %v1241 = vadd.f32 %v1040, %v1240
      %v1242 = vpop.f32.mrf.mxu0
      %1243 = vmatprep.mubr.bf16.mxu0 0
      %1244 = vmatmul.mubr.bf16.gmra.mxu0 %v1086
      %v1245 = vpop.f32.mrf.mxu0
      %v1246 = vadd.f32 %v1040, %v1245
      %v1247 = vpop.f32.mrf.mxu0
      %v1248 = vpop.f32.mrf.mxu0
      %v1249 = vadd.f32 %v1040, %v1248
      %v1250 = vpop.f32.mrf.mxu0
      %1251 = vmatprep.mubr.bf16.mxu0 0
      %1252 = vmatmul.mubr.bf16.gmra.mxu0 %v1089
      %v1253 = vpop.f32.mrf.mxu0
      %v1254 = vadd.f32 %v1040, %v1253
      %v1255 = vpop.f32.mrf.mxu0
      %v1256 = vpop.f32.mrf.mxu0
      %v1257 = vadd.f32 %v1040, %v1256
      %v1258 = vpop.f32.mrf.mxu0
      %1259 = vmatprep.mubr.bf16.mxu0 0
      %1260 = vmatmul.mubr.bf16.gmra.mxu0 %v1092
      %v1261 = vpop.f32.mrf.mxu0
      %v1262 = vadd.f32 %v1040, %v1261
      %v1263 = vpop.f32.mrf.mxu0
      %v1264 = vpop.f32.mrf.mxu0
      %v1265 = vadd.f32 %v1040, %v1264
      %v1266 = vpop.f32.mrf.mxu0
      %1267 = vmatprep.mubr.bf16.mxu0 0
      %1268 = vmatmul.mubr.bf16.gmra.mxu0 %v1095
      %v1269 = vpop.f32.mrf.mxu0
      %v1270 = vadd.f32 %v1040, %v1269
      %v1271 = vpop.f32.mrf.mxu0
      %v1272 = vpop.f32.mrf.mxu0
      %v1273 = vadd.f32 %v1040, %v1272
      %v1274 = vpop.f32.mrf.mxu0
      %1275 = vmatprep.mubr.bf16.mxu0 0
      %1276 = vmatmul.mubr.bf16.gmra.mxu0 %v1098
      %v1277 = vpop.f32.mrf.mxu0
      %v1278 = vadd.f32 %v1040, %v1277
      %v1279 = vpop.f32.mrf.mxu0
      %v1280 = vpop.f32.mrf.mxu0
      %v1281 = vadd.f32 %v1040, %v1280
      %v1282 = vpop.f32.mrf.mxu0
      %1283 = vmatprep.mubr.bf16.mxu0 0
      %1284 = vmatmul.mubr.bf16.gmra.mxu0 %v1101
      %v1285 = vpop.f32.mrf.mxu0
      %v1286 = vadd.f32 %v1040, %v1285
      %v1287 = vpop.f32.mrf.mxu0
      %v1288 = vpop.f32.mrf.mxu0
      %v1289 = vadd.f32 %v1040, %v1288
      %v1290 = vpop.f32.mrf.mxu0
      %1291 = vmatprep.mubr.bf16.mxu0 0
      %1292 = vmatmul.mubr.bf16.gmra.mxu0 %v1104
      %v1293 = vpop.f32.mrf.mxu0
      %v1294 = vadd.f32 %v1040, %v1293
      %v1295 = vpop.f32.mrf.mxu0
      %v1296 = vpop.f32.mrf.mxu0
      %v1297 = vadd.f32 %v1040, %v1296
      %v1298 = vpop.f32.mrf.mxu0
      %1299 = vmatprep.mubr.bf16.mxu0 0
      %1300 = vmatmul.mubr.bf16.gmra.mxu0 %v1107
      %v1301 = vpop.f32.mrf.mxu0
      %v1302 = vadd.f32 %v1040, %v1301
      %v1303 = vpop.f32.mrf.mxu0
      %v1304 = vpop.f32.mrf.mxu0
      %v1305 = vadd.f32 %v1040, %v1304
      %v1306 = vpop.f32.mrf.mxu0
      %1307 = vmatprep.mubr.bf16.mxu0 0
      %1308 = vmatmul.mubr.bf16.gmra.mxu0 %v1110
      %v1309 = vpop.f32.mrf.mxu0
      %v1310 = vadd.f32 %v1040, %v1309
      %v1311 = vpop.f32.mrf.mxu0
      %v1312 = vpop.f32.mrf.mxu0
      %v1313 = vadd.f32 %v1040, %v1312
      %v1314 = vpop.f32.mrf.mxu0
      %1315 = vmatprep.mubr.bf16.mxu0 0
      %1316 = vmatmul.mubr.bf16.gmra.mxu0 %v1113
      %v1317 = vpop.f32.mrf.mxu0
      %v1318 = vadd.f32 %v1040, %v1317
      %v1319 = vpop.f32.mrf.mxu0
      %v1320 = vpop.f32.mrf.mxu0
      %v1321 = vadd.f32 %v1040, %v1320
      %v1322 = vpop.f32.mrf.mxu0
      %1323 = vmatprep.mubr.bf16.mxu0 0
      %1324 = vmatmul.mubr.bf16.gmra.mxu0 %v1116
      %v1325 = vpop.f32.mrf.mxu0
      %v1326 = vadd.f32 %v1040, %v1325
      %v1327 = vpop.f32.mrf.mxu0
      %v1328 = vpop.f32.mrf.mxu0
      %v1329 = vadd.f32 %v1040, %v1328
      %v1330 = vpop.f32.mrf.mxu0
      %1331 = vmatprep.mubr.bf16.mxu0 0
      %1332 = vmatmul.mubr.bf16.gmra.mxu0 %v1119
      %v1333 = vpop.f32.mrf.mxu0
      %v1334 = vadd.f32 %v1040, %v1333
      %v1335 = vpop.f32.mrf.mxu0
      %v1336 = vpop.f32.mrf.mxu0
      %v1337 = vadd.f32 %v1040, %v1336
      %v1338 = vpop.f32.mrf.mxu0
      %1339 = vmatprep.mubr.bf16.mxu0 0
      %1340 = vmatmul.mubr.bf16.gmra.mxu0 %v1122
      %v1341 = vpop.f32.mrf.mxu0
      %v1342 = vadd.f32 %v1040, %v1341
      %v1343 = vpop.f32.mrf.mxu0
      %v1344 = vpop.f32.mrf.mxu0
      %v1345 = vadd.f32 %v1040, %v1344
      %v1346 = vpop.f32.mrf.mxu0
      %1347 = vmatprep.mubr.bf16.mxu0 0
      %1348 = vmatmul.mubr.bf16.gmra.mxu0 %v1125
      %v1349 = vpop.f32.mrf.mxu0
      %v1350 = vadd.f32 %v1040, %v1349
      %v1351 = vpop.f32.mrf.mxu0
      %v1352 = vpop.f32.mrf.mxu0
      %v1353 = vadd.f32 %v1040, %v1352
      %v1354 = vpop.f32.mrf.mxu0
      %1355 = vmatprep.mubr.bf16.mxu0 0
      %1356 = vmatmul.mubr.bf16.gmra.mxu0 %v1128
      %v1357 = vpop.f32.mrf.mxu0
      %v1358 = vadd.f32 %v1040, %v1357
      %v1359 = vpop.f32.mrf.mxu0
      %v1360 = vpop.f32.mrf.mxu0
      %v1361 = vadd.f32 %v1040, %v1360
      %v1362 = vpop.f32.mrf.mxu0
      %1363 = vmatprep.mubr.bf16.mxu0 0
      %1364 = vmatmul.mubr.bf16.gmra.mxu0 %v1131
      %v1365 = vpop.f32.mrf.mxu0
      %v1366 = vadd.f32 %v1040, %v1365
      %v1367 = vpop.f32.mrf.mxu0
      %v1368 = vpop.f32.mrf.mxu0
      %v1369 = vadd.f32 %v1040, %v1368
      %v1370 = vpop.f32.mrf.mxu0
      %1371 = vmatprep.mubr.bf16.mxu0 0
      %1372 = vmatmul.mubr.bf16.gmra.mxu0 %v1134
      %v1373 = vpop.f32.mrf.mxu0
      %v1374 = vadd.f32 %v1040, %v1373
      %v1375 = vpop.f32.mrf.mxu0
      %v1376 = vpop.f32.mrf.mxu0
      %v1377 = vadd.f32 %v1040, %v1376
      %v1378 = vpop.f32.mrf.mxu0
      %1379 = vmatprep.mubr.bf16.mxu0 0
      %1380 = vmatmul.mubr.bf16.gmra.mxu0 %v1137
      %v1381 = vpop.f32.mrf.mxu0
      %v1382 = vadd.f32 %v1040, %v1381
      %v1383 = vpop.f32.mrf.mxu0
      %v1384 = vpop.f32.mrf.mxu0
      %v1385 = vadd.f32 %v1040, %v1384
      %v1386 = vpop.f32.mrf.mxu0
      %1387 = vmatprep.mubr.bf16.mxu0 0
      %1388 = vmatmul.mubr.bf16.gmra.mxu0 %v1140
      %v1389 = vpop.f32.mrf.mxu0
      %v1390 = vadd.f32 %v1040, %v1389
      %v1391 = vpop.f32.mrf.mxu0
      %v1392 = vpop.f32.mrf.mxu0
      %v1393 = vadd.f32 %v1040, %v1392
      %v1394 = vpop.f32.mrf.mxu0
      %1395 = vmatprep.mubr.bf16.mxu0 0
      %1396 = vmatmul.mubr.bf16.gmra.mxu0 %v1143
      %v1397 = vpop.f32.mrf.mxu0
      %v1398 = vadd.f32 %v1040, %v1397
      %v1399 = vpop.f32.mrf.mxu0
      %v1400 = vpop.f32.mrf.mxu0
      %v1401 = vadd.f32 %v1040, %v1400
      %v1402 = vpop.f32.mrf.mxu0
      %1403 = vmatprep.mubr.bf16.mxu0 0
      %1404 = vmatmul.mubr.bf16.gmra.mxu0 %v1146
      %v1405 = vpop.f32.mrf.mxu0
      %v1406 = vadd.f32 %v1040, %v1405
      %v1407 = vpop.f32.mrf.mxu0
      %v1408 = vpop.f32.mrf.mxu0
      %v1409 = vadd.f32 %v1040, %v1408
      %v1410 = vpop.f32.mrf.mxu0
      %1411 = vmatprep.mubr.bf16.mxu0 0
      %1412 = vmatmul.mubr.bf16.gmra.mxu0 %v1149
      %v1413 = vpop.f32.mrf.mxu0
      %v1414 = vadd.f32 %v1040, %v1413
      %v1415 = vpop.f32.mrf.mxu0
      %v1416 = vpop.f32.mrf.mxu0
      %v1417 = vadd.f32 %v1040, %v1416
      %v1418 = vpop.f32.mrf.mxu0
      %1419 = vmatprep.mubr.bf16.mxu0 0
      %1420 = vmatmul.mubr.bf16.gmra.mxu0 %v1152
      %v1421 = vpop.f32.mrf.mxu0
      %v1422 = vadd.f32 %v1040, %v1421
      %v1423 = vpop.f32.mrf.mxu0
      %v1424 = vpop.f32.mrf.mxu0
      %v1425 = vadd.f32 %v1040, %v1424
      %v1426 = vpop.f32.mrf.mxu0
      %1427 = vmatprep.mubr.bf16.mxu0 0
      %1428 = vmatmul.mubr.bf16.gmra.mxu0 %v1155
      %v1429 = vpop.f32.mrf.mxu0
      %v1430 = vadd.f32 %v1040, %v1429
      %v1431 = vpop.f32.mrf.mxu0
      %v1432 = vpop.f32.mrf.mxu0
      %v1433 = vadd.f32 %v1040, %v1432
      %v1434 = vpop.f32.mrf.mxu0
      %1435 = vmatprep.mubr.bf16.mxu0 0
      %1436 = vmatmul.mubr.bf16.gmra.mxu0 %v1158
      %v1437 = vpop.f32.mrf.mxu0
      %v1438 = vadd.f32 %v1040, %v1437
      %v1439 = vpop.f32.mrf.mxu0
      %v1440 = vpop.f32.mrf.mxu0
      %v1441 = vadd.f32 %v1040, %v1440
      %v1442 = vpop.f32.mrf.mxu0
      %1443 = vmatprep.mubr.bf16.mxu0 0
      %1444 = vmatmul.mubr.bf16.gmra.mxu0 %v1161
      %v1445 = vpop.f32.mrf.mxu0
      %v1446 = vadd.f32 %v1040, %v1445
      %v1447 = vpop.f32.mrf.mxu0
      %v1448 = vpop.f32.mrf.mxu0
      %v1449 = vadd.f32 %v1040, %v1448
      %v1450 = vpop.f32.mrf.mxu0
      %1451 = vdwg.mxu0
      %1516 = vrot.lane.b32.xlu0 %v931, 64
      %v1517 = vpop.permute.xlu0 %1516
      %1518 = vrot.lane.b32.xlu0 %v932, 64
      %v1519 = vpop.permute.xlu0 %1518
      %1520 = vrot.lane.b32.xlu0 %v933, 64
      %v1521 = vpop.permute.xlu0 %1520
      %1522 = vrot.lane.b32.xlu0 %v934, 64
      %v1523 = vpop.permute.xlu0 %1522
      %1524 = vrot.lane.b32.xlu0 %v935, 64
      %v1525 = vpop.permute.xlu0 %1524
      %1526 = vrot.lane.b32.xlu0 %v936, 64
      %v1527 = vpop.permute.xlu0 %1526
      %1528 = vrot.lane.b32.xlu0 %v937, 64
      %v1529 = vpop.permute.xlu0 %1528
      %1530 = vrot.lane.b32.xlu0 %v938, 64
      %v1531 = vpop.permute.xlu0 %1530
      %1532 = vrot.lane.b32.xlu0 %v939, 64
      %v1533 = vpop.permute.xlu0 %1532
      %1534 = vrot.lane.b32.xlu0 %v940, 64
      %v1535 = vpop.permute.xlu0 %1534
      %1536 = vrot.lane.b32.xlu0 %v941, 64
      %v1537 = vpop.permute.xlu0 %1536
      %1538 = vrot.lane.b32.xlu0 %v942, 64
      %v1539 = vpop.permute.xlu0 %1538
      %1540 = vrot.lane.b32.xlu0 %v943, 64
      %v1541 = vpop.permute.xlu0 %1540
      %1542 = vrot.lane.b32.xlu0 %v944, 64
      %v1543 = vpop.permute.xlu0 %1542
      %1544 = vrot.lane.b32.xlu0 %v945, 64
      %v1545 = vpop.permute.xlu0 %1544
      %1546 = vrot.lane.b32.xlu0 %v946, 64
      %v1547 = vpop.permute.xlu0 %1546
      %1548 = vrot.lane.b32.xlu0 %v947, 64
      %v1549 = vpop.permute.xlu0 %1548
      %1550 = vrot.lane.b32.xlu0 %v948, 64
      %v1551 = vpop.permute.xlu0 %1550
      %1552 = vrot.lane.b32.xlu0 %v949, 64
      %v1553 = vpop.permute.xlu0 %1552
      %1554 = vrot.lane.b32.xlu0 %v950, 64
      %v1555 = vpop.permute.xlu0 %1554
      %1556 = vrot.lane.b32.xlu0 %v951, 64
      %v1557 = vpop.permute.xlu0 %1556
      %1558 = vrot.lane.b32.xlu0 %v952, 64
      %v1559 = vpop.permute.xlu0 %1558
      %1560 = vrot.lane.b32.xlu0 %v953, 64
      %v1561 = vpop.permute.xlu0 %1560
      %1562 = vrot.lane.b32.xlu0 %v954, 64
      %v1563 = vpop.permute.xlu0 %1562
      %1564 = vrot.lane.b32.xlu0 %v955, 64
      %v1565 = vpop.permute.xlu0 %1564
      %1566 = vrot.lane.b32.xlu0 %v956, 64
      %v1567 = vpop.permute.xlu0 %1566
      %1568 = vrot.lane.b32.xlu0 %v957, 64
      %v1569 = vpop.permute.xlu0 %1568
      %1570 = vrot.lane.b32.xlu0 %v958, 64
      %v1571 = vpop.permute.xlu0 %1570
      %1572 = vrot.lane.b32.xlu0 %v959, 64
      %v1573 = vpop.permute.xlu0 %1572
      %1574 = vrot.lane.b32.xlu0 %v960, 64
      %v1575 = vpop.permute.xlu0 %1574
      %1576 = vrot.lane.b32.xlu0 %v961, 64
      %v1577 = vpop.permute.xlu0 %1576
      %1578 = vrot.lane.b32.xlu0 %v962, 64
      %v1579 = vpop.permute.xlu0 %1578
      %1580 = vrot.lane.b32.xlu0 %v963, 64
      %v1581 = vpop.permute.xlu0 %1580
      %1582 = vrot.lane.b32.xlu0 %v964, 64
      %v1583 = vpop.permute.xlu0 %1582
      %1584 = vrot.lane.b32.xlu0 %v965, 64
      %v1585 = vpop.permute.xlu0 %1584
      %1586 = vrot.lane.b32.xlu0 %v966, 64
      %v1587 = vpop.permute.xlu0 %1586
      %1588 = vrot.lane.b32.xlu0 %v967, 64
      %v1589 = vpop.permute.xlu0 %1588
      %1590 = vrot.lane.b32.xlu0 %v968, 64
      %v1591 = vpop.permute.xlu0 %1590
      %1592 = vrot.lane.b32.xlu0 %v969, 64
      %v1593 = vpop.permute.xlu0 %1592
      %1594 = vrot.lane.b32.xlu0 %v970, 64
      %v1595 = vpop.permute.xlu0 %1594
      %1596 = vrot.lane.b32.xlu0 %v971, 64
      %v1597 = vpop.permute.xlu0 %1596
      %1598 = vrot.lane.b32.xlu0 %v972, 64
      %v1599 = vpop.permute.xlu0 %1598
      %1600 = vrot.lane.b32.xlu0 %v973, 64
      %v1601 = vpop.permute.xlu0 %1600
      %1602 = vrot.lane.b32.xlu0 %v974, 64
      %v1603 = vpop.permute.xlu0 %1602
      %1604 = vrot.lane.b32.xlu0 %v975, 64
      %v1605 = vpop.permute.xlu0 %1604
      %1606 = vrot.lane.b32.xlu0 %v976, 64
      %v1607 = vpop.permute.xlu0 %1606
      %1608 = vrot.lane.b32.xlu0 %v977, 64
      %v1609 = vpop.permute.xlu0 %1608
      %1610 = vrot.lane.b32.xlu0 %v978, 64
      %v1611 = vpop.permute.xlu0 %1610
      %1612 = vrot.lane.b32.xlu0 %v979, 64
      %v1613 = vpop.permute.xlu0 %1612
      %1614 = vrot.lane.b32.xlu0 %v980, 64
      %v1615 = vpop.permute.xlu0 %1614
      %1616 = vrot.lane.b32.xlu0 %v981, 64
      %v1617 = vpop.permute.xlu0 %1616
      %1618 = vrot.lane.b32.xlu0 %v982, 64
      %v1619 = vpop.permute.xlu0 %1618
      %1620 = vrot.lane.b32.xlu0 %v983, 64
      %v1621 = vpop.permute.xlu0 %1620
      %1622 = vrot.lane.b32.xlu0 %v984, 64
      %v1623 = vpop.permute.xlu0 %1622
      %1624 = vrot.lane.b32.xlu0 %v985, 64
      %v1625 = vpop.permute.xlu0 %1624
      %1626 = vrot.lane.b32.xlu0 %v986, 64
      %v1627 = vpop.permute.xlu0 %1626
      %1628 = vrot.lane.b32.xlu0 %v987, 64
      %v1629 = vpop.permute.xlu0 %1628
      %1630 = vrot.lane.b32.xlu0 %v988, 64
      %v1631 = vpop.permute.xlu0 %1630
      %1632 = vrot.lane.b32.xlu0 %v989, 64
      %v1633 = vpop.permute.xlu0 %1632
      %1634 = vrot.lane.b32.xlu0 %v990, 64
      %v1635 = vpop.permute.xlu0 %1634
      %1636 = vrot.lane.b32.xlu0 %v991, 64
      %v1637 = vpop.permute.xlu0 %1636
      %1638 = vrot.lane.b32.xlu0 %v992, 64
      %v1639 = vpop.permute.xlu0 %1638
      %1640 = vrot.lane.b32.xlu0 %v993, 64
      %v1641 = vpop.permute.xlu0 %1640
      %1642 = vrot.lane.b32.xlu0 %v994, 64
      %v1643 = vpop.permute.xlu0 %1642
      %v1708 = vsel %vm1066, %v1198, %v1517
      %v1709 = vsel %vm1066, %v1201, %v1519
      %v1710 = vsel %vm1066, %v1206, %v1521
      %v1711 = vsel %vm1066, %v1209, %v1523
      %v1712 = vsel %vm1066, %v1214, %v1525
      %v1713 = vsel %vm1066, %v1217, %v1527
      %v1714 = vsel %vm1066, %v1222, %v1529
      %v1715 = vsel %vm1066, %v1225, %v1531
      %v1716 = vsel %vm1066, %v1230, %v1533
      %v1717 = vsel %vm1066, %v1233, %v1535
      %v1718 = vsel %vm1066, %v1238, %v1537
      %v1719 = vsel %vm1066, %v1241, %v1539
      %v1720 = vsel %vm1066, %v1246, %v1541
      %v1721 = vsel %vm1066, %v1249, %v1543
      %v1722 = vsel %vm1066, %v1254, %v1545
      %v1723 = vsel %vm1066, %v1257, %v1547
      %v1724 = vsel %vm1066, %v1262, %v1549
      %v1725 = vsel %vm1066, %v1265, %v1551
      %v1726 = vsel %vm1066, %v1270, %v1553
      %v1727 = vsel %vm1066, %v1273, %v1555
      %v1728 = vsel %vm1066, %v1278, %v1557
      %v1729 = vsel %vm1066, %v1281, %v1559
      %v1730 = vsel %vm1066, %v1286, %v1561
      %v1731 = vsel %vm1066, %v1289, %v1563
      %v1732 = vsel %vm1066, %v1294, %v1565
      %v1733 = vsel %vm1066, %v1297, %v1567
      %v1734 = vsel %vm1066, %v1302, %v1569
      %v1735 = vsel %vm1066, %v1305, %v1571
      %v1736 = vsel %vm1066, %v1310, %v1573
      %v1737 = vsel %vm1066, %v1313, %v1575
      %v1738 = vsel %vm1066, %v1318, %v1577
      %v1739 = vsel %vm1066, %v1321, %v1579
      %v1740 = vsel %vm1066, %v1326, %v1581
      %v1741 = vsel %vm1066, %v1329, %v1583
      %v1742 = vsel %vm1066, %v1334, %v1585
      %v1743 = vsel %vm1066, %v1337, %v1587
      %v1744 = vsel %vm1066, %v1342, %v1589
      %v1745 = vsel %vm1066, %v1345, %v1591
      %v1746 = vsel %vm1066, %v1350, %v1593
      %v1747 = vsel %vm1066, %v1353, %v1595
      %v1748 = vsel %vm1066, %v1358, %v1597
      %v1749 = vsel %vm1066, %v1361, %v1599
      %v1750 = vsel %vm1066, %v1366, %v1601
      %v1751 = vsel %vm1066, %v1369, %v1603
      %v1752 = vsel %vm1066, %v1374, %v1605
      %v1753 = vsel %vm1066, %v1377, %v1607
      %v1754 = vsel %vm1066, %v1382, %v1609
      %v1755 = vsel %vm1066, %v1385, %v1611
      %v1756 = vsel %vm1066, %v1390, %v1613
      %v1757 = vsel %vm1066, %v1393, %v1615
      %v1758 = vsel %vm1066, %v1398, %v1617
      %v1759 = vsel %vm1066, %v1401, %v1619
      %v1760 = vsel %vm1066, %v1406, %v1621
      %v1761 = vsel %vm1066, %v1409, %v1623
      %v1762 = vsel %vm1066, %v1414, %v1625
      %v1763 = vsel %vm1066, %v1417, %v1627
      %v1764 = vsel %vm1066, %v1422, %v1629
      %v1765 = vsel %vm1066, %v1425, %v1631
      %v1766 = vsel %vm1066, %v1430, %v1633
      %v1767 = vsel %vm1066, %v1433, %v1635
      %v1768 = vsel %vm1066, %v1438, %v1637
      %v1769 = vsel %vm1066, %v1441, %v1639
      %v1770 = vsel %vm1066, %v1446, %v1641
      %v1771 = vsel %vm1066, %v1449, %v1643
      %v1772 = vpack.c.bf16 %v1709, %v1708
      %v1773 = vpack.c.bf16 %v1711, %v1710
      %v1774 = vpack.c.bf16 %v1713, %v1712
      %v1775 = vpack.c.bf16 %v1715, %v1714
      %v1776 = vpack.c.bf16 %v1717, %v1716
      %v1777 = vpack.c.bf16 %v1719, %v1718
      %v1778 = vpack.c.bf16 %v1721, %v1720
      %v1779 = vpack.c.bf16 %v1723, %v1722
      %v1780 = vpack.c.bf16 %v1725, %v1724
      %v1781 = vpack.c.bf16 %v1727, %v1726
      %v1782 = vpack.c.bf16 %v1729, %v1728
      %v1783 = vpack.c.bf16 %v1731, %v1730
      %v1784 = vpack.c.bf16 %v1733, %v1732
      %v1785 = vpack.c.bf16 %v1735, %v1734
      %v1786 = vpack.c.bf16 %v1737, %v1736
      %v1787 = vpack.c.bf16 %v1739, %v1738
      %v1788 = vpack.c.bf16 %v1741, %v1740
      %v1789 = vpack.c.bf16 %v1743, %v1742
      %v1790 = vpack.c.bf16 %v1745, %v1744
      %v1791 = vpack.c.bf16 %v1747, %v1746
      %v1792 = vpack.c.bf16 %v1749, %v1748
      %v1793 = vpack.c.bf16 %v1751, %v1750
      %v1794 = vpack.c.bf16 %v1753, %v1752
      %v1795 = vpack.c.bf16 %v1755, %v1754
      %v1796 = vpack.c.bf16 %v1757, %v1756
      %v1797 = vpack.c.bf16 %v1759, %v1758
      %v1798 = vpack.c.bf16 %v1761, %v1760
      %v1799 = vpack.c.bf16 %v1763, %v1762
      %v1800 = vpack.c.bf16 %v1765, %v1764
      %v1801 = vpack.c.bf16 %v1767, %v1766
      %v1802 = vpack.c.bf16 %v1769, %v1768
      %v1803 = vpack.c.bf16 %v1771, %v1770
      %v1836 = vunpack.c.l.b16 %v1772
      %v1837 = vunpack.c.h.b16 %v1772
      %v1838 = vunpack.c.l.b16 %v1773
      %v1839 = vunpack.c.h.b16 %v1773
      %v1840 = vunpack.c.l.b16 %v1774
      %v1841 = vunpack.c.h.b16 %v1774
      %v1842 = vunpack.c.l.b16 %v1775
      %v1843 = vunpack.c.h.b16 %v1775
      %v1844 = vunpack.c.l.b16 %v1776
      %v1845 = vunpack.c.h.b16 %v1776
      %v1846 = vunpack.c.l.b16 %v1777
      %v1847 = vunpack.c.h.b16 %v1777
      %v1848 = vunpack.c.l.b16 %v1778
      %v1849 = vunpack.c.h.b16 %v1778
      %v1850 = vunpack.c.l.b16 %v1779
      %v1851 = vunpack.c.h.b16 %v1779
      %v1852 = vunpack.c.l.b16 %v1780
      %v1853 = vunpack.c.h.b16 %v1780
      %v1854 = vunpack.c.l.b16 %v1781
      %v1855 = vunpack.c.h.b16 %v1781
      %v1856 = vunpack.c.l.b16 %v1782
      %v1857 = vunpack.c.h.b16 %v1782
      %v1858 = vunpack.c.l.b16 %v1783
      %v1859 = vunpack.c.h.b16 %v1783
      %v1860 = vunpack.c.l.b16 %v1784
      %v1861 = vunpack.c.h.b16 %v1784
      %v1862 = vunpack.c.l.b16 %v1785
      %v1863 = vunpack.c.h.b16 %v1785
      %v1864 = vunpack.c.l.b16 %v1786
      %v1865 = vunpack.c.h.b16 %v1786
      %v1866 = vunpack.c.l.b16 %v1787
      %v1867 = vunpack.c.h.b16 %v1787
      %v1868 = vunpack.c.l.b16 %v1788
      %v1869 = vunpack.c.h.b16 %v1788
      %v1870 = vunpack.c.l.b16 %v1789
      %v1871 = vunpack.c.h.b16 %v1789
      %v1872 = vunpack.c.l.b16 %v1790
      %v1873 = vunpack.c.h.b16 %v1790
      %v1874 = vunpack.c.l.b16 %v1791
      %v1875 = vunpack.c.h.b16 %v1791
      %v1876 = vunpack.c.l.b16 %v1792
      %v1877 = vunpack.c.h.b16 %v1792
      %v1878 = vunpack.c.l.b16 %v1793
      %v1879 = vunpack.c.h.b16 %v1793
      %v1880 = vunpack.c.l.b16 %v1794
      %v1881 = vunpack.c.h.b16 %v1794
      %v1882 = vunpack.c.l.b16 %v1795
      %v1883 = vunpack.c.h.b16 %v1795
      %v1884 = vunpack.c.l.b16 %v1796
      %v1885 = vunpack.c.h.b16 %v1796
      %v1886 = vunpack.c.l.b16 %v1797
      %v1887 = vunpack.c.h.b16 %v1797
      %v1888 = vunpack.c.l.b16 %v1798
      %v1889 = vunpack.c.h.b16 %v1798
      %v1890 = vunpack.c.l.b16 %v1799
      %v1891 = vunpack.c.h.b16 %v1799
      %v1892 = vunpack.c.l.b16 %v1800
      %v1893 = vunpack.c.h.b16 %v1800
      %v1894 = vunpack.c.l.b16 %v1801
      %v1895 = vunpack.c.h.b16 %v1801
      %v1896 = vunpack.c.l.b16 %v1802
      %v1897 = vunpack.c.h.b16 %v1802
      %v1898 = vunpack.c.l.b16 %v1803
      %v1899 = vunpack.c.h.b16 %v1803
      %v1900 = vpack.c.b16 %v1836, %v1836
      %v1901 = vpack.c.b16 %v1837, %v1837
      %v1902 = vpack.c.b16 %v1838, %v1838
      %v1903 = vpack.c.b16 %v1839, %v1839
      %v1904 = vpack.c.b16 %v1840, %v1840
      %v1905 = vpack.c.b16 %v1841, %v1841
      %v1906 = vpack.c.b16 %v1842, %v1842
      %v1907 = vpack.c.b16 %v1843, %v1843
      %v1908 = vpack.c.b16 %v1844, %v1844
      %v1909 = vpack.c.b16 %v1845, %v1845
      %v1910 = vpack.c.b16 %v1846, %v1846
      %v1911 = vpack.c.b16 %v1847, %v1847
      %v1912 = vpack.c.b16 %v1848, %v1848
      %v1913 = vpack.c.b16 %v1849, %v1849
      %v1914 = vpack.c.b16 %v1850, %v1850
      %v1915 = vpack.c.b16 %v1851, %v1851
      %v1916 = vpack.c.b16 %v1852, %v1852
      %v1917 = vpack.c.b16 %v1853, %v1853
      %v1918 = vpack.c.b16 %v1854, %v1854
      %v1919 = vpack.c.b16 %v1855, %v1855
      %v1920 = vpack.c.b16 %v1856, %v1856
      %v1921 = vpack.c.b16 %v1857, %v1857
      %v1922 = vpack.c.b16 %v1858, %v1858
      %v1923 = vpack.c.b16 %v1859, %v1859
      %v1924 = vpack.c.b16 %v1860, %v1860
      %v1925 = vpack.c.b16 %v1861, %v1861
      %v1926 = vpack.c.b16 %v1862, %v1862
      %v1927 = vpack.c.b16 %v1863, %v1863
      %v1928 = vpack.c.b16 %v1864, %v1864
      %v1929 = vpack.c.b16 %v1865, %v1865
      %v1930 = vpack.c.b16 %v1866, %v1866
      %v1931 = vpack.c.b16 %v1867, %v1867
      %v1932 = vpack.c.b16 %v1868, %v1868
      %v1933 = vpack.c.b16 %v1869, %v1869
      %v1934 = vpack.c.b16 %v1870, %v1870
      %v1935 = vpack.c.b16 %v1871, %v1871
      %v1936 = vpack.c.b16 %v1872, %v1872
      %v1937 = vpack.c.b16 %v1873, %v1873
      %v1938 = vpack.c.b16 %v1874, %v1874
      %v1939 = vpack.c.b16 %v1875, %v1875
      %v1940 = vpack.c.b16 %v1876, %v1876
      %v1941 = vpack.c.b16 %v1877, %v1877
      %v1942 = vpack.c.b16 %v1878, %v1878
      %v1943 = vpack.c.b16 %v1879, %v1879
      %v1944 = vpack.c.b16 %v1880, %v1880
      %v1945 = vpack.c.b16 %v1881, %v1881
      %v1946 = vpack.c.b16 %v1882, %v1882
      %v1947 = vpack.c.b16 %v1883, %v1883
      %v1948 = vpack.c.b16 %v1884, %v1884
      %v1949 = vpack.c.b16 %v1885, %v1885
      %v1950 = vpack.c.b16 %v1886, %v1886
      %v1951 = vpack.c.b16 %v1887, %v1887
      %v1952 = vpack.c.b16 %v1888, %v1888
      %v1953 = vpack.c.b16 %v1889, %v1889
      %v1954 = vpack.c.b16 %v1890, %v1890
      %v1955 = vpack.c.b16 %v1891, %v1891
      %v1956 = vpack.c.b16 %v1892, %v1892
      %v1957 = vpack.c.b16 %v1893, %v1893
      %v1958 = vpack.c.b16 %v1894, %v1894
      %v1959 = vpack.c.b16 %v1895, %v1895
      %v1960 = vpack.c.b16 %v1896, %v1896
      %v1961 = vpack.c.b16 %v1897, %v1897
      %v1962 = vpack.c.b16 %v1898, %v1898
      %v1963 = vpack.c.b16 %v1899, %v1899
      %2028 = vst [vmem:[%s330] sm:$0xf] %v1900
      %2029 = vst [vmem:[%s330 + $0x4] sm:$0xf] %v1901
      %2030 = vst [vmem:[%s330 + $0x8] sm:$0xf] %v1902
      %2031 = vst [vmem:[%s330 + $0xc] sm:$0xf] %v1903
      %2032 = vst [vmem:[%s330 + $0x10] sm:$0xf] %v1904
      %2033 = vst [vmem:[%s330 + $0x14] sm:$0xf] %v1905
      %2034 = vst [vmem:[%s330 + $0x18] sm:$0xf] %v1906
      %2035 = vst [vmem:[%s330 + $0x1c] sm:$0xf] %v1907
      %2036 = vst [vmem:[%s330 + $0x20] sm:$0xf] %v1908
      %2037 = vst [vmem:[%s330 + $0x24] sm:$0xf] %v1909
      %2038 = vst [vmem:[%s330 + $0x28] sm:$0xf] %v1910
      %2039 = vst [vmem:[%s330 + $0x2c] sm:$0xf] %v1911
      %2040 = vst [vmem:[%s330 + $0x30] sm:$0xf] %v1912
      %2041 = vst [vmem:[%s330 + $0x34] sm:$0xf] %v1913
      %2042 = vst [vmem:[%s330 + $0x38] sm:$0xf] %v1914
      %2043 = vst [vmem:[%s330 + $0x3c] sm:$0xf] %v1915
      %2044 = vst [vmem:[%s330 + $0x40] sm:$0xf] %v1916
      %2045 = vst [vmem:[%s330 + $0x44] sm:$0xf] %v1917
      %2046 = vst [vmem:[%s330 + $0x48] sm:$0xf] %v1918
      %2047 = vst [vmem:[%s330 + $0x4c] sm:$0xf] %v1919
      %2048 = vst [vmem:[%s330 + $0x50] sm:$0xf] %v1920
      %2049 = vst [vmem:[%s330 + $0x54] sm:$0xf] %v1921
      %2050 = vst [vmem:[%s330 + $0x58] sm:$0xf] %v1922
      %2051 = vst [vmem:[%s330 + $0x5c] sm:$0xf] %v1923
      %2052 = vst [vmem:[%s330 + $0x60] sm:$0xf] %v1924
      %2053 = vst [vmem:[%s330 + $0x64] sm:$0xf] %v1925
      %2054 = vst [vmem:[%s330 + $0x68] sm:$0xf] %v1926
      %2055 = vst [vmem:[%s330 + $0x6c] sm:$0xf] %v1927
      %2056 = vst [vmem:[%s330 + $0x70] sm:$0xf] %v1928
      %2057 = vst [vmem:[%s330 + $0x74] sm:$0xf] %v1929
      %2058 = vst [vmem:[%s330 + $0x78] sm:$0xf] %v1930
      %2059 = vst [vmem:[%s330 + $0x7c] sm:$0xf] %v1931
      %2060 = vst [vmem:[%s330 + $0x80] sm:$0xf] %v1932
      %2061 = vst [vmem:[%s330 + $0x84] sm:$0xf] %v1933
      %2062 = vst [vmem:[%s330 + $0x88] sm:$0xf] %v1934
      %2063 = vst [vmem:[%s330 + $0x8c] sm:$0xf] %v1935
      %2064 = vst [vmem:[%s330 + $0x90] sm:$0xf] %v1936
      %2065 = vst [vmem:[%s330 + $0x94] sm:$0xf] %v1937
      %2066 = vst [vmem:[%s330 + $0x98] sm:$0xf] %v1938
      %2067 = vst [vmem:[%s330 + $0x9c] sm:$0xf] %v1939
      %2068 = vst [vmem:[%s330 + $0xa0] sm:$0xf] %v1940
      %2069 = vst [vmem:[%s330 + $0xa4] sm:$0xf] %v1941
      %2070 = vst [vmem:[%s330 + $0xa8] sm:$0xf] %v1942
      %2071 = vst [vmem:[%s330 + $0xac] sm:$0xf] %v1943
      %2072 = vst [vmem:[%s330 + $0xb0] sm:$0xf] %v1944
      %2073 = vst [vmem:[%s330 + $0xb4] sm:$0xf] %v1945
      %2074 = vst [vmem:[%s330 + $0xb8] sm:$0xf] %v1946
      %2075 = vst [vmem:[%s330 + $0xbc] sm:$0xf] %v1947
      %2076 = vst [vmem:[%s330 + $0xc0] sm:$0xf] %v1948
      %2077 = vst [vmem:[%s330 + $0xc4] sm:$0xf] %v1949
      %2078 = vst [vmem:[%s330 + $0xc8] sm:$0xf] %v1950
      %2079 = vst [vmem:[%s330 + $0xcc] sm:$0xf] %v1951
      %2080 = vst [vmem:[%s330 + $0xd0] sm:$0xf] %v1952
      %2081 = vst [vmem:[%s330 + $0xd4] sm:$0xf] %v1953
      %2082 = vst [vmem:[%s330 + $0xd8] sm:$0xf] %v1954
      %2083 = vst [vmem:[%s330 + $0xdc] sm:$0xf] %v1955
      %2084 = vst [vmem:[%s330 + $0xe0] sm:$0xf] %v1956
      %2085 = vst [vmem:[%s330 + $0xe4] sm:$0xf] %v1957
      %2086 = vst [vmem:[%s330 + $0xe8] sm:$0xf] %v1958
      %2087 = vst [vmem:[%s330 + $0xec] sm:$0xf] %v1959
      %2088 = vst [vmem:[%s330 + $0xf0] sm:$0xf] %v1960
      %2089 = vst [vmem:[%s330 + $0xf4] sm:$0xf] %v1961
      %2090 = vst [vmem:[%s330 + $0xf8] sm:$0xf] %v1962
      %2091 = vst [vmem:[%s330 + $0xfc] sm:$0xf] %v1963
      %v2092 = vsel %vm1066, %v1198, 0.0
      %v2093 = vsel %vm1066, %v1201, 0.0
      %v2094 = vadd.f32 %v2092, %v2093
      %v2095 = vsel %vm1066, %v1206, 0.0
      %v2096 = vadd.f32 %v2094, %v2095
      %v2097 = vsel %vm1066, %v1209, 0.0
      %v2098 = vadd.f32 %v2096, %v2097
      %v2099 = vsel %vm1066, %v1214, 0.0
      %v2100 = vadd.f32 %v2098, %v2099
      %v2101 = vsel %vm1066, %v1217, 0.0
      %v2102 = vadd.f32 %v2100, %v2101
      %v2103 = vsel %vm1066, %v1222, 0.0
      %v2104 = vadd.f32 %v2102, %v2103
      %v2105 = vsel %vm1066, %v1225, 0.0
      %v2106 = vadd.f32 %v2104, %v2105
      %v2107 = vsel %vm1066, %v1230, 0.0
      %v2108 = vadd.f32 %v2106, %v2107
      %v2109 = vsel %vm1066, %v1233, 0.0
      %v2110 = vadd.f32 %v2108, %v2109
      %v2111 = vsel %vm1066, %v1238, 0.0
      %v2112 = vadd.f32 %v2110, %v2111
      %v2113 = vsel %vm1066, %v1241, 0.0
      %v2114 = vadd.f32 %v2112, %v2113
      %v2115 = vsel %vm1066, %v1246, 0.0
      %v2116 = vadd.f32 %v2114, %v2115
      %v2117 = vsel %vm1066, %v1249, 0.0
      %v2118 = vadd.f32 %v2116, %v2117
      %v2119 = vsel %vm1066, %v1254, 0.0
      %v2120 = vadd.f32 %v2118, %v2119
      %v2121 = vsel %vm1066, %v1257, 0.0
      %v2122 = vadd.f32 %v2120, %v2121
      %v2123 = vsel %vm1066, %v1262, 0.0
      %v2124 = vadd.f32 %v2122, %v2123
      %v2125 = vsel %vm1066, %v1265, 0.0
      %v2126 = vadd.f32 %v2124, %v2125
      %v2127 = vsel %vm1066, %v1270, 0.0
      %v2128 = vadd.f32 %v2126, %v2127
      %v2129 = vsel %vm1066, %v1273, 0.0
      %v2130 = vadd.f32 %v2128, %v2129
      %v2131 = vsel %vm1066, %v1278, 0.0
      %v2132 = vadd.f32 %v2130, %v2131
      %v2133 = vsel %vm1066, %v1281, 0.0
      %v2134 = vadd.f32 %v2132, %v2133
      %v2135 = vsel %vm1066, %v1286, 0.0
      %v2136 = vadd.f32 %v2134, %v2135
      %v2137 = vsel %vm1066, %v1289, 0.0
      %v2138 = vadd.f32 %v2136, %v2137
      %v2139 = vsel %vm1066, %v1294, 0.0
      %v2140 = vadd.f32 %v2138, %v2139
      %v2141 = vsel %vm1066, %v1297, 0.0
      %v2142 = vadd.f32 %v2140, %v2141
      %v2143 = vsel %vm1066, %v1302, 0.0
      %v2144 = vadd.f32 %v2142, %v2143
      %v2145 = vsel %vm1066, %v1305, 0.0
      %v2146 = vadd.f32 %v2144, %v2145
      %v2147 = vsel %vm1066, %v1310, 0.0
      %v2148 = vadd.f32 %v2146, %v2147
      %v2149 = vsel %vm1066, %v1313, 0.0
      %v2150 = vadd.f32 %v2148, %v2149
      %v2151 = vsel %vm1066, %v1318, 0.0
      %v2152 = vadd.f32 %v2150, %v2151
      %v2153 = vsel %vm1066, %v1321, 0.0
      %v2154 = vadd.f32 %v2152, %v2153
      %v2155 = vsel %vm1066, %v1326, 0.0
      %v2156 = vadd.f32 %v2154, %v2155
      %v2157 = vsel %vm1066, %v1329, 0.0
      %v2158 = vadd.f32 %v2156, %v2157
      %v2159 = vsel %vm1066, %v1334, 0.0
      %v2160 = vadd.f32 %v2158, %v2159
      %v2161 = vsel %vm1066, %v1337, 0.0
      %v2162 = vadd.f32 %v2160, %v2161
      %v2163 = vsel %vm1066, %v1342, 0.0
      %v2164 = vadd.f32 %v2162, %v2163
      %v2165 = vsel %vm1066, %v1345, 0.0
      %v2166 = vadd.f32 %v2164, %v2165
      %v2167 = vsel %vm1066, %v1350, 0.0
      %v2168 = vadd.f32 %v2166, %v2167
      %v2169 = vsel %vm1066, %v1353, 0.0
      %v2170 = vadd.f32 %v2168, %v2169
      %v2171 = vsel %vm1066, %v1358, 0.0
      %v2172 = vadd.f32 %v2170, %v2171
      %v2173 = vsel %vm1066, %v1361, 0.0
      %v2174 = vadd.f32 %v2172, %v2173
      %v2175 = vsel %vm1066, %v1366, 0.0
      %v2176 = vadd.f32 %v2174, %v2175
      %v2177 = vsel %vm1066, %v1369, 0.0
      %v2178 = vadd.f32 %v2176, %v2177
      %v2179 = vsel %vm1066, %v1374, 0.0
      %v2180 = vadd.f32 %v2178, %v2179
      %v2181 = vsel %vm1066, %v1377, 0.0
      %v2182 = vadd.f32 %v2180, %v2181
      %v2183 = vsel %vm1066, %v1382, 0.0
      %v2184 = vadd.f32 %v2182, %v2183
      %v2185 = vsel %vm1066, %v1385, 0.0
      %v2186 = vadd.f32 %v2184, %v2185
      %v2187 = vsel %vm1066, %v1390, 0.0
      %v2188 = vadd.f32 %v2186, %v2187
      %v2189 = vsel %vm1066, %v1393, 0.0
      %v2190 = vadd.f32 %v2188, %v2189
      %v2191 = vsel %vm1066, %v1398, 0.0
      %v2192 = vadd.f32 %v2190, %v2191
      %v2193 = vsel %vm1066, %v1401, 0.0
      %v2194 = vadd.f32 %v2192, %v2193
      %v2195 = vsel %vm1066, %v1406, 0.0
      %v2196 = vadd.f32 %v2194, %v2195
      %v2197 = vsel %vm1066, %v1409, 0.0
      %v2198 = vadd.f32 %v2196, %v2197
      %v2199 = vsel %vm1066, %v1414, 0.0
      %v2200 = vadd.f32 %v2198, %v2199
      %v2201 = vsel %vm1066, %v1417, 0.0
      %v2202 = vadd.f32 %v2200, %v2201
      %v2203 = vsel %vm1066, %v1422, 0.0
      %v2204 = vadd.f32 %v2202, %v2203
      %v2205 = vsel %vm1066, %v1425, 0.0
      %v2206 = vadd.f32 %v2204, %v2205
      %v2207 = vsel %vm1066, %v1430, 0.0
      %v2208 = vadd.f32 %v2206, %v2207
      %v2209 = vsel %vm1066, %v1433, 0.0
      %v2210 = vadd.f32 %v2208, %v2209
      %v2211 = vsel %vm1066, %v1438, 0.0
      %v2212 = vadd.f32 %v2210, %v2211
      %v2213 = vsel %vm1066, %v1441, 0.0
      %v2214 = vadd.f32 %v2212, %v2213
      %v2215 = vsel %vm1066, %v1446, 0.0
      %v2216 = vadd.f32 %v2214, %v2215
      %v2217 = vsel %vm1066, %v1449, 0.0
      %v2218 = vadd.f32 %v2216, %v2217
      %v2219 = vrot.slane %v2218, 4
      %v2220 = vadd.f32 %v2218, %v2219
      %v2221 = vrot.slane %v2220, 2
      %v2222 = vadd.f32 %v2220, %v2221
      %v2223 = vrot.slane %v2222, 1
      %v2224 = vadd.f32 %v2222, %v2223
      %v2225 = vmul.f32 %v1198, %v1198
      %v2226 = vmul.f32 %v1201, %v1201
      %v2227 = vmul.f32 %v1206, %v1206
      %v2228 = vmul.f32 %v1209, %v1209
      %v2229 = vmul.f32 %v1214, %v1214
      %v2230 = vmul.f32 %v1217, %v1217
      %v2231 = vmul.f32 %v1222, %v1222
      %v2232 = vmul.f32 %v1225, %v1225
      %v2233 = vmul.f32 %v1230, %v1230
      %v2234 = vmul.f32 %v1233, %v1233
      %v2235 = vmul.f32 %v1238, %v1238
      %v2236 = vmul.f32 %v1241, %v1241
      %v2237 = vmul.f32 %v1246, %v1246
      %v2238 = vmul.f32 %v1249, %v1249
      %v2239 = vmul.f32 %v1254, %v1254
      %v2240 = vmul.f32 %v1257, %v1257
      %v2241 = vmul.f32 %v1262, %v1262
      %v2242 = vmul.f32 %v1265, %v1265
      %v2243 = vmul.f32 %v1270, %v1270
      %v2244 = vmul.f32 %v1273, %v1273
      %v2245 = vmul.f32 %v1278, %v1278
      %v2246 = vmul.f32 %v1281, %v1281
      %v2247 = vmul.f32 %v1286, %v1286
      %v2248 = vmul.f32 %v1289, %v1289
      %v2249 = vmul.f32 %v1294, %v1294
      %v2250 = vmul.f32 %v1297, %v1297
      %v2251 = vmul.f32 %v1302, %v1302
      %v2252 = vmul.f32 %v1305, %v1305
      %v2253 = vmul.f32 %v1310, %v1310
      %v2254 = vmul.f32 %v1313, %v1313
      %v2255 = vmul.f32 %v1318, %v1318
      %v2256 = vmul.f32 %v1321, %v1321
      %v2257 = vmul.f32 %v1326, %v1326
      %v2258 = vmul.f32 %v1329, %v1329
      %v2259 = vmul.f32 %v1334, %v1334
      %v2260 = vmul.f32 %v1337, %v1337
      %v2261 = vmul.f32 %v1342, %v1342
      %v2262 = vmul.f32 %v1345, %v1345
      %v2263 = vmul.f32 %v1350, %v1350
      %v2264 = vmul.f32 %v1353, %v1353
      %v2265 = vmul.f32 %v1358, %v1358
      %v2266 = vmul.f32 %v1361, %v1361
      %v2267 = vmul.f32 %v1366, %v1366
      %v2268 = vmul.f32 %v1369, %v1369
      %v2269 = vmul.f32 %v1374, %v1374
      %v2270 = vmul.f32 %v1377, %v1377
      %v2271 = vmul.f32 %v1382, %v1382
      %v2272 = vmul.f32 %v1385, %v1385
      %v2273 = vmul.f32 %v1390, %v1390
      %v2274 = vmul.f32 %v1393, %v1393
      %v2275 = vmul.f32 %v1398, %v1398
      %v2276 = vmul.f32 %v1401, %v1401
      %v2277 = vmul.f32 %v1406, %v1406
      %v2278 = vmul.f32 %v1409, %v1409
      %v2279 = vmul.f32 %v1414, %v1414
      %v2280 = vmul.f32 %v1417, %v1417
      %v2281 = vmul.f32 %v1422, %v1422
      %v2282 = vmul.f32 %v1425, %v1425
      %v2283 = vmul.f32 %v1430, %v1430
      %v2284 = vmul.f32 %v1433, %v1433
      %v2285 = vmul.f32 %v1438, %v1438
      %v2286 = vmul.f32 %v1441, %v1441
      %v2287 = vmul.f32 %v1446, %v1446
      %v2288 = vmul.f32 %v1449, %v1449
      %v2289 = vsel %vm1066, %v2225, 0.0
      %v2290 = vsel %vm1066, %v2226, 0.0
      %v2291 = vadd.f32 %v2289, %v2290
      %v2292 = vsel %vm1066, %v2227, 0.0
      %v2293 = vadd.f32 %v2291, %v2292
      %v2294 = vsel %vm1066, %v2228, 0.0
      %v2295 = vadd.f32 %v2293, %v2294
      %v2296 = vsel %vm1066, %v2229, 0.0
      %v2297 = vadd.f32 %v2295, %v2296
      %v2298 = vsel %vm1066, %v2230, 0.0
      %v2299 = vadd.f32 %v2297, %v2298
      %v2300 = vsel %vm1066, %v2231, 0.0
      %v2301 = vadd.f32 %v2299, %v2300
      %v2302 = vsel %vm1066, %v2232, 0.0
      %v2303 = vadd.f32 %v2301, %v2302
      %v2304 = vsel %vm1066, %v2233, 0.0
      %v2305 = vadd.f32 %v2303, %v2304
      %v2306 = vsel %vm1066, %v2234, 0.0
      %v2307 = vadd.f32 %v2305, %v2306
      %v2308 = vsel %vm1066, %v2235, 0.0
      %v2309 = vadd.f32 %v2307, %v2308
      %v2310 = vsel %vm1066, %v2236, 0.0
      %v2311 = vadd.f32 %v2309, %v2310
      %v2312 = vsel %vm1066, %v2237, 0.0
      %v2313 = vadd.f32 %v2311, %v2312
      %v2314 = vsel %vm1066, %v2238, 0.0
      %v2315 = vadd.f32 %v2313, %v2314
      %v2316 = vsel %vm1066, %v2239, 0.0
      %v2317 = vadd.f32 %v2315, %v2316
      %v2318 = vsel %vm1066, %v2240, 0.0
      %v2319 = vadd.f32 %v2317, %v2318
      %v2320 = vsel %vm1066, %v2241, 0.0
      %v2321 = vadd.f32 %v2319, %v2320
      %v2322 = vsel %vm1066, %v2242, 0.0
      %v2323 = vadd.f32 %v2321, %v2322
      %v2324 = vsel %vm1066, %v2243, 0.0
      %v2325 = vadd.f32 %v2323, %v2324
      %v2326 = vsel %vm1066, %v2244, 0.0
      %v2327 = vadd.f32 %v2325, %v2326
      %v2328 = vsel %vm1066, %v2245, 0.0
      %v2329 = vadd.f32 %v2327, %v2328
      %v2330 = vsel %vm1066, %v2246, 0.0
      %v2331 = vadd.f32 %v2329, %v2330
      %v2332 = vsel %vm1066, %v2247, 0.0
      %v2333 = vadd.f32 %v2331, %v2332
      %v2334 = vsel %vm1066, %v2248, 0.0
      %v2335 = vadd.f32 %v2333, %v2334
      %v2336 = vsel %vm1066, %v2249, 0.0
      %v2337 = vadd.f32 %v2335, %v2336
      %v2338 = vsel %vm1066, %v2250, 0.0
      %v2339 = vadd.f32 %v2337, %v2338
      %v2340 = vsel %vm1066, %v2251, 0.0
      %v2341 = vadd.f32 %v2339, %v2340
      %v2342 = vsel %vm1066, %v2252, 0.0
      %v2343 = vadd.f32 %v2341, %v2342
      %v2344 = vsel %vm1066, %v2253, 0.0
      %v2345 = vadd.f32 %v2343, %v2344
      %v2346 = vsel %vm1066, %v2254, 0.0
      %v2347 = vadd.f32 %v2345, %v2346
      %v2348 = vsel %vm1066, %v2255, 0.0
      %v2349 = vadd.f32 %v2347, %v2348
      %v2350 = vsel %vm1066, %v2256, 0.0
      %v2351 = vadd.f32 %v2349, %v2350
      %v2352 = vsel %vm1066, %v2257, 0.0
      %v2353 = vadd.f32 %v2351, %v2352
      %v2354 = vsel %vm1066, %v2258, 0.0
      %v2355 = vadd.f32 %v2353, %v2354
      %v2356 = vsel %vm1066, %v2259, 0.0
      %v2357 = vadd.f32 %v2355, %v2356
      %v2358 = vsel %vm1066, %v2260, 0.0
      %v2359 = vadd.f32 %v2357, %v2358
      %v2360 = vsel %vm1066, %v2261, 0.0
      %v2361 = vadd.f32 %v2359, %v2360
      %v2362 = vsel %vm1066, %v2262, 0.0
      %v2363 = vadd.f32 %v2361, %v2362
      %v2364 = vsel %vm1066, %v2263, 0.0
      %v2365 = vadd.f32 %v2363, %v2364
      %v2366 = vsel %vm1066, %v2264, 0.0
      %v2367 = vadd.f32 %v2365, %v2366
      %v2368 = vsel %vm1066, %v2265, 0.0
      %v2369 = vadd.f32 %v2367, %v2368
      %v2370 = vsel %vm1066, %v2266, 0.0
      %v2371 = vadd.f32 %v2369, %v2370
      %v2372 = vsel %vm1066, %v2267, 0.0
      %v2373 = vadd.f32 %v2371, %v2372
      %v2374 = vsel %vm1066, %v2268, 0.0
      %v2375 = vadd.f32 %v2373, %v2374
      %v2376 = vsel %vm1066, %v2269, 0.0
      %v2377 = vadd.f32 %v2375, %v2376
      %v2378 = vsel %vm1066, %v2270, 0.0
      %v2379 = vadd.f32 %v2377, %v2378
      %v2380 = vsel %vm1066, %v2271, 0.0
      %v2381 = vadd.f32 %v2379, %v2380
      %v2382 = vsel %vm1066, %v2272, 0.0
      %v2383 = vadd.f32 %v2381, %v2382
      %v2384 = vsel %vm1066, %v2273, 0.0
      %v2385 = vadd.f32 %v2383, %v2384
      %v2386 = vsel %vm1066, %v2274, 0.0
      %v2387 = vadd.f32 %v2385, %v2386
      %v2388 = vsel %vm1066, %v2275, 0.0
      %v2389 = vadd.f32 %v2387, %v2388
      %v2390 = vsel %vm1066, %v2276, 0.0
      %v2391 = vadd.f32 %v2389, %v2390
      %v2392 = vsel %vm1066, %v2277, 0.0
      %v2393 = vadd.f32 %v2391, %v2392
      %v2394 = vsel %vm1066, %v2278, 0.0
      %v2395 = vadd.f32 %v2393, %v2394
      %v2396 = vsel %vm1066, %v2279, 0.0
      %v2397 = vadd.f32 %v2395, %v2396
      %v2398 = vsel %vm1066, %v2280, 0.0
      %v2399 = vadd.f32 %v2397, %v2398
      %v2400 = vsel %vm1066, %v2281, 0.0
      %v2401 = vadd.f32 %v2399, %v2400
      %v2402 = vsel %vm1066, %v2282, 0.0
      %v2403 = vadd.f32 %v2401, %v2402
      %v2404 = vsel %vm1066, %v2283, 0.0
      %v2405 = vadd.f32 %v2403, %v2404
      %v2406 = vsel %vm1066, %v2284, 0.0
      %v2407 = vadd.f32 %v2405, %v2406
      %v2408 = vsel %vm1066, %v2285, 0.0
      %v2409 = vadd.f32 %v2407, %v2408
      %v2410 = vsel %vm1066, %v2286, 0.0
      %v2411 = vadd.f32 %v2409, %v2410
      %v2412 = vsel %vm1066, %v2287, 0.0
      %v2413 = vadd.f32 %v2411, %v2412
      %v2414 = vsel %vm1066, %v2288, 0.0
      %v2415 = vadd.f32 %v2413, %v2414
      %v2416 = vrot.slane %v2415, 4
      %v2417 = vadd.f32 %v2415, %v2416
      %v2418 = vrot.slane %v2417, 2
      %v2419 = vadd.f32 %v2417, %v2418
      %v2420 = vrot.slane %v2419, 1
      %v2421 = vadd.f32 %v2419, %v2420
      %2423 = vrot.lane.b32.xlu0 %v2421, 64
      %v2424 = vpop.permute.xlu0 %2423
      %v2426 = vsel %vm1066, %v2224, %v2424
      %v2427 = vlaneseq
      %v2428 = vshrl.u32 %v2427, 7
      %v2429 = vsub.s32 0, %v2428
      %v2430 = vrot.slane %v2426, %v2429
      %2431 = vst [vmem:[%s339] sm:$0xff] %v2430
      %s2432 = smul.u32 64, %s23
      %p2433 = scmp.lt.s32.totalorder %s22, 1
      %s2434 = scalar_select %p2433, %s22, 1
      %p2435 = scmp.lt.s32.totalorder %s2432, 127
      %s2436 = scalar_select %p2435, %s2432, 127
      %s2437 = smul.addr %s2434, 128
      %s2438 = sadd.s32 %s2436, %s2437
      %s2439 = smul.addr %s2438, 4
      %s2440 = scalar_lea.vmem %s5, %s2439
      %p2441 = scmp.lt.s32.totalorder %s22, 1
      %s2442 = scalar_select %p2441, %s22, 1
      %p2443 = scmp.lt.s32.totalorder %s23, 1
      %s2444 = scalar_select %p2443, %s23, 1
      %s2445 = smul.addr %s2442, 2
      %s2446 = sadd.s32 %s2444, %s2445
      %s2447 = smul.addr %s2446, 8
      %s2448 = scalar_lea.vmem %s6, %s2447
      // Predicated region
      $region41: #{residual_cbn_decoder_forward.11} parent=39 // pred_check
        %p2449 = pneg %p172
      $region42: #{residual_cbn_decoder_forward.11} parent=39 // pred_check_branch
        %2451 = sbr.rel (%p2449) target = $region44
      $region43: #{residual_cbn_decoder_forward.11} parent=39 // pred_region
        %s2452 = smul.u32 64, %s23
      $region44: #{residual_cbn_decoder_forward.11} parent=39 // pred_fallthru
        _
      // Predicated region
      $region45: #{residual_cbn_decoder_forward.11} parent=39 // pred_check
        %p2453 = pneg %p200
      $region46: #{residual_cbn_decoder_forward.11} parent=39 // pred_check_branch
        %2455 = sbr.rel (%p2453) target = $region48
      $region47: #{residual_cbn_decoder_forward.11} parent=39 // pred_region
        _
      $region48: #{residual_cbn_decoder_forward.11} parent=39 // pred_fallthru
        _
    $region40: #{residual_cbn_decoder_forward.11} parent=5 // pred_fallthru
      _
    %p2456 = scmp.le.s32.totalorder 2, %s13
    // Predicated region
    $region49: #{residual_cbn_decoder_forward.11} parent=5 // pred_check
      %p2457 = pneg %p2456
    $region50: #{residual_cbn_decoder_forward.11} parent=5 // pred_check_branch
      %2459 = sbr.rel (%p2457) target = $region52
    $region51: #{residual_cbn_decoder_forward.11} parent=5 // pred_region
      %s2460 = ssub.s32 %s13, 2
      // Predicated region
      $region53: #{residual_cbn_decoder_forward.11} parent=51 // pred_check
        %p2461 = pneg %p178
      $region54: #{residual_cbn_decoder_forward.11} parent=51 // pred_check_branch
        %2463 = sbr.rel (%p2461) target = $region56
      $region55: #{residual_cbn_decoder_forward.11} parent=51 // pred_region
        %s2464 = smul.u32 64, %s25
        %p2465 = scmp.lt.s32.totalorder %s24, 1
        %s2466 = scalar_select %p2465, %s24, 1
        %p2467 = scmp.lt.s32.totalorder %s2464, 127
        %s2468 = scalar_select %p2467, %s2464, 127
        %s2469 = smul.addr %s2466, 128
        %s2470 = sadd.s32 %s2468, %s2469
        %s2471 = smul.addr %s2470, 4
        %s2472 = scalar_lea.vmem %s5, %s2471
      $region56: #{residual_cbn_decoder_forward.11} parent=51 // pred_fallthru
        _
      // Predicated region
      $region57: #{residual_cbn_decoder_forward.11} parent=51 // pred_check
        %p2473 = pneg %p206
      $region58: #{residual_cbn_decoder_forward.11} parent=51 // pred_check_branch
        %2475 = sbr.rel (%p2473) target = $region60
      $region59: #{residual_cbn_decoder_forward.11} parent=51 // pred_region
        %p2476 = scmp.lt.s32.totalorder %s24, 1
        %s2477 = scalar_select %p2476, %s24, 1
        %p2478 = scmp.lt.s32.totalorder %s25, 1
        %s2479 = scalar_select %p2478, %s25, 1
        %s2480 = smul.addr %s2477, 2
        %s2481 = sadd.s32 %s2479, %s2480
        %s2482 = smul.addr %s2481, 8
        %s2483 = scalar_lea.vmem %s6, %s2482
      $region60: #{residual_cbn_decoder_forward.11} parent=51 // pred_fallthru
        _
    $region52: #{residual_cbn_decoder_forward.11} parent=5 // pred_fallthru
      _
  $region6: #{residual_cbn_decoder_forward.11} parent=0 // loop_footer
    %s17 = sadd.s32 1, %s13
  $region7: #{residual_cbn_decoder_forward.11} parent=0 // loop_footer_branch
    %12 = sbr.rel target = $region3
  $region8: #{residual_cbn_decoder_forward.11} parent=0 // loop_exit
    _

</llo_original>
